<compile_context>
chip_gen: v5e
topology: v5e:2x2
jax: 0.10.0
libtpu: 0.0.40
codegen_flags: <defaults>
</compile_context>

<pallas_src>
import functools
import math

import jax
import jax.numpy as jnp
import numpy as np
from jax.experimental import pallas as pl
from jax.experimental.pallas import tpu as pltpu


# ----------------------------------------------------------------------------
# Pallas kernel: ResnetBlockFC x n_blocks with local max-pool between blocks
# -> fc_c -> scatter_mean onto the 'xz' plane (emitted as (c_dim, n_vox)).
# ----------------------------------------------------------------------------
def _pointnet_kernel(idx_sm,                       # (B, T) int32 in SMEM (scalar prefetch)
                     net0_ref, idxv_ref,           # (1,T,2H) f32, (1,T,1) int32
                     w0_ref, b0_ref, w1_ref, b1_ref, wsc_ref, wc_ref, bc_ref,
                     plane_ref,                    # (1, c_dim, n_vox) f32
                     net2h_ref, cur_ref, vox_ref, onehot_ref,
                     *, n_vox, n_blocks, hidden):
    f32, bf16 = jnp.float32, jnp.bfloat16
    H = hidden
    b = pl.program_id(0)

    x0 = net0_ref[0]                               # (T, 2H) f32 — fc_pos output
    T = x0.shape[0]

    # One-hot membership (T points x n_vox voxels), built once, staged in VMEM
    # as bf16 (0/1 exact).  Used for the MXU gather-back and the scatter-mean.
    onehot_ref[...] = (jax.lax.broadcasted_iota(jnp.int32, (T, n_vox), 1)
                       == idxv_ref[0]).astype(bf16)

    def linear(x, w, bias):                        # bf16 MXU inputs, f32 accum
        return jnp.dot(x.astype(bf16), w, preferred_element_type=f32) + bias

    def resblock(x, i):
        # ResnetBlockFC(2H, H): fc_0(ReLU(x)) -> fc_1(ReLU(.)) + shortcut(x)
        h = jnp.maximum(x, 0.0)
        net = linear(h, w0_ref[i], b0_ref[i])
        dx = linear(jnp.maximum(net, 0.0), w1_ref[i], b1_ref[i])
        x_s = jnp.dot(x.astype(bf16), wsc_ref[i], preferred_element_type=f32)
        return x_s + dx

    net = resblock(x0, 0)                          # (T, H) f32

    for i in range(1, n_blocks):
        cur_ref[...] = net                         # scatter source (full-lane rows)
        net2h_ref[:, :H] = net                     # first half of next block input

        # scatter_max as a running max over points.  -1e30 (not -inf) so the
        # one-hot gather below stays finite (0 * -inf would be NaN); activations
        # can never reach -1e30, so the max result is unaffected.
        vox_ref[...] = jnp.full((n_vox, H), -1e30, f32)

        @pl.loop(0, T)
        def _(t):
            v = idx_sm[b, t]                       # SMEM scalar read
            vox_ref[pl.ds(v, 1), :] = jnp.maximum(vox_ref[pl.ds(v, 1), :],
                                                  cur_ref[pl.ds(t, 1), :])

        # gather back per point on the MXU (exact row select via one-hot).
        pooled = jnp.dot(onehot_ref[...], vox_ref[...].astype(bf16),
                         preferred_element_type=f32)           # (T, H)
        net2h_ref[:, H:] = pooled
        net = resblock(net2h_ref[...], i)          # (T, H)

    c = linear(net, wc_ref[...], bc_ref[...])      # (T, c_dim) f32

    # generate_plane_features: scatter_mean of c, produced lane-dense as
    # (c_dim, n_vox) by contracting T on both operands (no output transpose).
    dn = (((0,), (0,)), ((), ()))
    sums = jax.lax.dot_general(c.astype(bf16), onehot_ref[...], dn,
                               preferred_element_type=f32)     # (c_dim, n_vox)
    counts = jnp.dot(jnp.ones((1, T), bf16), onehot_ref[...],
                     preferred_element_type=f32)               # (1, n_vox), exact ints
    mean = jnp.where(counts > 0.0, sums / jnp.maximum(counts, 1.0), 0.0)
    plane_ref[0] = mean.astype(plane_ref.dtype)


# ----------------------------------------------------------------------------
# Wrapper
# ----------------------------------------------------------------------------
def patch_local_pool_pointnet(p, idx, params, *, reso_plane, hidden_dim,
                              c_dim, n_blocks):
    B, T, D = p.shape
    H = hidden_dim
    n_vox = reso_plane ** 2
    bf16 = jnp.bfloat16

    # fc_pos: tiny D(=3)-wide contraction, done in XLA so the kernel streams a
    # dense (B, T, 2H) tensor instead of 128-lane zero-padded points.
    net0 = (jnp.matmul(p, params['w_pos']) + params['b_pos']).astype(jnp.float32)

    idx_flat = idx.reshape(B, T).astype(jnp.int32)   # SMEM copy for the point loop
    idx_col = idx_flat[..., None]                    # (B, T, 1) VMEM copy for one-hot

    # MXU inputs in bf16 (halves weight DMA + VMEM); biases stay f32.
    w0 = params['w0'].astype(bf16)
    w1 = params['w1'].astype(bf16)
    w_sc = params['w_sc'].astype(bf16)
    w_c = params['w_c'].astype(bf16)

    kernel = functools.partial(_pointnet_kernel, n_vox=n_vox,
                               n_blocks=n_blocks, hidden=H)

    def const_spec(arr):
        zeros = (0,) * arr.ndim
        return pl.BlockSpec(arr.shape, lambda b, *_: zeros)

    plane = pl.pallas_call(
        kernel,
        out_shape=jax.ShapeDtypeStruct((B, c_dim, n_vox), jnp.float32),
        grid_spec=pltpu.PrefetchScalarGridSpec(
            num_scalar_prefetch=1,                 # idx_flat -> SMEM
            grid=(B,),
            in_specs=[
                pl.BlockSpec((1, T, 2 * H), lambda b, *_: (b, 0, 0)),  # net0
                pl.BlockSpec((1, T, 1), lambda b, *_: (b, 0, 0)),      # idx column
                const_spec(w0), const_spec(params['b0']),
                const_spec(w1), const_spec(params['b1']),
                const_spec(w_sc),
                const_spec(w_c), const_spec(params['b_c']),
            ],
            out_specs=pl.BlockSpec((1, c_dim, n_vox), lambda b, *_: (b, 0, 0)),
            scratch_shapes=[
                pltpu.VMEM((T, 2 * H), jnp.float32),    # [net | pooled] block input
                pltpu.VMEM((T, H), jnp.float32),        # scatter-source rows
                pltpu.VMEM((n_vox, H), jnp.float32),    # per-voxel running max
                pltpu.VMEM((T, n_vox), jnp.bfloat16),   # one-hot membership
            ],
        ),
        compiler_params=pltpu.CompilerParams(
            dimension_semantics=("parallel",),
            vmem_limit_bytes=32 * 1024 * 1024),
    )(idx_flat, net0, idx_col, w0, params['b0'], w1, params['b1'],
      w_sc, w_c, params['b_c'])

    # Already channel-major: just reshape to PyTorch NCHW (B, c_dim, reso, reso)
    fea_plane = plane.reshape(B, c_dim, reso_plane, reso_plane)
    return {'xz': fea_plane}


# ----------------------------------------------------------------------------
# Deterministic parameter init (torch.nn.Linear default U(-1/sqrt(fan_in), ...))
# Weights stored as (in, out); y = x @ W + b.
# TODO(synk): PyTorch ResnetBlockFC zero-initializes fc_1.weight; uniform init
# is used here (irrelevant for kernel math, only for matching pretrained nets).
# ----------------------------------------------------------------------------
def init_params(key, dim, hidden, c_dim, n_blocks):
    def lin_init(k, fi, fo, bias=True):
        k1, k2 = jax.random.split(k)
        bound = 1.0 / math.sqrt(fi)
        w = jax.random.uniform(k1, (fi, fo), jnp.float32, -bound, bound)
        b = (jax.random.uniform(k2, (1, fo), jnp.float32, -bound, bound)
             if bias else None)
        return w, b

    ks = jax.random.split(key, 2 + 3 * n_blocks)
    w_pos, b_pos = lin_init(ks[0], dim, 2 * hidden)
    w_c, b_c = lin_init(ks[1], hidden, c_dim)
    w0s, b0s, w1s, b1s, wscs = [], [], [], [], []
    for i in range(n_blocks):
        w0, b0 = lin_init(ks[2 + 3 * i], 2 * hidden, hidden)
        w1, b1 = lin_init(ks[3 + 3 * i], hidden, hidden)
        wsc, _ = lin_init(ks[4 + 3 * i], 2 * hidden, hidden, bias=False)
        w0s.append(w0); b0s.append(b0)
        w1s.append(w1); b1s.append(b1)
        wscs.append(wsc)
    return {
        'w_pos': w_pos, 'b_pos': b_pos,
        'w0': jnp.stack(w0s), 'b0': jnp.stack(b0s),
        'w1': jnp.stack(w1s), 'b1': jnp.stack(b1s),
        'w_sc': jnp.stack(wscs),
        'w_c': w_c, 'b_c': b_c,
    }


# ----------------------------------------------------------------------------
# Pure-JAX reference (mirrors the PyTorch forward).  mm_dtype controls the
# matmul-input precision: float32 reproduces the original module exactly;
# bfloat16 mirrors the kernel's MXU precision policy (f32 accumulation).
# ----------------------------------------------------------------------------
def ref_forward(p, idx, params, *, reso_plane, c_dim, n_blocks,
                mm_dtype=jnp.float32):
    B, T, D = p.shape
    n_vox = reso_plane ** 2
    f32 = jnp.float32

    def mm(x, w):
        return jnp.matmul(x.astype(mm_dtype), w.astype(mm_dtype),
                          preferred_element_type=f32)

    def block(x, i):
        h = jnp.maximum(x, 0.0)
        n1 = mm(h, params['w0'][i]) + params['b0'][i, 0]
        dx = mm(jnp.maximum(n1, 0.0), params['w1'][i]) + params['b1'][i, 0]
        return mm(x, params['w_sc'][i]) + dx

    outs = []
    for bi in range(B):
        x = p[bi]
        ib = idx[bi, 0]
        net = x @ params['w_pos'] + params['b_pos'][0]      # fc_pos stays f32
        net = block(net, 0)
        for i in range(1, n_blocks):
            vox = jnp.full((n_vox, net.shape[1]), -jnp.inf,
                           f32).at[ib].max(net)
            pooled = vox[ib]
            net = jnp.concatenate([net, pooled], axis=1)
            net = block(net, i)
        c = mm(net, params['w_c']) + params['b_c'][0]
        c_q = c.astype(mm_dtype).astype(f32)                # kernel scatters bf16 c
        sums = jnp.zeros((n_vox, c_dim), f32).at[ib].add(c_q)
        counts = jnp.zeros((n_vox, 1), f32).at[ib].add(1.0)
        mean = jnp.where(counts > 0, sums / jnp.maximum(counts, 1.0), 0.0)
        outs.append(mean.T.reshape(c_dim, reso_plane, reso_plane))
    return jnp.stack(outs, 0)


if __name__ == "__main__":
    # module defaults: hidden_dim=128, c_dim=128 (already lane-dense channels)
    B, T, D = 2, 128, 3
    hidden, c_dim, n_blocks, reso = 128, 128, 5, 16

    key = jax.random.PRNGKey(0)
    k_p, k_i, k_par = jax.random.split(key, 3)
    points = jax.random.uniform(k_p, (B, T, D), jnp.float32, -0.5, 0.5)
    index_xz = jax.random.randint(k_i, (B, 1, T), 0, reso * reso, jnp.int32)
    params = init_params(k_par, D, hidden, c_dim, n_blocks)

    out = patch_local_pool_pointnet(points, index_xz, params,
                                    reso_plane=reso, hidden_dim=hidden,
                                    c_dim=c_dim, n_blocks=n_blocks)
    fea = jax.block_until_ready(out['xz'])
    assert fea.shape == (B, c_dim, reso, reso)

    # Verify against a reference that mirrors the PyTorch forward with the same
    # bf16-MXU-input / f32-accumulate precision policy as the kernel.  (Against
    # the pure-f32 module the kernel differs only by bf16-level matmul rounding.)
    ref = ref_forward(points, index_xz, params, reso_plane=reso, c_dim=c_dim,
                      n_blocks=n_blocks, mm_dtype=jnp.bfloat16)
    np.testing.assert_allclose(np.asarray(fea), np.asarray(ref),
                               rtol=5e-3, atol=5e-3)
    print("KERNEL_OK")
</pallas_src>

<mosaic_0001>
module attributes {stable_mosaic.version = 11 : i64} {
  func.func @_pointnet_kernel(%arg0: i32, %arg1: memref<2x128xi32, #tpu.memory_space<smem>>, %arg2: memref<1x128x256xf32, #tpu.memory_space<vmem>>, %arg3: memref<1x128x1xi32, #tpu.memory_space<vmem>>, %arg4: memref<5x256x128xbf16, #tpu.memory_space<vmem>>, %arg5: memref<5x1x128xf32, #tpu.memory_space<vmem>>, %arg6: memref<5x128x128xbf16, #tpu.memory_space<vmem>>, %arg7: memref<5x1x128xf32, #tpu.memory_space<vmem>>, %arg8: memref<5x256x128xbf16, #tpu.memory_space<vmem>>, %arg9: memref<128x128xbf16, #tpu.memory_space<vmem>>, %arg10: memref<1x128xf32, #tpu.memory_space<vmem>>, %arg11: memref<1x128x256xf32, #tpu.memory_space<vmem>>, %arg12: memref<128x256xf32, #tpu.memory_space<vmem>>, %arg13: memref<128x128xf32, #tpu.memory_space<vmem>>, %arg14: memref<256x128xf32, #tpu.memory_space<vmem>>, %arg15: memref<128x256xbf16, #tpu.memory_space<vmem>>) attributes {dimension_semantics = [#tpu.dimension_semantics<parallel>], iteration_bounds = array<i64: 2>, scalar_prefetch = 1 : i64, scratch_operands = 4 : i64, tpu.core_type = #tpu.core_type<tc>, window_params = [{transform_indices = @transform_0, window_bounds = array<i64: 1, 128, 256>}, {transform_indices = @transform_1, window_bounds = array<i64: 1, 128, 1>}, {pipeline_mode = #tpu.pipeline_mode<synchronous>, transform_indices = @transform_2, window_bounds = array<i64: 5, 256, 128>}, {pipeline_mode = #tpu.pipeline_mode<synchronous>, transform_indices = @transform_3, window_bounds = array<i64: 5, 1, 128>}, {pipeline_mode = #tpu.pipeline_mode<synchronous>, transform_indices = @transform_4, window_bounds = array<i64: 5, 128, 128>}, {pipeline_mode = #tpu.pipeline_mode<synchronous>, transform_indices = @transform_5, window_bounds = array<i64: 5, 1, 128>}, {pipeline_mode = #tpu.pipeline_mode<synchronous>, transform_indices = @transform_6, window_bounds = array<i64: 5, 256, 128>}, {pipeline_mode = #tpu.pipeline_mode<synchronous>, transform_indices = @transform_7, window_bounds = array<i64: 128, 128>}, {pipeline_mode = #tpu.pipeline_mode<synchronous>, transform_indices = @transform_8, window_bounds = array<i64: 1, 128>}, {transform_indices = @transform_9, window_bounds = array<i64: 1, 128, 256>}]} {
    %c0 = arith.constant 0 : index
    %c0_0 = arith.constant 0 : index
    %c0_1 = arith.constant 0 : index
    %0 = vector.load %arg2[%c0, %c0_0, %c0_1] : memref<1x128x256xf32, #tpu.memory_space<vmem>>, vector<1x128x256xf32>
    %1 = vector.shape_cast %0 : vector<1x128x256xf32> to vector<128x256xf32>
    %2 = tpu.iota {dimensions = array<i32: 1>} : vector<128x256xi32>
    %c0_2 = arith.constant 0 : index
    %c0_3 = arith.constant 0 : index
    %c0_4 = arith.constant 0 : index
    %3 = vector.load %arg3[%c0_2, %c0_3, %c0_4] : memref<1x128x1xi32, #tpu.memory_space<vmem>>, vector<1x128x1xi32>
    %4 = vector.shape_cast %3 : vector<1x128x1xi32> to vector<128x1xi32>
    %5 = vector.broadcast %4 : vector<128x1xi32> to vector<128x256xi32>
    %6 = arith.cmpi eq, %2, %5 : vector<128x256xi32>
    %7 = arith.extui %6 : vector<128x256xi1> to vector<128x256xi32>
    %8 = arith.sitofp %7 : vector<128x256xi32> to vector<128x256xf32>
    %9 = arith.truncf %8 : vector<128x256xf32> to vector<128x256xbf16>
    %c0_5 = arith.constant 0 : index
    %c0_6 = arith.constant 0 : index
    %10 = vector.load %arg15[%c0_5, %c0_6] : memref<128x256xbf16, #tpu.memory_space<vmem>>, vector<128x256xbf16>
    tpu.vector_store %arg15[%c0_5, %c0_6], %9 {strides = array<i32>} : memref<128x256xbf16, #tpu.memory_space<vmem>>, vector<128x256xbf16>,
    %cst = arith.constant 0.000000e+00 : f32
    %11 = vector.broadcast %cst : f32 to vector<128x256xf32>
    %12 = arith.maximumf %1, %11 : vector<128x256xf32>
    %c0_7 = arith.constant 0 : index
    %c0_8 = arith.constant 0 : index
    %c0_9 = arith.constant 0 : index
    %13 = vector.load %arg4[%c0_7, %c0_8, %c0_9] : memref<5x256x128xbf16, #tpu.memory_space<vmem>>, vector<1x256x128xbf16>
    %14 = vector.shape_cast %13 : vector<1x256x128xbf16> to vector<256x128xbf16>
    %c0_10 = arith.constant 0 : index
    %c0_11 = arith.constant 0 : index
    %c0_12 = arith.constant 0 : index
    %15 = vector.load %arg5[%c0_10, %c0_11, %c0_12] : memref<5x1x128xf32, #tpu.memory_space<vmem>>, vector<1x1x128xf32>
    %16 = vector.shape_cast %15 : vector<1x1x128xf32> to vector<1x128xf32>
    %17 = arith.truncf %12 : vector<128x256xf32> to vector<128x256xbf16>
    %cst_13 = arith.constant dense<0.000000e+00> : vector<128x128xf32>
    %18 = tpu.matmul %17, %14, %cst_13 {dimension_numbers = #tpu.dot_dimension_numbers<[1], [0], [0], [1], [0, 0, 1, 1], [], []>} : vector<128x256xbf16>, vector<256x128xbf16>, vector<128x128xf32> -> vector<128x128xf32>
    %19 = vector.broadcast %16 : vector<1x128xf32> to vector<128x128xf32>
    %20 = arith.addf %18, %19 : vector<128x128xf32>
    %cst_14 = arith.constant 0.000000e+00 : f32
    %21 = vector.broadcast %cst_14 : f32 to vector<128x128xf32>
    %22 = arith.maximumf %20, %21 : vector<128x128xf32>
    %c0_15 = arith.constant 0 : index
    %c0_16 = arith.constant 0 : index
    %c0_17 = arith.constant 0 : index
    %23 = vector.load %arg6[%c0_15, %c0_16, %c0_17] : memref<5x128x128xbf16, #tpu.memory_space<vmem>>, vector<1x128x128xbf16>
    %24 = vector.shape_cast %23 : vector<1x128x128xbf16> to vector<128x128xbf16>
    %c0_18 = arith.constant 0 : index
    %c0_19 = arith.constant 0 : index
    %c0_20 = arith.constant 0 : index
    %25 = vector.load %arg7[%c0_18, %c0_19, %c0_20] : memref<5x1x128xf32, #tpu.memory_space<vmem>>, vector<1x1x128xf32>
    %26 = vector.shape_cast %25 : vector<1x1x128xf32> to vector<1x128xf32>
    %27 = arith.truncf %22 : vector<128x128xf32> to vector<128x128xbf16>
    %cst_21 = arith.constant dense<0.000000e+00> : vector<128x128xf32>
    %28 = tpu.matmul %27, %24, %cst_21 {dimension_numbers = #tpu.dot_dimension_numbers<[1], [0], [0], [1], [0, 0, 1, 1], [], []>} : vector<128x128xbf16>, vector<128x128xbf16>, vector<128x128xf32> -> vector<128x128xf32>
    %29 = vector.broadcast %26 : vector<1x128xf32> to vector<128x128xf32>
    %30 = arith.addf %28, %29 : vector<128x128xf32>
    %31 = arith.truncf %1 : vector<128x256xf32> to vector<128x256xbf16>
    %c0_22 = arith.constant 0 : index
    %c0_23 = arith.constant 0 : index
    %c0_24 = arith.constant 0 : index
    %32 = vector.load %arg8[%c0_22, %c0_23, %c0_24] : memref<5x256x128xbf16, #tpu.memory_space<vmem>>, vector<1x256x128xbf16>
    %33 = vector.shape_cast %32 : vector<1x256x128xbf16> to vector<256x128xbf16>
    %cst_25 = arith.constant dense<0.000000e+00> : vector<128x128xf32>
    %34 = tpu.matmul %31, %33, %cst_25 {dimension_numbers = #tpu.dot_dimension_numbers<[1], [0], [0], [1], [0, 0, 1, 1], [], []>} : vector<128x256xbf16>, vector<256x128xbf16>, vector<128x128xf32> -> vector<128x128xf32>
    %35 = arith.addf %34, %30 : vector<128x128xf32>
    %c0_26 = arith.constant 0 : index
    %c0_27 = arith.constant 0 : index
    %36 = vector.load %arg13[%c0_26, %c0_27] : memref<128x128xf32, #tpu.memory_space<vmem>>, vector<128x128xf32>
    tpu.vector_store %arg13[%c0_26, %c0_27], %35 {strides = array<i32>} : memref<128x128xf32, #tpu.memory_space<vmem>>, vector<128x128xf32>,
    %c0_28 = arith.constant 0 : index
    %c0_29 = arith.constant 0 : index
    %37 = vector.load %arg12[%c0_28, %c0_29] : memref<128x256xf32, #tpu.memory_space<vmem>>, vector<128x128xf32>
    tpu.vector_store %arg12[%c0_28, %c0_29], %35 {strides = array<i32>} : memref<128x256xf32, #tpu.memory_space<vmem>>, vector<128x128xf32>,
    %cst_30 = arith.constant -1.000000e+30 : f32
    %38 = vector.broadcast %cst_30 : f32 to vector<256x128xf32>
    %c0_31 = arith.constant 0 : index
    %c0_32 = arith.constant 0 : index
    %39 = vector.load %arg14[%c0_31, %c0_32] : memref<256x128xf32, #tpu.memory_space<vmem>>, vector<256x128xf32>
    tpu.vector_store %arg14[%c0_31, %c0_32], %38 {strides = array<i32>} : memref<256x128xf32, #tpu.memory_space<vmem>>, vector<256x128xf32>,
    %c0_i32 = arith.constant 0 : i32
    %c128_i32 = arith.constant 128 : i32
    %40 = arith.addi %c0_i32, %c128_i32 : i32
    %c1_i32 = arith.constant 1 : i32
    scf.for %arg16 = %c0_i32 to %40 step %c1_i32  : i32 {
      %c1_i32_196 = arith.constant 1 : i32
      %205 = arith.muli %arg16, %c1_i32_196 : i32
      %c0_i32_197 = arith.constant 0 : i32
      %206 = arith.addi %c0_i32_197, %205 : i32
      %207 = arith.index_cast %arg0 : i32 to index
      %208 = arith.index_cast %206 : i32 to index
      %209 = memref.load %arg1[%207, %208] : memref<2x128xi32, #tpu.memory_space<smem>>
      %210 = arith.index_cast %209 : i32 to index
      %c0_198 = arith.constant 0 : index
      %211 = vector.load %arg14[%210, %c0_198] : memref<256x128xf32, #tpu.memory_space<vmem>>, vector<1x128xf32>
      %212 = arith.index_cast %206 : i32 to index
      %c0_199 = arith.constant 0 : index
      %213 = vector.load %arg13[%212, %c0_199] : memref<128x128xf32, #tpu.memory_space<vmem>>, vector<1x128xf32>
      %214 = arith.maximumf %211, %213 : vector<1x128xf32>
      %215 = arith.index_cast %209 : i32 to index
      %c0_200 = arith.constant 0 : index
      %216 = vector.load %arg14[%215, %c0_200] : memref<256x128xf32, #tpu.memory_space<vmem>>, vector<1x128xf32>
      tpu.vector_store %arg14[%215, %c0_200], %214 {strides = array<i32>} : memref<256x128xf32, #tpu.memory_space<vmem>>, vector<1x128xf32>,
    }
    %c128_i32_33 = arith.constant 128 : i32
    %c0_34 = arith.constant 0 : index
    %c0_35 = arith.constant 0 : index
    %41 = vector.load %arg15[%c0_34, %c0_35] : memref<128x256xbf16, #tpu.memory_space<vmem>>, vector<128x256xbf16>
    %c0_36 = arith.constant 0 : index
    %c0_37 = arith.constant 0 : index
    %42 = vector.load %arg14[%c0_36, %c0_37] : memref<256x128xf32, #tpu.memory_space<vmem>>, vector<256x128xf32>
    %43 = arith.truncf %42 : vector<256x128xf32> to vector<256x128xbf16>
    %cst_38 = arith.constant dense<0.000000e+00> : vector<128x128xf32>
    %44 = tpu.matmul %41, %43, %cst_38 {dimension_numbers = #tpu.dot_dimension_numbers<[1], [0], [0], [1], [0, 0, 1, 1], [], []>} : vector<128x256xbf16>, vector<256x128xbf16>, vector<128x128xf32> -> vector<128x128xf32>
    %c0_39 = arith.constant 0 : index
    %c128 = arith.constant 128 : index
    %45 = vector.load %arg12[%c0_39, %c128] : memref<128x256xf32, #tpu.memory_space<vmem>>, vector<128x128xf32>
    tpu.vector_store %arg12[%c0_39, %c128], %44 {strides = array<i32>} : memref<128x256xf32, #tpu.memory_space<vmem>>, vector<128x128xf32>,
    %c0_40 = arith.constant 0 : index
    %c0_41 = arith.constant 0 : index
    %46 = vector.load %arg12[%c0_40, %c0_41] : memref<128x256xf32, #tpu.memory_space<vmem>>, vector<128x256xf32>
    %cst_42 = arith.constant 0.000000e+00 : f32
    %47 = vector.broadcast %cst_42 : f32 to vector<128x256xf32>
    %48 = arith.maximumf %46, %47 : vector<128x256xf32>
    %c1 = arith.constant 1 : index
    %c0_43 = arith.constant 0 : index
    %c0_44 = arith.constant 0 : index
    %49 = vector.load %arg4[%c1, %c0_43, %c0_44] : memref<5x256x128xbf16, #tpu.memory_space<vmem>>, vector<1x256x128xbf16>
    %50 = vector.shape_cast %49 : vector<1x256x128xbf16> to vector<256x128xbf16>
    %c1_45 = arith.constant 1 : index
    %c0_46 = arith.constant 0 : index
    %c0_47 = arith.constant 0 : index
    %51 = vector.load %arg5[%c1_45, %c0_46, %c0_47] : memref<5x1x128xf32, #tpu.memory_space<vmem>>, vector<1x1x128xf32>
    %52 = vector.shape_cast %51 : vector<1x1x128xf32> to vector<1x128xf32>
    %53 = arith.truncf %48 : vector<128x256xf32> to vector<128x256xbf16>
    %cst_48 = arith.constant dense<0.000000e+00> : vector<128x128xf32>
    %54 = tpu.matmul %53, %50, %cst_48 {dimension_numbers = #tpu.dot_dimension_numbers<[1], [0], [0], [1], [0, 0, 1, 1], [], []>} : vector<128x256xbf16>, vector<256x128xbf16>, vector<128x128xf32> -> vector<128x128xf32>
    %55 = vector.broadcast %52 : vector<1x128xf32> to vector<128x128xf32>
    %56 = arith.addf %54, %55 : vector<128x128xf32>
    %cst_49 = arith.constant 0.000000e+00 : f32
    %57 = vector.broadcast %cst_49 : f32 to vector<128x128xf32>
    %58 = arith.maximumf %56, %57 : vector<128x128xf32>
    %c1_50 = arith.constant 1 : index
    %c0_51 = arith.constant 0 : index
    %c0_52 = arith.constant 0 : index
    %59 = vector.load %arg6[%c1_50, %c0_51, %c0_52] : memref<5x128x128xbf16, #tpu.memory_space<vmem>>, vector<1x128x128xbf16>
    %60 = vector.shape_cast %59 : vector<1x128x128xbf16> to vector<128x128xbf16>
    %c1_53 = arith.constant 1 : index
    %c0_54 = arith.constant 0 : index
    %c0_55 = arith.constant 0 : index
    %61 = vector.load %arg7[%c1_53, %c0_54, %c0_55] : memref<5x1x128xf32, #tpu.memory_space<vmem>>, vector<1x1x128xf32>
    %62 = vector.shape_cast %61 : vector<1x1x128xf32> to vector<1x128xf32>
    %63 = arith.truncf %58 : vector<128x128xf32> to vector<128x128xbf16>
    %cst_56 = arith.constant dense<0.000000e+00> : vector<128x128xf32>
    %64 = tpu.matmul %63, %60, %cst_56 {dimension_numbers = #tpu.dot_dimension_numbers<[1], [0], [0], [1], [0, 0, 1, 1], [], []>} : vector<128x128xbf16>, vector<128x128xbf16>, vector<128x128xf32> -> vector<128x128xf32>
    %65 = vector.broadcast %62 : vector<1x128xf32> to vector<128x128xf32>
    %66 = arith.addf %64, %65 : vector<128x128xf32>
    %67 = arith.truncf %46 : vector<128x256xf32> to vector<128x256xbf16>
    %c1_57 = arith.constant 1 : index
    %c0_58 = arith.constant 0 : index
    %c0_59 = arith.constant 0 : index
    %68 = vector.load %arg8[%c1_57, %c0_58, %c0_59] : memref<5x256x128xbf16, #tpu.memory_space<vmem>>, vector<1x256x128xbf16>
    %69 = vector.shape_cast %68 : vector<1x256x128xbf16> to vector<256x128xbf16>
    %cst_60 = arith.constant dense<0.000000e+00> : vector<128x128xf32>
    %70 = tpu.matmul %67, %69, %cst_60 {dimension_numbers = #tpu.dot_dimension_numbers<[1], [0], [0], [1], [0, 0, 1, 1], [], []>} : vector<128x256xbf16>, vector<256x128xbf16>, vector<128x128xf32> -> vector<128x128xf32>
    %71 = arith.addf %70, %66 : vector<128x128xf32>
    %c0_61 = arith.constant 0 : index
    %c0_62 = arith.constant 0 : index
    %72 = vector.load %arg13[%c0_61, %c0_62] : memref<128x128xf32, #tpu.memory_space<vmem>>, vector<128x128xf32>
    tpu.vector_store %arg13[%c0_61, %c0_62], %71 {strides = array<i32>} : memref<128x128xf32, #tpu.memory_space<vmem>>, vector<128x128xf32>,
    %c0_63 = arith.constant 0 : index
    %c0_64 = arith.constant 0 : index
    %73 = vector.load %arg12[%c0_63, %c0_64] : memref<128x256xf32, #tpu.memory_space<vmem>>, vector<128x128xf32>
    tpu.vector_store %arg12[%c0_63, %c0_64], %71 {strides = array<i32>} : memref<128x256xf32, #tpu.memory_space<vmem>>, vector<128x128xf32>,
    %cst_65 = arith.constant -1.000000e+30 : f32
    %74 = vector.broadcast %cst_65 : f32 to vector<256x128xf32>
    %c0_66 = arith.constant 0 : index
    %c0_67 = arith.constant 0 : index
    %75 = vector.load %arg14[%c0_66, %c0_67] : memref<256x128xf32, #tpu.memory_space<vmem>>, vector<256x128xf32>
    tpu.vector_store %arg14[%c0_66, %c0_67], %74 {strides = array<i32>} : memref<256x128xf32, #tpu.memory_space<vmem>>, vector<256x128xf32>,
    %c0_i32_68 = arith.constant 0 : i32
    %c128_i32_69 = arith.constant 128 : i32
    %76 = arith.addi %c0_i32_68, %c128_i32_69 : i32
    %c1_i32_70 = arith.constant 1 : i32
    scf.for %arg16 = %c0_i32_68 to %76 step %c1_i32_70  : i32 {
      %c1_i32_196 = arith.constant 1 : i32
      %205 = arith.muli %arg16, %c1_i32_196 : i32
      %c0_i32_197 = arith.constant 0 : i32
      %206 = arith.addi %c0_i32_197, %205 : i32
      %207 = arith.index_cast %arg0 : i32 to index
      %208 = arith.index_cast %206 : i32 to index
      %209 = memref.load %arg1[%207, %208] : memref<2x128xi32, #tpu.memory_space<smem>>
      %210 = arith.index_cast %209 : i32 to index
      %c0_198 = arith.constant 0 : index
      %211 = vector.load %arg14[%210, %c0_198] : memref<256x128xf32, #tpu.memory_space<vmem>>, vector<1x128xf32>
      %212 = arith.index_cast %206 : i32 to index
      %c0_199 = arith.constant 0 : index
      %213 = vector.load %arg13[%212, %c0_199] : memref<128x128xf32, #tpu.memory_space<vmem>>, vector<1x128xf32>
      %214 = arith.maximumf %211, %213 : vector<1x128xf32>
      %215 = arith.index_cast %209 : i32 to index
      %c0_200 = arith.constant 0 : index
      %216 = vector.load %arg14[%215, %c0_200] : memref<256x128xf32, #tpu.memory_space<vmem>>, vector<1x128xf32>
      tpu.vector_store %arg14[%215, %c0_200], %214 {strides = array<i32>} : memref<256x128xf32, #tpu.memory_space<vmem>>, vector<1x128xf32>,
    }
    %c128_i32_71 = arith.constant 128 : i32
    %c0_72 = arith.constant 0 : index
    %c0_73 = arith.constant 0 : index
    %77 = vector.load %arg15[%c0_72, %c0_73] : memref<128x256xbf16, #tpu.memory_space<vmem>>, vector<128x256xbf16>
    %c0_74 = arith.constant 0 : index
    %c0_75 = arith.constant 0 : index
    %78 = vector.load %arg14[%c0_74, %c0_75] : memref<256x128xf32, #tpu.memory_space<vmem>>, vector<256x128xf32>
    %79 = arith.truncf %78 : vector<256x128xf32> to vector<256x128xbf16>
    %cst_76 = arith.constant dense<0.000000e+00> : vector<128x128xf32>
    %80 = tpu.matmul %77, %79, %cst_76 {dimension_numbers = #tpu.dot_dimension_numbers<[1], [0], [0], [1], [0, 0, 1, 1], [], []>} : vector<128x256xbf16>, vector<256x128xbf16>, vector<128x128xf32> -> vector<128x128xf32>
    %c0_77 = arith.constant 0 : index
    %c128_78 = arith.constant 128 : index
    %81 = vector.load %arg12[%c0_77, %c128_78] : memref<128x256xf32, #tpu.memory_space<vmem>>, vector<128x128xf32>
    tpu.vector_store %arg12[%c0_77, %c128_78], %80 {strides = array<i32>} : memref<128x256xf32, #tpu.memory_space<vmem>>, vector<128x128xf32>,
    %c0_79 = arith.constant 0 : index
    %c0_80 = arith.constant 0 : index
    %82 = vector.load %arg12[%c0_79, %c0_80] : memref<128x256xf32, #tpu.memory_space<vmem>>, vector<128x256xf32>
    %cst_81 = arith.constant 0.000000e+00 : f32
    %83 = vector.broadcast %cst_81 : f32 to vector<128x256xf32>
    %84 = arith.maximumf %82, %83 : vector<128x256xf32>
    %c2 = arith.constant 2 : index
    %c0_82 = arith.constant 0 : index
    %c0_83 = arith.constant 0 : index
    %85 = vector.load %arg4[%c2, %c0_82, %c0_83] : memref<5x256x128xbf16, #tpu.memory_space<vmem>>, vector<1x256x128xbf16>
    %86 = vector.shape_cast %85 : vector<1x256x128xbf16> to vector<256x128xbf16>
    %c2_84 = arith.constant 2 : index
    %c0_85 = arith.constant 0 : index
    %c0_86 = arith.constant 0 : index
    %87 = vector.load %arg5[%c2_84, %c0_85, %c0_86] : memref<5x1x128xf32, #tpu.memory_space<vmem>>, vector<1x1x128xf32>
    %88 = vector.shape_cast %87 : vector<1x1x128xf32> to vector<1x128xf32>
    %89 = arith.truncf %84 : vector<128x256xf32> to vector<128x256xbf16>
    %cst_87 = arith.constant dense<0.000000e+00> : vector<128x128xf32>
    %90 = tpu.matmul %89, %86, %cst_87 {dimension_numbers = #tpu.dot_dimension_numbers<[1], [0], [0], [1], [0, 0, 1, 1], [], []>} : vector<128x256xbf16>, vector<256x128xbf16>, vector<128x128xf32> -> vector<128x128xf32>
    %91 = vector.broadcast %88 : vector<1x128xf32> to vector<128x128xf32>
    %92 = arith.addf %90, %91 : vector<128x128xf32>
    %cst_88 = arith.constant 0.000000e+00 : f32
    %93 = vector.broadcast %cst_88 : f32 to vector<128x128xf32>
    %94 = arith.maximumf %92, %93 : vector<128x128xf32>
    %c2_89 = arith.constant 2 : index
    %c0_90 = arith.constant 0 : index
    %c0_91 = arith.constant 0 : index
    %95 = vector.load %arg6[%c2_89, %c0_90, %c0_91] : memref<5x128x128xbf16, #tpu.memory_space<vmem>>, vector<1x128x128xbf16>
    %96 = vector.shape_cast %95 : vector<1x128x128xbf16> to vector<128x128xbf16>
    %c2_92 = arith.constant 2 : index
    %c0_93 = arith.constant 0 : index
    %c0_94 = arith.constant 0 : index
    %97 = vector.load %arg7[%c2_92, %c0_93, %c0_94] : memref<5x1x128xf32, #tpu.memory_space<vmem>>, vector<1x1x128xf32>
    %98 = vector.shape_cast %97 : vector<1x1x128xf32> to vector<1x128xf32>
    %99 = arith.truncf %94 : vector<128x128xf32> to vector<128x128xbf16>
    %cst_95 = arith.constant dense<0.000000e+00> : vector<128x128xf32>
    %100 = tpu.matmul %99, %96, %cst_95 {dimension_numbers = #tpu.dot_dimension_numbers<[1], [0], [0], [1], [0, 0, 1, 1], [], []>} : vector<128x128xbf16>, vector<128x128xbf16>, vector<128x128xf32> -> vector<128x128xf32>
    %101 = vector.broadcast %98 : vector<1x128xf32> to vector<128x128xf32>
    %102 = arith.addf %100, %101 : vector<128x128xf32>
    %103 = arith.truncf %82 : vector<128x256xf32> to vector<128x256xbf16>
    %c2_96 = arith.constant 2 : index
    %c0_97 = arith.constant 0 : index
    %c0_98 = arith.constant 0 : index
    %104 = vector.load %arg8[%c2_96, %c0_97, %c0_98] : memref<5x256x128xbf16, #tpu.memory_space<vmem>>, vector<1x256x128xbf16>
    %105 = vector.shape_cast %104 : vector<1x256x128xbf16> to vector<256x128xbf16>
    %cst_99 = arith.constant dense<0.000000e+00> : vector<128x128xf32>
    %106 = tpu.matmul %103, %105, %cst_99 {dimension_numbers = #tpu.dot_dimension_numbers<[1], [0], [0], [1], [0, 0, 1, 1], [], []>} : vector<128x256xbf16>, vector<256x128xbf16>, vector<128x128xf32> -> vector<128x128xf32>
    %107 = arith.addf %106, %102 : vector<128x128xf32>
    %c0_100 = arith.constant 0 : index
    %c0_101 = arith.constant 0 : index
    %108 = vector.load %arg13[%c0_100, %c0_101] : memref<128x128xf32, #tpu.memory_space<vmem>>, vector<128x128xf32>
    tpu.vector_store %arg13[%c0_100, %c0_101], %107 {strides = array<i32>} : memref<128x128xf32, #tpu.memory_space<vmem>>, vector<128x128xf32>,
    %c0_102 = arith.constant 0 : index
    %c0_103 = arith.constant 0 : index
    %109 = vector.load %arg12[%c0_102, %c0_103] : memref<128x256xf32, #tpu.memory_space<vmem>>, vector<128x128xf32>
    tpu.vector_store %arg12[%c0_102, %c0_103], %107 {strides = array<i32>} : memref<128x256xf32, #tpu.memory_space<vmem>>, vector<128x128xf32>,
    %cst_104 = arith.constant -1.000000e+30 : f32
    %110 = vector.broadcast %cst_104 : f32 to vector<256x128xf32>
    %c0_105 = arith.constant 0 : index
    %c0_106 = arith.constant 0 : index
    %111 = vector.load %arg14[%c0_105, %c0_106] : memref<256x128xf32, #tpu.memory_space<vmem>>, vector<256x128xf32>
    tpu.vector_store %arg14[%c0_105, %c0_106], %110 {strides = array<i32>} : memref<256x128xf32, #tpu.memory_space<vmem>>, vector<256x128xf32>,
    %c0_i32_107 = arith.constant 0 : i32
    %c128_i32_108 = arith.constant 128 : i32
    %112 = arith.addi %c0_i32_107, %c128_i32_108 : i32
    %c1_i32_109 = arith.constant 1 : i32
    scf.for %arg16 = %c0_i32_107 to %112 step %c1_i32_109  : i32 {
      %c1_i32_196 = arith.constant 1 : i32
      %205 = arith.muli %arg16, %c1_i32_196 : i32
      %c0_i32_197 = arith.constant 0 : i32
      %206 = arith.addi %c0_i32_197, %205 : i32
      %207 = arith.index_cast %arg0 : i32 to index
      %208 = arith.index_cast %206 : i32 to index
      %209 = memref.load %arg1[%207, %208] : memref<2x128xi32, #tpu.memory_space<smem>>
      %210 = arith.index_cast %209 : i32 to index
      %c0_198 = arith.constant 0 : index
      %211 = vector.load %arg14[%210, %c0_198] : memref<256x128xf32, #tpu.memory_space<vmem>>, vector<1x128xf32>
      %212 = arith.index_cast %206 : i32 to index
      %c0_199 = arith.constant 0 : index
      %213 = vector.load %arg13[%212, %c0_199] : memref<128x128xf32, #tpu.memory_space<vmem>>, vector<1x128xf32>
      %214 = arith.maximumf %211, %213 : vector<1x128xf32>
      %215 = arith.index_cast %209 : i32 to index
      %c0_200 = arith.constant 0 : index
      %216 = vector.load %arg14[%215, %c0_200] : memref<256x128xf32, #tpu.memory_space<vmem>>, vector<1x128xf32>
      tpu.vector_store %arg14[%215, %c0_200], %214 {strides = array<i32>} : memref<256x128xf32, #tpu.memory_space<vmem>>, vector<1x128xf32>,
    }
    %c128_i32_110 = arith.constant 128 : i32
    %c0_111 = arith.constant 0 : index
    %c0_112 = arith.constant 0 : index
    %113 = vector.load %arg15[%c0_111, %c0_112] : memref<128x256xbf16, #tpu.memory_space<vmem>>, vector<128x256xbf16>
    %c0_113 = arith.constant 0 : index
    %c0_114 = arith.constant 0 : index
    %114 = vector.load %arg14[%c0_113, %c0_114] : memref<256x128xf32, #tpu.memory_space<vmem>>, vector<256x128xf32>
    %115 = arith.truncf %114 : vector<256x128xf32> to vector<256x128xbf16>
    %cst_115 = arith.constant dense<0.000000e+00> : vector<128x128xf32>
    %116 = tpu.matmul %113, %115, %cst_115 {dimension_numbers = #tpu.dot_dimension_numbers<[1], [0], [0], [1], [0, 0, 1, 1], [], []>} : vector<128x256xbf16>, vector<256x128xbf16>, vector<128x128xf32> -> vector<128x128xf32>
    %c0_116 = arith.constant 0 : index
    %c128_117 = arith.constant 128 : index
    %117 = vector.load %arg12[%c0_116, %c128_117] : memref<128x256xf32, #tpu.memory_space<vmem>>, vector<128x128xf32>
    tpu.vector_store %arg12[%c0_116, %c128_117], %116 {strides = array<i32>} : memref<128x256xf32, #tpu.memory_space<vmem>>, vector<128x128xf32>,
    %c0_118 = arith.constant 0 : index
    %c0_119 = arith.constant 0 : index
    %118 = vector.load %arg12[%c0_118, %c0_119] : memref<128x256xf32, #tpu.memory_space<vmem>>, vector<128x256xf32>
    %cst_120 = arith.constant 0.000000e+00 : f32
    %119 = vector.broadcast %cst_120 : f32 to vector<128x256xf32>
    %120 = arith.maximumf %118, %119 : vector<128x256xf32>
    %c3 = arith.constant 3 : index
    %c0_121 = arith.constant 0 : index
    %c0_122 = arith.constant 0 : index
    %121 = vector.load %arg4[%c3, %c0_121, %c0_122] : memref<5x256x128xbf16, #tpu.memory_space<vmem>>, vector<1x256x128xbf16>
    %122 = vector.shape_cast %121 : vector<1x256x128xbf16> to vector<256x128xbf16>
    %c3_123 = arith.constant 3 : index
    %c0_124 = arith.constant 0 : index
    %c0_125 = arith.constant 0 : index
    %123 = vector.load %arg5[%c3_123, %c0_124, %c0_125] : memref<5x1x128xf32, #tpu.memory_space<vmem>>, vector<1x1x128xf32>
    %124 = vector.shape_cast %123 : vector<1x1x128xf32> to vector<1x128xf32>
    %125 = arith.truncf %120 : vector<128x256xf32> to vector<128x256xbf16>
    %cst_126 = arith.constant dense<0.000000e+00> : vector<128x128xf32>
    %126 = tpu.matmul %125, %122, %cst_126 {dimension_numbers = #tpu.dot_dimension_numbers<[1], [0], [0], [1], [0, 0, 1, 1], [], []>} : vector<128x256xbf16>, vector<256x128xbf16>, vector<128x128xf32> -> vector<128x128xf32>
    %127 = vector.broadcast %124 : vector<1x128xf32> to vector<128x128xf32>
    %128 = arith.addf %126, %127 : vector<128x128xf32>
    %cst_127 = arith.constant 0.000000e+00 : f32
    %129 = vector.broadcast %cst_127 : f32 to vector<128x128xf32>
    %130 = arith.maximumf %128, %129 : vector<128x128xf32>
    %c3_128 = arith.constant 3 : index
    %c0_129 = arith.constant 0 : index
    %c0_130 = arith.constant 0 : index
    %131 = vector.load %arg6[%c3_128, %c0_129, %c0_130] : memref<5x128x128xbf16, #tpu.memory_space<vmem>>, vector<1x128x128xbf16>
    %132 = vector.shape_cast %131 : vector<1x128x128xbf16> to vector<128x128xbf16>
    %c3_131 = arith.constant 3 : index
    %c0_132 = arith.constant 0 : index
    %c0_133 = arith.constant 0 : index
    %133 = vector.load %arg7[%c3_131, %c0_132, %c0_133] : memref<5x1x128xf32, #tpu.memory_space<vmem>>, vector<1x1x128xf32>
    %134 = vector.shape_cast %133 : vector<1x1x128xf32> to vector<1x128xf32>
    %135 = arith.truncf %130 : vector<128x128xf32> to vector<128x128xbf16>
    %cst_134 = arith.constant dense<0.000000e+00> : vector<128x128xf32>
    %136 = tpu.matmul %135, %132, %cst_134 {dimension_numbers = #tpu.dot_dimension_numbers<[1], [0], [0], [1], [0, 0, 1, 1], [], []>} : vector<128x128xbf16>, vector<128x128xbf16>, vector<128x128xf32> -> vector<128x128xf32>
    %137 = vector.broadcast %134 : vector<1x128xf32> to vector<128x128xf32>
    %138 = arith.addf %136, %137 : vector<128x128xf32>
    %139 = arith.truncf %118 : vector<128x256xf32> to vector<128x256xbf16>
    %c3_135 = arith.constant 3 : index
    %c0_136 = arith.constant 0 : index
    %c0_137 = arith.constant 0 : index
    %140 = vector.load %arg8[%c3_135, %c0_136, %c0_137] : memref<5x256x128xbf16, #tpu.memory_space<vmem>>, vector<1x256x128xbf16>
    %141 = vector.shape_cast %140 : vector<1x256x128xbf16> to vector<256x128xbf16>
    %cst_138 = arith.constant dense<0.000000e+00> : vector<128x128xf32>
    %142 = tpu.matmul %139, %141, %cst_138 {dimension_numbers = #tpu.dot_dimension_numbers<[1], [0], [0], [1], [0, 0, 1, 1], [], []>} : vector<128x256xbf16>, vector<256x128xbf16>, vector<128x128xf32> -> vector<128x128xf32>
    %143 = arith.addf %142, %138 : vector<128x128xf32>
    %c0_139 = arith.constant 0 : index
    %c0_140 = arith.constant 0 : index
    %144 = vector.load %arg13[%c0_139, %c0_140] : memref<128x128xf32, #tpu.memory_space<vmem>>, vector<128x128xf32>
    tpu.vector_store %arg13[%c0_139, %c0_140], %143 {strides = array<i32>} : memref<128x128xf32, #tpu.memory_space<vmem>>, vector<128x128xf32>,
    %c0_141 = arith.constant 0 : index
    %c0_142 = arith.constant 0 : index
    %145 = vector.load %arg12[%c0_141, %c0_142] : memref<128x256xf32, #tpu.memory_space<vmem>>, vector<128x128xf32>
    tpu.vector_store %arg12[%c0_141, %c0_142], %143 {strides = array<i32>} : memref<128x256xf32, #tpu.memory_space<vmem>>, vector<128x128xf32>,
    %cst_143 = arith.constant -1.000000e+30 : f32
    %146 = vector.broadcast %cst_143 : f32 to vector<256x128xf32>
    %c0_144 = arith.constant 0 : index
    %c0_145 = arith.constant 0 : index
    %147 = vector.load %arg14[%c0_144, %c0_145] : memref<256x128xf32, #tpu.memory_space<vmem>>, vector<256x128xf32>
    tpu.vector_store %arg14[%c0_144, %c0_145], %146 {strides = array<i32>} : memref<256x128xf32, #tpu.memory_space<vmem>>, vector<256x128xf32>,
    %c0_i32_146 = arith.constant 0 : i32
    %c128_i32_147 = arith.constant 128 : i32
    %148 = arith.addi %c0_i32_146, %c128_i32_147 : i32
    %c1_i32_148 = arith.constant 1 : i32
    scf.for %arg16 = %c0_i32_146 to %148 step %c1_i32_148  : i32 {
      %c1_i32_196 = arith.constant 1 : i32
      %205 = arith.muli %arg16, %c1_i32_196 : i32
      %c0_i32_197 = arith.constant 0 : i32
      %206 = arith.addi %c0_i32_197, %205 : i32
      %207 = arith.index_cast %arg0 : i32 to index
      %208 = arith.index_cast %206 : i32 to index
      %209 = memref.load %arg1[%207, %208] : memref<2x128xi32, #tpu.memory_space<smem>>
      %210 = arith.index_cast %209 : i32 to index
      %c0_198 = arith.constant 0 : index
      %211 = vector.load %arg14[%210, %c0_198] : memref<256x128xf32, #tpu.memory_space<vmem>>, vector<1x128xf32>
      %212 = arith.index_cast %206 : i32 to index
      %c0_199 = arith.constant 0 : index
      %213 = vector.load %arg13[%212, %c0_199] : memref<128x128xf32, #tpu.memory_space<vmem>>, vector<1x128xf32>
      %214 = arith.maximumf %211, %213 : vector<1x128xf32>
      %215 = arith.index_cast %209 : i32 to index
      %c0_200 = arith.constant 0 : index
      %216 = vector.load %arg14[%215, %c0_200] : memref<256x128xf32, #tpu.memory_space<vmem>>, vector<1x128xf32>
      tpu.vector_store %arg14[%215, %c0_200], %214 {strides = array<i32>} : memref<256x128xf32, #tpu.memory_space<vmem>>, vector<1x128xf32>,
    }
    %c128_i32_149 = arith.constant 128 : i32
    %c0_150 = arith.constant 0 : index
    %c0_151 = arith.constant 0 : index
    %149 = vector.load %arg15[%c0_150, %c0_151] : memref<128x256xbf16, #tpu.memory_space<vmem>>, vector<128x256xbf16>
    %c0_152 = arith.constant 0 : index
    %c0_153 = arith.constant 0 : index
    %150 = vector.load %arg14[%c0_152, %c0_153] : memref<256x128xf32, #tpu.memory_space<vmem>>, vector<256x128xf32>
    %151 = arith.truncf %150 : vector<256x128xf32> to vector<256x128xbf16>
    %cst_154 = arith.constant dense<0.000000e+00> : vector<128x128xf32>
    %152 = tpu.matmul %149, %151, %cst_154 {dimension_numbers = #tpu.dot_dimension_numbers<[1], [0], [0], [1], [0, 0, 1, 1], [], []>} : vector<128x256xbf16>, vector<256x128xbf16>, vector<128x128xf32> -> vector<128x128xf32>
    %c0_155 = arith.constant 0 : index
    %c128_156 = arith.constant 128 : index
    %153 = vector.load %arg12[%c0_155, %c128_156] : memref<128x256xf32, #tpu.memory_space<vmem>>, vector<128x128xf32>
    tpu.vector_store %arg12[%c0_155, %c128_156], %152 {strides = array<i32>} : memref<128x256xf32, #tpu.memory_space<vmem>>, vector<128x128xf32>,
    %c0_157 = arith.constant 0 : index
    %c0_158 = arith.constant 0 : index
    %154 = vector.load %arg12[%c0_157, %c0_158] : memref<128x256xf32, #tpu.memory_space<vmem>>, vector<128x256xf32>
    %cst_159 = arith.constant 0.000000e+00 : f32
    %155 = vector.broadcast %cst_159 : f32 to vector<128x256xf32>
    %156 = arith.maximumf %154, %155 : vector<128x256xf32>
    %c4 = arith.constant 4 : index
    %c0_160 = arith.constant 0 : index
    %c0_161 = arith.constant 0 : index
    %157 = vector.load %arg4[%c4, %c0_160, %c0_161] : memref<5x256x128xbf16, #tpu.memory_space<vmem>>, vector<1x256x128xbf16>
    %158 = vector.shape_cast %157 : vector<1x256x128xbf16> to vector<256x128xbf16>
    %c4_162 = arith.constant 4 : index
    %c0_163 = arith.constant 0 : index
    %c0_164 = arith.constant 0 : index
    %159 = vector.load %arg5[%c4_162, %c0_163, %c0_164] : memref<5x1x128xf32, #tpu.memory_space<vmem>>, vector<1x1x128xf32>
    %160 = vector.shape_cast %159 : vector<1x1x128xf32> to vector<1x128xf32>
    %161 = arith.truncf %156 : vector<128x256xf32> to vector<128x256xbf16>
    %cst_165 = arith.constant dense<0.000000e+00> : vector<128x128xf32>
    %162 = tpu.matmul %161, %158, %cst_165 {dimension_numbers = #tpu.dot_dimension_numbers<[1], [0], [0], [1], [0, 0, 1, 1], [], []>} : vector<128x256xbf16>, vector<256x128xbf16>, vector<128x128xf32> -> vector<128x128xf32>
    %163 = vector.broadcast %160 : vector<1x128xf32> to vector<128x128xf32>
    %164 = arith.addf %162, %163 : vector<128x128xf32>
    %cst_166 = arith.constant 0.000000e+00 : f32
    %165 = vector.broadcast %cst_166 : f32 to vector<128x128xf32>
    %166 = arith.maximumf %164, %165 : vector<128x128xf32>
    %c4_167 = arith.constant 4 : index
    %c0_168 = arith.constant 0 : index
    %c0_169 = arith.constant 0 : index
    %167 = vector.load %arg6[%c4_167, %c0_168, %c0_169] : memref<5x128x128xbf16, #tpu.memory_space<vmem>>, vector<1x128x128xbf16>
    %168 = vector.shape_cast %167 : vector<1x128x128xbf16> to vector<128x128xbf16>
    %c4_170 = arith.constant 4 : index
    %c0_171 = arith.constant 0 : index
    %c0_172 = arith.constant 0 : index
    %169 = vector.load %arg7[%c4_170, %c0_171, %c0_172] : memref<5x1x128xf32, #tpu.memory_space<vmem>>, vector<1x1x128xf32>
    %170 = vector.shape_cast %169 : vector<1x1x128xf32> to vector<1x128xf32>
    %171 = arith.truncf %166 : vector<128x128xf32> to vector<128x128xbf16>
    %cst_173 = arith.constant dense<0.000000e+00> : vector<128x128xf32>
    %172 = tpu.matmul %171, %168, %cst_173 {dimension_numbers = #tpu.dot_dimension_numbers<[1], [0], [0], [1], [0, 0, 1, 1], [], []>} : vector<128x128xbf16>, vector<128x128xbf16>, vector<128x128xf32> -> vector<128x128xf32>
    %173 = vector.broadcast %170 : vector<1x128xf32> to vector<128x128xf32>
    %174 = arith.addf %172, %173 : vector<128x128xf32>
    %175 = arith.truncf %154 : vector<128x256xf32> to vector<128x256xbf16>
    %c4_174 = arith.constant 4 : index
    %c0_175 = arith.constant 0 : index
    %c0_176 = arith.constant 0 : index
    %176 = vector.load %arg8[%c4_174, %c0_175, %c0_176] : memref<5x256x128xbf16, #tpu.memory_space<vmem>>, vector<1x256x128xbf16>
    %177 = vector.shape_cast %176 : vector<1x256x128xbf16> to vector<256x128xbf16>
    %cst_177 = arith.constant dense<0.000000e+00> : vector<128x128xf32>
    %178 = tpu.matmul %175, %177, %cst_177 {dimension_numbers = #tpu.dot_dimension_numbers<[1], [0], [0], [1], [0, 0, 1, 1], [], []>} : vector<128x256xbf16>, vector<256x128xbf16>, vector<128x128xf32> -> vector<128x128xf32>
    %179 = arith.addf %178, %174 : vector<128x128xf32>
    %c0_178 = arith.constant 0 : index
    %c0_179 = arith.constant 0 : index
    %180 = vector.load %arg9[%c0_178, %c0_179] : memref<128x128xbf16, #tpu.memory_space<vmem>>, vector<128x128xbf16>
    %c0_180 = arith.constant 0 : index
    %c0_181 = arith.constant 0 : index
    %181 = vector.load %arg10[%c0_180, %c0_181] : memref<1x128xf32, #tpu.memory_space<vmem>>, vector<1x128xf32>
    %182 = arith.truncf %179 : vector<128x128xf32> to vector<128x128xbf16>
    %cst_182 = arith.constant dense<0.000000e+00> : vector<128x128xf32>
    %183 = tpu.matmul %182, %180, %cst_182 {dimension_numbers = #tpu.dot_dimension_numbers<[1], [0], [0], [1], [0, 0, 1, 1], [], []>} : vector<128x128xbf16>, vector<128x128xbf16>, vector<128x128xf32> -> vector<128x128xf32>
    %184 = vector.broadcast %181 : vector<1x128xf32> to vector<128x128xf32>
    %185 = arith.addf %183, %184 : vector<128x128xf32>
    %186 = arith.truncf %185 : vector<128x128xf32> to vector<128x128xbf16>
    %c0_183 = arith.constant 0 : index
    %c0_184 = arith.constant 0 : index
    %187 = vector.load %arg15[%c0_183, %c0_184] : memref<128x256xbf16, #tpu.memory_space<vmem>>, vector<128x256xbf16>
    %cst_185 = arith.constant dense<0.000000e+00> : vector<128x256xf32>
    %188 = tpu.matmul %186, %187, %cst_185 {dimension_numbers = #tpu.dot_dimension_numbers<[0], [0], [1], [1], [0, 1, 1, 1], [], []>} : vector<128x128xbf16>, vector<128x256xbf16>, vector<128x256xf32> -> vector<128x256xf32>
    %cst_186 = arith.constant 1.000000e+00 : bf16
    %189 = vector.broadcast %cst_186 : bf16 to vector<1x128xbf16>
    %c0_187 = arith.constant 0 : index
    %c0_188 = arith.constant 0 : index
    %190 = vector.load %arg15[%c0_187, %c0_188] : memref<128x256xbf16, #tpu.memory_space<vmem>>, vector<128x256xbf16>
    %cst_189 = arith.constant dense<0.000000e+00> : vector<1x256xf32>
    %191 = tpu.matmul %189, %190, %cst_189 {dimension_numbers = #tpu.dot_dimension_numbers<[1], [0], [0], [1], [0, 0, 1, 1], [], []>} : vector<1x128xbf16>, vector<128x256xbf16>, vector<1x256xf32> -> vector<1x256xf32>
    %cst_190 = arith.constant 0.000000e+00 : f32
    %192 = vector.broadcast %cst_190 : f32 to vector<1x256xf32>
    %193 = arith.cmpf ogt, %191, %192 : vector<1x256xf32>
    %cst_191 = arith.constant 1.000000e+00 : f32
    %194 = vector.broadcast %cst_191 : f32 to vector<1x256xf32>
    %195 = arith.maximumf %191, %194 : vector<1x256xf32>
    %196 = vector.broadcast %195 : vector<1x256xf32> to vector<128x256xf32>
    %197 = arith.divf %188, %196 : vector<128x256xf32>
    %cst_192 = arith.constant 0.000000e+00 : f32
    %198 = vector.shape_cast %193 : vector<1x256xi1> to vector<1x256xi1>
    %199 = vector.broadcast %198 : vector<1x256xi1> to vector<128x256xi1>
    %200 = vector.broadcast %cst_192 : f32 to vector<128x256xf32>
    %201 = arith.select %199, %197, %200 : vector<128x256xi1>, vector<128x256xf32>
    %c0_193 = arith.constant 0 : index
    %c0_194 = arith.constant 0 : index
    %c0_195 = arith.constant 0 : index
    %202 = vector.load %arg11[%c0_193, %c0_194, %c0_195] : memref<1x128x256xf32, #tpu.memory_space<vmem>>, vector<1x128x256xf32>
    %203 = vector.shape_cast %202 : vector<1x128x256xf32> to vector<128x256xf32>
    %204 = vector.shape_cast %201 : vector<128x256xf32> to vector<1x128x256xf32>
    tpu.vector_store %arg11[%c0_193, %c0_194, %c0_195], %204 {strides = array<i32>} : memref<1x128x256xf32, #tpu.memory_space<vmem>>, vector<1x128x256xf32>,
    return
  }
  func.func @transform_0(%arg0: i32, %arg1: memref<2x128xi32, #tpu.memory_space<smem>>) -> (i32, i32, i32) {
    %c0_i32 = arith.constant 0 : i32
    %c0_i32_0 = arith.constant 0 : i32
    %c0_i32_1 = arith.constant 0 : i32
    return %arg0, %c0_i32, %c0_i32_0 : i32, i32, i32
  }
  func.func @transform_1(%arg0: i32, %arg1: memref<2x128xi32, #tpu.memory_space<smem>>) -> (i32, i32, i32) {
    %c0_i32 = arith.constant 0 : i32
    %c0_i32_0 = arith.constant 0 : i32
    %c0_i32_1 = arith.constant 0 : i32
    return %arg0, %c0_i32, %c0_i32_0 : i32, i32, i32
  }
  func.func @transform_2(%arg0: i32, %arg1: memref<2x128xi32, #tpu.memory_space<smem>>) -> (i32, i32, i32) {
    %c0_i32 = arith.constant 0 : i32
    %c0_i32_0 = arith.constant 0 : i32
    %c0_i32_1 = arith.constant 0 : i32
    %c0_i32_2 = arith.constant 0 : i32
    return %c0_i32, %c0_i32_0, %c0_i32_1 : i32, i32, i32
  }
  func.func @transform_3(%arg0: i32, %arg1: memref<2x128xi32, #tpu.memory_space<smem>>) -> (i32, i32, i32) {
    %c0_i32 = arith.constant 0 : i32
    %c0_i32_0 = arith.constant 0 : i32
    %c0_i32_1 = arith.constant 0 : i32
    %c0_i32_2 = arith.constant 0 : i32
    return %c0_i32, %c0_i32_0, %c0_i32_1 : i32, i32, i32
  }
  func.func @transform_4(%arg0: i32, %arg1: memref<2x128xi32, #tpu.memory_space<smem>>) -> (i32, i32, i32) {
    %c0_i32 = arith.constant 0 : i32
    %c0_i32_0 = arith.constant 0 : i32
    %c0_i32_1 = arith.constant 0 : i32
    %c0_i32_2 = arith.constant 0 : i32
    return %c0_i32, %c0_i32_0, %c0_i32_1 : i32, i32, i32
  }
  func.func @transform_5(%arg0: i32, %arg1: memref<2x128xi32, #tpu.memory_space<smem>>) -> (i32, i32, i32) {
    %c0_i32 = arith.constant 0 : i32
    %c0_i32_0 = arith.constant 0 : i32
    %c0_i32_1 = arith.constant 0 : i32
    %c0_i32_2 = arith.constant 0 : i32
    return %c0_i32, %c0_i32_0, %c0_i32_1 : i32, i32, i32
  }
  func.func @transform_6(%arg0: i32, %arg1: memref<2x128xi32, #tpu.memory_space<smem>>) -> (i32, i32, i32) {
    %c0_i32 = arith.constant 0 : i32
    %c0_i32_0 = arith.constant 0 : i32
    %c0_i32_1 = arith.constant 0 : i32
    %c0_i32_2 = arith.constant 0 : i32
    return %c0_i32, %c0_i32_0, %c0_i32_1 : i32, i32, i32
  }
  func.func @transform_7(%arg0: i32, %arg1: memref<2x128xi32, #tpu.memory_space<smem>>) -> (i32, i32) {
    %c0_i32 = arith.constant 0 : i32
    %c0_i32_0 = arith.constant 0 : i32
    %c0_i32_1 = arith.constant 0 : i32
    return %c0_i32, %c0_i32_0 : i32, i32
  }
  func.func @transform_8(%arg0: i32, %arg1: memref<2x128xi32, #tpu.memory_space<smem>>) -> (i32, i32) {
    %c0_i32 = arith.constant 0 : i32
    %c0_i32_0 = arith.constant 0 : i32
    %c0_i32_1 = arith.constant 0 : i32
    return %c0_i32, %c0_i32_0 : i32, i32
  }
  func.func @transform_9(%arg0: i32, %arg1: memref<2x128xi32, #tpu.memory_space<smem>>) -> (i32, i32, i32) {
    %c0_i32 = arith.constant 0 : i32
    %c0_i32_0 = arith.constant 0 : i32
    %c0_i32_1 = arith.constant 0 : i32
    return %arg0, %c0_i32, %c0_i32_0 : i32, i32, i32
  }
}

</mosaic_0001>

<llo_original>
// kernel: tpu_custom_call.1
$region0: #{tpu_custom_call.1}
  #allocation0 [shape = 'u32[]', space=smem, size = 0x4, offset = 0x4, fixed_abs, tag = 'smem constant byte address 0x4 - core index']
  #allocation1 [shape = 'u32[72,128]{1,0:T(1,128)}', space=vmem, size = 0x9000, scoped, tag = 'internal scratch']
  #allocation2 [shape = 'f32[128,256]{1,0:T(8,128)}', space=vmem, size = 0x20000, scoped, tag = 'scratch operand']
  #allocation3 [shape = 'f32[128,128]{1,0:T(8,128)}', space=vmem, size = 0x10000, scoped, tag = 'scratch operand']
  #allocation4 [shape = 'f32[256,128]{1,0:T(8,128)}', space=vmem, size = 0x20000, scoped, tag = 'scratch operand']
  #allocation5 [shape = 'bf16[128,256]{1,0:T(8,128)(2,1)}', space=vmem, size = 0x10000, scoped, tag = 'scratch operand']
  #allocation6 [shape = 's32[1]{0}', space=sflag, size = 0x4, scoped, tag = 'scoped memory for tpu_custom_call.1']
  #allocation7 [shape = 'u8[1024]{0}', space=smem, size = 0x400, scoped, tag = 'prefetched SMEM operand 0']
  %s0 = inlined_call_operand.vmem [shape: s32[2,128], index: 0, kind: input, shape index: {}]
  %s1 = inlined_call_operand.hbm [shape: f32[2,128,256], index: 1, kind: input, shape index: {}]
  %s2 = inlined_call_operand.vmem [shape: s32[2,128,1], index: 2, kind: input, shape index: {}]
  %s3 = inlined_call_operand.hbm [shape: bf16[5,256,128], index: 3, kind: input, shape index: {}]
  %s4 = inlined_call_operand.vmem [shape: f32[5,1,128], index: 4, kind: input, shape index: {}]
  %s5 = inlined_call_operand.hbm [shape: bf16[5,128,128], index: 5, kind: input, shape index: {}]
  %s6 = inlined_call_operand.vmem [shape: f32[5,1,128], index: 6, kind: input, shape index: {}]
  %s7 = inlined_call_operand.hbm [shape: bf16[5,256,128], index: 7, kind: input, shape index: {}]
  %s8 = inlined_call_operand.vmem [shape: bf16[128,128], index: 8, kind: input, shape index: {}]
  %s9 = inlined_call_operand.vmem [shape: f32[1,128], index: 9, kind: input, shape index: {}]
  %s10 = inlined_call_operand.hbm [shape: f32[2,128,256], index: 10, kind: output, shape index: {}]
  %s11 = sld [smem:[#allocation0]]
  $region113: #{tpu_custom_call.1} parent=0
    _
  %s13 = ssub.s32 1, %s11
  %s14 = scalar_select 0, %s13, %s11
  %s16 = sshll.u32 %s0, 4
  %s17 = int_to_ptr.vmem [resolvable:$true] %s16
  %19 = dma.vmem_to_smem %s17, 32, [#allocation7], [#allocation6]
  %21 = dma.done [#allocation6], 32
  %22 = sfence
  $region1: #{tpu_custom_call.1} parent=0
    #allocation8 [shape = 'u8[262144]{0}', space=vmem, size = 0x40000, scoped, tag = 'input window, operand 1']
    #allocation9 [shape = 's32[2]{0}', space=sflag, size = 0x8, scoped, tag = 'scoped memory for tpu_custom_call.1']
    #allocation10 [shape = 's32[2]{0}', space=sflag, size = 0x8, scoped, tag = 'scoped memory for tpu_custom_call.1']
    #allocation11 [shape = 'u8[327680]{0}', space=vmem, size = 0x50000, scoped, tag = 'input window, operand 3, single buffered']
    #allocation12 [shape = 's32[1]{0}', space=sflag, size = 0x4, scoped, tag = 'scoped memory for tpu_custom_call.1']
    #allocation13 [shape = 'u8[163840]{0}', space=vmem, size = 0x28000, scoped, tag = 'input window, operand 5, single buffered']
    #allocation14 [shape = 'u8[327680]{0}', space=vmem, size = 0x50000, scoped, tag = 'input window, operand 7, single buffered']
    #allocation15 [shape = 's32[1]{0}', space=sflag, size = 0x4, scoped, tag = 'scoped memory for tpu_custom_call.1']
    #allocation16 [shape = 'u8[262144]{0}', space=vmem, size = 0x40000, scoped, tag = 'output window, operand 0']
    %23 = vsyncpa [#allocation9], 0
    %s24 = scalar_lea.sflag [#allocation9], 1
    %25 = vsyncpa %s24, 0
    %26 = vsyncpa [#allocation12], 0
    %27 = vsyncpa [#allocation15], 0
    %28 = vsyncpa [#allocation10], 0
    %s29 = scalar_lea.sflag [#allocation10], 1
    %30 = vsyncpa %s29, 0
    loop: start=0, step=1, limit=4
    $region2: #{tpu_custom_call.1} parent=1 // loop_pre_header
      _
    $region3: #{tpu_custom_call.1} parent=1 // loop_header
      %s32 = sphi 0, %s36
      %p33 = scmp.ge.s32.totalorder %s32, 4
      %s42 = sphi 0, %s44
      %s45 = sphi 0, %s42
      %s46 = sphi 0, %s45
      %s62 = sphi 0, %s46
      %s68 = sphi 0, %s70
      %s71 = sphi 0, %s68
      %s72 = sphi 0, %s71
      %s88 = sphi 0, %s72
      %s92 = sphi 0, %s92
      %s94 = sphi 0, %s92
      %s95 = sphi 0, %s94
      %s109 = sphi 0, %s95
      %s113 = sphi 0, %s113
      %s115 = sphi 0, %s113
      %s116 = sphi 0, %s115
      %s130 = sphi 0, %s116
      %s134 = sphi 0, %s134
      %s136 = sphi 0, %s134
      %s137 = sphi 0, %s136
      %s151 = sphi 0, %s137
      %s155 = sphi 0, %s155
      %s157 = sphi 0, %s155
      %s158 = sphi 0, %s157
      %s172 = sphi 0, %s158
      %s176 = sphi 0, %s176
      %s178 = sphi 0, %s176
      %s179 = sphi 0, %s178
      %s193 = sphi 0, %s179
      %s197 = sphi 0, %s197
      %s199 = sphi 0, %s197
      %s200 = sphi 0, %s199
      %s214 = sphi 0, %s200
      %s218 = sphi 0, %s218
      %s220 = sphi 0, %s218
      %s221 = sphi 0, %s220
      %s235 = sphi 0, %s221
      %s241 = sphi 0, %s243
      %s244 = sphi 0, %s241
      %s245 = sphi 0, %s244
      %s261 = sphi 0, %s245
    $region4: #{tpu_custom_call.1} parent=1 // loop_header_branch
      %35 = sbr.rel (%p33) target = $region8
    $region5: #{tpu_custom_call.1} parent=1 // loop_body
      %s37 = ssub.s32 %s32, 1
      %s38 = ssub.s32 %s32, 2
      %s39 = sadd.s32 %s32, 1
      %s40 = ssub.s32 %s32, %s39
      %p41 = scmp.eq.s32.totalorder %s40, 0
      %s43 = sadd.s32 %s42, 1
      %s44 = scalar_select %p41, %s42, %s43
      %p47 = pneg %p41
      %p48 = scmp.eq.s32.totalorder %s32, 1
      %p49 = por %p47, %p48
      %p50 = scmp.ne.s32.totalorder %s42, %s45
      %p51 = scmp.eq.s32.totalorder %s32, 0
      %p52 = por %p50, %p51
      %p53 = scmp.ne.s32.totalorder %s42, %s45
      %p54 = scmp.eq.s32.totalorder %s37, 1
      %p55 = por %p53, %p54
      %p56 = scmp.ne.s32.totalorder %s45, %s46
      %p57 = scmp.eq.s32.totalorder %s37, 0
      %p58 = por %p56, %p57
      %p59 = scmp.ne.s32.totalorder %s45, %s46
      %p60 = scmp.eq.s32.totalorder %s38, 1
      %p61 = por %p59, %p60
      %p63 = scmp.ne.s32.totalorder %s46, %s62
      %p64 = scmp.eq.s32.totalorder %s38, 0
      %p65 = por %p63, %p64
      %s66 = ssub.s32 %s32, %s39
      %p67 = scmp.eq.s32.totalorder %s66, 0
      %s69 = sadd.s32 %s68, 1
      %s70 = scalar_select %p67, %s68, %s69
      %p73 = pneg %p67
      %p74 = scmp.eq.s32.totalorder %s32, 1
      %p75 = por %p73, %p74
      %p76 = scmp.ne.s32.totalorder %s68, %s71
      %p77 = scmp.eq.s32.totalorder %s32, 0
      %p78 = por %p76, %p77
      %p79 = scmp.ne.s32.totalorder %s68, %s71
      %p80 = scmp.eq.s32.totalorder %s37, 1
      %p81 = por %p79, %p80
      %p82 = scmp.ne.s32.totalorder %s71, %s72
      %p83 = scmp.eq.s32.totalorder %s37, 0
      %p84 = por %p82, %p83
      %p85 = scmp.ne.s32.totalorder %s71, %s72
      %p86 = scmp.eq.s32.totalorder %s38, 1
      %p87 = por %p85, %p86
      %p89 = scmp.ne.s32.totalorder %s72, %s88
      %p90 = scmp.eq.s32.totalorder %s38, 0
      %p91 = por %p89, %p90
      %s93 = sadd.s32 %s92, 1
      %p96 = scmp.eq.s32.totalorder %s32, 1
      %p97 = scmp.ne.s32.totalorder %s92, %s94
      %p98 = scmp.eq.s32.totalorder %s32, 0
      %p99 = por %p97, %p98
      %p100 = scmp.ne.s32.totalorder %s92, %s94
      %p101 = scmp.eq.s32.totalorder %s37, 1
      %p102 = por %p100, %p101
      %p103 = scmp.ne.s32.totalorder %s94, %s95
      %p104 = scmp.eq.s32.totalorder %s37, 0
      %p105 = por %p103, %p104
      %p106 = scmp.ne.s32.totalorder %s94, %s95
      %p107 = scmp.eq.s32.totalorder %s38, 1
      %p108 = por %p106, %p107
      %p110 = scmp.ne.s32.totalorder %s95, %s109
      %p111 = scmp.eq.s32.totalorder %s38, 0
      %p112 = por %p110, %p111
      %s114 = sadd.s32 %s113, 1
      %p117 = scmp.eq.s32.totalorder %s32, 1
      %p118 = scmp.ne.s32.totalorder %s113, %s115
      %p119 = scmp.eq.s32.totalorder %s32, 0
      %p120 = por %p118, %p119
      %p121 = scmp.ne.s32.totalorder %s113, %s115
      %p122 = scmp.eq.s32.totalorder %s37, 1
      %p123 = por %p121, %p122
      %p124 = scmp.ne.s32.totalorder %s115, %s116
      %p125 = scmp.eq.s32.totalorder %s37, 0
      %p126 = por %p124, %p125
      %p127 = scmp.ne.s32.totalorder %s115, %s116
      %p128 = scmp.eq.s32.totalorder %s38, 1
      %p129 = por %p127, %p128
      %p131 = scmp.ne.s32.totalorder %s116, %s130
      %p132 = scmp.eq.s32.totalorder %s38, 0
      %p133 = por %p131, %p132
      %s135 = sadd.s32 %s134, 1
      %p138 = scmp.eq.s32.totalorder %s32, 1
      %p139 = scmp.ne.s32.totalorder %s134, %s136
      %p140 = scmp.eq.s32.totalorder %s32, 0
      %p141 = por %p139, %p140
      %p142 = scmp.ne.s32.totalorder %s134, %s136
      %p143 = scmp.eq.s32.totalorder %s37, 1
      %p144 = por %p142, %p143
      %p145 = scmp.ne.s32.totalorder %s136, %s137
      %p146 = scmp.eq.s32.totalorder %s37, 0
      %p147 = por %p145, %p146
      %p148 = scmp.ne.s32.totalorder %s136, %s137
      %p149 = scmp.eq.s32.totalorder %s38, 1
      %p150 = por %p148, %p149
      %p152 = scmp.ne.s32.totalorder %s137, %s151
      %p153 = scmp.eq.s32.totalorder %s38, 0
      %p154 = por %p152, %p153
      %s156 = sadd.s32 %s155, 1
      %p159 = scmp.eq.s32.totalorder %s32, 1
      %p160 = scmp.ne.s32.totalorder %s155, %s157
      %p161 = scmp.eq.s32.totalorder %s32, 0
      %p162 = por %p160, %p161
      %p163 = scmp.ne.s32.totalorder %s155, %s157
      %p164 = scmp.eq.s32.totalorder %s37, 1
      %p165 = por %p163, %p164
      %p166 = scmp.ne.s32.totalorder %s157, %s158
      %p167 = scmp.eq.s32.totalorder %s37, 0
      %p168 = por %p166, %p167
      %p169 = scmp.ne.s32.totalorder %s157, %s158
      %p170 = scmp.eq.s32.totalorder %s38, 1
      %p171 = por %p169, %p170
      %p173 = scmp.ne.s32.totalorder %s158, %s172
      %p174 = scmp.eq.s32.totalorder %s38, 0
      %p175 = por %p173, %p174
      %s177 = sadd.s32 %s176, 1
      %p180 = scmp.eq.s32.totalorder %s32, 1
      %p181 = scmp.ne.s32.totalorder %s176, %s178
      %p182 = scmp.eq.s32.totalorder %s32, 0
      %p183 = por %p181, %p182
      %p184 = scmp.ne.s32.totalorder %s176, %s178
      %p185 = scmp.eq.s32.totalorder %s37, 1
      %p186 = por %p184, %p185
      %p187 = scmp.ne.s32.totalorder %s178, %s179
      %p188 = scmp.eq.s32.totalorder %s37, 0
      %p189 = por %p187, %p188
      %p190 = scmp.ne.s32.totalorder %s178, %s179
      %p191 = scmp.eq.s32.totalorder %s38, 1
      %p192 = por %p190, %p191
      %p194 = scmp.ne.s32.totalorder %s179, %s193
      %p195 = scmp.eq.s32.totalorder %s38, 0
      %p196 = por %p194, %p195
      %s198 = sadd.s32 %s197, 1
      %p201 = scmp.eq.s32.totalorder %s32, 1
      %p202 = scmp.ne.s32.totalorder %s197, %s199
      %p203 = scmp.eq.s32.totalorder %s32, 0
      %p204 = por %p202, %p203
      %p205 = scmp.ne.s32.totalorder %s197, %s199
      %p206 = scmp.eq.s32.totalorder %s37, 1
      %p207 = por %p205, %p206
      %p208 = scmp.ne.s32.totalorder %s199, %s200
      %p209 = scmp.eq.s32.totalorder %s37, 0
      %p210 = por %p208, %p209
      %p211 = scmp.ne.s32.totalorder %s199, %s200
      %p212 = scmp.eq.s32.totalorder %s38, 1
      %p213 = por %p211, %p212
      %p215 = scmp.ne.s32.totalorder %s200, %s214
      %p216 = scmp.eq.s32.totalorder %s38, 0
      %p217 = por %p215, %p216
      %s219 = sadd.s32 %s218, 1
      %p222 = scmp.eq.s32.totalorder %s32, 1
      %p223 = scmp.ne.s32.totalorder %s218, %s220
      %p224 = scmp.eq.s32.totalorder %s32, 0
      %p225 = por %p223, %p224
      %p226 = scmp.ne.s32.totalorder %s218, %s220
      %p227 = scmp.eq.s32.totalorder %s37, 1
      %p228 = por %p226, %p227
      %p229 = scmp.ne.s32.totalorder %s220, %s221
      %p230 = scmp.eq.s32.totalorder %s37, 0
      %p231 = por %p229, %p230
      %p232 = scmp.ne.s32.totalorder %s220, %s221
      %p233 = scmp.eq.s32.totalorder %s38, 1
      %p234 = por %p232, %p233
      %p236 = scmp.ne.s32.totalorder %s221, %s235
      %p237 = scmp.eq.s32.totalorder %s38, 0
      %p238 = por %p236, %p237
      %s239 = ssub.s32 %s32, %s39
      %p240 = scmp.eq.s32.totalorder %s239, 0
      %s242 = sadd.s32 %s241, 1
      %s243 = scalar_select %p240, %s241, %s242
      %p246 = pneg %p240
      %p247 = scmp.eq.s32.totalorder %s32, 1
      %p248 = por %p246, %p247
      %p249 = scmp.ne.s32.totalorder %s241, %s244
      %p250 = scmp.eq.s32.totalorder %s32, 0
      %p251 = por %p249, %p250
      %p252 = scmp.ne.s32.totalorder %s241, %s244
      %p253 = scmp.eq.s32.totalorder %s37, 1
      %p254 = por %p252, %p253
      %p255 = scmp.ne.s32.totalorder %s244, %s245
      %p256 = scmp.eq.s32.totalorder %s37, 0
      %p257 = por %p255, %p256
      %p258 = scmp.ne.s32.totalorder %s244, %s245
      %p259 = scmp.eq.s32.totalorder %s38, 1
      %p260 = por %p258, %p259
      %p262 = scmp.ne.s32.totalorder %s245, %s261
      %p263 = scmp.eq.s32.totalorder %s38, 0
      %p264 = por %p262, %p263
      %p265 = scmp.le.s32.totalorder 1, %s32
      %p266 = scmp.lt.s32.totalorder %s32, 3
      %p267 = pnand %p265, %p266
      %p268 = pneg %p267
      // Predicated region
      $region9: #{tpu_custom_call.1} parent=5 // pred_check
        _
      $region10: #{tpu_custom_call.1} parent=5 // pred_check_branch
        %270 = sbr.rel (%p267) target = $region12
      $region11: #{tpu_custom_call.1} parent=5 // pred_region
        %s271 = ssub.s32 %s32, 1
        // Predicated region
        $region13: #{tpu_custom_call.1} parent=11 // pred_check
          %p272 = pneg %p105
        $region14: #{tpu_custom_call.1} parent=11 // pred_check_branch
          %274 = sbr.rel (%p272) target = $region16
        $region15: #{tpu_custom_call.1} parent=11 // pred_region
          %276 = vsyncadd [#allocation12], 0
          %s277 = sshll.u32 %s3, 4
          %s278 = int_to_ptr.hbm [resolvable:$true] %s277
          %s279 = sshll.u32 [#allocation11], 4
          %s280 = int_to_ptr.vmem [resolvable:$true] %s279
          %285 = dma.hbm_to_vmem [thread:$0]  %s278, 10240, %s280, [#allocation12], 64, 64, 4
        $region16: #{tpu_custom_call.1} parent=11 // pred_fallthru
          _
        // Predicated region
        $region17: #{tpu_custom_call.1} parent=11 // pred_check
          %p286 = pneg %p126
        $region18: #{tpu_custom_call.1} parent=11 // pred_check_branch
          %288 = sbr.rel (%p286) target = $region20
        $region19: #{tpu_custom_call.1} parent=11 // pred_region
          _
        $region20: #{tpu_custom_call.1} parent=11 // pred_fallthru
          _
        // Predicated region
        $region21: #{tpu_custom_call.1} parent=11 // pred_check
          %p289 = pneg %p147
        $region22: #{tpu_custom_call.1} parent=11 // pred_check_branch
          %291 = sbr.rel (%p289) target = $region24
        $region23: #{tpu_custom_call.1} parent=11 // pred_region
          %293 = vsyncadd [#allocation12], 0
          %s294 = sshll.u32 %s5, 4
          %s295 = int_to_ptr.hbm [resolvable:$true] %s294
          %s296 = sshll.u32 [#allocation13], 4
          %s297 = int_to_ptr.vmem [resolvable:$true] %s296
          %302 = dma.hbm_to_vmem [thread:$0]  %s295, 5120, %s297, [#allocation12], 64, 64, 4
        $region24: #{tpu_custom_call.1} parent=11 // pred_fallthru
          _
        // Predicated region
        $region25: #{tpu_custom_call.1} parent=11 // pred_check
          %p303 = pneg %p168
        $region26: #{tpu_custom_call.1} parent=11 // pred_check_branch
          %305 = sbr.rel (%p303) target = $region28
        $region27: #{tpu_custom_call.1} parent=11 // pred_region
          _
        $region28: #{tpu_custom_call.1} parent=11 // pred_fallthru
          _
        // Predicated region
        $region29: #{tpu_custom_call.1} parent=11 // pred_check
          %p306 = pneg %p189
        $region30: #{tpu_custom_call.1} parent=11 // pred_check_branch
          %308 = sbr.rel (%p306) target = $region32
        $region31: #{tpu_custom_call.1} parent=11 // pred_region
          %310 = vsyncadd [#allocation15], 0
          %s311 = sshll.u32 %s7, 4
          %s312 = int_to_ptr.hbm [resolvable:$true] %s311
          %s313 = sshll.u32 [#allocation14], 4
          %s314 = int_to_ptr.vmem [resolvable:$true] %s313
          %319 = dma.hbm_to_vmem [thread:$0]  %s312, 10240, %s314, [#allocation15], 64, 64, 4
        $region32: #{tpu_custom_call.1} parent=11 // pred_fallthru
          _
        // Predicated region
        $region33: #{tpu_custom_call.1} parent=11 // pred_check
          %p320 = pneg %p210
        $region34: #{tpu_custom_call.1} parent=11 // pred_check_branch
          %322 = sbr.rel (%p320) target = $region36
        $region35: #{tpu_custom_call.1} parent=11 // pred_region
          _
        $region36: #{tpu_custom_call.1} parent=11 // pred_fallthru
          _
        // Predicated region
        $region37: #{tpu_custom_call.1} parent=11 // pred_check
          %p323 = pneg %p231
        $region38: #{tpu_custom_call.1} parent=11 // pred_check_branch
          %325 = sbr.rel (%p323) target = $region40
        $region39: #{tpu_custom_call.1} parent=11 // pred_region
          _
        $region40: #{tpu_custom_call.1} parent=11 // pred_fallthru
          _
      $region12: #{tpu_custom_call.1} parent=5 // pred_fallthru
        _
      %p326 = scmp.lt.s32.totalorder %s32, 2
      // Predicated region
      $region41: #{tpu_custom_call.1} parent=5 // pred_check
        %p327 = pneg %p326
      $region42: #{tpu_custom_call.1} parent=5 // pred_check_branch
        %329 = sbr.rel (%p327) target = $region44
      $region43: #{tpu_custom_call.1} parent=5 // pred_region
        // Predicated region
        $region45: #{tpu_custom_call.1} parent=43 // pred_check
          %p330 = pneg %p52
        $region46: #{tpu_custom_call.1} parent=43 // pred_check_branch
          %332 = sbr.rel (%p330) target = $region48
        $region47: #{tpu_custom_call.1} parent=43 // pred_region
          %s333 = sand.u32 %s42, 1
          %s334 = scalar_lea.sflag [#allocation9], %s333
          %s335 = sand.u32 %s42, 1
          %s336 = smul.addr %s335, 256
          %s337 = scalar_lea.vmem [#allocation8], %s336
          %339 = vsyncadd %s334, 0
          %s340 = smul.addr %s32, 32
          %s341 = smul.addr %s340, 8
          %s342 = scalar_lea.hbm %s1, %s341
          %s343 = sshll.u32 %s342, 4
          %s344 = int_to_ptr.hbm [resolvable:$true] %s343
          %s345 = sshll.u32 %s337, 4
          %s346 = int_to_ptr.vmem [resolvable:$true] %s345
          %351 = dma.hbm_to_vmem [thread:$0]  %s344, 4096, %s346, %s334, 256, 256, 16
        $region48: #{tpu_custom_call.1} parent=43 // pred_fallthru
          _
        // Predicated region
        $region49: #{tpu_custom_call.1} parent=43 // pred_check
          %p352 = pneg %p78
        $region50: #{tpu_custom_call.1} parent=43 // pred_check_branch
          %354 = sbr.rel (%p352) target = $region52
        $region51: #{tpu_custom_call.1} parent=43 // pred_region
          %p355 = scmp.lt.s32.totalorder %s32, 1
          %s356 = scalar_select %p355, %s32, 1
          %s357 = smul.addr %s356, 16
          %s358 = smul.addr %s357, 8
          %s359 = scalar_lea.vmem %s2, %s358
        $region52: #{tpu_custom_call.1} parent=43 // pred_fallthru
          _
      $region44: #{tpu_custom_call.1} parent=5 // pred_fallthru
        _
      %p360 = scmp.le.s32.totalorder 1, %s32
      %p361 = scmp.lt.s32.totalorder %s32, 3
      %p362 = pnand %p360, %p361
      %p363 = pneg %p362
      // Predicated region
      $region53: #{tpu_custom_call.1} parent=5 // pred_check
        _
      $region54: #{tpu_custom_call.1} parent=5 // pred_check_branch
        %365 = sbr.rel (%p362) target = $region56
      $region55: #{tpu_custom_call.1} parent=5 // pred_region
        %s366 = ssub.s32 %s32, 1
        %s367 = sand.u32 %s45, 1
        %s368 = scalar_lea.sflag [#allocation9], %s367
        %s369 = sand.u32 %s45, 1
        %s370 = smul.addr %s369, 256
        %s371 = scalar_lea.vmem [#allocation8], %s370
        // Predicated region
        $region57: #{tpu_custom_call.1} parent=55 // pred_check
          %p372 = pneg %p58
        $region58: #{tpu_custom_call.1} parent=55 // pred_check_branch
          %374 = sbr.rel (%p372) target = $region60
        $region59: #{tpu_custom_call.1} parent=55 // pred_region
          %376 = dma.done %s368, 4096
        $region60: #{tpu_custom_call.1} parent=55 // pred_fallthru
          _
        // Predicated region
        $region61: #{tpu_custom_call.1} parent=55 // pred_check
          %p377 = pneg %p105
        $region62: #{tpu_custom_call.1} parent=55 // pred_check_branch
          %379 = sbr.rel (%p377) target = $region64
        $region63: #{tpu_custom_call.1} parent=55 // pred_region
          %381 = dma.done [#allocation12], 10240
        $region64: #{tpu_custom_call.1} parent=55 // pred_fallthru
          _
        // Predicated region
        $region65: #{tpu_custom_call.1} parent=55 // pred_check
          %p382 = pneg %p147
        $region66: #{tpu_custom_call.1} parent=55 // pred_check_branch
          %384 = sbr.rel (%p382) target = $region68
        $region67: #{tpu_custom_call.1} parent=55 // pred_region
          %386 = dma.done [#allocation12], 5120
        $region68: #{tpu_custom_call.1} parent=55 // pred_fallthru
          _
        // Predicated region
        $region69: #{tpu_custom_call.1} parent=55 // pred_check
          %p387 = pneg %p189
        $region70: #{tpu_custom_call.1} parent=55 // pred_check_branch
          %389 = sbr.rel (%p387) target = $region72
        $region71: #{tpu_custom_call.1} parent=55 // pred_region
          %391 = dma.done [#allocation15], 10240
        $region72: #{tpu_custom_call.1} parent=55 // pred_fallthru
          _
        %s392 = sand.u32 %s45, 1
        %s393 = scalar_lea.sflag [#allocation9], %s392
        %s394 = sand.u32 %s45, 1
        %s395 = smul.addr %s394, 256
        %s396 = scalar_lea.vmem [#allocation8], %s395
        %p397 = pneg %p58
        %p398 = pneg %p55
        %p399 = scmp.lt.s32.totalorder %s37, 1
        %s400 = scalar_select %p399, %s37, 1
        %s401 = smul.addr %s400, 16
        %s402 = smul.addr %s401, 8
        %s403 = scalar_lea.vmem %s2, %s402
        %p404 = pneg %p84
        %p405 = pneg %p81
        %p406 = pneg %p105
        %p407 = pneg %p102
        %p408 = pneg %p126
        %p409 = pneg %p123
        %p410 = pneg %p147
        %p411 = pneg %p144
        %p412 = pneg %p168
        %p413 = pneg %p165
        %p414 = pneg %p189
        %p415 = pneg %p186
        %p416 = pneg %p210
        %p417 = pneg %p207
        %p418 = pneg %p231
        %p419 = pneg %p228
        %p420 = pneg %p257
        %p421 = pneg %p254
        %s422 = sand.u32 %s244, 1
        %s423 = scalar_lea.sflag [#allocation10], %s422
        %s424 = sand.u32 %s244, 1
        %s425 = smul.addr %s424, 256
        %s426 = scalar_lea.vmem [#allocation16], %s425
        %p427 = scmp.lt.s32.totalorder %s37, 1
        %s428 = scalar_select %p427, %s37, 1
        %s429 = smul.addr %s428, 16
        %s430 = smul.addr %s429, 8
        %s431 = scalar_lea.vmem %s2, %s430
        %v433 = vld [vmem:[%s371] sm:$0xff]
        %v434 = vld [vmem:[%s371 + $0x8] sm:$0xff]
        %v435 = vld [vmem:[%s371 + $0x10] sm:$0xff]
        %v436 = vld [vmem:[%s371 + $0x18] sm:$0xff]
        %v437 = vld [vmem:[%s371 + $0x20] sm:$0xff]
        %v438 = vld [vmem:[%s371 + $0x28] sm:$0xff]
        %v439 = vld [vmem:[%s371 + $0x30] sm:$0xff]
        %v440 = vld [vmem:[%s371 + $0x38] sm:$0xff]
        %v441 = vld [vmem:[%s371 + $0x40] sm:$0xff]
        %v442 = vld [vmem:[%s371 + $0x48] sm:$0xff]
        %v443 = vld [vmem:[%s371 + $0x50] sm:$0xff]
        %v444 = vld [vmem:[%s371 + $0x58] sm:$0xff]
        %v445 = vld [vmem:[%s371 + $0x60] sm:$0xff]
        %v446 = vld [vmem:[%s371 + $0x68] sm:$0xff]
        %v447 = vld [vmem:[%s371 + $0x70] sm:$0xff]
        %v448 = vld [vmem:[%s371 + $0x78] sm:$0xff]
        %v449 = vld [vmem:[%s371 + $0x80] sm:$0xff]
        %v450 = vld [vmem:[%s371 + $0x88] sm:$0xff]
        %v451 = vld [vmem:[%s371 + $0x90] sm:$0xff]
        %v452 = vld [vmem:[%s371 + $0x98] sm:$0xff]
        %v453 = vld [vmem:[%s371 + $0xa0] sm:$0xff]
        %v454 = vld [vmem:[%s371 + $0xa8] sm:$0xff]
        %v455 = vld [vmem:[%s371 + $0xb0] sm:$0xff]
        %v456 = vld [vmem:[%s371 + $0xb8] sm:$0xff]
        %v457 = vld [vmem:[%s371 + $0xc0] sm:$0xff]
        %v458 = vld [vmem:[%s371 + $0xc8] sm:$0xff]
        %v459 = vld [vmem:[%s371 + $0xd0] sm:$0xff]
        %v460 = vld [vmem:[%s371 + $0xd8] sm:$0xff]
        %v461 = vld [vmem:[%s371 + $0xe0] sm:$0xff]
        %v462 = vld [vmem:[%s371 + $0xe8] sm:$0xff]
        %v463 = vld [vmem:[%s371 + $0xf0] sm:$0xff]
        %v464 = vld [vmem:[%s371 + $0xf8] sm:$0xff]
        %v465 = vlaneseq
        %v466 = vand.u32 %v465, 127
        %v467 = vadd.s32 %v466, 128
        %v468 = vld [vmem:[%s431] sm:$0xff]
        %v469 = vld [vmem:[%s431 + $0x8] sm:$0xff]
        %v470 = vld [vmem:[%s431 + $0x10] sm:$0xff]
        %v471 = vld [vmem:[%s431 + $0x18] sm:$0xff]
        %v472 = vld [vmem:[%s431 + $0x20] sm:$0xff]
        %v473 = vld [vmem:[%s431 + $0x28] sm:$0xff]
        %v474 = vld [vmem:[%s431 + $0x30] sm:$0xff]
        %v475 = vld [vmem:[%s431 + $0x38] sm:$0xff]
        %v476 = vld [vmem:[%s431 + $0x40] sm:$0xff]
        %v477 = vld [vmem:[%s431 + $0x48] sm:$0xff]
        %v478 = vld [vmem:[%s431 + $0x50] sm:$0xff]
        %v479 = vld [vmem:[%s431 + $0x58] sm:$0xff]
        %v480 = vld [vmem:[%s431 + $0x60] sm:$0xff]
        %v481 = vld [vmem:[%s431 + $0x68] sm:$0xff]
        %v482 = vld [vmem:[%s431 + $0x70] sm:$0xff]
        %v483 = vld [vmem:[%s431 + $0x78] sm:$0xff]
        %484 = vset.pattern.permute.xlu0 0
        %485 = vperm.xlu0 %484, %v468
        %v486 = vpop.permute.xlu0 %485
        %487 = vset.pattern.permute.xlu0 0
        %488 = vperm.xlu0 %487, %v469
        %v489 = vpop.permute.xlu0 %488
        %490 = vset.pattern.permute.xlu0 0
        %491 = vperm.xlu0 %490, %v470
        %v492 = vpop.permute.xlu0 %491
        %493 = vset.pattern.permute.xlu0 0
        %494 = vperm.xlu0 %493, %v471
        %v495 = vpop.permute.xlu0 %494
        %496 = vset.pattern.permute.xlu0 0
        %497 = vperm.xlu0 %496, %v472
        %v498 = vpop.permute.xlu0 %497
        %499 = vset.pattern.permute.xlu0 0
        %500 = vperm.xlu0 %499, %v473
        %v501 = vpop.permute.xlu0 %500
        %502 = vset.pattern.permute.xlu0 0
        %503 = vperm.xlu0 %502, %v474
        %v504 = vpop.permute.xlu0 %503
        %505 = vset.pattern.permute.xlu0 0
        %506 = vperm.xlu0 %505, %v475
        %v507 = vpop.permute.xlu0 %506
        %508 = vset.pattern.permute.xlu0 0
        %509 = vperm.xlu0 %508, %v476
        %v510 = vpop.permute.xlu0 %509
        %511 = vset.pattern.permute.xlu0 0
        %512 = vperm.xlu0 %511, %v477
        %v513 = vpop.permute.xlu0 %512
        %514 = vset.pattern.permute.xlu0 0
        %515 = vperm.xlu0 %514, %v478
        %v516 = vpop.permute.xlu0 %515
        %517 = vset.pattern.permute.xlu0 0
        %518 = vperm.xlu0 %517, %v479
        %v519 = vpop.permute.xlu0 %518
        %520 = vset.pattern.permute.xlu0 0
        %521 = vperm.xlu0 %520, %v480
        %v522 = vpop.permute.xlu0 %521
        %523 = vset.pattern.permute.xlu0 0
        %524 = vperm.xlu0 %523, %v481
        %v525 = vpop.permute.xlu0 %524
        %526 = vset.pattern.permute.xlu0 0
        %527 = vperm.xlu0 %526, %v482
        %v528 = vpop.permute.xlu0 %527
        %529 = vset.pattern.permute.xlu0 0
        %530 = vperm.xlu0 %529, %v483
        %v531 = vpop.permute.xlu0 %530
        %vm532 = vcmp.eq.s32.totalorder %v466, %v486
        %vm533 = vcmp.eq.s32.totalorder %v467, %v486
        %vm534 = vcmp.eq.s32.totalorder %v466, %v489
        %vm535 = vcmp.eq.s32.totalorder %v467, %v489
        %vm536 = vcmp.eq.s32.totalorder %v466, %v492
        %vm537 = vcmp.eq.s32.totalorder %v467, %v492
        %vm538 = vcmp.eq.s32.totalorder %v466, %v495
        %vm539 = vcmp.eq.s32.totalorder %v467, %v495
        %vm540 = vcmp.eq.s32.totalorder %v466, %v498
        %vm541 = vcmp.eq.s32.totalorder %v467, %v498
        %vm542 = vcmp.eq.s32.totalorder %v466, %v501
        %vm543 = vcmp.eq.s32.totalorder %v467, %v501
        %vm544 = vcmp.eq.s32.totalorder %v466, %v504
        %vm545 = vcmp.eq.s32.totalorder %v467, %v504
        %vm546 = vcmp.eq.s32.totalorder %v466, %v507
        %vm547 = vcmp.eq.s32.totalorder %v467, %v507
        %vm548 = vcmp.eq.s32.totalorder %v466, %v510
        %vm549 = vcmp.eq.s32.totalorder %v467, %v510
        %vm550 = vcmp.eq.s32.totalorder %v466, %v513
        %vm551 = vcmp.eq.s32.totalorder %v467, %v513
        %vm552 = vcmp.eq.s32.totalorder %v466, %v516
        %vm553 = vcmp.eq.s32.totalorder %v467, %v516
        %vm554 = vcmp.eq.s32.totalorder %v466, %v519
        %vm555 = vcmp.eq.s32.totalorder %v467, %v519
        %vm556 = vcmp.eq.s32.totalorder %v466, %v522
        %vm557 = vcmp.eq.s32.totalorder %v467, %v522
        %vm558 = vcmp.eq.s32.totalorder %v466, %v525
        %vm559 = vcmp.eq.s32.totalorder %v467, %v525
        %vm560 = vcmp.eq.s32.totalorder %v466, %v528
        %vm561 = vcmp.eq.s32.totalorder %v467, %v528
        %vm562 = vcmp.eq.s32.totalorder %v466, %v531
        %vm563 = vcmp.eq.s32.totalorder %v467, %v531
        %v564 = vsel %vm532, 1, 0
        %v565 = vsel %vm533, 1, 0
        %v566 = vsel %vm534, 1, 0
        %v567 = vsel %vm535, 1, 0
        %v568 = vsel %vm536, 1, 0
        %v569 = vsel %vm537, 1, 0
        %v570 = vsel %vm538, 1, 0
        %v571 = vsel %vm539, 1, 0
        %v572 = vsel %vm540, 1, 0
        %v573 = vsel %vm541, 1, 0
        %v574 = vsel %vm542, 1, 0
        %v575 = vsel %vm543, 1, 0
        %v576 = vsel %vm544, 1, 0
        %v577 = vsel %vm545, 1, 0
        %v578 = vsel %vm546, 1, 0
        %v579 = vsel %vm547, 1, 0
        %v580 = vsel %vm548, 1, 0
        %v581 = vsel %vm549, 1, 0
        %v582 = vsel %vm550, 1, 0
        %v583 = vsel %vm551, 1, 0
        %v584 = vsel %vm552, 1, 0
        %v585 = vsel %vm553, 1, 0
        %v586 = vsel %vm554, 1, 0
        %v587 = vsel %vm555, 1, 0
        %v588 = vsel %vm556, 1, 0
        %v589 = vsel %vm557, 1, 0
        %v590 = vsel %vm558, 1, 0
        %v591 = vsel %vm559, 1, 0
        %v592 = vsel %vm560, 1, 0
        %v593 = vsel %vm561, 1, 0
        %v594 = vsel %vm562, 1, 0
        %v595 = vsel %vm563, 1, 0
        %v596 = vcvt.s32.f32 %v564
        %v597 = vcvt.s32.f32 %v565
        %v598 = vcvt.s32.f32 %v566
        %v599 = vcvt.s32.f32 %v567
        %v600 = vcvt.s32.f32 %v568
        %v601 = vcvt.s32.f32 %v569
        %v602 = vcvt.s32.f32 %v570
        %v603 = vcvt.s32.f32 %v571
        %v604 = vcvt.s32.f32 %v572
        %v605 = vcvt.s32.f32 %v573
        %v606 = vcvt.s32.f32 %v574
        %v607 = vcvt.s32.f32 %v575
        %v608 = vcvt.s32.f32 %v576
        %v609 = vcvt.s32.f32 %v577
        %v610 = vcvt.s32.f32 %v578
        %v611 = vcvt.s32.f32 %v579
        %v612 = vcvt.s32.f32 %v580
        %v613 = vcvt.s32.f32 %v581
        %v614 = vcvt.s32.f32 %v582
        %v615 = vcvt.s32.f32 %v583
        %v616 = vcvt.s32.f32 %v584
        %v617 = vcvt.s32.f32 %v585
        %v618 = vcvt.s32.f32 %v586
        %v619 = vcvt.s32.f32 %v587
        %v620 = vcvt.s32.f32 %v588
        %v621 = vcvt.s32.f32 %v589
        %v622 = vcvt.s32.f32 %v590
        %v623 = vcvt.s32.f32 %v591
        %v624 = vcvt.s32.f32 %v592
        %v625 = vcvt.s32.f32 %v593
        %v626 = vcvt.s32.f32 %v594
        %v627 = vcvt.s32.f32 %v595
        %v628 = vpack.c.bf16 %v597, %v596
        %v629 = vpack.c.bf16 %v599, %v598
        %v630 = vpack.c.bf16 %v601, %v600
        %v631 = vpack.c.bf16 %v603, %v602
        %v632 = vpack.c.bf16 %v605, %v604
        %v633 = vpack.c.bf16 %v607, %v606
        %v634 = vpack.c.bf16 %v609, %v608
        %v635 = vpack.c.bf16 %v611, %v610
        %v636 = vpack.c.bf16 %v613, %v612
        %v637 = vpack.c.bf16 %v615, %v614
        %v638 = vpack.c.bf16 %v617, %v616
        %v639 = vpack.c.bf16 %v619, %v618
        %v640 = vpack.c.bf16 %v621, %v620
        %v641 = vpack.c.bf16 %v623, %v622
        %v642 = vpack.c.bf16 %v625, %v624
        %v643 = vpack.c.bf16 %v627, %v626
        %644 = vst [vmem:[#allocation5] sm:$0xff] %v628
        %645 = vst [vmem:[#allocation5 + $0x8] sm:$0xff] %v629
        %646 = vst [vmem:[#allocation5 + $0x10] sm:$0xff] %v630
        %647 = vst [vmem:[#allocation5 + $0x18] sm:$0xff] %v631
        %648 = vst [vmem:[#allocation5 + $0x20] sm:$0xff] %v632
        %649 = vst [vmem:[#allocation5 + $0x28] sm:$0xff] %v633
        %650 = vst [vmem:[#allocation5 + $0x30] sm:$0xff] %v634
        %651 = vst [vmem:[#allocation5 + $0x38] sm:$0xff] %v635
        %652 = vst [vmem:[#allocation5 + $0x40] sm:$0xff] %v636
        %653 = vst [vmem:[#allocation5 + $0x48] sm:$0xff] %v637
        %654 = vst [vmem:[#allocation5 + $0x50] sm:$0xff] %v638
        %655 = vst [vmem:[#allocation5 + $0x58] sm:$0xff] %v639
        %656 = vst [vmem:[#allocation5 + $0x60] sm:$0xff] %v640
        %657 = vst [vmem:[#allocation5 + $0x68] sm:$0xff] %v641
        %658 = vst [vmem:[#allocation5 + $0x70] sm:$0xff] %v642
        %659 = vst [vmem:[#allocation5 + $0x78] sm:$0xff] %v643
        %v660 = vmax.f32 %v433, 0.0
        %v661 = vmax.f32 %v434, 0.0
        %v662 = vmax.f32 %v435, 0.0
        %v663 = vmax.f32 %v436, 0.0
        %v664 = vmax.f32 %v437, 0.0
        %v665 = vmax.f32 %v438, 0.0
        %v666 = vmax.f32 %v439, 0.0
        %v667 = vmax.f32 %v440, 0.0
        %v668 = vmax.f32 %v441, 0.0
        %v669 = vmax.f32 %v442, 0.0
        %v670 = vmax.f32 %v443, 0.0
        %v671 = vmax.f32 %v444, 0.0
        %v672 = vmax.f32 %v445, 0.0
        %v673 = vmax.f32 %v446, 0.0
        %v674 = vmax.f32 %v447, 0.0
        %v675 = vmax.f32 %v448, 0.0
        %v676 = vmax.f32 %v449, 0.0
        %v677 = vmax.f32 %v450, 0.0
        %v678 = vmax.f32 %v451, 0.0
        %v679 = vmax.f32 %v452, 0.0
        %v680 = vmax.f32 %v453, 0.0
        %v681 = vmax.f32 %v454, 0.0
        %v682 = vmax.f32 %v455, 0.0
        %v683 = vmax.f32 %v456, 0.0
        %v684 = vmax.f32 %v457, 0.0
        %v685 = vmax.f32 %v458, 0.0
        %v686 = vmax.f32 %v459, 0.0
        %v687 = vmax.f32 %v460, 0.0
        %v688 = vmax.f32 %v461, 0.0
        %v689 = vmax.f32 %v462, 0.0
        %v690 = vmax.f32 %v463, 0.0
        %v691 = vmax.f32 %v464, 0.0
        %v692 = vld [vmem:[#allocation11] sm:$0xf]
        %v693 = vld [vmem:[#allocation11 + $0x4] sm:$0xf]
        %v694 = vld [vmem:[#allocation11 + $0x8] sm:$0xf]
        %v695 = vld [vmem:[#allocation11 + $0xc] sm:$0xf]
        %v696 = vld [vmem:[#allocation11 + $0x10] sm:$0xf]
        %v697 = vld [vmem:[#allocation11 + $0x14] sm:$0xf]
        %v698 = vld [vmem:[#allocation11 + $0x18] sm:$0xf]
        %v699 = vld [vmem:[#allocation11 + $0x1c] sm:$0xf]
        %v700 = vld [vmem:[#allocation11 + $0x20] sm:$0xf]
        %v701 = vld [vmem:[#allocation11 + $0x24] sm:$0xf]
        %v702 = vld [vmem:[#allocation11 + $0x28] sm:$0xf]
        %v703 = vld [vmem:[#allocation11 + $0x2c] sm:$0xf]
        %v704 = vld [vmem:[#allocation11 + $0x30] sm:$0xf]
        %v705 = vld [vmem:[#allocation11 + $0x34] sm:$0xf]
        %v706 = vld [vmem:[#allocation11 + $0x38] sm:$0xf]
        %v707 = vld [vmem:[#allocation11 + $0x3c] sm:$0xf]
        %v708 = vld [vmem:[#allocation11 + $0x40] sm:$0xf]
        %v709 = vld [vmem:[#allocation11 + $0x44] sm:$0xf]
        %v710 = vld [vmem:[#allocation11 + $0x48] sm:$0xf]
        %v711 = vld [vmem:[#allocation11 + $0x4c] sm:$0xf]
        %v712 = vld [vmem:[#allocation11 + $0x50] sm:$0xf]
        %v713 = vld [vmem:[#allocation11 + $0x54] sm:$0xf]
        %v714 = vld [vmem:[#allocation11 + $0x58] sm:$0xf]
        %v715 = vld [vmem:[#allocation11 + $0x5c] sm:$0xf]
        %v716 = vld [vmem:[#allocation11 + $0x60] sm:$0xf]
        %v717 = vld [vmem:[#allocation11 + $0x64] sm:$0xf]
        %v718 = vld [vmem:[#allocation11 + $0x68] sm:$0xf]
        %v719 = vld [vmem:[#allocation11 + $0x6c] sm:$0xf]
        %v720 = vld [vmem:[#allocation11 + $0x70] sm:$0xf]
        %v721 = vld [vmem:[#allocation11 + $0x74] sm:$0xf]
        %v722 = vld [vmem:[#allocation11 + $0x78] sm:$0xf]
        %v723 = vld [vmem:[#allocation11 + $0x7c] sm:$0xf]
        %v724 = vld [vmem:[%s4] sm:$0x1]
        %v725 = vpack.c.bf16 %v662, %v660
        %v726 = vpack.c.bf16 %v663, %v661
        %v727 = vpack.c.bf16 %v666, %v664
        %v728 = vpack.c.bf16 %v667, %v665
        %v729 = vpack.c.bf16 %v670, %v668
        %v730 = vpack.c.bf16 %v671, %v669
        %v731 = vpack.c.bf16 %v674, %v672
        %v732 = vpack.c.bf16 %v675, %v673
        %v733 = vpack.c.bf16 %v678, %v676
        %v734 = vpack.c.bf16 %v679, %v677
        %v735 = vpack.c.bf16 %v682, %v680
        %v736 = vpack.c.bf16 %v683, %v681
        %v737 = vpack.c.bf16 %v686, %v684
        %v738 = vpack.c.bf16 %v687, %v685
        %v739 = vpack.c.bf16 %v690, %v688
        %v740 = vpack.c.bf16 %v691, %v689
        %v742 = vperm.slane %v724, 0
        %v776 = vunpack.c.l.b16 %v692
        %v777 = vunpack.c.l.b16 %v693
        %v778 = vunpack.c.l.b16 %v694
        %v779 = vunpack.c.l.b16 %v695
        %v780 = vunpack.c.l.b16 %v696
        %v781 = vunpack.c.l.b16 %v697
        %v782 = vunpack.c.l.b16 %v698
        %v783 = vunpack.c.l.b16 %v699
        %v784 = vunpack.c.l.b16 %v700
        %v785 = vunpack.c.l.b16 %v701
        %v786 = vunpack.c.l.b16 %v702
        %v787 = vunpack.c.l.b16 %v703
        %v788 = vunpack.c.l.b16 %v704
        %v789 = vunpack.c.l.b16 %v705
        %v790 = vunpack.c.l.b16 %v706
        %v791 = vunpack.c.l.b16 %v707
        %v792 = vunpack.c.l.b16 %v708
        %v793 = vunpack.c.l.b16 %v709
        %v794 = vunpack.c.l.b16 %v710
        %v795 = vunpack.c.l.b16 %v711
        %v796 = vunpack.c.l.b16 %v712
        %v797 = vunpack.c.l.b16 %v713
        %v798 = vunpack.c.l.b16 %v714
        %v799 = vunpack.c.l.b16 %v715
        %v800 = vunpack.c.l.b16 %v716
        %v801 = vunpack.c.l.b16 %v717
        %v802 = vunpack.c.l.b16 %v718
        %v803 = vunpack.c.l.b16 %v719
        %v804 = vunpack.c.l.b16 %v720
        %v805 = vunpack.c.l.b16 %v721
        %v806 = vunpack.c.l.b16 %v722
        %v807 = vunpack.c.l.b16 %v723
        %v808 = vpack.c.b16 %v777, %v776
        %v809 = vpack.c.b16 %v779, %v778
        %v810 = vpack.c.b16 %v781, %v780
        %v811 = vpack.c.b16 %v783, %v782
        %v812 = vpack.c.b16 %v785, %v784
        %v813 = vpack.c.b16 %v787, %v786
        %v814 = vpack.c.b16 %v789, %v788
        %v815 = vpack.c.b16 %v791, %v790
        %v816 = vpack.c.b16 %v793, %v792
        %v817 = vpack.c.b16 %v795, %v794
        %v818 = vpack.c.b16 %v797, %v796
        %v819 = vpack.c.b16 %v799, %v798
        %v820 = vpack.c.b16 %v801, %v800
        %v821 = vpack.c.b16 %v803, %v802
        %v822 = vpack.c.b16 %v805, %v804
        %v823 = vpack.c.b16 %v807, %v806
        %840 = vmatpush.bf16.msra.mxu0 %v815
        %841 = vmatpush.bf16.msra.mxu0 %v814
        %842 = vmatpush.bf16.msra.mxu0 %v813
        %843 = vmatpush.bf16.msra.mxu0 %v812
        %844 = vmatpush.bf16.msra.mxu0 %v811
        %845 = vmatpush.bf16.msra.mxu0 %v810
        %846 = vmatpush.bf16.msra.mxu0 %v809
        %847 = vmatpush.bf16.msra.mxu0 %v808
        %848 = vmatmul.bf16.gmra.mxu0 %v725
        %v849 = vpop.f32.mrf.mxu0
        %v850 = vadd.f32 %v742, %v849
        %v851 = vpop.f32.mrf.mxu0
        %v852 = vadd.f32 %v742, %v851
        %853 = vmatmul.bf16.gmra.mxu0 %v727
        %v854 = vpop.f32.mrf.mxu0
        %v855 = vadd.f32 %v742, %v854
        %v856 = vpop.f32.mrf.mxu0
        %v857 = vadd.f32 %v742, %v856
        %858 = vmatmul.bf16.gmra.mxu0 %v729
        %v859 = vpop.f32.mrf.mxu0
        %v860 = vadd.f32 %v742, %v859
        %v861 = vpop.f32.mrf.mxu0
        %v862 = vadd.f32 %v742, %v861
        %863 = vmatmul.bf16.gmra.mxu0 %v731
        %v864 = vpop.f32.mrf.mxu0
        %v865 = vadd.f32 %v742, %v864
        %v866 = vpop.f32.mrf.mxu0
        %v867 = vadd.f32 %v742, %v866
        %868 = vmatmul.bf16.gmra.mxu0 %v733
        %v869 = vpop.f32.mrf.mxu0
        %v870 = vadd.f32 %v742, %v869
        %v871 = vpop.f32.mrf.mxu0
        %v872 = vadd.f32 %v742, %v871
        %873 = vmatmul.bf16.gmra.mxu0 %v735
        %v874 = vpop.f32.mrf.mxu0
        %v875 = vadd.f32 %v742, %v874
        %v876 = vpop.f32.mrf.mxu0
        %v877 = vadd.f32 %v742, %v876
        %878 = vmatmul.bf16.gmra.mxu0 %v737
        %v879 = vpop.f32.mrf.mxu0
        %v880 = vadd.f32 %v742, %v879
        %v881 = vpop.f32.mrf.mxu0
        %v882 = vadd.f32 %v742, %v881
        %883 = vmatmul.bf16.gmra.mxu0 %v739
        %v884 = vpop.f32.mrf.mxu0
        %v885 = vadd.f32 %v742, %v884
        %v886 = vpop.f32.mrf.mxu0
        %v887 = vadd.f32 %v742, %v886
        %888 = vdwg.mxu0
        %889 = vmatpush.bf16.msra.mxu0 %v823
        %890 = vmatpush.bf16.msra.mxu0 %v822
        %891 = vmatpush.bf16.msra.mxu0 %v821
        %892 = vmatpush.bf16.msra.mxu0 %v820
        %893 = vmatpush.bf16.msra.mxu0 %v819
        %894 = vmatpush.bf16.msra.mxu0 %v818
        %895 = vmatpush.bf16.msra.mxu0 %v817
        %896 = vmatpush.bf16.msra.mxu0 %v816
        %897 = vmatmul.bf16.gmra.mxu0 %v726
        %v898 = vpop.f32.mrf.mxu0
        %v899 = vadd.f32 %v850, %v898
        %v900 = vpop.f32.mrf.mxu0
        %v901 = vadd.f32 %v852, %v900
        %902 = vmatmul.bf16.gmra.mxu0 %v728
        %v903 = vpop.f32.mrf.mxu0
        %v904 = vadd.f32 %v855, %v903
        %v905 = vpop.f32.mrf.mxu0
        %v906 = vadd.f32 %v857, %v905
        %907 = vmatmul.bf16.gmra.mxu0 %v730
        %v908 = vpop.f32.mrf.mxu0
        %v909 = vadd.f32 %v860, %v908
        %v910 = vpop.f32.mrf.mxu0
        %v911 = vadd.f32 %v862, %v910
        %912 = vmatmul.bf16.gmra.mxu0 %v732
        %v913 = vpop.f32.mrf.mxu0
        %v914 = vadd.f32 %v865, %v913
        %v915 = vpop.f32.mrf.mxu0
        %v916 = vadd.f32 %v867, %v915
        %917 = vmatmul.bf16.gmra.mxu0 %v734
        %v918 = vpop.f32.mrf.mxu0
        %v919 = vadd.f32 %v870, %v918
        %v920 = vpop.f32.mrf.mxu0
        %v921 = vadd.f32 %v872, %v920
        %922 = vmatmul.bf16.gmra.mxu0 %v736
        %v923 = vpop.f32.mrf.mxu0
        %v924 = vadd.f32 %v875, %v923
        %v925 = vpop.f32.mrf.mxu0
        %v926 = vadd.f32 %v877, %v925
        %927 = vmatmul.bf16.gmra.mxu0 %v738
        %v928 = vpop.f32.mrf.mxu0
        %v929 = vadd.f32 %v880, %v928
        %v930 = vpop.f32.mrf.mxu0
        %v931 = vadd.f32 %v882, %v930
        %932 = vmatmul.bf16.gmra.mxu0 %v740
        %v933 = vpop.f32.mrf.mxu0
        %v934 = vadd.f32 %v885, %v933
        %v935 = vpop.f32.mrf.mxu0
        %v936 = vadd.f32 %v887, %v935
        %937 = vdwg.mxu0
        %v938 = vmax.f32 %v899, 0.0
        %v939 = vmax.f32 %v901, 0.0
        %v940 = vmax.f32 %v904, 0.0
        %v941 = vmax.f32 %v906, 0.0
        %v942 = vmax.f32 %v909, 0.0
        %v943 = vmax.f32 %v911, 0.0
        %v944 = vmax.f32 %v914, 0.0
        %v945 = vmax.f32 %v916, 0.0
        %v946 = vmax.f32 %v919, 0.0
        %v947 = vmax.f32 %v921, 0.0
        %v948 = vmax.f32 %v924, 0.0
        %v949 = vmax.f32 %v926, 0.0
        %v950 = vmax.f32 %v929, 0.0
        %v951 = vmax.f32 %v931, 0.0
        %v952 = vmax.f32 %v934, 0.0
        %v953 = vmax.f32 %v936, 0.0
        %v954 = vld [vmem:[#allocation13] sm:$0xf]
        %v955 = vld [vmem:[#allocation13 + $0x4] sm:$0xf]
        %v956 = vld [vmem:[#allocation13 + $0x8] sm:$0xf]
        %v957 = vld [vmem:[#allocation13 + $0xc] sm:$0xf]
        %v958 = vld [vmem:[#allocation13 + $0x10] sm:$0xf]
        %v959 = vld [vmem:[#allocation13 + $0x14] sm:$0xf]
        %v960 = vld [vmem:[#allocation13 + $0x18] sm:$0xf]
        %v961 = vld [vmem:[#allocation13 + $0x1c] sm:$0xf]
        %v962 = vld [vmem:[#allocation13 + $0x20] sm:$0xf]
        %v963 = vld [vmem:[#allocation13 + $0x24] sm:$0xf]
        %v964 = vld [vmem:[#allocation13 + $0x28] sm:$0xf]
        %v965 = vld [vmem:[#allocation13 + $0x2c] sm:$0xf]
        %v966 = vld [vmem:[#allocation13 + $0x30] sm:$0xf]
        %v967 = vld [vmem:[#allocation13 + $0x34] sm:$0xf]
        %v968 = vld [vmem:[#allocation13 + $0x38] sm:$0xf]
        %v969 = vld [vmem:[#allocation13 + $0x3c] sm:$0xf]
        %v970 = vld [vmem:[%s6] sm:$0x1]
        %v971 = vpack.c.bf16 %v939, %v938
        %v972 = vpack.c.bf16 %v941, %v940
        %v973 = vpack.c.bf16 %v943, %v942
        %v974 = vpack.c.bf16 %v945, %v944
        %v975 = vpack.c.bf16 %v947, %v946
        %v976 = vpack.c.bf16 %v949, %v948
        %v977 = vpack.c.bf16 %v951, %v950
        %v978 = vpack.c.bf16 %v953, %v952
        %v980 = vperm.slane %v970, 0
        %v998 = vunpack.c.l.b16 %v954
        %v999 = vunpack.c.l.b16 %v955
        %v1000 = vunpack.c.l.b16 %v956
        %v1001 = vunpack.c.l.b16 %v957
        %v1002 = vunpack.c.l.b16 %v958
        %v1003 = vunpack.c.l.b16 %v959
        %v1004 = vunpack.c.l.b16 %v960
        %v1005 = vunpack.c.l.b16 %v961
        %v1006 = vunpack.c.l.b16 %v962
        %v1007 = vunpack.c.l.b16 %v963
        %v1008 = vunpack.c.l.b16 %v964
        %v1009 = vunpack.c.l.b16 %v965
        %v1010 = vunpack.c.l.b16 %v966
        %v1011 = vunpack.c.l.b16 %v967
        %v1012 = vunpack.c.l.b16 %v968
        %v1013 = vunpack.c.l.b16 %v969
        %v1014 = vpack.c.b16 %v999, %v998
        %v1015 = vpack.c.b16 %v1001, %v1000
        %v1016 = vpack.c.b16 %v1003, %v1002
        %v1017 = vpack.c.b16 %v1005, %v1004
        %v1018 = vpack.c.b16 %v1007, %v1006
        %v1019 = vpack.c.b16 %v1009, %v1008
        %v1020 = vpack.c.b16 %v1011, %v1010
        %v1021 = vpack.c.b16 %v1013, %v1012
        %1030 = vmatpush.bf16.msra.mxu0 %v1021
        %1031 = vmatpush.bf16.msra.mxu0 %v1020
        %1032 = vmatpush.bf16.msra.mxu0 %v1019
        %1033 = vmatpush.bf16.msra.mxu0 %v1018
        %1034 = vmatpush.bf16.msra.mxu0 %v1017
        %1035 = vmatpush.bf16.msra.mxu0 %v1016
        %1036 = vmatpush.bf16.msra.mxu0 %v1015
        %1037 = vmatpush.bf16.msra.mxu0 %v1014
        %1038 = vmatmul.bf16.gmra.mxu0 %v971
        %v1039 = vpop.f32.mrf.mxu0
        %v1040 = vadd.f32 %v980, %v1039
        %v1041 = vpop.f32.mrf.mxu0
        %v1042 = vadd.f32 %v980, %v1041
        %1043 = vmatmul.bf16.gmra.mxu0 %v972
        %v1044 = vpop.f32.mrf.mxu0
        %v1045 = vadd.f32 %v980, %v1044
        %v1046 = vpop.f32.mrf.mxu0
        %v1047 = vadd.f32 %v980, %v1046
        %1048 = vmatmul.bf16.gmra.mxu0 %v973
        %v1049 = vpop.f32.mrf.mxu0
        %v1050 = vadd.f32 %v980, %v1049
        %v1051 = vpop.f32.mrf.mxu0
        %v1052 = vadd.f32 %v980, %v1051
        %1053 = vmatmul.bf16.gmra.mxu0 %v974
        %v1054 = vpop.f32.mrf.mxu0
        %v1055 = vadd.f32 %v980, %v1054
        %v1056 = vpop.f32.mrf.mxu0
        %v1057 = vadd.f32 %v980, %v1056
        %1058 = vmatmul.bf16.gmra.mxu0 %v975
        %v1059 = vpop.f32.mrf.mxu0
        %v1060 = vadd.f32 %v980, %v1059
        %v1061 = vpop.f32.mrf.mxu0
        %v1062 = vadd.f32 %v980, %v1061
        %1063 = vmatmul.bf16.gmra.mxu0 %v976
        %v1064 = vpop.f32.mrf.mxu0
        %v1065 = vadd.f32 %v980, %v1064
        %v1066 = vpop.f32.mrf.mxu0
        %v1067 = vadd.f32 %v980, %v1066
        %1068 = vmatmul.bf16.gmra.mxu0 %v977
        %v1069 = vpop.f32.mrf.mxu0
        %v1070 = vadd.f32 %v980, %v1069
        %v1071 = vpop.f32.mrf.mxu0
        %v1072 = vadd.f32 %v980, %v1071
        %1073 = vmatmul.bf16.gmra.mxu0 %v978
        %v1074 = vpop.f32.mrf.mxu0
        %v1075 = vadd.f32 %v980, %v1074
        %v1076 = vpop.f32.mrf.mxu0
        %v1077 = vadd.f32 %v980, %v1076
        %1078 = vdwg.mxu0
        %v1079 = vpack.c.bf16 %v435, %v433
        %v1080 = vpack.c.bf16 %v436, %v434
        %v1081 = vpack.c.bf16 %v439, %v437
        %v1082 = vpack.c.bf16 %v440, %v438
        %v1083 = vpack.c.bf16 %v443, %v441
        %v1084 = vpack.c.bf16 %v444, %v442
        %v1085 = vpack.c.bf16 %v447, %v445
        %v1086 = vpack.c.bf16 %v448, %v446
        %v1087 = vpack.c.bf16 %v451, %v449
        %v1088 = vpack.c.bf16 %v452, %v450
        %v1089 = vpack.c.bf16 %v455, %v453
        %v1090 = vpack.c.bf16 %v456, %v454
        %v1091 = vpack.c.bf16 %v459, %v457
        %v1092 = vpack.c.bf16 %v460, %v458
        %v1093 = vpack.c.bf16 %v463, %v461
        %v1094 = vpack.c.bf16 %v464, %v462
        %v1095 = vld [vmem:[#allocation14] sm:$0xf]
        %v1096 = vld [vmem:[#allocation14 + $0x4] sm:$0xf]
        %v1097 = vld [vmem:[#allocation14 + $0x8] sm:$0xf]
        %v1098 = vld [vmem:[#allocation14 + $0xc] sm:$0xf]
        %v1099 = vld [vmem:[#allocation14 + $0x10] sm:$0xf]
        %v1100 = vld [vmem:[#allocation14 + $0x14] sm:$0xf]
        %v1101 = vld [vmem:[#allocation14 + $0x18] sm:$0xf]
        %v1102 = vld [vmem:[#allocation14 + $0x1c] sm:$0xf]
        %v1103 = vld [vmem:[#allocation14 + $0x20] sm:$0xf]
        %v1104 = vld [vmem:[#allocation14 + $0x24] sm:$0xf]
        %v1105 = vld [vmem:[#allocation14 + $0x28] sm:$0xf]
        %v1106 = vld [vmem:[#allocation14 + $0x2c] sm:$0xf]
        %v1107 = vld [vmem:[#allocation14 + $0x30] sm:$0xf]
        %v1108 = vld [vmem:[#allocation14 + $0x34] sm:$0xf]
        %v1109 = vld [vmem:[#allocation14 + $0x38] sm:$0xf]
        %v1110 = vld [vmem:[#allocation14 + $0x3c] sm:$0xf]
        %v1111 = vld [vmem:[#allocation14 + $0x40] sm:$0xf]
        %v1112 = vld [vmem:[#allocation14 + $0x44] sm:$0xf]
        %v1113 = vld [vmem:[#allocation14 + $0x48] sm:$0xf]
        %v1114 = vld [vmem:[#allocation14 + $0x4c] sm:$0xf]
        %v1115 = vld [vmem:[#allocation14 + $0x50] sm:$0xf]
        %v1116 = vld [vmem:[#allocation14 + $0x54] sm:$0xf]
        %v1117 = vld [vmem:[#allocation14 + $0x58] sm:$0xf]
        %v1118 = vld [vmem:[#allocation14 + $0x5c] sm:$0xf]
        %v1119 = vld [vmem:[#allocation14 + $0x60] sm:$0xf]
        %v1120 = vld [vmem:[#allocation14 + $0x64] sm:$0xf]
        %v1121 = vld [vmem:[#allocation14 + $0x68] sm:$0xf]
        %v1122 = vld [vmem:[#allocation14 + $0x6c] sm:$0xf]
        %v1123 = vld [vmem:[#allocation14 + $0x70] sm:$0xf]
        %v1124 = vld [vmem:[#allocation14 + $0x74] sm:$0xf]
        %v1125 = vld [vmem:[#allocation14 + $0x78] sm:$0xf]
        %v1126 = vld [vmem:[#allocation14 + $0x7c] sm:$0xf]
        %v1159 = vunpack.c.l.b16 %v1095
        %v1160 = vunpack.c.l.b16 %v1096
        %v1161 = vunpack.c.l.b16 %v1097
        %v1162 = vunpack.c.l.b16 %v1098
        %v1163 = vunpack.c.l.b16 %v1099
        %v1164 = vunpack.c.l.b16 %v1100
        %v1165 = vunpack.c.l.b16 %v1101
        %v1166 = vunpack.c.l.b16 %v1102
        %v1167 = vunpack.c.l.b16 %v1103
        %v1168 = vunpack.c.l.b16 %v1104
        %v1169 = vunpack.c.l.b16 %v1105
        %v1170 = vunpack.c.l.b16 %v1106
        %v1171 = vunpack.c.l.b16 %v1107
        %v1172 = vunpack.c.l.b16 %v1108
        %v1173 = vunpack.c.l.b16 %v1109
        %v1174 = vunpack.c.l.b16 %v1110
        %v1175 = vunpack.c.l.b16 %v1111
        %v1176 = vunpack.c.l.b16 %v1112
        %v1177 = vunpack.c.l.b16 %v1113
        %v1178 = vunpack.c.l.b16 %v1114
        %v1179 = vunpack.c.l.b16 %v1115
        %v1180 = vunpack.c.l.b16 %v1116
        %v1181 = vunpack.c.l.b16 %v1117
        %v1182 = vunpack.c.l.b16 %v1118
        %v1183 = vunpack.c.l.b16 %v1119
        %v1184 = vunpack.c.l.b16 %v1120
        %v1185 = vunpack.c.l.b16 %v1121
        %v1186 = vunpack.c.l.b16 %v1122
        %v1187 = vunpack.c.l.b16 %v1123
        %v1188 = vunpack.c.l.b16 %v1124
        %v1189 = vunpack.c.l.b16 %v1125
        %v1190 = vunpack.c.l.b16 %v1126
        %v1191 = vpack.c.b16 %v1160, %v1159
        %v1192 = vpack.c.b16 %v1162, %v1161
        %v1193 = vpack.c.b16 %v1164, %v1163
        %v1194 = vpack.c.b16 %v1166, %v1165
        %v1195 = vpack.c.b16 %v1168, %v1167
        %v1196 = vpack.c.b16 %v1170, %v1169
        %v1197 = vpack.c.b16 %v1172, %v1171
        %v1198 = vpack.c.b16 %v1174, %v1173
        %v1199 = vpack.c.b16 %v1176, %v1175
        %v1200 = vpack.c.b16 %v1178, %v1177
        %v1201 = vpack.c.b16 %v1180, %v1179
        %v1202 = vpack.c.b16 %v1182, %v1181
        %v1203 = vpack.c.b16 %v1184, %v1183
        %v1204 = vpack.c.b16 %v1186, %v1185
        %v1205 = vpack.c.b16 %v1188, %v1187
        %v1206 = vpack.c.b16 %v1190, %v1189
        %1223 = vmatpush.bf16.msra.mxu0 %v1198
        %1224 = vmatpush.bf16.msra.mxu0 %v1197
        %1225 = vmatpush.bf16.msra.mxu0 %v1196
        %1226 = vmatpush.bf16.msra.mxu0 %v1195
        %1227 = vmatpush.bf16.msra.mxu0 %v1194
        %1228 = vmatpush.bf16.msra.mxu0 %v1193
        %1229 = vmatpush.bf16.msra.mxu0 %v1192
        %1230 = vmatpush.bf16.msra.mxu0 %v1191
        %1231 = vmatmul.bf16.gmra.mxu0 %v1079
        %v1232 = vpop.f32.mrf.mxu0
        %v1233 = vadd.f32 %v1040, %v1232
        %v1234 = vpop.f32.mrf.mxu0
        %v1235 = vadd.f32 %v1042, %v1234
        %1236 = vmatmul.bf16.gmra.mxu0 %v1081
        %v1237 = vpop.f32.mrf.mxu0
        %v1238 = vadd.f32 %v1045, %v1237
        %v1239 = vpop.f32.mrf.mxu0
        %v1240 = vadd.f32 %v1047, %v1239
        %1241 = vmatmul.bf16.gmra.mxu0 %v1083
        %v1242 = vpop.f32.mrf.mxu0
        %v1243 = vadd.f32 %v1050, %v1242
        %v1244 = vpop.f32.mrf.mxu0
        %v1245 = vadd.f32 %v1052, %v1244
        %1246 = vmatmul.bf16.gmra.mxu0 %v1085
        %v1247 = vpop.f32.mrf.mxu0
        %v1248 = vadd.f32 %v1055, %v1247
        %v1249 = vpop.f32.mrf.mxu0
        %v1250 = vadd.f32 %v1057, %v1249
        %1251 = vmatmul.bf16.gmra.mxu0 %v1087
        %v1252 = vpop.f32.mrf.mxu0
        %v1253 = vadd.f32 %v1060, %v1252
        %v1254 = vpop.f32.mrf.mxu0
        %v1255 = vadd.f32 %v1062, %v1254
        %1256 = vmatmul.bf16.gmra.mxu0 %v1089
        %v1257 = vpop.f32.mrf.mxu0
        %v1258 = vadd.f32 %v1065, %v1257
        %v1259 = vpop.f32.mrf.mxu0
        %v1260 = vadd.f32 %v1067, %v1259
        %1261 = vmatmul.bf16.gmra.mxu0 %v1091
        %v1262 = vpop.f32.mrf.mxu0
        %v1263 = vadd.f32 %v1070, %v1262
        %v1264 = vpop.f32.mrf.mxu0
        %v1265 = vadd.f32 %v1072, %v1264
        %1266 = vmatmul.bf16.gmra.mxu0 %v1093
        %v1267 = vpop.f32.mrf.mxu0
        %v1268 = vadd.f32 %v1075, %v1267
        %v1269 = vpop.f32.mrf.mxu0
        %v1270 = vadd.f32 %v1077, %v1269
        %1271 = vdwg.mxu0
        %1272 = vmatpush.bf16.msra.mxu0 %v1206
        %1273 = vmatpush.bf16.msra.mxu0 %v1205
        %1274 = vmatpush.bf16.msra.mxu0 %v1204
        %1275 = vmatpush.bf16.msra.mxu0 %v1203
        %1276 = vmatpush.bf16.msra.mxu0 %v1202
        %1277 = vmatpush.bf16.msra.mxu0 %v1201
        %1278 = vmatpush.bf16.msra.mxu0 %v1200
        %1279 = vmatpush.bf16.msra.mxu0 %v1199
        %1280 = vmatmul.bf16.gmra.mxu0 %v1080
        %v1281 = vpop.f32.mrf.mxu0
        %v1282 = vadd.f32 %v1233, %v1281
        %v1283 = vpop.f32.mrf.mxu0
        %v1284 = vadd.f32 %v1235, %v1283
        %1285 = vmatmul.bf16.gmra.mxu0 %v1082
        %v1286 = vpop.f32.mrf.mxu0
        %v1287 = vadd.f32 %v1238, %v1286
        %v1288 = vpop.f32.mrf.mxu0
        %v1289 = vadd.f32 %v1240, %v1288
        %1290 = vmatmul.bf16.gmra.mxu0 %v1084
        %v1291 = vpop.f32.mrf.mxu0
        %v1292 = vadd.f32 %v1243, %v1291
        %v1293 = vpop.f32.mrf.mxu0
        %v1294 = vadd.f32 %v1245, %v1293
        %1295 = vmatmul.bf16.gmra.mxu0 %v1086
        %v1296 = vpop.f32.mrf.mxu0
        %v1297 = vadd.f32 %v1248, %v1296
        %v1298 = vpop.f32.mrf.mxu0
        %v1299 = vadd.f32 %v1250, %v1298
        %1300 = vmatmul.bf16.gmra.mxu0 %v1088
        %v1301 = vpop.f32.mrf.mxu0
        %v1302 = vadd.f32 %v1253, %v1301
        %v1303 = vpop.f32.mrf.mxu0
        %v1304 = vadd.f32 %v1255, %v1303
        %1305 = vmatmul.bf16.gmra.mxu0 %v1090
        %v1306 = vpop.f32.mrf.mxu0
        %v1307 = vadd.f32 %v1258, %v1306
        %v1308 = vpop.f32.mrf.mxu0
        %v1309 = vadd.f32 %v1260, %v1308
        %1310 = vmatmul.bf16.gmra.mxu0 %v1092
        %v1311 = vpop.f32.mrf.mxu0
        %v1312 = vadd.f32 %v1263, %v1311
        %v1313 = vpop.f32.mrf.mxu0
        %v1314 = vadd.f32 %v1265, %v1313
        %1315 = vmatmul.bf16.gmra.mxu0 %v1094
        %v1316 = vpop.f32.mrf.mxu0
        %v1317 = vadd.f32 %v1268, %v1316
        %v1318 = vpop.f32.mrf.mxu0
        %v1319 = vadd.f32 %v1270, %v1318
        %1320 = vdwg.mxu0
        %1321 = vst [vmem:[#allocation3] sm:$0xff] %v1282
        %1322 = vst [vmem:[#allocation3 + $0x8] sm:$0xff] %v1284
        %1323 = vst [vmem:[#allocation3 + $0x10] sm:$0xff] %v1287
        %1324 = vst [vmem:[#allocation3 + $0x18] sm:$0xff] %v1289
        %1325 = vst [vmem:[#allocation3 + $0x20] sm:$0xff] %v1292
        %1326 = vst [vmem:[#allocation3 + $0x28] sm:$0xff] %v1294
        %1327 = vst [vmem:[#allocation3 + $0x30] sm:$0xff] %v1297
        %1328 = vst [vmem:[#allocation3 + $0x38] sm:$0xff] %v1299
        %1329 = vst [vmem:[#allocation3 + $0x40] sm:$0xff] %v1302
        %1330 = vst [vmem:[#allocation3 + $0x48] sm:$0xff] %v1304
        %1331 = vst [vmem:[#allocation3 + $0x50] sm:$0xff] %v1307
        %1332 = vst [vmem:[#allocation3 + $0x58] sm:$0xff] %v1309
        %1333 = vst [vmem:[#allocation3 + $0x60] sm:$0xff] %v1312
        %1334 = vst [vmem:[#allocation3 + $0x68] sm:$0xff] %v1314
        %1335 = vst [vmem:[#allocation3 + $0x70] sm:$0xff] %v1317
        %1336 = vst [vmem:[#allocation3 + $0x78] sm:$0xff] %v1319
        %1337 = vst [vmem:[#allocation2] sm:$0xff] %v1282
        %1338 = vst [vmem:[#allocation2 + $0x10] sm:$0xff] %v1284
        %1339 = vst [vmem:[#allocation2 + $0x20] sm:$0xff] %v1287
        %1340 = vst [vmem:[#allocation2 + $0x30] sm:$0xff] %v1289
        %1341 = vst [vmem:[#allocation2 + $0x40] sm:$0xff] %v1292
        %1342 = vst [vmem:[#allocation2 + $0x50] sm:$0xff] %v1294
        %1343 = vst [vmem:[#allocation2 + $0x60] sm:$0xff] %v1297
        %1344 = vst [vmem:[#allocation2 + $0x70] sm:$0xff] %v1299
        %1345 = vst [vmem:[#allocation2 + $0x80] sm:$0xff] %v1302
        %1346 = vst [vmem:[#allocation2 + $0x90] sm:$0xff] %v1304
        %1347 = vst [vmem:[#allocation2 + $0xa0] sm:$0xff] %v1307
        %1348 = vst [vmem:[#allocation2 + $0xb0] sm:$0xff] %v1309
        %1349 = vst [vmem:[#allocation2 + $0xc0] sm:$0xff] %v1312
        %1350 = vst [vmem:[#allocation2 + $0xd0] sm:$0xff] %v1314
        %1351 = vst [vmem:[#allocation2 + $0xe0] sm:$0xff] %v1317
        %1352 = vst [vmem:[#allocation2 + $0xf0] sm:$0xff] %v1319
        %1353 = vst [vmem:[#allocation4] sm:$0xff] -1e+30
        %1354 = vst [vmem:[#allocation4 + $0x8] sm:$0xff] -1e+30
        %1355 = vst [vmem:[#allocation4 + $0x10] sm:$0xff] -1e+30
        %1356 = vst [vmem:[#allocation4 + $0x18] sm:$0xff] -1e+30
        %1357 = vst [vmem:[#allocation4 + $0x20] sm:$0xff] -1e+30
        %1358 = vst [vmem:[#allocation4 + $0x28] sm:$0xff] -1e+30
        %1359 = vst [vmem:[#allocation4 + $0x30] sm:$0xff] -1e+30
        %1360 = vst [vmem:[#allocation4 + $0x38] sm:$0xff] -1e+30
        %1361 = vst [vmem:[#allocation4 + $0x40] sm:$0xff] -1e+30
        %1362 = vst [vmem:[#allocation4 + $0x48] sm:$0xff] -1e+30
        %1363 = vst [vmem:[#allocation4 + $0x50] sm:$0xff] -1e+30
        %1364 = vst [vmem:[#allocation4 + $0x58] sm:$0xff] -1e+30
        %1365 = vst [vmem:[#allocation4 + $0x60] sm:$0xff] -1e+30
        %1366 = vst [vmem:[#allocation4 + $0x68] sm:$0xff] -1e+30
        %1367 = vst [vmem:[#allocation4 + $0x70] sm:$0xff] -1e+30
        %1368 = vst [vmem:[#allocation4 + $0x78] sm:$0xff] -1e+30
        %1369 = vst [vmem:[#allocation4 + $0x80] sm:$0xff] -1e+30
        %1370 = vst [vmem:[#allocation4 + $0x88] sm:$0xff] -1e+30
        %1371 = vst [vmem:[#allocation4 + $0x90] sm:$0xff] -1e+30
        %1372 = vst [vmem:[#allocation4 + $0x98] sm:$0xff] -1e+30
        %1373 = vst [vmem:[#allocation4 + $0xa0] sm:$0xff] -1e+30
        %1374 = vst [vmem:[#allocation4 + $0xa8] sm:$0xff] -1e+30
        %1375 = vst [vmem:[#allocation4 + $0xb0] sm:$0xff] -1e+30
        %1376 = vst [vmem:[#allocation4 + $0xb8] sm:$0xff] -1e+30
        %1377 = vst [vmem:[#allocation4 + $0xc0] sm:$0xff] -1e+30
        %1378 = vst [vmem:[#allocation4 + $0xc8] sm:$0xff] -1e+30
        %1379 = vst [vmem:[#allocation4 + $0xd0] sm:$0xff] -1e+30
        %1380 = vst [vmem:[#allocation4 + $0xd8] sm:$0xff] -1e+30
        %1381 = vst [vmem:[#allocation4 + $0xe0] sm:$0xff] -1e+30
        %1382 = vst [vmem:[#allocation4 + $0xe8] sm:$0xff] -1e+30
        %1383 = vst [vmem:[#allocation4 + $0xf0] sm:$0xff] -1e+30
        %1384 = vst [vmem:[#allocation4 + $0xf8] sm:$0xff] -1e+30
        loop: start=0, step=1, limit=128
        $region73: #{tpu_custom_call.1} parent=55 // loop_pre_header
          _
        $region74: #{tpu_custom_call.1} parent=55 // loop_header
          %s1386 = sphi 0, %s1390
          %p1387 = scmp.ge.s32.totalorder %s1386, 128
        $region75: #{tpu_custom_call.1} parent=55 // loop_header_branch
          %1389 = sbr.rel (%p1387) target = $region79
        $region76: #{tpu_custom_call.1} parent=55 // loop_body
          %s1391 = sshra.s32 %s1386, 7
          %s1392 = sand.u32 %s1386, 127
          %s1393 = sadd.s32 %s1391, %s37
          %s1394 = smul.u32 %s1393, 128
          %s1395 = sshra.s32 %s1386, 7
          %s1396 = sand.u32 %s1386, 127
          %s1397 = sadd.s32 %s1394, %s1396
          %s1398 = sld [smem:[#allocation7 + %s1397]]
          %s1399 = scalar_lea.vmem [#allocation4], %s1398
          %v1400 = vld [vmem:[%s1399] sm:$0x1]
          %s1401 = scalar_lea.vmem [#allocation3], %s1386
          %v1402 = vld [vmem:[%s1401] sm:$0x1]
          %v1403 = vmax.f32 %v1400, %v1402
          %1404 = vst [vmem:[%s1399] sm:$0x1] %v1403
        $region77: #{tpu_custom_call.1} parent=55 // loop_footer
          %s1390 = sadd.s32 1, %s1386
        $region78: #{tpu_custom_call.1} parent=55 // loop_footer_branch
          %1385 = sbr.rel target = $region74
        $region79: #{tpu_custom_call.1} parent=55 // loop_exit
          _
        %v1405 = vld [vmem:[#allocation5] sm:$0xff]
        %v1406 = vld [vmem:[#allocation5 + $0x8] sm:$0xff]
        %v1407 = vld [vmem:[#allocation5 + $0x10] sm:$0xff]
        %v1408 = vld [vmem:[#allocation5 + $0x18] sm:$0xff]
        %v1409 = vld [vmem:[#allocation5 + $0x20] sm:$0xff]
        %v1410 = vld [vmem:[#allocation5 + $0x28] sm:$0xff]
        %v1411 = vld [vmem:[#allocation5 + $0x30] sm:$0xff]
        %v1412 = vld [vmem:[#allocation5 + $0x38] sm:$0xff]
        %v1413 = vld [vmem:[#allocation5 + $0x40] sm:$0xff]
        %v1414 = vld [vmem:[#allocation5 + $0x48] sm:$0xff]
        %v1415 = vld [vmem:[#allocation5 + $0x50] sm:$0xff]
        %v1416 = vld [vmem:[#allocation5 + $0x58] sm:$0xff]
        %v1417 = vld [vmem:[#allocation5 + $0x60] sm:$0xff]
        %v1418 = vld [vmem:[#allocation5 + $0x68] sm:$0xff]
        %v1419 = vld [vmem:[#allocation5 + $0x70] sm:$0xff]
        %v1420 = vld [vmem:[#allocation5 + $0x78] sm:$0xff]
        %v1421 = vld [vmem:[#allocation4] sm:$0xff]
        %v1422 = vld [vmem:[#allocation4 + $0x8] sm:$0xff]
        %v1423 = vld [vmem:[#allocation4 + $0x10] sm:$0xff]
        %v1424 = vld [vmem:[#allocation4 + $0x18] sm:$0xff]
        %v1425 = vld [vmem:[#allocation4 + $0x20] sm:$0xff]
        %v1426 = vld [vmem:[#allocation4 + $0x28] sm:$0xff]
        %v1427 = vld [vmem:[#allocation4 + $0x30] sm:$0xff]
        %v1428 = vld [vmem:[#allocation4 + $0x38] sm:$0xff]
        %v1429 = vld [vmem:[#allocation4 + $0x40] sm:$0xff]
        %v1430 = vld [vmem:[#allocation4 + $0x48] sm:$0xff]
        %v1431 = vld [vmem:[#allocation4 + $0x50] sm:$0xff]
        %v1432 = vld [vmem:[#allocation4 + $0x58] sm:$0xff]
        %v1433 = vld [vmem:[#allocation4 + $0x60] sm:$0xff]
        %v1434 = vld [vmem:[#allocation4 + $0x68] sm:$0xff]
        %v1435 = vld [vmem:[#allocation4 + $0x70] sm:$0xff]
        %v1436 = vld [vmem:[#allocation4 + $0x78] sm:$0xff]
        %v1437 = vld [vmem:[#allocation4 + $0x80] sm:$0xff]
        %v1438 = vld [vmem:[#allocation4 + $0x88] sm:$0xff]
        %v1439 = vld [vmem:[#allocation4 + $0x90] sm:$0xff]
        %v1440 = vld [vmem:[#allocation4 + $0x98] sm:$0xff]
        %v1441 = vld [vmem:[#allocation4 + $0xa0] sm:$0xff]
        %v1442 = vld [vmem:[#allocation4 + $0xa8] sm:$0xff]
        %v1443 = vld [vmem:[#allocation4 + $0xb0] sm:$0xff]
        %v1444 = vld [vmem:[#allocation4 + $0xb8] sm:$0xff]
        %v1445 = vld [vmem:[#allocation4 + $0xc0] sm:$0xff]
        %v1446 = vld [vmem:[#allocation4 + $0xc8] sm:$0xff]
        %v1447 = vld [vmem:[#allocation4 + $0xd0] sm:$0xff]
        %v1448 = vld [vmem:[#allocation4 + $0xd8] sm:$0xff]
        %v1449 = vld [vmem:[#allocation4 + $0xe0] sm:$0xff]
        %v1450 = vld [vmem:[#allocation4 + $0xe8] sm:$0xff]
        %v1451 = vld [vmem:[#allocation4 + $0xf0] sm:$0xff]
        %v1452 = vld [vmem:[#allocation4 + $0xf8] sm:$0xff]
        %v1453 = vpack.c.bf16 %v1422, %v1421
        %v1454 = vpack.c.bf16 %v1424, %v1423
        %v1455 = vpack.c.bf16 %v1426, %v1425
        %v1456 = vpack.c.bf16 %v1428, %v1427
        %v1457 = vpack.c.bf16 %v1430, %v1429
        %v1458 = vpack.c.bf16 %v1432, %v1431
        %v1459 = vpack.c.bf16 %v1434, %v1433
        %v1460 = vpack.c.bf16 %v1436, %v1435
        %v1461 = vpack.c.bf16 %v1438, %v1437
        %v1462 = vpack.c.bf16 %v1440, %v1439
        %v1463 = vpack.c.bf16 %v1442, %v1441
        %v1464 = vpack.c.bf16 %v1444, %v1443
        %v1465 = vpack.c.bf16 %v1446, %v1445
        %v1466 = vpack.c.bf16 %v1448, %v1447
        %v1467 = vpack.c.bf16 %v1450, %v1449
        %v1468 = vpack.c.bf16 %v1452, %v1451
        %v1485 = vunpack.c.l.b16 %v1405
        %v1486 = vunpack.c.h.b16 %v1405
        %v1487 = vunpack.c.l.b16 %v1406
        %v1488 = vunpack.c.h.b16 %v1406
        %v1489 = vunpack.c.l.b16 %v1407
        %v1490 = vunpack.c.h.b16 %v1407
        %v1491 = vunpack.c.l.b16 %v1408
        %v1492 = vunpack.c.h.b16 %v1408
        %v1493 = vunpack.c.l.b16 %v1409
        %v1494 = vunpack.c.h.b16 %v1409
        %v1495 = vunpack.c.l.b16 %v1410
        %v1496 = vunpack.c.h.b16 %v1410
        %v1497 = vunpack.c.l.b16 %v1411
        %v1498 = vunpack.c.h.b16 %v1411
        %v1499 = vunpack.c.l.b16 %v1412
        %v1500 = vunpack.c.h.b16 %v1412
        %v1501 = vunpack.c.l.b16 %v1413
        %v1502 = vunpack.c.h.b16 %v1413
        %v1503 = vunpack.c.l.b16 %v1414
        %v1504 = vunpack.c.h.b16 %v1414
        %v1505 = vunpack.c.l.b16 %v1415
        %v1506 = vunpack.c.h.b16 %v1415
        %v1507 = vunpack.c.l.b16 %v1416
        %v1508 = vunpack.c.h.b16 %v1416
        %v1509 = vunpack.c.l.b16 %v1417
        %v1510 = vunpack.c.h.b16 %v1417
        %v1511 = vunpack.c.l.b16 %v1418
        %v1512 = vunpack.c.h.b16 %v1418
        %v1513 = vunpack.c.l.b16 %v1419
        %v1514 = vunpack.c.h.b16 %v1419
        %v1515 = vunpack.c.l.b16 %v1420
        %v1516 = vunpack.c.h.b16 %v1420
        %v1517 = vpack.c.b16 %v1487, %v1485
        %v1518 = vpack.c.b16 %v1488, %v1486
        %v1519 = vpack.c.b16 %v1491, %v1489
        %v1520 = vpack.c.b16 %v1492, %v1490
        %v1521 = vpack.c.b16 %v1495, %v1493
        %v1522 = vpack.c.b16 %v1496, %v1494
        %v1523 = vpack.c.b16 %v1499, %v1497
        %v1524 = vpack.c.b16 %v1500, %v1498
        %v1525 = vpack.c.b16 %v1503, %v1501
        %v1526 = vpack.c.b16 %v1504, %v1502
        %v1527 = vpack.c.b16 %v1507, %v1505
        %v1528 = vpack.c.b16 %v1508, %v1506
        %v1529 = vpack.c.b16 %v1511, %v1509
        %v1530 = vpack.c.b16 %v1512, %v1510
        %v1531 = vpack.c.b16 %v1515, %v1513
        %v1532 = vpack.c.b16 %v1516, %v1514
        %1549 = vmatpush.bf16.msra.mxu0 %v1460
        %1550 = vmatpush.bf16.msra.mxu0 %v1459
        %1551 = vmatpush.bf16.msra.mxu0 %v1458
        %1552 = vmatpush.bf16.msra.mxu0 %v1457
        %1553 = vmatpush.bf16.msra.mxu0 %v1456
        %1554 = vmatpush.bf16.msra.mxu0 %v1455
        %1555 = vmatpush.bf16.msra.mxu0 %v1454
        %1556 = vmatpush.bf16.msra.mxu0 %v1453
        %1557 = vmatmul.bf16.gmra.mxu0 %v1517
        %v1558 = vpop.f32.mrf.mxu0
        %v1559 = vadd.f32 0.0, %v1558
        %v1560 = vpop.f32.mrf.mxu0
        %v1561 = vadd.f32 0.0, %v1560
        %1562 = vmatmul.bf16.gmra.mxu0 %v1519
        %v1563 = vpop.f32.mrf.mxu0
        %v1564 = vadd.f32 0.0, %v1563
        %v1565 = vpop.f32.mrf.mxu0
        %v1566 = vadd.f32 0.0, %v1565
        %1567 = vmatmul.bf16.gmra.mxu0 %v1521
        %v1568 = vpop.f32.mrf.mxu0
        %v1569 = vadd.f32 0.0, %v1568
        %v1570 = vpop.f32.mrf.mxu0
        %v1571 = vadd.f32 0.0, %v1570
        %1572 = vmatmul.bf16.gmra.mxu0 %v1523
        %v1573 = vpop.f32.mrf.mxu0
        %v1574 = vadd.f32 0.0, %v1573
        %v1575 = vpop.f32.mrf.mxu0
        %v1576 = vadd.f32 0.0, %v1575
        %1577 = vmatmul.bf16.gmra.mxu0 %v1525
        %v1578 = vpop.f32.mrf.mxu0
        %v1579 = vadd.f32 0.0, %v1578
        %v1580 = vpop.f32.mrf.mxu0
        %v1581 = vadd.f32 0.0, %v1580
        %1582 = vmatmul.bf16.gmra.mxu0 %v1527
        %v1583 = vpop.f32.mrf.mxu0
        %v1584 = vadd.f32 0.0, %v1583
        %v1585 = vpop.f32.mrf.mxu0
        %v1586 = vadd.f32 0.0, %v1585
        %1587 = vmatmul.bf16.gmra.mxu0 %v1529
        %v1588 = vpop.f32.mrf.mxu0
        %v1589 = vadd.f32 0.0, %v1588
        %v1590 = vpop.f32.mrf.mxu0
        %v1591 = vadd.f32 0.0, %v1590
        %1592 = vmatmul.bf16.gmra.mxu0 %v1531
        %v1593 = vpop.f32.mrf.mxu0
        %v1594 = vadd.f32 0.0, %v1593
        %v1595 = vpop.f32.mrf.mxu0
        %v1596 = vadd.f32 0.0, %v1595
        %1597 = vdwg.mxu0
        %1598 = vmatpush.bf16.msra.mxu0 %v1468
        %1599 = vmatpush.bf16.msra.mxu0 %v1467
        %1600 = vmatpush.bf16.msra.mxu0 %v1466
        %1601 = vmatpush.bf16.msra.mxu0 %v1465
        %1602 = vmatpush.bf16.msra.mxu0 %v1464
        %1603 = vmatpush.bf16.msra.mxu0 %v1463
        %1604 = vmatpush.bf16.msra.mxu0 %v1462
        %1605 = vmatpush.bf16.msra.mxu0 %v1461
        %1606 = vmatmul.bf16.gmra.mxu0 %v1518
        %v1607 = vpop.f32.mrf.mxu0
        %v1608 = vadd.f32 %v1559, %v1607
        %v1609 = vpop.f32.mrf.mxu0
        %v1610 = vadd.f32 %v1561, %v1609
        %1611 = vmatmul.bf16.gmra.mxu0 %v1520
        %v1612 = vpop.f32.mrf.mxu0
        %v1613 = vadd.f32 %v1564, %v1612
        %v1614 = vpop.f32.mrf.mxu0
        %v1615 = vadd.f32 %v1566, %v1614
        %1616 = vmatmul.bf16.gmra.mxu0 %v1522
        %v1617 = vpop.f32.mrf.mxu0
        %v1618 = vadd.f32 %v1569, %v1617
        %v1619 = vpop.f32.mrf.mxu0
        %v1620 = vadd.f32 %v1571, %v1619
        %1621 = vmatmul.bf16.gmra.mxu0 %v1524
        %v1622 = vpop.f32.mrf.mxu0
        %v1623 = vadd.f32 %v1574, %v1622
        %v1624 = vpop.f32.mrf.mxu0
        %v1625 = vadd.f32 %v1576, %v1624
        %1626 = vmatmul.bf16.gmra.mxu0 %v1526
        %v1627 = vpop.f32.mrf.mxu0
        %v1628 = vadd.f32 %v1579, %v1627
        %v1629 = vpop.f32.mrf.mxu0
        %v1630 = vadd.f32 %v1581, %v1629
        %1631 = vmatmul.bf16.gmra.mxu0 %v1528
        %v1632 = vpop.f32.mrf.mxu0
        %v1633 = vadd.f32 %v1584, %v1632
        %v1634 = vpop.f32.mrf.mxu0
        %v1635 = vadd.f32 %v1586, %v1634
        %1636 = vmatmul.bf16.gmra.mxu0 %v1530
        %v1637 = vpop.f32.mrf.mxu0
        %v1638 = vadd.f32 %v1589, %v1637
        %v1639 = vpop.f32.mrf.mxu0
        %v1640 = vadd.f32 %v1591, %v1639
        %1641 = vmatmul.bf16.gmra.mxu0 %v1532
        %v1642 = vpop.f32.mrf.mxu0
        %v1643 = vadd.f32 %v1594, %v1642
        %v1644 = vpop.f32.mrf.mxu0
        %v1645 = vadd.f32 %v1596, %v1644
        %1646 = vdwg.mxu0
        %1647 = vst [vmem:[#allocation2 + $0x8] sm:$0xff] %v1608
        %1648 = vst [vmem:[#allocation2 + $0x18] sm:$0xff] %v1610
        %1649 = vst [vmem:[#allocation2 + $0x28] sm:$0xff] %v1613
        %1650 = vst [vmem:[#allocation2 + $0x38] sm:$0xff] %v1615
        %1651 = vst [vmem:[#allocation2 + $0x48] sm:$0xff] %v1618
        %1652 = vst [vmem:[#allocation2 + $0x58] sm:$0xff] %v1620
        %1653 = vst [vmem:[#allocation2 + $0x68] sm:$0xff] %v1623
        %1654 = vst [vmem:[#allocation2 + $0x78] sm:$0xff] %v1625
        %1655 = vst [vmem:[#allocation2 + $0x88] sm:$0xff] %v1628
        %1656 = vst [vmem:[#allocation2 + $0x98] sm:$0xff] %v1630
        %1657 = vst [vmem:[#allocation2 + $0xa8] sm:$0xff] %v1633
        %1658 = vst [vmem:[#allocation2 + $0xb8] sm:$0xff] %v1635
        %1659 = vst [vmem:[#allocation2 + $0xc8] sm:$0xff] %v1638
        %1660 = vst [vmem:[#allocation2 + $0xd8] sm:$0xff] %v1640
        %1661 = vst [vmem:[#allocation2 + $0xe8] sm:$0xff] %v1643
        %1662 = vst [vmem:[#allocation2 + $0xf8] sm:$0xff] %v1645
        %v1663 = vld [vmem:[#allocation2] sm:$0xff]
        %v1664 = vld [vmem:[#allocation2 + $0x8] sm:$0xff]
        %v1665 = vld [vmem:[#allocation2 + $0x10] sm:$0xff]
        %v1666 = vld [vmem:[#allocation2 + $0x18] sm:$0xff]
        %v1667 = vld [vmem:[#allocation2 + $0x20] sm:$0xff]
        %v1668 = vld [vmem:[#allocation2 + $0x28] sm:$0xff]
        %v1669 = vld [vmem:[#allocation2 + $0x30] sm:$0xff]
        %v1670 = vld [vmem:[#allocation2 + $0x38] sm:$0xff]
        %v1671 = vld [vmem:[#allocation2 + $0x40] sm:$0xff]
        %v1672 = vld [vmem:[#allocation2 + $0x48] sm:$0xff]
        %v1673 = vld [vmem:[#allocation2 + $0x50] sm:$0xff]
        %v1674 = vld [vmem:[#allocation2 + $0x58] sm:$0xff]
        %v1675 = vld [vmem:[#allocation2 + $0x60] sm:$0xff]
        %v1676 = vld [vmem:[#allocation2 + $0x68] sm:$0xff]
        %v1677 = vld [vmem:[#allocation2 + $0x70] sm:$0xff]
        %v1678 = vld [vmem:[#allocation2 + $0x78] sm:$0xff]
        %v1679 = vld [vmem:[#allocation2 + $0x80] sm:$0xff]
        %v1680 = vld [vmem:[#allocation2 + $0x88] sm:$0xff]
        %v1681 = vld [vmem:[#allocation2 + $0x90] sm:$0xff]
        %v1682 = vld [vmem:[#allocation2 + $0x98] sm:$0xff]
        %v1683 = vld [vmem:[#allocation2 + $0xa0] sm:$0xff]
        %v1684 = vld [vmem:[#allocation2 + $0xa8] sm:$0xff]
        %v1685 = vld [vmem:[#allocation2 + $0xb0] sm:$0xff]
        %v1686 = vld [vmem:[#allocation2 + $0xb8] sm:$0xff]
        %v1687 = vld [vmem:[#allocation2 + $0xc0] sm:$0xff]
        %v1688 = vld [vmem:[#allocation2 + $0xc8] sm:$0xff]
        %v1689 = vld [vmem:[#allocation2 + $0xd0] sm:$0xff]
        %v1690 = vld [vmem:[#allocation2 + $0xd8] sm:$0xff]
        %v1691 = vld [vmem:[#allocation2 + $0xe0] sm:$0xff]
        %v1692 = vld [vmem:[#allocation2 + $0xe8] sm:$0xff]
        %v1693 = vld [vmem:[#allocation2 + $0xf0] sm:$0xff]
        %v1694 = vld [vmem:[#allocation2 + $0xf8] sm:$0xff]
        %v1695 = vmax.f32 %v1663, 0.0
        %v1696 = vmax.f32 %v1664, 0.0
        %v1697 = vmax.f32 %v1665, 0.0
        %v1698 = vmax.f32 %v1666, 0.0
        %v1699 = vmax.f32 %v1667, 0.0
        %v1700 = vmax.f32 %v1668, 0.0
        %v1701 = vmax.f32 %v1669, 0.0
        %v1702 = vmax.f32 %v1670, 0.0
        %v1703 = vmax.f32 %v1671, 0.0
        %v1704 = vmax.f32 %v1672, 0.0
        %v1705 = vmax.f32 %v1673, 0.0
        %v1706 = vmax.f32 %v1674, 0.0
        %v1707 = vmax.f32 %v1675, 0.0
        %v1708 = vmax.f32 %v1676, 0.0
        %v1709 = vmax.f32 %v1677, 0.0
        %v1710 = vmax.f32 %v1678, 0.0
        %v1711 = vmax.f32 %v1679, 0.0
        %v1712 = vmax.f32 %v1680, 0.0
        %v1713 = vmax.f32 %v1681, 0.0
        %v1714 = vmax.f32 %v1682, 0.0
        %v1715 = vmax.f32 %v1683, 0.0
        %v1716 = vmax.f32 %v1684, 0.0
        %v1717 = vmax.f32 %v1685, 0.0
        %v1718 = vmax.f32 %v1686, 0.0
        %v1719 = vmax.f32 %v1687, 0.0
        %v1720 = vmax.f32 %v1688, 0.0
        %v1721 = vmax.f32 %v1689, 0.0
        %v1722 = vmax.f32 %v1690, 0.0
        %v1723 = vmax.f32 %v1691, 0.0
        %v1724 = vmax.f32 %v1692, 0.0
        %v1725 = vmax.f32 %v1693, 0.0
        %v1726 = vmax.f32 %v1694, 0.0
        %s1727 = scalar_lea.vmem [#allocation11], 128
        %v1728 = vld [vmem:[%s1727] sm:$0xf]
        %v1729 = vld [vmem:[%s1727 + $0x4] sm:$0xf]
        %v1730 = vld [vmem:[%s1727 + $0x8] sm:$0xf]
        %v1731 = vld [vmem:[%s1727 + $0xc] sm:$0xf]
        %v1732 = vld [vmem:[%s1727 + $0x10] sm:$0xf]
        %v1733 = vld [vmem:[%s1727 + $0x14] sm:$0xf]
        %v1734 = vld [vmem:[%s1727 + $0x18] sm:$0xf]
        %v1735 = vld [vmem:[%s1727 + $0x1c] sm:$0xf]
        %v1736 = vld [vmem:[%s1727 + $0x20] sm:$0xf]
        %v1737 = vld [vmem:[%s1727 + $0x24] sm:$0xf]
        %v1738 = vld [vmem:[%s1727 + $0x28] sm:$0xf]
        %v1739 = vld [vmem:[%s1727 + $0x2c] sm:$0xf]
        %v1740 = vld [vmem:[%s1727 + $0x30] sm:$0xf]
        %v1741 = vld [vmem:[%s1727 + $0x34] sm:$0xf]
        %v1742 = vld [vmem:[%s1727 + $0x38] sm:$0xf]
        %v1743 = vld [vmem:[%s1727 + $0x3c] sm:$0xf]
        %v1744 = vld [vmem:[%s1727 + $0x40] sm:$0xf]
        %v1745 = vld [vmem:[%s1727 + $0x44] sm:$0xf]
        %v1746 = vld [vmem:[%s1727 + $0x48] sm:$0xf]
        %v1747 = vld [vmem:[%s1727 + $0x4c] sm:$0xf]
        %v1748 = vld [vmem:[%s1727 + $0x50] sm:$0xf]
        %v1749 = vld [vmem:[%s1727 + $0x54] sm:$0xf]
        %v1750 = vld [vmem:[%s1727 + $0x58] sm:$0xf]
        %v1751 = vld [vmem:[%s1727 + $0x5c] sm:$0xf]
        %v1752 = vld [vmem:[%s1727 + $0x60] sm:$0xf]
        %v1753 = vld [vmem:[%s1727 + $0x64] sm:$0xf]
        %v1754 = vld [vmem:[%s1727 + $0x68] sm:$0xf]
        %v1755 = vld [vmem:[%s1727 + $0x6c] sm:$0xf]
        %v1756 = vld [vmem:[%s1727 + $0x70] sm:$0xf]
        %v1757 = vld [vmem:[%s1727 + $0x74] sm:$0xf]
        %v1758 = vld [vmem:[%s1727 + $0x78] sm:$0xf]
        %v1759 = vld [vmem:[%s1727 + $0x7c] sm:$0xf]
        %s1760 = scalar_lea.vmem %s4, 1
        %v1761 = vld [vmem:[%s1760] sm:$0x1]
        %v1762 = vpack.c.bf16 %v1697, %v1695
        %v1763 = vpack.c.bf16 %v1698, %v1696
        %v1764 = vpack.c.bf16 %v1701, %v1699
        %v1765 = vpack.c.bf16 %v1702, %v1700
        %v1766 = vpack.c.bf16 %v1705, %v1703
        %v1767 = vpack.c.bf16 %v1706, %v1704
        %v1768 = vpack.c.bf16 %v1709, %v1707
        %v1769 = vpack.c.bf16 %v1710, %v1708
        %v1770 = vpack.c.bf16 %v1713, %v1711
        %v1771 = vpack.c.bf16 %v1714, %v1712
        %v1772 = vpack.c.bf16 %v1717, %v1715
        %v1773 = vpack.c.bf16 %v1718, %v1716
        %v1774 = vpack.c.bf16 %v1721, %v1719
        %v1775 = vpack.c.bf16 %v1722, %v1720
        %v1776 = vpack.c.bf16 %v1725, %v1723
        %v1777 = vpack.c.bf16 %v1726, %v1724
        %v1779 = vperm.slane %v1761, 0
        %v1813 = vunpack.c.l.b16 %v1728
        %v1814 = vunpack.c.l.b16 %v1729
        %v1815 = vunpack.c.l.b16 %v1730
        %v1816 = vunpack.c.l.b16 %v1731
        %v1817 = vunpack.c.l.b16 %v1732
        %v1818 = vunpack.c.l.b16 %v1733
        %v1819 = vunpack.c.l.b16 %v1734
        %v1820 = vunpack.c.l.b16 %v1735
        %v1821 = vunpack.c.l.b16 %v1736
        %v1822 = vunpack.c.l.b16 %v1737
        %v1823 = vunpack.c.l.b16 %v1738
        %v1824 = vunpack.c.l.b16 %v1739
        %v1825 = vunpack.c.l.b16 %v1740
        %v1826 = vunpack.c.l.b16 %v1741
        %v1827 = vunpack.c.l.b16 %v1742
        %v1828 = vunpack.c.l.b16 %v1743
        %v1829 = vunpack.c.l.b16 %v1744
        %v1830 = vunpack.c.l.b16 %v1745
        %v1831 = vunpack.c.l.b16 %v1746
        %v1832 = vunpack.c.l.b16 %v1747
        %v1833 = vunpack.c.l.b16 %v1748
        %v1834 = vunpack.c.l.b16 %v1749
        %v1835 = vunpack.c.l.b16 %v1750
        %v1836 = vunpack.c.l.b16 %v1751
        %v1837 = vunpack.c.l.b16 %v1752
        %v1838 = vunpack.c.l.b16 %v1753
        %v1839 = vunpack.c.l.b16 %v1754
        %v1840 = vunpack.c.l.b16 %v1755
        %v1841 = vunpack.c.l.b16 %v1756
        %v1842 = vunpack.c.l.b16 %v1757
        %v1843 = vunpack.c.l.b16 %v1758
        %v1844 = vunpack.c.l.b16 %v1759
        %v1845 = vpack.c.b16 %v1814, %v1813
        %v1846 = vpack.c.b16 %v1816, %v1815
        %v1847 = vpack.c.b16 %v1818, %v1817
        %v1848 = vpack.c.b16 %v1820, %v1819
        %v1849 = vpack.c.b16 %v1822, %v1821
        %v1850 = vpack.c.b16 %v1824, %v1823
        %v1851 = vpack.c.b16 %v1826, %v1825
        %v1852 = vpack.c.b16 %v1828, %v1827
        %v1853 = vpack.c.b16 %v1830, %v1829
        %v1854 = vpack.c.b16 %v1832, %v1831
        %v1855 = vpack.c.b16 %v1834, %v1833
        %v1856 = vpack.c.b16 %v1836, %v1835
        %v1857 = vpack.c.b16 %v1838, %v1837
        %v1858 = vpack.c.b16 %v1840, %v1839
        %v1859 = vpack.c.b16 %v1842, %v1841
        %v1860 = vpack.c.b16 %v1844, %v1843
        %1877 = vmatpush.bf16.msra.mxu0 %v1852
        %1878 = vmatpush.bf16.msra.mxu0 %v1851
        %1879 = vmatpush.bf16.msra.mxu0 %v1850
        %1880 = vmatpush.bf16.msra.mxu0 %v1849
        %1881 = vmatpush.bf16.msra.mxu0 %v1848
        %1882 = vmatpush.bf16.msra.mxu0 %v1847
        %1883 = vmatpush.bf16.msra.mxu0 %v1846
        %1884 = vmatpush.bf16.msra.mxu0 %v1845
        %1885 = vmatmul.bf16.gmra.mxu0 %v1762
        %v1886 = vpop.f32.mrf.mxu0
        %v1887 = vadd.f32 %v1779, %v1886
        %v1888 = vpop.f32.mrf.mxu0
        %v1889 = vadd.f32 %v1779, %v1888
        %1890 = vmatmul.bf16.gmra.mxu0 %v1764
        %v1891 = vpop.f32.mrf.mxu0
        %v1892 = vadd.f32 %v1779, %v1891
        %v1893 = vpop.f32.mrf.mxu0
        %v1894 = vadd.f32 %v1779, %v1893
        %1895 = vmatmul.bf16.gmra.mxu0 %v1766
        %v1896 = vpop.f32.mrf.mxu0
        %v1897 = vadd.f32 %v1779, %v1896
        %v1898 = vpop.f32.mrf.mxu0
        %v1899 = vadd.f32 %v1779, %v1898
        %1900 = vmatmul.bf16.gmra.mxu0 %v1768
        %v1901 = vpop.f32.mrf.mxu0
        %v1902 = vadd.f32 %v1779, %v1901
        %v1903 = vpop.f32.mrf.mxu0
        %v1904 = vadd.f32 %v1779, %v1903
        %1905 = vmatmul.bf16.gmra.mxu0 %v1770
        %v1906 = vpop.f32.mrf.mxu0
        %v1907 = vadd.f32 %v1779, %v1906
        %v1908 = vpop.f32.mrf.mxu0
        %v1909 = vadd.f32 %v1779, %v1908
        %1910 = vmatmul.bf16.gmra.mxu0 %v1772
        %v1911 = vpop.f32.mrf.mxu0
        %v1912 = vadd.f32 %v1779, %v1911
        %v1913 = vpop.f32.mrf.mxu0
        %v1914 = vadd.f32 %v1779, %v1913
        %1915 = vmatmul.bf16.gmra.mxu0 %v1774
        %v1916 = vpop.f32.mrf.mxu0
        %v1917 = vadd.f32 %v1779, %v1916
        %v1918 = vpop.f32.mrf.mxu0
        %v1919 = vadd.f32 %v1779, %v1918
        %1920 = vmatmul.bf16.gmra.mxu0 %v1776
        %v1921 = vpop.f32.mrf.mxu0
        %v1922 = vadd.f32 %v1779, %v1921
        %v1923 = vpop.f32.mrf.mxu0
        %v1924 = vadd.f32 %v1779, %v1923
        %1925 = vdwg.mxu0
        %1926 = vmatpush.bf16.msra.mxu0 %v1860
        %1927 = vmatpush.bf16.msra.mxu0 %v1859
        %1928 = vmatpush.bf16.msra.mxu0 %v1858
        %1929 = vmatpush.bf16.msra.mxu0 %v1857
        %1930 = vmatpush.bf16.msra.mxu0 %v1856
        %1931 = vmatpush.bf16.msra.mxu0 %v1855
        %1932 = vmatpush.bf16.msra.mxu0 %v1854
        %1933 = vmatpush.bf16.msra.mxu0 %v1853
        %1934 = vmatmul.bf16.gmra.mxu0 %v1763
        %v1935 = vpop.f32.mrf.mxu0
        %v1936 = vadd.f32 %v1887, %v1935
        %v1937 = vpop.f32.mrf.mxu0
        %v1938 = vadd.f32 %v1889, %v1937
        %1939 = vmatmul.bf16.gmra.mxu0 %v1765
        %v1940 = vpop.f32.mrf.mxu0
        %v1941 = vadd.f32 %v1892, %v1940
        %v1942 = vpop.f32.mrf.mxu0
        %v1943 = vadd.f32 %v1894, %v1942
        %1944 = vmatmul.bf16.gmra.mxu0 %v1767
        %v1945 = vpop.f32.mrf.mxu0
        %v1946 = vadd.f32 %v1897, %v1945
        %v1947 = vpop.f32.mrf.mxu0
        %v1948 = vadd.f32 %v1899, %v1947
        %1949 = vmatmul.bf16.gmra.mxu0 %v1769
        %v1950 = vpop.f32.mrf.mxu0
        %v1951 = vadd.f32 %v1902, %v1950
        %v1952 = vpop.f32.mrf.mxu0
        %v1953 = vadd.f32 %v1904, %v1952
        %1954 = vmatmul.bf16.gmra.mxu0 %v1771
        %v1955 = vpop.f32.mrf.mxu0
        %v1956 = vadd.f32 %v1907, %v1955
        %v1957 = vpop.f32.mrf.mxu0
        %v1958 = vadd.f32 %v1909, %v1957
        %1959 = vmatmul.bf16.gmra.mxu0 %v1773
        %v1960 = vpop.f32.mrf.mxu0
        %v1961 = vadd.f32 %v1912, %v1960
        %v1962 = vpop.f32.mrf.mxu0
        %v1963 = vadd.f32 %v1914, %v1962
        %1964 = vmatmul.bf16.gmra.mxu0 %v1775
        %v1965 = vpop.f32.mrf.mxu0
        %v1966 = vadd.f32 %v1917, %v1965
        %v1967 = vpop.f32.mrf.mxu0
        %v1968 = vadd.f32 %v1919, %v1967
        %1969 = vmatmul.bf16.gmra.mxu0 %v1777
        %v1970 = vpop.f32.mrf.mxu0
        %v1971 = vadd.f32 %v1922, %v1970
        %v1972 = vpop.f32.mrf.mxu0
        %v1973 = vadd.f32 %v1924, %v1972
        %1974 = vdwg.mxu0
        %v1975 = vmax.f32 %v1936, 0.0
        %v1976 = vmax.f32 %v1938, 0.0
        %v1977 = vmax.f32 %v1941, 0.0
        %v1978 = vmax.f32 %v1943, 0.0
        %v1979 = vmax.f32 %v1946, 0.0
        %v1980 = vmax.f32 %v1948, 0.0
        %v1981 = vmax.f32 %v1951, 0.0
        %v1982 = vmax.f32 %v1953, 0.0
        %v1983 = vmax.f32 %v1956, 0.0
        %v1984 = vmax.f32 %v1958, 0.0
        %v1985 = vmax.f32 %v1961, 0.0
        %v1986 = vmax.f32 %v1963, 0.0
        %v1987 = vmax.f32 %v1966, 0.0
        %v1988 = vmax.f32 %v1968, 0.0
        %v1989 = vmax.f32 %v1971, 0.0
        %v1990 = vmax.f32 %v1973, 0.0
        %s1991 = scalar_lea.vmem [#allocation13], 64
        %v1992 = vld [vmem:[%s1991] sm:$0xf]
        %v1993 = vld [vmem:[%s1991 + $0x4] sm:$0xf]
        %v1994 = vld [vmem:[%s1991 + $0x8] sm:$0xf]
        %v1995 = vld [vmem:[%s1991 + $0xc] sm:$0xf]
        %v1996 = vld [vmem:[%s1991 + $0x10] sm:$0xf]
        %v1997 = vld [vmem:[%s1991 + $0x14] sm:$0xf]
        %v1998 = vld [vmem:[%s1991 + $0x18] sm:$0xf]
        %v1999 = vld [vmem:[%s1991 + $0x1c] sm:$0xf]
        %v2000 = vld [vmem:[%s1991 + $0x20] sm:$0xf]
        %v2001 = vld [vmem:[%s1991 + $0x24] sm:$0xf]
        %v2002 = vld [vmem:[%s1991 + $0x28] sm:$0xf]
        %v2003 = vld [vmem:[%s1991 + $0x2c] sm:$0xf]
        %v2004 = vld [vmem:[%s1991 + $0x30] sm:$0xf]
        %v2005 = vld [vmem:[%s1991 + $0x34] sm:$0xf]
        %v2006 = vld [vmem:[%s1991 + $0x38] sm:$0xf]
        %v2007 = vld [vmem:[%s1991 + $0x3c] sm:$0xf]
        %s2008 = scalar_lea.vmem %s6, 1
        %v2009 = vld [vmem:[%s2008] sm:$0x1]
        %v2010 = vpack.c.bf16 %v1976, %v1975
        %v2011 = vpack.c.bf16 %v1978, %v1977
        %v2012 = vpack.c.bf16 %v1980, %v1979
        %v2013 = vpack.c.bf16 %v1982, %v1981
        %v2014 = vpack.c.bf16 %v1984, %v1983
        %v2015 = vpack.c.bf16 %v1986, %v1985
        %v2016 = vpack.c.bf16 %v1988, %v1987
        %v2017 = vpack.c.bf16 %v1990, %v1989
        %v2019 = vperm.slane %v2009, 0
        %v2037 = vunpack.c.l.b16 %v1992
        %v2038 = vunpack.c.l.b16 %v1993
        %v2039 = vunpack.c.l.b16 %v1994
        %v2040 = vunpack.c.l.b16 %v1995
        %v2041 = vunpack.c.l.b16 %v1996
        %v2042 = vunpack.c.l.b16 %v1997
        %v2043 = vunpack.c.l.b16 %v1998
        %v2044 = vunpack.c.l.b16 %v1999
        %v2045 = vunpack.c.l.b16 %v2000
        %v2046 = vunpack.c.l.b16 %v2001
        %v2047 = vunpack.c.l.b16 %v2002
        %v2048 = vunpack.c.l.b16 %v2003
        %v2049 = vunpack.c.l.b16 %v2004
        %v2050 = vunpack.c.l.b16 %v2005
        %v2051 = vunpack.c.l.b16 %v2006
        %v2052 = vunpack.c.l.b16 %v2007
        %v2053 = vpack.c.b16 %v2038, %v2037
        %v2054 = vpack.c.b16 %v2040, %v2039
        %v2055 = vpack.c.b16 %v2042, %v2041
        %v2056 = vpack.c.b16 %v2044, %v2043
        %v2057 = vpack.c.b16 %v2046, %v2045
        %v2058 = vpack.c.b16 %v2048, %v2047
        %v2059 = vpack.c.b16 %v2050, %v2049
        %v2060 = vpack.c.b16 %v2052, %v2051
        %2069 = vmatpush.bf16.msra.mxu0 %v2060
        %2070 = vmatpush.bf16.msra.mxu0 %v2059
        %2071 = vmatpush.bf16.msra.mxu0 %v2058
        %2072 = vmatpush.bf16.msra.mxu0 %v2057
        %2073 = vmatpush.bf16.msra.mxu0 %v2056
        %2074 = vmatpush.bf16.msra.mxu0 %v2055
        %2075 = vmatpush.bf16.msra.mxu0 %v2054
        %2076 = vmatpush.bf16.msra.mxu0 %v2053
        %2077 = vmatmul.bf16.gmra.mxu0 %v2010
        %v2078 = vpop.f32.mrf.mxu0
        %v2079 = vadd.f32 %v2019, %v2078
        %v2080 = vpop.f32.mrf.mxu0
        %v2081 = vadd.f32 %v2019, %v2080
        %2082 = vmatmul.bf16.gmra.mxu0 %v2011
        %v2083 = vpop.f32.mrf.mxu0
        %v2084 = vadd.f32 %v2019, %v2083
        %v2085 = vpop.f32.mrf.mxu0
        %v2086 = vadd.f32 %v2019, %v2085
        %2087 = vmatmul.bf16.gmra.mxu0 %v2012
        %v2088 = vpop.f32.mrf.mxu0
        %v2089 = vadd.f32 %v2019, %v2088
        %v2090 = vpop.f32.mrf.mxu0
        %v2091 = vadd.f32 %v2019, %v2090
        %2092 = vmatmul.bf16.gmra.mxu0 %v2013
        %v2093 = vpop.f32.mrf.mxu0
        %v2094 = vadd.f32 %v2019, %v2093
        %v2095 = vpop.f32.mrf.mxu0
        %v2096 = vadd.f32 %v2019, %v2095
        %2097 = vmatmul.bf16.gmra.mxu0 %v2014
        %v2098 = vpop.f32.mrf.mxu0
        %v2099 = vadd.f32 %v2019, %v2098
        %v2100 = vpop.f32.mrf.mxu0
        %v2101 = vadd.f32 %v2019, %v2100
        %2102 = vmatmul.bf16.gmra.mxu0 %v2015
        %v2103 = vpop.f32.mrf.mxu0
        %v2104 = vadd.f32 %v2019, %v2103
        %v2105 = vpop.f32.mrf.mxu0
        %v2106 = vadd.f32 %v2019, %v2105
        %2107 = vmatmul.bf16.gmra.mxu0 %v2016
        %v2108 = vpop.f32.mrf.mxu0
        %v2109 = vadd.f32 %v2019, %v2108
        %v2110 = vpop.f32.mrf.mxu0
        %v2111 = vadd.f32 %v2019, %v2110
        %2112 = vmatmul.bf16.gmra.mxu0 %v2017
        %v2113 = vpop.f32.mrf.mxu0
        %v2114 = vadd.f32 %v2019, %v2113
        %v2115 = vpop.f32.mrf.mxu0
        %v2116 = vadd.f32 %v2019, %v2115
        %2117 = vdwg.mxu0
        %v2118 = vpack.c.bf16 %v1665, %v1663
        %v2119 = vpack.c.bf16 %v1666, %v1664
        %v2120 = vpack.c.bf16 %v1669, %v1667
        %v2121 = vpack.c.bf16 %v1670, %v1668
        %v2122 = vpack.c.bf16 %v1673, %v1671
        %v2123 = vpack.c.bf16 %v1674, %v1672
        %v2124 = vpack.c.bf16 %v1677, %v1675
        %v2125 = vpack.c.bf16 %v1678, %v1676
        %v2126 = vpack.c.bf16 %v1681, %v1679
        %v2127 = vpack.c.bf16 %v1682, %v1680
        %v2128 = vpack.c.bf16 %v1685, %v1683
        %v2129 = vpack.c.bf16 %v1686, %v1684
        %v2130 = vpack.c.bf16 %v1689, %v1687
        %v2131 = vpack.c.bf16 %v1690, %v1688
        %v2132 = vpack.c.bf16 %v1693, %v1691
        %v2133 = vpack.c.bf16 %v1694, %v1692
        %s2134 = scalar_lea.vmem [#allocation14], 128
        %v2135 = vld [vmem:[%s2134] sm:$0xf]
        %v2136 = vld [vmem:[%s2134 + $0x4] sm:$0xf]
        %v2137 = vld [vmem:[%s2134 + $0x8] sm:$0xf]
        %v2138 = vld [vmem:[%s2134 + $0xc] sm:$0xf]
        %v2139 = vld [vmem:[%s2134 + $0x10] sm:$0xf]
        %v2140 = vld [vmem:[%s2134 + $0x14] sm:$0xf]
        %v2141 = vld [vmem:[%s2134 + $0x18] sm:$0xf]
        %v2142 = vld [vmem:[%s2134 + $0x1c] sm:$0xf]
        %v2143 = vld [vmem:[%s2134 + $0x20] sm:$0xf]
        %v2144 = vld [vmem:[%s2134 + $0x24] sm:$0xf]
        %v2145 = vld [vmem:[%s2134 + $0x28] sm:$0xf]
        %v2146 = vld [vmem:[%s2134 + $0x2c] sm:$0xf]
        %v2147 = vld [vmem:[%s2134 + $0x30] sm:$0xf]
        %v2148 = vld [vmem:[%s2134 + $0x34] sm:$0xf]
        %v2149 = vld [vmem:[%s2134 + $0x38] sm:$0xf]
        %v2150 = vld [vmem:[%s2134 + $0x3c] sm:$0xf]
        %v2151 = vld [vmem:[%s2134 + $0x40] sm:$0xf]
        %v2152 = vld [vmem:[%s2134 + $0x44] sm:$0xf]
        %v2153 = vld [vmem:[%s2134 + $0x48] sm:$0xf]
        %v2154 = vld [vmem:[%s2134 + $0x4c] sm:$0xf]
        %v2155 = vld [vmem:[%s2134 + $0x50] sm:$0xf]
        %v2156 = vld [vmem:[%s2134 + $0x54] sm:$0xf]
        %v2157 = vld [vmem:[%s2134 + $0x58] sm:$0xf]
        %v2158 = vld [vmem:[%s2134 + $0x5c] sm:$0xf]
        %v2159 = vld [vmem:[%s2134 + $0x60] sm:$0xf]
        %v2160 = vld [vmem:[%s2134 + $0x64] sm:$0xf]
        %v2161 = vld [vmem:[%s2134 + $0x68] sm:$0xf]
        %v2162 = vld [vmem:[%s2134 + $0x6c] sm:$0xf]
        %v2163 = vld [vmem:[%s2134 + $0x70] sm:$0xf]
        %v2164 = vld [vmem:[%s2134 + $0x74] sm:$0xf]
        %v2165 = vld [vmem:[%s2134 + $0x78] sm:$0xf]
        %v2166 = vld [vmem:[%s2134 + $0x7c] sm:$0xf]
        %v2199 = vunpack.c.l.b16 %v2135
        %v2200 = vunpack.c.l.b16 %v2136
        %v2201 = vunpack.c.l.b16 %v2137
        %v2202 = vunpack.c.l.b16 %v2138
        %v2203 = vunpack.c.l.b16 %v2139
        %v2204 = vunpack.c.l.b16 %v2140
        %v2205 = vunpack.c.l.b16 %v2141
        %v2206 = vunpack.c.l.b16 %v2142
        %v2207 = vunpack.c.l.b16 %v2143
        %v2208 = vunpack.c.l.b16 %v2144
        %v2209 = vunpack.c.l.b16 %v2145
        %v2210 = vunpack.c.l.b16 %v2146
        %v2211 = vunpack.c.l.b16 %v2147
        %v2212 = vunpack.c.l.b16 %v2148
        %v2213 = vunpack.c.l.b16 %v2149
        %v2214 = vunpack.c.l.b16 %v2150
        %v2215 = vunpack.c.l.b16 %v2151
        %v2216 = vunpack.c.l.b16 %v2152
        %v2217 = vunpack.c.l.b16 %v2153
        %v2218 = vunpack.c.l.b16 %v2154
        %v2219 = vunpack.c.l.b16 %v2155
        %v2220 = vunpack.c.l.b16 %v2156
        %v2221 = vunpack.c.l.b16 %v2157
        %v2222 = vunpack.c.l.b16 %v2158
        %v2223 = vunpack.c.l.b16 %v2159
        %v2224 = vunpack.c.l.b16 %v2160
        %v2225 = vunpack.c.l.b16 %v2161
        %v2226 = vunpack.c.l.b16 %v2162
        %v2227 = vunpack.c.l.b16 %v2163
        %v2228 = vunpack.c.l.b16 %v2164
        %v2229 = vunpack.c.l.b16 %v2165
        %v2230 = vunpack.c.l.b16 %v2166
        %v2231 = vpack.c.b16 %v2200, %v2199
        %v2232 = vpack.c.b16 %v2202, %v2201
        %v2233 = vpack.c.b16 %v2204, %v2203
        %v2234 = vpack.c.b16 %v2206, %v2205
        %v2235 = vpack.c.b16 %v2208, %v2207
        %v2236 = vpack.c.b16 %v2210, %v2209
        %v2237 = vpack.c.b16 %v2212, %v2211
        %v2238 = vpack.c.b16 %v2214, %v2213
        %v2239 = vpack.c.b16 %v2216, %v2215
        %v2240 = vpack.c.b16 %v2218, %v2217
        %v2241 = vpack.c.b16 %v2220, %v2219
        %v2242 = vpack.c.b16 %v2222, %v2221
        %v2243 = vpack.c.b16 %v2224, %v2223
        %v2244 = vpack.c.b16 %v2226, %v2225
        %v2245 = vpack.c.b16 %v2228, %v2227
        %v2246 = vpack.c.b16 %v2230, %v2229
        %2263 = vmatpush.bf16.msra.mxu0 %v2238
        %2264 = vmatpush.bf16.msra.mxu0 %v2237
        %2265 = vmatpush.bf16.msra.mxu0 %v2236
        %2266 = vmatpush.bf16.msra.mxu0 %v2235
        %2267 = vmatpush.bf16.msra.mxu0 %v2234
        %2268 = vmatpush.bf16.msra.mxu0 %v2233
        %2269 = vmatpush.bf16.msra.mxu0 %v2232
        %2270 = vmatpush.bf16.msra.mxu0 %v2231
        %2271 = vmatmul.bf16.gmra.mxu0 %v2118
        %v2272 = vpop.f32.mrf.mxu0
        %v2273 = vadd.f32 %v2079, %v2272
        %v2274 = vpop.f32.mrf.mxu0
        %v2275 = vadd.f32 %v2081, %v2274
        %2276 = vmatmul.bf16.gmra.mxu0 %v2120
        %v2277 = vpop.f32.mrf.mxu0
        %v2278 = vadd.f32 %v2084, %v2277
        %v2279 = vpop.f32.mrf.mxu0
        %v2280 = vadd.f32 %v2086, %v2279
        %2281 = vmatmul.bf16.gmra.mxu0 %v2122
        %v2282 = vpop.f32.mrf.mxu0
        %v2283 = vadd.f32 %v2089, %v2282
        %v2284 = vpop.f32.mrf.mxu0
        %v2285 = vadd.f32 %v2091, %v2284
        %2286 = vmatmul.bf16.gmra.mxu0 %v2124
        %v2287 = vpop.f32.mrf.mxu0
        %v2288 = vadd.f32 %v2094, %v2287
        %v2289 = vpop.f32.mrf.mxu0
        %v2290 = vadd.f32 %v2096, %v2289
        %2291 = vmatmul.bf16.gmra.mxu0 %v2126
        %v2292 = vpop.f32.mrf.mxu0
        %v2293 = vadd.f32 %v2099, %v2292
        %v2294 = vpop.f32.mrf.mxu0
        %v2295 = vadd.f32 %v2101, %v2294
        %2296 = vmatmul.bf16.gmra.mxu0 %v2128
        %v2297 = vpop.f32.mrf.mxu0
        %v2298 = vadd.f32 %v2104, %v2297
        %v2299 = vpop.f32.mrf.mxu0
        %v2300 = vadd.f32 %v2106, %v2299
        %2301 = vmatmul.bf16.gmra.mxu0 %v2130
        %v2302 = vpop.f32.mrf.mxu0
        %v2303 = vadd.f32 %v2109, %v2302
        %v2304 = vpop.f32.mrf.mxu0
        %v2305 = vadd.f32 %v2111, %v2304
        %2306 = vmatmul.bf16.gmra.mxu0 %v2132
        %v2307 = vpop.f32.mrf.mxu0
        %v2308 = vadd.f32 %v2114, %v2307
        %v2309 = vpop.f32.mrf.mxu0
        %v2310 = vadd.f32 %v2116, %v2309
        %2311 = vdwg.mxu0
        %2312 = vmatpush.bf16.msra.mxu0 %v2246
        %2313 = vmatpush.bf16.msra.mxu0 %v2245
        %2314 = vmatpush.bf16.msra.mxu0 %v2244
        %2315 = vmatpush.bf16.msra.mxu0 %v2243
        %2316 = vmatpush.bf16.msra.mxu0 %v2242
        %2317 = vmatpush.bf16.msra.mxu0 %v2241
        %2318 = vmatpush.bf16.msra.mxu0 %v2240
        %2319 = vmatpush.bf16.msra.mxu0 %v2239
        %2320 = vmatmul.bf16.gmra.mxu0 %v2119
        %v2321 = vpop.f32.mrf.mxu0
        %v2322 = vadd.f32 %v2273, %v2321
        %v2323 = vpop.f32.mrf.mxu0
        %v2324 = vadd.f32 %v2275, %v2323
        %2325 = vmatmul.bf16.gmra.mxu0 %v2121
        %v2326 = vpop.f32.mrf.mxu0
        %v2327 = vadd.f32 %v2278, %v2326
        %v2328 = vpop.f32.mrf.mxu0
        %v2329 = vadd.f32 %v2280, %v2328
        %2330 = vmatmul.bf16.gmra.mxu0 %v2123
        %v2331 = vpop.f32.mrf.mxu0
        %v2332 = vadd.f32 %v2283, %v2331
        %v2333 = vpop.f32.mrf.mxu0
        %v2334 = vadd.f32 %v2285, %v2333
        %2335 = vmatmul.bf16.gmra.mxu0 %v2125
        %v2336 = vpop.f32.mrf.mxu0
        %v2337 = vadd.f32 %v2288, %v2336
        %v2338 = vpop.f32.mrf.mxu0
        %v2339 = vadd.f32 %v2290, %v2338
        %2340 = vmatmul.bf16.gmra.mxu0 %v2127
        %v2341 = vpop.f32.mrf.mxu0
        %v2342 = vadd.f32 %v2293, %v2341
        %v2343 = vpop.f32.mrf.mxu0
        %v2344 = vadd.f32 %v2295, %v2343
        %2345 = vmatmul.bf16.gmra.mxu0 %v2129
        %v2346 = vpop.f32.mrf.mxu0
        %v2347 = vadd.f32 %v2298, %v2346
        %v2348 = vpop.f32.mrf.mxu0
        %v2349 = vadd.f32 %v2300, %v2348
        %2350 = vmatmul.bf16.gmra.mxu0 %v2131
        %v2351 = vpop.f32.mrf.mxu0
        %v2352 = vadd.f32 %v2303, %v2351
        %v2353 = vpop.f32.mrf.mxu0
        %v2354 = vadd.f32 %v2305, %v2353
        %2355 = vmatmul.bf16.gmra.mxu0 %v2133
        %v2356 = vpop.f32.mrf.mxu0
        %v2357 = vadd.f32 %v2308, %v2356
        %v2358 = vpop.f32.mrf.mxu0
        %v2359 = vadd.f32 %v2310, %v2358
        %2360 = vdwg.mxu0
        %2361 = vst [vmem:[#allocation3] sm:$0xff] %v2322
        %2362 = vst [vmem:[#allocation3 + $0x8] sm:$0xff] %v2324
        %2363 = vst [vmem:[#allocation3 + $0x10] sm:$0xff] %v2327
        %2364 = vst [vmem:[#allocation3 + $0x18] sm:$0xff] %v2329
        %2365 = vst [vmem:[#allocation3 + $0x20] sm:$0xff] %v2332
        %2366 = vst [vmem:[#allocation3 + $0x28] sm:$0xff] %v2334
        %2367 = vst [vmem:[#allocation3 + $0x30] sm:$0xff] %v2337
        %2368 = vst [vmem:[#allocation3 + $0x38] sm:$0xff] %v2339
        %2369 = vst [vmem:[#allocation3 + $0x40] sm:$0xff] %v2342
        %2370 = vst [vmem:[#allocation3 + $0x48] sm:$0xff] %v2344
        %2371 = vst [vmem:[#allocation3 + $0x50] sm:$0xff] %v2347
        %2372 = vst [vmem:[#allocation3 + $0x58] sm:$0xff] %v2349
        %2373 = vst [vmem:[#allocation3 + $0x60] sm:$0xff] %v2352
        %2374 = vst [vmem:[#allocation3 + $0x68] sm:$0xff] %v2354
        %2375 = vst [vmem:[#allocation3 + $0x70] sm:$0xff] %v2357
        %2376 = vst [vmem:[#allocation3 + $0x78] sm:$0xff] %v2359
        %2377 = vst [vmem:[#allocation2] sm:$0xff] %v2322
        %2378 = vst [vmem:[#allocation2 + $0x10] sm:$0xff] %v2324
        %2379 = vst [vmem:[#allocation2 + $0x20] sm:$0xff] %v2327
        %2380 = vst [vmem:[#allocation2 + $0x30] sm:$0xff] %v2329
        %2381 = vst [vmem:[#allocation2 + $0x40] sm:$0xff] %v2332
        %2382 = vst [vmem:[#allocation2 + $0x50] sm:$0xff] %v2334
        %2383 = vst [vmem:[#allocation2 + $0x60] sm:$0xff] %v2337
        %2384 = vst [vmem:[#allocation2 + $0x70] sm:$0xff] %v2339
        %2385 = vst [vmem:[#allocation2 + $0x80] sm:$0xff] %v2342
        %2386 = vst [vmem:[#allocation2 + $0x90] sm:$0xff] %v2344
        %2387 = vst [vmem:[#allocation2 + $0xa0] sm:$0xff] %v2347
        %2388 = vst [vmem:[#allocation2 + $0xb0] sm:$0xff] %v2349
        %2389 = vst [vmem:[#allocation2 + $0xc0] sm:$0xff] %v2352
        %2390 = vst [vmem:[#allocation2 + $0xd0] sm:$0xff] %v2354
        %2391 = vst [vmem:[#allocation2 + $0xe0] sm:$0xff] %v2357
        %2392 = vst [vmem:[#allocation2 + $0xf0] sm:$0xff] %v2359
        %2393 = vst [vmem:[#allocation4] sm:$0xff] -1e+30
        %2394 = vst [vmem:[#allocation4 + $0x8] sm:$0xff] -1e+30
        %2395 = vst [vmem:[#allocation4 + $0x10] sm:$0xff] -1e+30
        %2396 = vst [vmem:[#allocation4 + $0x18] sm:$0xff] -1e+30
        %2397 = vst [vmem:[#allocation4 + $0x20] sm:$0xff] -1e+30
        %2398 = vst [vmem:[#allocation4 + $0x28] sm:$0xff] -1e+30
        %2399 = vst [vmem:[#allocation4 + $0x30] sm:$0xff] -1e+30
        %2400 = vst [vmem:[#allocation4 + $0x38] sm:$0xff] -1e+30
        %2401 = vst [vmem:[#allocation4 + $0x40] sm:$0xff] -1e+30
        %2402 = vst [vmem:[#allocation4 + $0x48] sm:$0xff] -1e+30
        %2403 = vst [vmem:[#allocation4 + $0x50] sm:$0xff] -1e+30
        %2404 = vst [vmem:[#allocation4 + $0x58] sm:$0xff] -1e+30
        %2405 = vst [vmem:[#allocation4 + $0x60] sm:$0xff] -1e+30
        %2406 = vst [vmem:[#allocation4 + $0x68] sm:$0xff] -1e+30
        %2407 = vst [vmem:[#allocation4 + $0x70] sm:$0xff] -1e+30
        %2408 = vst [vmem:[#allocation4 + $0x78] sm:$0xff] -1e+30
        %2409 = vst [vmem:[#allocation4 + $0x80] sm:$0xff] -1e+30
        %2410 = vst [vmem:[#allocation4 + $0x88] sm:$0xff] -1e+30
        %2411 = vst [vmem:[#allocation4 + $0x90] sm:$0xff] -1e+30
        %2412 = vst [vmem:[#allocation4 + $0x98] sm:$0xff] -1e+30
        %2413 = vst [vmem:[#allocation4 + $0xa0] sm:$0xff] -1e+30
        %2414 = vst [vmem:[#allocation4 + $0xa8] sm:$0xff] -1e+30
        %2415 = vst [vmem:[#allocation4 + $0xb0] sm:$0xff] -1e+30
        %2416 = vst [vmem:[#allocation4 + $0xb8] sm:$0xff] -1e+30
        %2417 = vst [vmem:[#allocation4 + $0xc0] sm:$0xff] -1e+30
        %2418 = vst [vmem:[#allocation4 + $0xc8] sm:$0xff] -1e+30
        %2419 = vst [vmem:[#allocation4 + $0xd0] sm:$0xff] -1e+30
        %2420 = vst [vmem:[#allocation4 + $0xd8] sm:$0xff] -1e+30
        %2421 = vst [vmem:[#allocation4 + $0xe0] sm:$0xff] -1e+30
        %2422 = vst [vmem:[#allocation4 + $0xe8] sm:$0xff] -1e+30
        %2423 = vst [vmem:[#allocation4 + $0xf0] sm:$0xff] -1e+30
        %2424 = vst [vmem:[#allocation4 + $0xf8] sm:$0xff] -1e+30
        loop: start=0, step=1, limit=128
        $region80: #{tpu_custom_call.1} parent=55 // loop_pre_header
          _
        $region81: #{tpu_custom_call.1} parent=55 // loop_header
          %s2426 = sphi 0, %s2430
          %p2427 = scmp.ge.s32.totalorder %s2426, 128
        $region82: #{tpu_custom_call.1} parent=55 // loop_header_branch
          %2429 = sbr.rel (%p2427) target = $region86
        $region83: #{tpu_custom_call.1} parent=55 // loop_body
          %s2431 = sshra.s32 %s2426, 7
          %s2432 = sand.u32 %s2426, 127
          %s2433 = sadd.s32 %s2431, %s37
          %s2434 = smul.u32 %s2433, 128
          %s2435 = sshra.s32 %s2426, 7
          %s2436 = sand.u32 %s2426, 127
          %s2437 = sadd.s32 %s2434, %s2436
          %s2438 = sld [smem:[#allocation7 + %s2437]]
          %s2439 = scalar_lea.vmem [#allocation4], %s2438
          %v2440 = vld [vmem:[%s2439] sm:$0x1]
          %s2441 = scalar_lea.vmem [#allocation3], %s2426
          %v2442 = vld [vmem:[%s2441] sm:$0x1]
          %v2443 = vmax.f32 %v2440, %v2442
          %2444 = vst [vmem:[%s2439] sm:$0x1] %v2443
        $region84: #{tpu_custom_call.1} parent=55 // loop_footer
          %s2430 = sadd.s32 1, %s2426
        $region85: #{tpu_custom_call.1} parent=55 // loop_footer_branch
          %2425 = sbr.rel target = $region81
        $region86: #{tpu_custom_call.1} parent=55 // loop_exit
          _
        %v2445 = vld [vmem:[#allocation5] sm:$0xff]
        %v2446 = vld [vmem:[#allocation5 + $0x8] sm:$0xff]
        %v2447 = vld [vmem:[#allocation5 + $0x10] sm:$0xff]
        %v2448 = vld [vmem:[#allocation5 + $0x18] sm:$0xff]
        %v2449 = vld [vmem:[#allocation5 + $0x20] sm:$0xff]
        %v2450 = vld [vmem:[#allocation5 + $0x28] sm:$0xff]
        %v2451 = vld [vmem:[#allocation5 + $0x30] sm:$0xff]
        %v2452 = vld [vmem:[#allocation5 + $0x38] sm:$0xff]
        %v2453 = vld [vmem:[#allocation5 + $0x40] sm:$0xff]
        %v2454 = vld [vmem:[#allocation5 + $0x48] sm:$0xff]
        %v2455 = vld [vmem:[#allocation5 + $0x50] sm:$0xff]
        %v2456 = vld [vmem:[#allocation5 + $0x58] sm:$0xff]
        %v2457 = vld [vmem:[#allocation5 + $0x60] sm:$0xff]
        %v2458 = vld [vmem:[#allocation5 + $0x68] sm:$0xff]
        %v2459 = vld [vmem:[#allocation5 + $0x70] sm:$0xff]
        %v2460 = vld [vmem:[#allocation5 + $0x78] sm:$0xff]
        %v2461 = vld [vmem:[#allocation4] sm:$0xff]
        %v2462 = vld [vmem:[#allocation4 + $0x8] sm:$0xff]
        %v2463 = vld [vmem:[#allocation4 + $0x10] sm:$0xff]
        %v2464 = vld [vmem:[#allocation4 + $0x18] sm:$0xff]
        %v2465 = vld [vmem:[#allocation4 + $0x20] sm:$0xff]
        %v2466 = vld [vmem:[#allocation4 + $0x28] sm:$0xff]
        %v2467 = vld [vmem:[#allocation4 + $0x30] sm:$0xff]
        %v2468 = vld [vmem:[#allocation4 + $0x38] sm:$0xff]
        %v2469 = vld [vmem:[#allocation4 + $0x40] sm:$0xff]
        %v2470 = vld [vmem:[#allocation4 + $0x48] sm:$0xff]
        %v2471 = vld [vmem:[#allocation4 + $0x50] sm:$0xff]
        %v2472 = vld [vmem:[#allocation4 + $0x58] sm:$0xff]
        %v2473 = vld [vmem:[#allocation4 + $0x60] sm:$0xff]
        %v2474 = vld [vmem:[#allocation4 + $0x68] sm:$0xff]
        %v2475 = vld [vmem:[#allocation4 + $0x70] sm:$0xff]
        %v2476 = vld [vmem:[#allocation4 + $0x78] sm:$0xff]
        %v2477 = vld [vmem:[#allocation4 + $0x80] sm:$0xff]
        %v2478 = vld [vmem:[#allocation4 + $0x88] sm:$0xff]
        %v2479 = vld [vmem:[#allocation4 + $0x90] sm:$0xff]
        %v2480 = vld [vmem:[#allocation4 + $0x98] sm:$0xff]
        %v2481 = vld [vmem:[#allocation4 + $0xa0] sm:$0xff]
        %v2482 = vld [vmem:[#allocation4 + $0xa8] sm:$0xff]
        %v2483 = vld [vmem:[#allocation4 + $0xb0] sm:$0xff]
        %v2484 = vld [vmem:[#allocation4 + $0xb8] sm:$0xff]
        %v2485 = vld [vmem:[#allocation4 + $0xc0] sm:$0xff]
        %v2486 = vld [vmem:[#allocation4 + $0xc8] sm:$0xff]
        %v2487 = vld [vmem:[#allocation4 + $0xd0] sm:$0xff]
        %v2488 = vld [vmem:[#allocation4 + $0xd8] sm:$0xff]
        %v2489 = vld [vmem:[#allocation4 + $0xe0] sm:$0xff]
        %v2490 = vld [vmem:[#allocation4 + $0xe8] sm:$0xff]
        %v2491 = vld [vmem:[#allocation4 + $0xf0] sm:$0xff]
        %v2492 = vld [vmem:[#allocation4 + $0xf8] sm:$0xff]
        %v2493 = vpack.c.bf16 %v2462, %v2461
        %v2494 = vpack.c.bf16 %v2464, %v2463
        %v2495 = vpack.c.bf16 %v2466, %v2465
        %v2496 = vpack.c.bf16 %v2468, %v2467
        %v2497 = vpack.c.bf16 %v2470, %v2469
        %v2498 = vpack.c.bf16 %v2472, %v2471
        %v2499 = vpack.c.bf16 %v2474, %v2473
        %v2500 = vpack.c.bf16 %v2476, %v2475
        %v2501 = vpack.c.bf16 %v2478, %v2477
        %v2502 = vpack.c.bf16 %v2480, %v2479
        %v2503 = vpack.c.bf16 %v2482, %v2481
        %v2504 = vpack.c.bf16 %v2484, %v2483
        %v2505 = vpack.c.bf16 %v2486, %v2485
        %v2506 = vpack.c.bf16 %v2488, %v2487
        %v2507 = vpack.c.bf16 %v2490, %v2489
        %v2508 = vpack.c.bf16 %v2492, %v2491
        %v2525 = vunpack.c.l.b16 %v2445
        %v2526 = vunpack.c.h.b16 %v2445
        %v2527 = vunpack.c.l.b16 %v2446
        %v2528 = vunpack.c.h.b16 %v2446
        %v2529 = vunpack.c.l.b16 %v2447
        %v2530 = vunpack.c.h.b16 %v2447
        %v2531 = vunpack.c.l.b16 %v2448
        %v2532 = vunpack.c.h.b16 %v2448
        %v2533 = vunpack.c.l.b16 %v2449
        %v2534 = vunpack.c.h.b16 %v2449
        %v2535 = vunpack.c.l.b16 %v2450
        %v2536 = vunpack.c.h.b16 %v2450
        %v2537 = vunpack.c.l.b16 %v2451
        %v2538 = vunpack.c.h.b16 %v2451
        %v2539 = vunpack.c.l.b16 %v2452
        %v2540 = vunpack.c.h.b16 %v2452
        %v2541 = vunpack.c.l.b16 %v2453
        %v2542 = vunpack.c.h.b16 %v2453
        %v2543 = vunpack.c.l.b16 %v2454
        %v2544 = vunpack.c.h.b16 %v2454
        %v2545 = vunpack.c.l.b16 %v2455
        %v2546 = vunpack.c.h.b16 %v2455
        %v2547 = vunpack.c.l.b16 %v2456
        %v2548 = vunpack.c.h.b16 %v2456
        %v2549 = vunpack.c.l.b16 %v2457
        %v2550 = vunpack.c.h.b16 %v2457
        %v2551 = vunpack.c.l.b16 %v2458
        %v2552 = vunpack.c.h.b16 %v2458
        %v2553 = vunpack.c.l.b16 %v2459
        %v2554 = vunpack.c.h.b16 %v2459
        %v2555 = vunpack.c.l.b16 %v2460
        %v2556 = vunpack.c.h.b16 %v2460
        %v2557 = vpack.c.b16 %v2527, %v2525
        %v2558 = vpack.c.b16 %v2528, %v2526
        %v2559 = vpack.c.b16 %v2531, %v2529
        %v2560 = vpack.c.b16 %v2532, %v2530
        %v2561 = vpack.c.b16 %v2535, %v2533
        %v2562 = vpack.c.b16 %v2536, %v2534
        %v2563 = vpack.c.b16 %v2539, %v2537
        %v2564 = vpack.c.b16 %v2540, %v2538
        %v2565 = vpack.c.b16 %v2543, %v2541
        %v2566 = vpack.c.b16 %v2544, %v2542
        %v2567 = vpack.c.b16 %v2547, %v2545
        %v2568 = vpack.c.b16 %v2548, %v2546
        %v2569 = vpack.c.b16 %v2551, %v2549
        %v2570 = vpack.c.b16 %v2552, %v2550
        %v2571 = vpack.c.b16 %v2555, %v2553
        %v2572 = vpack.c.b16 %v2556, %v2554
        %2589 = vmatpush.bf16.msra.mxu0 %v2500
        %2590 = vmatpush.bf16.msra.mxu0 %v2499
        %2591 = vmatpush.bf16.msra.mxu0 %v2498
        %2592 = vmatpush.bf16.msra.mxu0 %v2497
        %2593 = vmatpush.bf16.msra.mxu0 %v2496
        %2594 = vmatpush.bf16.msra.mxu0 %v2495
        %2595 = vmatpush.bf16.msra.mxu0 %v2494
        %2596 = vmatpush.bf16.msra.mxu0 %v2493
        %2597 = vmatmul.bf16.gmra.mxu0 %v2557
        %v2598 = vpop.f32.mrf.mxu0
        %v2599 = vadd.f32 0.0, %v2598
        %v2600 = vpop.f32.mrf.mxu0
        %v2601 = vadd.f32 0.0, %v2600
        %2602 = vmatmul.bf16.gmra.mxu0 %v2559
        %v2603 = vpop.f32.mrf.mxu0
        %v2604 = vadd.f32 0.0, %v2603
        %v2605 = vpop.f32.mrf.mxu0
        %v2606 = vadd.f32 0.0, %v2605
        %2607 = vmatmul.bf16.gmra.mxu0 %v2561
        %v2608 = vpop.f32.mrf.mxu0
        %v2609 = vadd.f32 0.0, %v2608
        %v2610 = vpop.f32.mrf.mxu0
        %v2611 = vadd.f32 0.0, %v2610
        %2612 = vmatmul.bf16.gmra.mxu0 %v2563
        %v2613 = vpop.f32.mrf.mxu0
        %v2614 = vadd.f32 0.0, %v2613
        %v2615 = vpop.f32.mrf.mxu0
        %v2616 = vadd.f32 0.0, %v2615
        %2617 = vmatmul.bf16.gmra.mxu0 %v2565
        %v2618 = vpop.f32.mrf.mxu0
        %v2619 = vadd.f32 0.0, %v2618
        %v2620 = vpop.f32.mrf.mxu0
        %v2621 = vadd.f32 0.0, %v2620
        %2622 = vmatmul.bf16.gmra.mxu0 %v2567
        %v2623 = vpop.f32.mrf.mxu0
        %v2624 = vadd.f32 0.0, %v2623
        %v2625 = vpop.f32.mrf.mxu0
        %v2626 = vadd.f32 0.0, %v2625
        %2627 = vmatmul.bf16.gmra.mxu0 %v2569
        %v2628 = vpop.f32.mrf.mxu0
        %v2629 = vadd.f32 0.0, %v2628
        %v2630 = vpop.f32.mrf.mxu0
        %v2631 = vadd.f32 0.0, %v2630
        %2632 = vmatmul.bf16.gmra.mxu0 %v2571
        %v2633 = vpop.f32.mrf.mxu0
        %v2634 = vadd.f32 0.0, %v2633
        %v2635 = vpop.f32.mrf.mxu0
        %v2636 = vadd.f32 0.0, %v2635
        %2637 = vdwg.mxu0
        %2638 = vmatpush.bf16.msra.mxu0 %v2508
        %2639 = vmatpush.bf16.msra.mxu0 %v2507
        %2640 = vmatpush.bf16.msra.mxu0 %v2506
        %2641 = vmatpush.bf16.msra.mxu0 %v2505
        %2642 = vmatpush.bf16.msra.mxu0 %v2504
        %2643 = vmatpush.bf16.msra.mxu0 %v2503
        %2644 = vmatpush.bf16.msra.mxu0 %v2502
        %2645 = vmatpush.bf16.msra.mxu0 %v2501
        %2646 = vmatmul.bf16.gmra.mxu0 %v2558
        %v2647 = vpop.f32.mrf.mxu0
        %v2648 = vadd.f32 %v2599, %v2647
        %v2649 = vpop.f32.mrf.mxu0
        %v2650 = vadd.f32 %v2601, %v2649
        %2651 = vmatmul.bf16.gmra.mxu0 %v2560
        %v2652 = vpop.f32.mrf.mxu0
        %v2653 = vadd.f32 %v2604, %v2652
        %v2654 = vpop.f32.mrf.mxu0
        %v2655 = vadd.f32 %v2606, %v2654
        %2656 = vmatmul.bf16.gmra.mxu0 %v2562
        %v2657 = vpop.f32.mrf.mxu0
        %v2658 = vadd.f32 %v2609, %v2657
        %v2659 = vpop.f32.mrf.mxu0
        %v2660 = vadd.f32 %v2611, %v2659
        %2661 = vmatmul.bf16.gmra.mxu0 %v2564
        %v2662 = vpop.f32.mrf.mxu0
        %v2663 = vadd.f32 %v2614, %v2662
        %v2664 = vpop.f32.mrf.mxu0
        %v2665 = vadd.f32 %v2616, %v2664
        %2666 = vmatmul.bf16.gmra.mxu0 %v2566
        %v2667 = vpop.f32.mrf.mxu0
        %v2668 = vadd.f32 %v2619, %v2667
        %v2669 = vpop.f32.mrf.mxu0
        %v2670 = vadd.f32 %v2621, %v2669
        %2671 = vmatmul.bf16.gmra.mxu0 %v2568
        %v2672 = vpop.f32.mrf.mxu0
        %v2673 = vadd.f32 %v2624, %v2672
        %v2674 = vpop.f32.mrf.mxu0
        %v2675 = vadd.f32 %v2626, %v2674
        %2676 = vmatmul.bf16.gmra.mxu0 %v2570
        %v2677 = vpop.f32.mrf.mxu0
        %v2678 = vadd.f32 %v2629, %v2677
        %v2679 = vpop.f32.mrf.mxu0
        %v2680 = vadd.f32 %v2631, %v2679
        %2681 = vmatmul.bf16.gmra.mxu0 %v2572
        %v2682 = vpop.f32.mrf.mxu0
        %v2683 = vadd.f32 %v2634, %v2682
        %v2684 = vpop.f32.mrf.mxu0
        %v2685 = vadd.f32 %v2636, %v2684
        %2686 = vdwg.mxu0
        %2687 = vst [vmem:[#allocation2 + $0x8] sm:$0xff] %v2648
        %2688 = vst [vmem:[#allocation2 + $0x18] sm:$0xff] %v2650
        %2689 = vst [vmem:[#allocation2 + $0x28] sm:$0xff] %v2653
        %2690 = vst [vmem:[#allocation2 + $0x38] sm:$0xff] %v2655
        %2691 = vst [vmem:[#allocation2 + $0x48] sm:$0xff] %v2658
        %2692 = vst [vmem:[#allocation2 + $0x58] sm:$0xff] %v2660
        %2693 = vst [vmem:[#allocation2 + $0x68] sm:$0xff] %v2663
        %2694 = vst [vmem:[#allocation2 + $0x78] sm:$0xff] %v2665
        %2695 = vst [vmem:[#allocation2 + $0x88] sm:$0xff] %v2668
        %2696 = vst [vmem:[#allocation2 + $0x98] sm:$0xff] %v2670
        %2697 = vst [vmem:[#allocation2 + $0xa8] sm:$0xff] %v2673
        %2698 = vst [vmem:[#allocation2 + $0xb8] sm:$0xff] %v2675
        %2699 = vst [vmem:[#allocation2 + $0xc8] sm:$0xff] %v2678
        %2700 = vst [vmem:[#allocation2 + $0xd8] sm:$0xff] %v2680
        %2701 = vst [vmem:[#allocation2 + $0xe8] sm:$0xff] %v2683
        %2702 = vst [vmem:[#allocation2 + $0xf8] sm:$0xff] %v2685
        %v2703 = vld [vmem:[#allocation2] sm:$0xff]
        %v2704 = vld [vmem:[#allocation2 + $0x8] sm:$0xff]
        %v2705 = vld [vmem:[#allocation2 + $0x10] sm:$0xff]
        %v2706 = vld [vmem:[#allocation2 + $0x18] sm:$0xff]
        %v2707 = vld [vmem:[#allocation2 + $0x20] sm:$0xff]
        %v2708 = vld [vmem:[#allocation2 + $0x28] sm:$0xff]
        %v2709 = vld [vmem:[#allocation2 + $0x30] sm:$0xff]
        %v2710 = vld [vmem:[#allocation2 + $0x38] sm:$0xff]
        %v2711 = vld [vmem:[#allocation2 + $0x40] sm:$0xff]
        %v2712 = vld [vmem:[#allocation2 + $0x48] sm:$0xff]
        %v2713 = vld [vmem:[#allocation2 + $0x50] sm:$0xff]
        %v2714 = vld [vmem:[#allocation2 + $0x58] sm:$0xff]
        %v2715 = vld [vmem:[#allocation2 + $0x60] sm:$0xff]
        %v2716 = vld [vmem:[#allocation2 + $0x68] sm:$0xff]
        %v2717 = vld [vmem:[#allocation2 + $0x70] sm:$0xff]
        %v2718 = vld [vmem:[#allocation2 + $0x78] sm:$0xff]
        %v2719 = vld [vmem:[#allocation2 + $0x80] sm:$0xff]
        %v2720 = vld [vmem:[#allocation2 + $0x88] sm:$0xff]
        %v2721 = vld [vmem:[#allocation2 + $0x90] sm:$0xff]
        %v2722 = vld [vmem:[#allocation2 + $0x98] sm:$0xff]
        %v2723 = vld [vmem:[#allocation2 + $0xa0] sm:$0xff]
        %v2724 = vld [vmem:[#allocation2 + $0xa8] sm:$0xff]
        %v2725 = vld [vmem:[#allocation2 + $0xb0] sm:$0xff]
        %v2726 = vld [vmem:[#allocation2 + $0xb8] sm:$0xff]
        %v2727 = vld [vmem:[#allocation2 + $0xc0] sm:$0xff]
        %v2728 = vld [vmem:[#allocation2 + $0xc8] sm:$0xff]
        %v2729 = vld [vmem:[#allocation2 + $0xd0] sm:$0xff]
        %v2730 = vld [vmem:[#allocation2 + $0xd8] sm:$0xff]
        %v2731 = vld [vmem:[#allocation2 + $0xe0] sm:$0xff]
        %v2732 = vld [vmem:[#allocation2 + $0xe8] sm:$0xff]
        %v2733 = vld [vmem:[#allocation2 + $0xf0] sm:$0xff]
        %v2734 = vld [vmem:[#allocation2 + $0xf8] sm:$0xff]
        %v2735 = vmax.f32 %v2703, 0.0
        %v2736 = vmax.f32 %v2704, 0.0
        %v2737 = vmax.f32 %v2705, 0.0
        %v2738 = vmax.f32 %v2706, 0.0
        %v2739 = vmax.f32 %v2707, 0.0
        %v2740 = vmax.f32 %v2708, 0.0
        %v2741 = vmax.f32 %v2709, 0.0
        %v2742 = vmax.f32 %v2710, 0.0
        %v2743 = vmax.f32 %v2711, 0.0
        %v2744 = vmax.f32 %v2712, 0.0
        %v2745 = vmax.f32 %v2713, 0.0
        %v2746 = vmax.f32 %v2714, 0.0
        %v2747 = vmax.f32 %v2715, 0.0
        %v2748 = vmax.f32 %v2716, 0.0
        %v2749 = vmax.f32 %v2717, 0.0
        %v2750 = vmax.f32 %v2718, 0.0
        %v2751 = vmax.f32 %v2719, 0.0
        %v2752 = vmax.f32 %v2720, 0.0
        %v2753 = vmax.f32 %v2721, 0.0
        %v2754 = vmax.f32 %v2722, 0.0
        %v2755 = vmax.f32 %v2723, 0.0
        %v2756 = vmax.f32 %v2724, 0.0
        %v2757 = vmax.f32 %v2725, 0.0
        %v2758 = vmax.f32 %v2726, 0.0
        %v2759 = vmax.f32 %v2727, 0.0
        %v2760 = vmax.f32 %v2728, 0.0
        %v2761 = vmax.f32 %v2729, 0.0
        %v2762 = vmax.f32 %v2730, 0.0
        %v2763 = vmax.f32 %v2731, 0.0
        %v2764 = vmax.f32 %v2732, 0.0
        %v2765 = vmax.f32 %v2733, 0.0
        %v2766 = vmax.f32 %v2734, 0.0
        %s2767 = scalar_lea.vmem [#allocation11], 256
        %v2768 = vld [vmem:[%s2767] sm:$0xf]
        %v2769 = vld [vmem:[%s2767 + $0x4] sm:$0xf]
        %v2770 = vld [vmem:[%s2767 + $0x8] sm:$0xf]
        %v2771 = vld [vmem:[%s2767 + $0xc] sm:$0xf]
        %v2772 = vld [vmem:[%s2767 + $0x10] sm:$0xf]
        %v2773 = vld [vmem:[%s2767 + $0x14] sm:$0xf]
        %v2774 = vld [vmem:[%s2767 + $0x18] sm:$0xf]
        %v2775 = vld [vmem:[%s2767 + $0x1c] sm:$0xf]
        %v2776 = vld [vmem:[%s2767 + $0x20] sm:$0xf]
        %v2777 = vld [vmem:[%s2767 + $0x24] sm:$0xf]
        %v2778 = vld [vmem:[%s2767 + $0x28] sm:$0xf]
        %v2779 = vld [vmem:[%s2767 + $0x2c] sm:$0xf]
        %v2780 = vld [vmem:[%s2767 + $0x30] sm:$0xf]
        %v2781 = vld [vmem:[%s2767 + $0x34] sm:$0xf]
        %v2782 = vld [vmem:[%s2767 + $0x38] sm:$0xf]
        %v2783 = vld [vmem:[%s2767 + $0x3c] sm:$0xf]
        %v2784 = vld [vmem:[%s2767 + $0x40] sm:$0xf]
        %v2785 = vld [vmem:[%s2767 + $0x44] sm:$0xf]
        %v2786 = vld [vmem:[%s2767 + $0x48] sm:$0xf]
        %v2787 = vld [vmem:[%s2767 + $0x4c] sm:$0xf]
        %v2788 = vld [vmem:[%s2767 + $0x50] sm:$0xf]
        %v2789 = vld [vmem:[%s2767 + $0x54] sm:$0xf]
        %v2790 = vld [vmem:[%s2767 + $0x58] sm:$0xf]
        %v2791 = vld [vmem:[%s2767 + $0x5c] sm:$0xf]
        %v2792 = vld [vmem:[%s2767 + $0x60] sm:$0xf]
        %v2793 = vld [vmem:[%s2767 + $0x64] sm:$0xf]
        %v2794 = vld [vmem:[%s2767 + $0x68] sm:$0xf]
        %v2795 = vld [vmem:[%s2767 + $0x6c] sm:$0xf]
        %v2796 = vld [vmem:[%s2767 + $0x70] sm:$0xf]
        %v2797 = vld [vmem:[%s2767 + $0x74] sm:$0xf]
        %v2798 = vld [vmem:[%s2767 + $0x78] sm:$0xf]
        %v2799 = vld [vmem:[%s2767 + $0x7c] sm:$0xf]
        %s2800 = scalar_lea.vmem %s4, 2
        %v2801 = vld [vmem:[%s2800] sm:$0x1]
        %v2802 = vpack.c.bf16 %v2737, %v2735
        %v2803 = vpack.c.bf16 %v2738, %v2736
        %v2804 = vpack.c.bf16 %v2741, %v2739
        %v2805 = vpack.c.bf16 %v2742, %v2740
        %v2806 = vpack.c.bf16 %v2745, %v2743
        %v2807 = vpack.c.bf16 %v2746, %v2744
        %v2808 = vpack.c.bf16 %v2749, %v2747
        %v2809 = vpack.c.bf16 %v2750, %v2748
        %v2810 = vpack.c.bf16 %v2753, %v2751
        %v2811 = vpack.c.bf16 %v2754, %v2752
        %v2812 = vpack.c.bf16 %v2757, %v2755
        %v2813 = vpack.c.bf16 %v2758, %v2756
        %v2814 = vpack.c.bf16 %v2761, %v2759
        %v2815 = vpack.c.bf16 %v2762, %v2760
        %v2816 = vpack.c.bf16 %v2765, %v2763
        %v2817 = vpack.c.bf16 %v2766, %v2764
        %v2819 = vperm.slane %v2801, 0
        %v2853 = vunpack.c.l.b16 %v2768
        %v2854 = vunpack.c.l.b16 %v2769
        %v2855 = vunpack.c.l.b16 %v2770
        %v2856 = vunpack.c.l.b16 %v2771
        %v2857 = vunpack.c.l.b16 %v2772
        %v2858 = vunpack.c.l.b16 %v2773
        %v2859 = vunpack.c.l.b16 %v2774
        %v2860 = vunpack.c.l.b16 %v2775
        %v2861 = vunpack.c.l.b16 %v2776
        %v2862 = vunpack.c.l.b16 %v2777
        %v2863 = vunpack.c.l.b16 %v2778
        %v2864 = vunpack.c.l.b16 %v2779
        %v2865 = vunpack.c.l.b16 %v2780
        %v2866 = vunpack.c.l.b16 %v2781
        %v2867 = vunpack.c.l.b16 %v2782
        %v2868 = vunpack.c.l.b16 %v2783
        %v2869 = vunpack.c.l.b16 %v2784
        %v2870 = vunpack.c.l.b16 %v2785
        %v2871 = vunpack.c.l.b16 %v2786
        %v2872 = vunpack.c.l.b16 %v2787
        %v2873 = vunpack.c.l.b16 %v2788
        %v2874 = vunpack.c.l.b16 %v2789
        %v2875 = vunpack.c.l.b16 %v2790
        %v2876 = vunpack.c.l.b16 %v2791
        %v2877 = vunpack.c.l.b16 %v2792
        %v2878 = vunpack.c.l.b16 %v2793
        %v2879 = vunpack.c.l.b16 %v2794
        %v2880 = vunpack.c.l.b16 %v2795
        %v2881 = vunpack.c.l.b16 %v2796
        %v2882 = vunpack.c.l.b16 %v2797
        %v2883 = vunpack.c.l.b16 %v2798
        %v2884 = vunpack.c.l.b16 %v2799
        %v2885 = vpack.c.b16 %v2854, %v2853
        %v2886 = vpack.c.b16 %v2856, %v2855
        %v2887 = vpack.c.b16 %v2858, %v2857
        %v2888 = vpack.c.b16 %v2860, %v2859
        %v2889 = vpack.c.b16 %v2862, %v2861
        %v2890 = vpack.c.b16 %v2864, %v2863
        %v2891 = vpack.c.b16 %v2866, %v2865
        %v2892 = vpack.c.b16 %v2868, %v2867
        %v2893 = vpack.c.b16 %v2870, %v2869
        %v2894 = vpack.c.b16 %v2872, %v2871
        %v2895 = vpack.c.b16 %v2874, %v2873
        %v2896 = vpack.c.b16 %v2876, %v2875
        %v2897 = vpack.c.b16 %v2878, %v2877
        %v2898 = vpack.c.b16 %v2880, %v2879
        %v2899 = vpack.c.b16 %v2882, %v2881
        %v2900 = vpack.c.b16 %v2884, %v2883
        %2917 = vmatpush.bf16.msra.mxu0 %v2892
        %2918 = vmatpush.bf16.msra.mxu0 %v2891
        %2919 = vmatpush.bf16.msra.mxu0 %v2890
        %2920 = vmatpush.bf16.msra.mxu0 %v2889
        %2921 = vmatpush.bf16.msra.mxu0 %v2888
        %2922 = vmatpush.bf16.msra.mxu0 %v2887
        %2923 = vmatpush.bf16.msra.mxu0 %v2886
        %2924 = vmatpush.bf16.msra.mxu0 %v2885
        %2925 = vmatmul.bf16.gmra.mxu0 %v2802
        %v2926 = vpop.f32.mrf.mxu0
        %v2927 = vadd.f32 %v2819, %v2926
        %v2928 = vpop.f32.mrf.mxu0
        %v2929 = vadd.f32 %v2819, %v2928
        %2930 = vmatmul.bf16.gmra.mxu0 %v2804
        %v2931 = vpop.f32.mrf.mxu0
        %v2932 = vadd.f32 %v2819, %v2931
        %v2933 = vpop.f32.mrf.mxu0
        %v2934 = vadd.f32 %v2819, %v2933
        %2935 = vmatmul.bf16.gmra.mxu0 %v2806
        %v2936 = vpop.f32.mrf.mxu0
        %v2937 = vadd.f32 %v2819, %v2936
        %v2938 = vpop.f32.mrf.mxu0
        %v2939 = vadd.f32 %v2819, %v2938
        %2940 = vmatmul.bf16.gmra.mxu0 %v2808
        %v2941 = vpop.f32.mrf.mxu0
        %v2942 = vadd.f32 %v2819, %v2941
        %v2943 = vpop.f32.mrf.mxu0
        %v2944 = vadd.f32 %v2819, %v2943
        %2945 = vmatmul.bf16.gmra.mxu0 %v2810
        %v2946 = vpop.f32.mrf.mxu0
        %v2947 = vadd.f32 %v2819, %v2946
        %v2948 = vpop.f32.mrf.mxu0
        %v2949 = vadd.f32 %v2819, %v2948
        %2950 = vmatmul.bf16.gmra.mxu0 %v2812
        %v2951 = vpop.f32.mrf.mxu0
        %v2952 = vadd.f32 %v2819, %v2951
        %v2953 = vpop.f32.mrf.mxu0
        %v2954 = vadd.f32 %v2819, %v2953
        %2955 = vmatmul.bf16.gmra.mxu0 %v2814
        %v2956 = vpop.f32.mrf.mxu0
        %v2957 = vadd.f32 %v2819, %v2956
        %v2958 = vpop.f32.mrf.mxu0
        %v2959 = vadd.f32 %v2819, %v2958
        %2960 = vmatmul.bf16.gmra.mxu0 %v2816
        %v2961 = vpop.f32.mrf.mxu0
        %v2962 = vadd.f32 %v2819, %v2961
        %v2963 = vpop.f32.mrf.mxu0
        %v2964 = vadd.f32 %v2819, %v2963
        %2965 = vdwg.mxu0
        %2966 = vmatpush.bf16.msra.mxu0 %v2900
        %2967 = vmatpush.bf16.msra.mxu0 %v2899
        %2968 = vmatpush.bf16.msra.mxu0 %v2898
        %2969 = vmatpush.bf16.msra.mxu0 %v2897
        %2970 = vmatpush.bf16.msra.mxu0 %v2896
        %2971 = vmatpush.bf16.msra.mxu0 %v2895
        %2972 = vmatpush.bf16.msra.mxu0 %v2894
        %2973 = vmatpush.bf16.msra.mxu0 %v2893
        %2974 = vmatmul.bf16.gmra.mxu0 %v2803
        %v2975 = vpop.f32.mrf.mxu0
        %v2976 = vadd.f32 %v2927, %v2975
        %v2977 = vpop.f32.mrf.mxu0
        %v2978 = vadd.f32 %v2929, %v2977
        %2979 = vmatmul.bf16.gmra.mxu0 %v2805
        %v2980 = vpop.f32.mrf.mxu0
        %v2981 = vadd.f32 %v2932, %v2980
        %v2982 = vpop.f32.mrf.mxu0
        %v2983 = vadd.f32 %v2934, %v2982
        %2984 = vmatmul.bf16.gmra.mxu0 %v2807
        %v2985 = vpop.f32.mrf.mxu0
        %v2986 = vadd.f32 %v2937, %v2985
        %v2987 = vpop.f32.mrf.mxu0
        %v2988 = vadd.f32 %v2939, %v2987
        %2989 = vmatmul.bf16.gmra.mxu0 %v2809
        %v2990 = vpop.f32.mrf.mxu0
        %v2991 = vadd.f32 %v2942, %v2990
        %v2992 = vpop.f32.mrf.mxu0
        %v2993 = vadd.f32 %v2944, %v2992
        %2994 = vmatmul.bf16.gmra.mxu0 %v2811
        %v2995 = vpop.f32.mrf.mxu0
        %v2996 = vadd.f32 %v2947, %v2995
        %v2997 = vpop.f32.mrf.mxu0
        %v2998 = vadd.f32 %v2949, %v2997
        %2999 = vmatmul.bf16.gmra.mxu0 %v2813
        %v3000 = vpop.f32.mrf.mxu0
        %v3001 = vadd.f32 %v2952, %v3000
        %v3002 = vpop.f32.mrf.mxu0
        %v3003 = vadd.f32 %v2954, %v3002
        %3004 = vmatmul.bf16.gmra.mxu0 %v2815
        %v3005 = vpop.f32.mrf.mxu0
        %v3006 = vadd.f32 %v2957, %v3005
        %v3007 = vpop.f32.mrf.mxu0
        %v3008 = vadd.f32 %v2959, %v3007
        %3009 = vmatmul.bf16.gmra.mxu0 %v2817
        %v3010 = vpop.f32.mrf.mxu0
        %v3011 = vadd.f32 %v2962, %v3010
        %v3012 = vpop.f32.mrf.mxu0
        %v3013 = vadd.f32 %v2964, %v3012
        %3014 = vdwg.mxu0
        %v3015 = vmax.f32 %v2976, 0.0
        %v3016 = vmax.f32 %v2978, 0.0
        %v3017 = vmax.f32 %v2981, 0.0
        %v3018 = vmax.f32 %v2983, 0.0
        %v3019 = vmax.f32 %v2986, 0.0
        %v3020 = vmax.f32 %v2988, 0.0
        %v3021 = vmax.f32 %v2991, 0.0
        %v3022 = vmax.f32 %v2993, 0.0
        %v3023 = vmax.f32 %v2996, 0.0
        %v3024 = vmax.f32 %v2998, 0.0
        %v3025 = vmax.f32 %v3001, 0.0
        %v3026 = vmax.f32 %v3003, 0.0
        %v3027 = vmax.f32 %v3006, 0.0
        %v3028 = vmax.f32 %v3008, 0.0
        %v3029 = vmax.f32 %v3011, 0.0
        %v3030 = vmax.f32 %v3013, 0.0
        %s3031 = scalar_lea.vmem [#allocation13], 128
        %v3032 = vld [vmem:[%s3031] sm:$0xf]
        %v3033 = vld [vmem:[%s3031 + $0x4] sm:$0xf]
        %v3034 = vld [vmem:[%s3031 + $0x8] sm:$0xf]
        %v3035 = vld [vmem:[%s3031 + $0xc] sm:$0xf]
        %v3036 = vld [vmem:[%s3031 + $0x10] sm:$0xf]
        %v3037 = vld [vmem:[%s3031 + $0x14] sm:$0xf]
        %v3038 = vld [vmem:[%s3031 + $0x18] sm:$0xf]
        %v3039 = vld [vmem:[%s3031 + $0x1c] sm:$0xf]
        %v3040 = vld [vmem:[%s3031 + $0x20] sm:$0xf]
        %v3041 = vld [vmem:[%s3031 + $0x24] sm:$0xf]
        %v3042 = vld [vmem:[%s3031 + $0x28] sm:$0xf]
        %v3043 = vld [vmem:[%s3031 + $0x2c] sm:$0xf]
        %v3044 = vld [vmem:[%s3031 + $0x30] sm:$0xf]
        %v3045 = vld [vmem:[%s3031 + $0x34] sm:$0xf]
        %v3046 = vld [vmem:[%s3031 + $0x38] sm:$0xf]
        %v3047 = vld [vmem:[%s3031 + $0x3c] sm:$0xf]
        %s3048 = scalar_lea.vmem %s6, 2
        %v3049 = vld [vmem:[%s3048] sm:$0x1]
        %v3050 = vpack.c.bf16 %v3016, %v3015
        %v3051 = vpack.c.bf16 %v3018, %v3017
        %v3052 = vpack.c.bf16 %v3020, %v3019
        %v3053 = vpack.c.bf16 %v3022, %v3021
        %v3054 = vpack.c.bf16 %v3024, %v3023
        %v3055 = vpack.c.bf16 %v3026, %v3025
        %v3056 = vpack.c.bf16 %v3028, %v3027
        %v3057 = vpack.c.bf16 %v3030, %v3029
        %v3059 = vperm.slane %v3049, 0
        %v3077 = vunpack.c.l.b16 %v3032
        %v3078 = vunpack.c.l.b16 %v3033
        %v3079 = vunpack.c.l.b16 %v3034
        %v3080 = vunpack.c.l.b16 %v3035
        %v3081 = vunpack.c.l.b16 %v3036
        %v3082 = vunpack.c.l.b16 %v3037
        %v3083 = vunpack.c.l.b16 %v3038
        %v3084 = vunpack.c.l.b16 %v3039
        %v3085 = vunpack.c.l.b16 %v3040
        %v3086 = vunpack.c.l.b16 %v3041
        %v3087 = vunpack.c.l.b16 %v3042
        %v3088 = vunpack.c.l.b16 %v3043
        %v3089 = vunpack.c.l.b16 %v3044
        %v3090 = vunpack.c.l.b16 %v3045
        %v3091 = vunpack.c.l.b16 %v3046
        %v3092 = vunpack.c.l.b16 %v3047
        %v3093 = vpack.c.b16 %v3078, %v3077
        %v3094 = vpack.c.b16 %v3080, %v3079
        %v3095 = vpack.c.b16 %v3082, %v3081
        %v3096 = vpack.c.b16 %v3084, %v3083
        %v3097 = vpack.c.b16 %v3086, %v3085
        %v3098 = vpack.c.b16 %v3088, %v3087
        %v3099 = vpack.c.b16 %v3090, %v3089
        %v3100 = vpack.c.b16 %v3092, %v3091
        %3109 = vmatpush.bf16.msra.mxu0 %v3100
        %3110 = vmatpush.bf16.msra.mxu0 %v3099
        %3111 = vmatpush.bf16.msra.mxu0 %v3098
        %3112 = vmatpush.bf16.msra.mxu0 %v3097
        %3113 = vmatpush.bf16.msra.mxu0 %v3096
        %3114 = vmatpush.bf16.msra.mxu0 %v3095
        %3115 = vmatpush.bf16.msra.mxu0 %v3094
        %3116 = vmatpush.bf16.msra.mxu0 %v3093
        %3117 = vmatmul.bf16.gmra.mxu0 %v3050
        %v3118 = vpop.f32.mrf.mxu0
        %v3119 = vadd.f32 %v3059, %v3118
        %v3120 = vpop.f32.mrf.mxu0
        %v3121 = vadd.f32 %v3059, %v3120
        %3122 = vmatmul.bf16.gmra.mxu0 %v3051
        %v3123 = vpop.f32.mrf.mxu0
        %v3124 = vadd.f32 %v3059, %v3123
        %v3125 = vpop.f32.mrf.mxu0
        %v3126 = vadd.f32 %v3059, %v3125
        %3127 = vmatmul.bf16.gmra.mxu0 %v3052
        %v3128 = vpop.f32.mrf.mxu0
        %v3129 = vadd.f32 %v3059, %v3128
        %v3130 = vpop.f32.mrf.mxu0
        %v3131 = vadd.f32 %v3059, %v3130
        %3132 = vmatmul.bf16.gmra.mxu0 %v3053
        %v3133 = vpop.f32.mrf.mxu0
        %v3134 = vadd.f32 %v3059, %v3133
        %v3135 = vpop.f32.mrf.mxu0
        %v3136 = vadd.f32 %v3059, %v3135
        %3137 = vmatmul.bf16.gmra.mxu0 %v3054
        %v3138 = vpop.f32.mrf.mxu0
        %v3139 = vadd.f32 %v3059, %v3138
        %v3140 = vpop.f32.mrf.mxu0
        %v3141 = vadd.f32 %v3059, %v3140
        %3142 = vmatmul.bf16.gmra.mxu0 %v3055
        %v3143 = vpop.f32.mrf.mxu0
        %v3144 = vadd.f32 %v3059, %v3143
        %v3145 = vpop.f32.mrf.mxu0
        %v3146 = vadd.f32 %v3059, %v3145
        %3147 = vmatmul.bf16.gmra.mxu0 %v3056
        %v3148 = vpop.f32.mrf.mxu0
        %v3149 = vadd.f32 %v3059, %v3148
        %v3150 = vpop.f32.mrf.mxu0
        %v3151 = vadd.f32 %v3059, %v3150
        %3152 = vmatmul.bf16.gmra.mxu0 %v3057
        %v3153 = vpop.f32.mrf.mxu0
        %v3154 = vadd.f32 %v3059, %v3153
        %v3155 = vpop.f32.mrf.mxu0
        %v3156 = vadd.f32 %v3059, %v3155
        %3157 = vdwg.mxu0
        %v3158 = vpack.c.bf16 %v2705, %v2703
        %v3159 = vpack.c.bf16 %v2706, %v2704
        %v3160 = vpack.c.bf16 %v2709, %v2707
        %v3161 = vpack.c.bf16 %v2710, %v2708
        %v3162 = vpack.c.bf16 %v2713, %v2711
        %v3163 = vpack.c.bf16 %v2714, %v2712
        %v3164 = vpack.c.bf16 %v2717, %v2715
        %v3165 = vpack.c.bf16 %v2718, %v2716
        %v3166 = vpack.c.bf16 %v2721, %v2719
        %v3167 = vpack.c.bf16 %v2722, %v2720
        %v3168 = vpack.c.bf16 %v2725, %v2723
        %v3169 = vpack.c.bf16 %v2726, %v2724
        %v3170 = vpack.c.bf16 %v2729, %v2727
        %v3171 = vpack.c.bf16 %v2730, %v2728
        %v3172 = vpack.c.bf16 %v2733, %v2731
        %v3173 = vpack.c.bf16 %v2734, %v2732
        %s3174 = scalar_lea.vmem [#allocation14], 256
        %v3175 = vld [vmem:[%s3174] sm:$0xf]
        %v3176 = vld [vmem:[%s3174 + $0x4] sm:$0xf]
        %v3177 = vld [vmem:[%s3174 + $0x8] sm:$0xf]
        %v3178 = vld [vmem:[%s3174 + $0xc] sm:$0xf]
        %v3179 = vld [vmem:[%s3174 + $0x10] sm:$0xf]
        %v3180 = vld [vmem:[%s3174 + $0x14] sm:$0xf]
        %v3181 = vld [vmem:[%s3174 + $0x18] sm:$0xf]
        %v3182 = vld [vmem:[%s3174 + $0x1c] sm:$0xf]
        %v3183 = vld [vmem:[%s3174 + $0x20] sm:$0xf]
        %v3184 = vld [vmem:[%s3174 + $0x24] sm:$0xf]
        %v3185 = vld [vmem:[%s3174 + $0x28] sm:$0xf]
        %v3186 = vld [vmem:[%s3174 + $0x2c] sm:$0xf]
        %v3187 = vld [vmem:[%s3174 + $0x30] sm:$0xf]
        %v3188 = vld [vmem:[%s3174 + $0x34] sm:$0xf]
        %v3189 = vld [vmem:[%s3174 + $0x38] sm:$0xf]
        %v3190 = vld [vmem:[%s3174 + $0x3c] sm:$0xf]
        %v3191 = vld [vmem:[%s3174 + $0x40] sm:$0xf]
        %v3192 = vld [vmem:[%s3174 + $0x44] sm:$0xf]
        %v3193 = vld [vmem:[%s3174 + $0x48] sm:$0xf]
        %v3194 = vld [vmem:[%s3174 + $0x4c] sm:$0xf]
        %v3195 = vld [vmem:[%s3174 + $0x50] sm:$0xf]
        %v3196 = vld [vmem:[%s3174 + $0x54] sm:$0xf]
        %v3197 = vld [vmem:[%s3174 + $0x58] sm:$0xf]
        %v3198 = vld [vmem:[%s3174 + $0x5c] sm:$0xf]
        %v3199 = vld [vmem:[%s3174 + $0x60] sm:$0xf]
        %v3200 = vld [vmem:[%s3174 + $0x64] sm:$0xf]
        %v3201 = vld [vmem:[%s3174 + $0x68] sm:$0xf]
        %v3202 = vld [vmem:[%s3174 + $0x6c] sm:$0xf]
        %v3203 = vld [vmem:[%s3174 + $0x70] sm:$0xf]
        %v3204 = vld [vmem:[%s3174 + $0x74] sm:$0xf]
        %v3205 = vld [vmem:[%s3174 + $0x78] sm:$0xf]
        %v3206 = vld [vmem:[%s3174 + $0x7c] sm:$0xf]
        %v3239 = vunpack.c.l.b16 %v3175
        %v3240 = vunpack.c.l.b16 %v3176
        %v3241 = vunpack.c.l.b16 %v3177
        %v3242 = vunpack.c.l.b16 %v3178
        %v3243 = vunpack.c.l.b16 %v3179
        %v3244 = vunpack.c.l.b16 %v3180
        %v3245 = vunpack.c.l.b16 %v3181
        %v3246 = vunpack.c.l.b16 %v3182
        %v3247 = vunpack.c.l.b16 %v3183
        %v3248 = vunpack.c.l.b16 %v3184
        %v3249 = vunpack.c.l.b16 %v3185
        %v3250 = vunpack.c.l.b16 %v3186
        %v3251 = vunpack.c.l.b16 %v3187
        %v3252 = vunpack.c.l.b16 %v3188
        %v3253 = vunpack.c.l.b16 %v3189
        %v3254 = vunpack.c.l.b16 %v3190
        %v3255 = vunpack.c.l.b16 %v3191
        %v3256 = vunpack.c.l.b16 %v3192
        %v3257 = vunpack.c.l.b16 %v3193
        %v3258 = vunpack.c.l.b16 %v3194
        %v3259 = vunpack.c.l.b16 %v3195
        %v3260 = vunpack.c.l.b16 %v3196
        %v3261 = vunpack.c.l.b16 %v3197
        %v3262 = vunpack.c.l.b16 %v3198
        %v3263 = vunpack.c.l.b16 %v3199
        %v3264 = vunpack.c.l.b16 %v3200
        %v3265 = vunpack.c.l.b16 %v3201
        %v3266 = vunpack.c.l.b16 %v3202
        %v3267 = vunpack.c.l.b16 %v3203
        %v3268 = vunpack.c.l.b16 %v3204
        %v3269 = vunpack.c.l.b16 %v3205
        %v3270 = vunpack.c.l.b16 %v3206
        %v3271 = vpack.c.b16 %v3240, %v3239
        %v3272 = vpack.c.b16 %v3242, %v3241
        %v3273 = vpack.c.b16 %v3244, %v3243
        %v3274 = vpack.c.b16 %v3246, %v3245
        %v3275 = vpack.c.b16 %v3248, %v3247
        %v3276 = vpack.c.b16 %v3250, %v3249
        %v3277 = vpack.c.b16 %v3252, %v3251
        %v3278 = vpack.c.b16 %v3254, %v3253
        %v3279 = vpack.c.b16 %v3256, %v3255
        %v3280 = vpack.c.b16 %v3258, %v3257
        %v3281 = vpack.c.b16 %v3260, %v3259
        %v3282 = vpack.c.b16 %v3262, %v3261
        %v3283 = vpack.c.b16 %v3264, %v3263
        %v3284 = vpack.c.b16 %v3266, %v3265
        %v3285 = vpack.c.b16 %v3268, %v3267
        %v3286 = vpack.c.b16 %v3270, %v3269
        %3303 = vmatpush.bf16.msra.mxu0 %v3278
        %3304 = vmatpush.bf16.msra.mxu0 %v3277
        %3305 = vmatpush.bf16.msra.mxu0 %v3276
        %3306 = vmatpush.bf16.msra.mxu0 %v3275
        %3307 = vmatpush.bf16.msra.mxu0 %v3274
        %3308 = vmatpush.bf16.msra.mxu0 %v3273
        %3309 = vmatpush.bf16.msra.mxu0 %v3272
        %3310 = vmatpush.bf16.msra.mxu0 %v3271
        %3311 = vmatmul.bf16.gmra.mxu0 %v3158
        %v3312 = vpop.f32.mrf.mxu0
        %v3313 = vadd.f32 %v3119, %v3312
        %v3314 = vpop.f32.mrf.mxu0
        %v3315 = vadd.f32 %v3121, %v3314
        %3316 = vmatmul.bf16.gmra.mxu0 %v3160
        %v3317 = vpop.f32.mrf.mxu0
        %v3318 = vadd.f32 %v3124, %v3317
        %v3319 = vpop.f32.mrf.mxu0
        %v3320 = vadd.f32 %v3126, %v3319
        %3321 = vmatmul.bf16.gmra.mxu0 %v3162
        %v3322 = vpop.f32.mrf.mxu0
        %v3323 = vadd.f32 %v3129, %v3322
        %v3324 = vpop.f32.mrf.mxu0
        %v3325 = vadd.f32 %v3131, %v3324
        %3326 = vmatmul.bf16.gmra.mxu0 %v3164
        %v3327 = vpop.f32.mrf.mxu0
        %v3328 = vadd.f32 %v3134, %v3327
        %v3329 = vpop.f32.mrf.mxu0
        %v3330 = vadd.f32 %v3136, %v3329
        %3331 = vmatmul.bf16.gmra.mxu0 %v3166
        %v3332 = vpop.f32.mrf.mxu0
        %v3333 = vadd.f32 %v3139, %v3332
        %v3334 = vpop.f32.mrf.mxu0
        %v3335 = vadd.f32 %v3141, %v3334
        %3336 = vmatmul.bf16.gmra.mxu0 %v3168
        %v3337 = vpop.f32.mrf.mxu0
        %v3338 = vadd.f32 %v3144, %v3337
        %v3339 = vpop.f32.mrf.mxu0
        %v3340 = vadd.f32 %v3146, %v3339
        %3341 = vmatmul.bf16.gmra.mxu0 %v3170
        %v3342 = vpop.f32.mrf.mxu0
        %v3343 = vadd.f32 %v3149, %v3342
        %v3344 = vpop.f32.mrf.mxu0
        %v3345 = vadd.f32 %v3151, %v3344
        %3346 = vmatmul.bf16.gmra.mxu0 %v3172
        %v3347 = vpop.f32.mrf.mxu0
        %v3348 = vadd.f32 %v3154, %v3347
        %v3349 = vpop.f32.mrf.mxu0
        %v3350 = vadd.f32 %v3156, %v3349
        %3351 = vdwg.mxu0
        %3352 = vmatpush.bf16.msra.mxu0 %v3286
        %3353 = vmatpush.bf16.msra.mxu0 %v3285
        %3354 = vmatpush.bf16.msra.mxu0 %v3284
        %3355 = vmatpush.bf16.msra.mxu0 %v3283
        %3356 = vmatpush.bf16.msra.mxu0 %v3282
        %3357 = vmatpush.bf16.msra.mxu0 %v3281
        %3358 = vmatpush.bf16.msra.mxu0 %v3280
        %3359 = vmatpush.bf16.msra.mxu0 %v3279
        %3360 = vmatmul.bf16.gmra.mxu0 %v3159
        %v3361 = vpop.f32.mrf.mxu0
        %v3362 = vadd.f32 %v3313, %v3361
        %v3363 = vpop.f32.mrf.mxu0
        %v3364 = vadd.f32 %v3315, %v3363
        %3365 = vmatmul.bf16.gmra.mxu0 %v3161
        %v3366 = vpop.f32.mrf.mxu0
        %v3367 = vadd.f32 %v3318, %v3366
        %v3368 = vpop.f32.mrf.mxu0
        %v3369 = vadd.f32 %v3320, %v3368
        %3370 = vmatmul.bf16.gmra.mxu0 %v3163
        %v3371 = vpop.f32.mrf.mxu0
        %v3372 = vadd.f32 %v3323, %v3371
        %v3373 = vpop.f32.mrf.mxu0
        %v3374 = vadd.f32 %v3325, %v3373
        %3375 = vmatmul.bf16.gmra.mxu0 %v3165
        %v3376 = vpop.f32.mrf.mxu0
        %v3377 = vadd.f32 %v3328, %v3376
        %v3378 = vpop.f32.mrf.mxu0
        %v3379 = vadd.f32 %v3330, %v3378
        %3380 = vmatmul.bf16.gmra.mxu0 %v3167
        %v3381 = vpop.f32.mrf.mxu0
        %v3382 = vadd.f32 %v3333, %v3381
        %v3383 = vpop.f32.mrf.mxu0
        %v3384 = vadd.f32 %v3335, %v3383
        %3385 = vmatmul.bf16.gmra.mxu0 %v3169
        %v3386 = vpop.f32.mrf.mxu0
        %v3387 = vadd.f32 %v3338, %v3386
        %v3388 = vpop.f32.mrf.mxu0
        %v3389 = vadd.f32 %v3340, %v3388
        %3390 = vmatmul.bf16.gmra.mxu0 %v3171
        %v3391 = vpop.f32.mrf.mxu0
        %v3392 = vadd.f32 %v3343, %v3391
        %v3393 = vpop.f32.mrf.mxu0
        %v3394 = vadd.f32 %v3345, %v3393
        %3395 = vmatmul.bf16.gmra.mxu0 %v3173
        %v3396 = vpop.f32.mrf.mxu0
        %v3397 = vadd.f32 %v3348, %v3396
        %v3398 = vpop.f32.mrf.mxu0
        %v3399 = vadd.f32 %v3350, %v3398
        %3400 = vdwg.mxu0
        %3401 = vst [vmem:[#allocation3] sm:$0xff] %v3362
        %3402 = vst [vmem:[#allocation3 + $0x8] sm:$0xff] %v3364
        %3403 = vst [vmem:[#allocation3 + $0x10] sm:$0xff] %v3367
        %3404 = vst [vmem:[#allocation3 + $0x18] sm:$0xff] %v3369
        %3405 = vst [vmem:[#allocation3 + $0x20] sm:$0xff] %v3372
        %3406 = vst [vmem:[#allocation3 + $0x28] sm:$0xff] %v3374
        %3407 = vst [vmem:[#allocation3 + $0x30] sm:$0xff] %v3377
        %3408 = vst [vmem:[#allocation3 + $0x38] sm:$0xff] %v3379
        %3409 = vst [vmem:[#allocation3 + $0x40] sm:$0xff] %v3382
        %3410 = vst [vmem:[#allocation3 + $0x48] sm:$0xff] %v3384
        %3411 = vst [vmem:[#allocation3 + $0x50] sm:$0xff] %v3387
        %3412 = vst [vmem:[#allocation3 + $0x58] sm:$0xff] %v3389
        %3413 = vst [vmem:[#allocation3 + $0x60] sm:$0xff] %v3392
        %3414 = vst [vmem:[#allocation3 + $0x68] sm:$0xff] %v3394
        %3415 = vst [vmem:[#allocation3 + $0x70] sm:$0xff] %v3397
        %3416 = vst [vmem:[#allocation3 + $0x78] sm:$0xff] %v3399
        %3417 = vst [vmem:[#allocation2] sm:$0xff] %v3362
        %3418 = vst [vmem:[#allocation2 + $0x10] sm:$0xff] %v3364
        %3419 = vst [vmem:[#allocation2 + $0x20] sm:$0xff] %v3367
        %3420 = vst [vmem:[#allocation2 + $0x30] sm:$0xff] %v3369
        %3421 = vst [vmem:[#allocation2 + $0x40] sm:$0xff] %v3372
        %3422 = vst [vmem:[#allocation2 + $0x50] sm:$0xff] %v3374
        %3423 = vst [vmem:[#allocation2 + $0x60] sm:$0xff] %v3377
        %3424 = vst [vmem:[#allocation2 + $0x70] sm:$0xff] %v3379
        %3425 = vst [vmem:[#allocation2 + $0x80] sm:$0xff] %v3382
        %3426 = vst [vmem:[#allocation2 + $0x90] sm:$0xff] %v3384
        %3427 = vst [vmem:[#allocation2 + $0xa0] sm:$0xff] %v3387
        %3428 = vst [vmem:[#allocation2 + $0xb0] sm:$0xff] %v3389
        %3429 = vst [vmem:[#allocation2 + $0xc0] sm:$0xff] %v3392
        %3430 = vst [vmem:[#allocation2 + $0xd0] sm:$0xff] %v3394
        %3431 = vst [vmem:[#allocation2 + $0xe0] sm:$0xff] %v3397
        %3432 = vst [vmem:[#allocation2 + $0xf0] sm:$0xff] %v3399
        %3433 = vst [vmem:[#allocation4] sm:$0xff] -1e+30
        %3434 = vst [vmem:[#allocation4 + $0x8] sm:$0xff] -1e+30
        %3435 = vst [vmem:[#allocation4 + $0x10] sm:$0xff] -1e+30
        %3436 = vst [vmem:[#allocation4 + $0x18] sm:$0xff] -1e+30
        %3437 = vst [vmem:[#allocation4 + $0x20] sm:$0xff] -1e+30
        %3438 = vst [vmem:[#allocation4 + $0x28] sm:$0xff] -1e+30
        %3439 = vst [vmem:[#allocation4 + $0x30] sm:$0xff] -1e+30
        %3440 = vst [vmem:[#allocation4 + $0x38] sm:$0xff] -1e+30
        %3441 = vst [vmem:[#allocation4 + $0x40] sm:$0xff] -1e+30
        %3442 = vst [vmem:[#allocation4 + $0x48] sm:$0xff] -1e+30
        %3443 = vst [vmem:[#allocation4 + $0x50] sm:$0xff] -1e+30
        %3444 = vst [vmem:[#allocation4 + $0x58] sm:$0xff] -1e+30
        %3445 = vst [vmem:[#allocation4 + $0x60] sm:$0xff] -1e+30
        %3446 = vst [vmem:[#allocation4 + $0x68] sm:$0xff] -1e+30
        %3447 = vst [vmem:[#allocation4 + $0x70] sm:$0xff] -1e+30
        %3448 = vst [vmem:[#allocation4 + $0x78] sm:$0xff] -1e+30
        %3449 = vst [vmem:[#allocation4 + $0x80] sm:$0xff] -1e+30
        %3450 = vst [vmem:[#allocation4 + $0x88] sm:$0xff] -1e+30
        %3451 = vst [vmem:[#allocation4 + $0x90] sm:$0xff] -1e+30
        %3452 = vst [vmem:[#allocation4 + $0x98] sm:$0xff] -1e+30
        %3453 = vst [vmem:[#allocation4 + $0xa0] sm:$0xff] -1e+30
        %3454 = vst [vmem:[#allocation4 + $0xa8] sm:$0xff] -1e+30
        %3455 = vst [vmem:[#allocation4 + $0xb0] sm:$0xff] -1e+30
        %3456 = vst [vmem:[#allocation4 + $0xb8] sm:$0xff] -1e+30
        %3457 = vst [vmem:[#allocation4 + $0xc0] sm:$0xff] -1e+30
        %3458 = vst [vmem:[#allocation4 + $0xc8] sm:$0xff] -1e+30
        %3459 = vst [vmem:[#allocation4 + $0xd0] sm:$0xff] -1e+30
        %3460 = vst [vmem:[#allocation4 + $0xd8] sm:$0xff] -1e+30
        %3461 = vst [vmem:[#allocation4 + $0xe0] sm:$0xff] -1e+30
        %3462 = vst [vmem:[#allocation4 + $0xe8] sm:$0xff] -1e+30
        %3463 = vst [vmem:[#allocation4 + $0xf0] sm:$0xff] -1e+30
        %3464 = vst [vmem:[#allocation4 + $0xf8] sm:$0xff] -1e+30
        loop: start=0, step=1, limit=128
        $region87: #{tpu_custom_call.1} parent=55 // loop_pre_header
          _
        $region88: #{tpu_custom_call.1} parent=55 // loop_header
          %s3466 = sphi 0, %s3470
          %p3467 = scmp.ge.s32.totalorder %s3466, 128
        $region89: #{tpu_custom_call.1} parent=55 // loop_header_branch
          %3469 = sbr.rel (%p3467) target = $region93
        $region90: #{tpu_custom_call.1} parent=55 // loop_body
          %s3471 = sshra.s32 %s3466, 7
          %s3472 = sand.u32 %s3466, 127
          %s3473 = sadd.s32 %s3471, %s37
          %s3474 = smul.u32 %s3473, 128
          %s3475 = sshra.s32 %s3466, 7
          %s3476 = sand.u32 %s3466, 127
          %s3477 = sadd.s32 %s3474, %s3476
          %s3478 = sld [smem:[#allocation7 + %s3477]]
          %s3479 = scalar_lea.vmem [#allocation4], %s3478
          %v3480 = vld [vmem:[%s3479] sm:$0x1]
          %s3481 = scalar_lea.vmem [#allocation3], %s3466
          %v3482 = vld [vmem:[%s3481] sm:$0x1]
          %v3483 = vmax.f32 %v3480, %v3482
          %3484 = vst [vmem:[%s3479] sm:$0x1] %v3483
        $region91: #{tpu_custom_call.1} parent=55 // loop_footer
          %s3470 = sadd.s32 1, %s3466
        $region92: #{tpu_custom_call.1} parent=55 // loop_footer_branch
          %3465 = sbr.rel target = $region88
        $region93: #{tpu_custom_call.1} parent=55 // loop_exit
          _
        %v3485 = vld [vmem:[#allocation5] sm:$0xff]
        %v3486 = vld [vmem:[#allocation5 + $0x8] sm:$0xff]
        %v3487 = vld [vmem:[#allocation5 + $0x10] sm:$0xff]
        %v3488 = vld [vmem:[#allocation5 + $0x18] sm:$0xff]
        %v3489 = vld [vmem:[#allocation5 + $0x20] sm:$0xff]
        %v3490 = vld [vmem:[#allocation5 + $0x28] sm:$0xff]
        %v3491 = vld [vmem:[#allocation5 + $0x30] sm:$0xff]
        %v3492 = vld [vmem:[#allocation5 + $0x38] sm:$0xff]
        %v3493 = vld [vmem:[#allocation5 + $0x40] sm:$0xff]
        %v3494 = vld [vmem:[#allocation5 + $0x48] sm:$0xff]
        %v3495 = vld [vmem:[#allocation5 + $0x50] sm:$0xff]
        %v3496 = vld [vmem:[#allocation5 + $0x58] sm:$0xff]
        %v3497 = vld [vmem:[#allocation5 + $0x60] sm:$0xff]
        %v3498 = vld [vmem:[#allocation5 + $0x68] sm:$0xff]
        %v3499 = vld [vmem:[#allocation5 + $0x70] sm:$0xff]
        %v3500 = vld [vmem:[#allocation5 + $0x78] sm:$0xff]
        %v3501 = vld [vmem:[#allocation4] sm:$0xff]
        %v3502 = vld [vmem:[#allocation4 + $0x8] sm:$0xff]
        %v3503 = vld [vmem:[#allocation4 + $0x10] sm:$0xff]
        %v3504 = vld [vmem:[#allocation4 + $0x18] sm:$0xff]
        %v3505 = vld [vmem:[#allocation4 + $0x20] sm:$0xff]
        %v3506 = vld [vmem:[#allocation4 + $0x28] sm:$0xff]
        %v3507 = vld [vmem:[#allocation4 + $0x30] sm:$0xff]
        %v3508 = vld [vmem:[#allocation4 + $0x38] sm:$0xff]
        %v3509 = vld [vmem:[#allocation4 + $0x40] sm:$0xff]
        %v3510 = vld [vmem:[#allocation4 + $0x48] sm:$0xff]
        %v3511 = vld [vmem:[#allocation4 + $0x50] sm:$0xff]
        %v3512 = vld [vmem:[#allocation4 + $0x58] sm:$0xff]
        %v3513 = vld [vmem:[#allocation4 + $0x60] sm:$0xff]
        %v3514 = vld [vmem:[#allocation4 + $0x68] sm:$0xff]
        %v3515 = vld [vmem:[#allocation4 + $0x70] sm:$0xff]
        %v3516 = vld [vmem:[#allocation4 + $0x78] sm:$0xff]
        %v3517 = vld [vmem:[#allocation4 + $0x80] sm:$0xff]
        %v3518 = vld [vmem:[#allocation4 + $0x88] sm:$0xff]
        %v3519 = vld [vmem:[#allocation4 + $0x90] sm:$0xff]
        %v3520 = vld [vmem:[#allocation4 + $0x98] sm:$0xff]
        %v3521 = vld [vmem:[#allocation4 + $0xa0] sm:$0xff]
        %v3522 = vld [vmem:[#allocation4 + $0xa8] sm:$0xff]
        %v3523 = vld [vmem:[#allocation4 + $0xb0] sm:$0xff]
        %v3524 = vld [vmem:[#allocation4 + $0xb8] sm:$0xff]
        %v3525 = vld [vmem:[#allocation4 + $0xc0] sm:$0xff]
        %v3526 = vld [vmem:[#allocation4 + $0xc8] sm:$0xff]
        %v3527 = vld [vmem:[#allocation4 + $0xd0] sm:$0xff]
        %v3528 = vld [vmem:[#allocation4 + $0xd8] sm:$0xff]
        %v3529 = vld [vmem:[#allocation4 + $0xe0] sm:$0xff]
        %v3530 = vld [vmem:[#allocation4 + $0xe8] sm:$0xff]
        %v3531 = vld [vmem:[#allocation4 + $0xf0] sm:$0xff]
        %v3532 = vld [vmem:[#allocation4 + $0xf8] sm:$0xff]
        %v3533 = vpack.c.bf16 %v3502, %v3501
        %v3534 = vpack.c.bf16 %v3504, %v3503
        %v3535 = vpack.c.bf16 %v3506, %v3505
        %v3536 = vpack.c.bf16 %v3508, %v3507
        %v3537 = vpack.c.bf16 %v3510, %v3509
        %v3538 = vpack.c.bf16 %v3512, %v3511
        %v3539 = vpack.c.bf16 %v3514, %v3513
        %v3540 = vpack.c.bf16 %v3516, %v3515
        %v3541 = vpack.c.bf16 %v3518, %v3517
        %v3542 = vpack.c.bf16 %v3520, %v3519
        %v3543 = vpack.c.bf16 %v3522, %v3521
        %v3544 = vpack.c.bf16 %v3524, %v3523
        %v3545 = vpack.c.bf16 %v3526, %v3525
        %v3546 = vpack.c.bf16 %v3528, %v3527
        %v3547 = vpack.c.bf16 %v3530, %v3529
        %v3548 = vpack.c.bf16 %v3532, %v3531
        %v3565 = vunpack.c.l.b16 %v3485
        %v3566 = vunpack.c.h.b16 %v3485
        %v3567 = vunpack.c.l.b16 %v3486
        %v3568 = vunpack.c.h.b16 %v3486
        %v3569 = vunpack.c.l.b16 %v3487
        %v3570 = vunpack.c.h.b16 %v3487
        %v3571 = vunpack.c.l.b16 %v3488
        %v3572 = vunpack.c.h.b16 %v3488
        %v3573 = vunpack.c.l.b16 %v3489
        %v3574 = vunpack.c.h.b16 %v3489
        %v3575 = vunpack.c.l.b16 %v3490
        %v3576 = vunpack.c.h.b16 %v3490
        %v3577 = vunpack.c.l.b16 %v3491
        %v3578 = vunpack.c.h.b16 %v3491
        %v3579 = vunpack.c.l.b16 %v3492
        %v3580 = vunpack.c.h.b16 %v3492
        %v3581 = vunpack.c.l.b16 %v3493
        %v3582 = vunpack.c.h.b16 %v3493
        %v3583 = vunpack.c.l.b16 %v3494
        %v3584 = vunpack.c.h.b16 %v3494
        %v3585 = vunpack.c.l.b16 %v3495
        %v3586 = vunpack.c.h.b16 %v3495
        %v3587 = vunpack.c.l.b16 %v3496
        %v3588 = vunpack.c.h.b16 %v3496
        %v3589 = vunpack.c.l.b16 %v3497
        %v3590 = vunpack.c.h.b16 %v3497
        %v3591 = vunpack.c.l.b16 %v3498
        %v3592 = vunpack.c.h.b16 %v3498
        %v3593 = vunpack.c.l.b16 %v3499
        %v3594 = vunpack.c.h.b16 %v3499
        %v3595 = vunpack.c.l.b16 %v3500
        %v3596 = vunpack.c.h.b16 %v3500
        %v3597 = vpack.c.b16 %v3567, %v3565
        %v3598 = vpack.c.b16 %v3568, %v3566
        %v3599 = vpack.c.b16 %v3571, %v3569
        %v3600 = vpack.c.b16 %v3572, %v3570
        %v3601 = vpack.c.b16 %v3575, %v3573
        %v3602 = vpack.c.b16 %v3576, %v3574
        %v3603 = vpack.c.b16 %v3579, %v3577
        %v3604 = vpack.c.b16 %v3580, %v3578
        %v3605 = vpack.c.b16 %v3583, %v3581
        %v3606 = vpack.c.b16 %v3584, %v3582
        %v3607 = vpack.c.b16 %v3587, %v3585
        %v3608 = vpack.c.b16 %v3588, %v3586
        %v3609 = vpack.c.b16 %v3591, %v3589
        %v3610 = vpack.c.b16 %v3592, %v3590
        %v3611 = vpack.c.b16 %v3595, %v3593
        %v3612 = vpack.c.b16 %v3596, %v3594
        %3629 = vmatpush.bf16.msra.mxu0 %v3540
        %3630 = vmatpush.bf16.msra.mxu0 %v3539
        %3631 = vmatpush.bf16.msra.mxu0 %v3538
        %3632 = vmatpush.bf16.msra.mxu0 %v3537
        %3633 = vmatpush.bf16.msra.mxu0 %v3536
        %3634 = vmatpush.bf16.msra.mxu0 %v3535
        %3635 = vmatpush.bf16.msra.mxu0 %v3534
        %3636 = vmatpush.bf16.msra.mxu0 %v3533
        %3637 = vmatmul.bf16.gmra.mxu0 %v3597
        %v3638 = vpop.f32.mrf.mxu0
        %v3639 = vadd.f32 0.0, %v3638
        %v3640 = vpop.f32.mrf.mxu0
        %v3641 = vadd.f32 0.0, %v3640
        %3642 = vmatmul.bf16.gmra.mxu0 %v3599
        %v3643 = vpop.f32.mrf.mxu0
        %v3644 = vadd.f32 0.0, %v3643
        %v3645 = vpop.f32.mrf.mxu0
        %v3646 = vadd.f32 0.0, %v3645
        %3647 = vmatmul.bf16.gmra.mxu0 %v3601
        %v3648 = vpop.f32.mrf.mxu0
        %v3649 = vadd.f32 0.0, %v3648
        %v3650 = vpop.f32.mrf.mxu0
        %v3651 = vadd.f32 0.0, %v3650
        %3652 = vmatmul.bf16.gmra.mxu0 %v3603
        %v3653 = vpop.f32.mrf.mxu0
        %v3654 = vadd.f32 0.0, %v3653
        %v3655 = vpop.f32.mrf.mxu0
        %v3656 = vadd.f32 0.0, %v3655
        %3657 = vmatmul.bf16.gmra.mxu0 %v3605
        %v3658 = vpop.f32.mrf.mxu0
        %v3659 = vadd.f32 0.0, %v3658
        %v3660 = vpop.f32.mrf.mxu0
        %v3661 = vadd.f32 0.0, %v3660
        %3662 = vmatmul.bf16.gmra.mxu0 %v3607
        %v3663 = vpop.f32.mrf.mxu0
        %v3664 = vadd.f32 0.0, %v3663
        %v3665 = vpop.f32.mrf.mxu0
        %v3666 = vadd.f32 0.0, %v3665
        %3667 = vmatmul.bf16.gmra.mxu0 %v3609
        %v3668 = vpop.f32.mrf.mxu0
        %v3669 = vadd.f32 0.0, %v3668
        %v3670 = vpop.f32.mrf.mxu0
        %v3671 = vadd.f32 0.0, %v3670
        %3672 = vmatmul.bf16.gmra.mxu0 %v3611
        %v3673 = vpop.f32.mrf.mxu0
        %v3674 = vadd.f32 0.0, %v3673
        %v3675 = vpop.f32.mrf.mxu0
        %v3676 = vadd.f32 0.0, %v3675
        %3677 = vdwg.mxu0
        %3678 = vmatpush.bf16.msra.mxu0 %v3548
        %3679 = vmatpush.bf16.msra.mxu0 %v3547
        %3680 = vmatpush.bf16.msra.mxu0 %v3546
        %3681 = vmatpush.bf16.msra.mxu0 %v3545
        %3682 = vmatpush.bf16.msra.mxu0 %v3544
        %3683 = vmatpush.bf16.msra.mxu0 %v3543
        %3684 = vmatpush.bf16.msra.mxu0 %v3542
        %3685 = vmatpush.bf16.msra.mxu0 %v3541
        %3686 = vmatmul.bf16.gmra.mxu0 %v3598
        %v3687 = vpop.f32.mrf.mxu0
        %v3688 = vadd.f32 %v3639, %v3687
        %v3689 = vpop.f32.mrf.mxu0
        %v3690 = vadd.f32 %v3641, %v3689
        %3691 = vmatmul.bf16.gmra.mxu0 %v3600
        %v3692 = vpop.f32.mrf.mxu0
        %v3693 = vadd.f32 %v3644, %v3692
        %v3694 = vpop.f32.mrf.mxu0
        %v3695 = vadd.f32 %v3646, %v3694
        %3696 = vmatmul.bf16.gmra.mxu0 %v3602
        %v3697 = vpop.f32.mrf.mxu0
        %v3698 = vadd.f32 %v3649, %v3697
        %v3699 = vpop.f32.mrf.mxu0
        %v3700 = vadd.f32 %v3651, %v3699
        %3701 = vmatmul.bf16.gmra.mxu0 %v3604
        %v3702 = vpop.f32.mrf.mxu0
        %v3703 = vadd.f32 %v3654, %v3702
        %v3704 = vpop.f32.mrf.mxu0
        %v3705 = vadd.f32 %v3656, %v3704
        %3706 = vmatmul.bf16.gmra.mxu0 %v3606
        %v3707 = vpop.f32.mrf.mxu0
        %v3708 = vadd.f32 %v3659, %v3707
        %v3709 = vpop.f32.mrf.mxu0
        %v3710 = vadd.f32 %v3661, %v3709
        %3711 = vmatmul.bf16.gmra.mxu0 %v3608
        %v3712 = vpop.f32.mrf.mxu0
        %v3713 = vadd.f32 %v3664, %v3712
        %v3714 = vpop.f32.mrf.mxu0
        %v3715 = vadd.f32 %v3666, %v3714
        %3716 = vmatmul.bf16.gmra.mxu0 %v3610
        %v3717 = vpop.f32.mrf.mxu0
        %v3718 = vadd.f32 %v3669, %v3717
        %v3719 = vpop.f32.mrf.mxu0
        %v3720 = vadd.f32 %v3671, %v3719
        %3721 = vmatmul.bf16.gmra.mxu0 %v3612
        %v3722 = vpop.f32.mrf.mxu0
        %v3723 = vadd.f32 %v3674, %v3722
        %v3724 = vpop.f32.mrf.mxu0
        %v3725 = vadd.f32 %v3676, %v3724
        %3726 = vdwg.mxu0
        %3727 = vst [vmem:[#allocation2 + $0x8] sm:$0xff] %v3688
        %3728 = vst [vmem:[#allocation2 + $0x18] sm:$0xff] %v3690
        %3729 = vst [vmem:[#allocation2 + $0x28] sm:$0xff] %v3693
        %3730 = vst [vmem:[#allocation2 + $0x38] sm:$0xff] %v3695
        %3731 = vst [vmem:[#allocation2 + $0x48] sm:$0xff] %v3698
        %3732 = vst [vmem:[#allocation2 + $0x58] sm:$0xff] %v3700
        %3733 = vst [vmem:[#allocation2 + $0x68] sm:$0xff] %v3703
        %3734 = vst [vmem:[#allocation2 + $0x78] sm:$0xff] %v3705
        %3735 = vst [vmem:[#allocation2 + $0x88] sm:$0xff] %v3708
        %3736 = vst [vmem:[#allocation2 + $0x98] sm:$0xff] %v3710
        %3737 = vst [vmem:[#allocation2 + $0xa8] sm:$0xff] %v3713
        %3738 = vst [vmem:[#allocation2 + $0xb8] sm:$0xff] %v3715
        %3739 = vst [vmem:[#allocation2 + $0xc8] sm:$0xff] %v3718
        %3740 = vst [vmem:[#allocation2 + $0xd8] sm:$0xff] %v3720
        %3741 = vst [vmem:[#allocation2 + $0xe8] sm:$0xff] %v3723
        %3742 = vst [vmem:[#allocation2 + $0xf8] sm:$0xff] %v3725
        %v3743 = vld [vmem:[#allocation2] sm:$0xff]
        %v3744 = vld [vmem:[#allocation2 + $0x8] sm:$0xff]
        %v3745 = vld [vmem:[#allocation2 + $0x10] sm:$0xff]
        %v3746 = vld [vmem:[#allocation2 + $0x18] sm:$0xff]
        %v3747 = vld [vmem:[#allocation2 + $0x20] sm:$0xff]
        %v3748 = vld [vmem:[#allocation2 + $0x28] sm:$0xff]
        %v3749 = vld [vmem:[#allocation2 + $0x30] sm:$0xff]
        %v3750 = vld [vmem:[#allocation2 + $0x38] sm:$0xff]
        %v3751 = vld [vmem:[#allocation2 + $0x40] sm:$0xff]
        %v3752 = vld [vmem:[#allocation2 + $0x48] sm:$0xff]
        %v3753 = vld [vmem:[#allocation2 + $0x50] sm:$0xff]
        %v3754 = vld [vmem:[#allocation2 + $0x58] sm:$0xff]
        %v3755 = vld [vmem:[#allocation2 + $0x60] sm:$0xff]
        %v3756 = vld [vmem:[#allocation2 + $0x68] sm:$0xff]
        %v3757 = vld [vmem:[#allocation2 + $0x70] sm:$0xff]
        %v3758 = vld [vmem:[#allocation2 + $0x78] sm:$0xff]
        %v3759 = vld [vmem:[#allocation2 + $0x80] sm:$0xff]
        %v3760 = vld [vmem:[#allocation2 + $0x88] sm:$0xff]
        %v3761 = vld [vmem:[#allocation2 + $0x90] sm:$0xff]
        %v3762 = vld [vmem:[#allocation2 + $0x98] sm:$0xff]
        %v3763 = vld [vmem:[#allocation2 + $0xa0] sm:$0xff]
        %v3764 = vld [vmem:[#allocation2 + $0xa8] sm:$0xff]
        %v3765 = vld [vmem:[#allocation2 + $0xb0] sm:$0xff]
        %v3766 = vld [vmem:[#allocation2 + $0xb8] sm:$0xff]
        %v3767 = vld [vmem:[#allocation2 + $0xc0] sm:$0xff]
        %v3768 = vld [vmem:[#allocation2 + $0xc8] sm:$0xff]
        %v3769 = vld [vmem:[#allocation2 + $0xd0] sm:$0xff]
        %v3770 = vld [vmem:[#allocation2 + $0xd8] sm:$0xff]
        %v3771 = vld [vmem:[#allocation2 + $0xe0] sm:$0xff]
        %v3772 = vld [vmem:[#allocation2 + $0xe8] sm:$0xff]
        %v3773 = vld [vmem:[#allocation2 + $0xf0] sm:$0xff]
        %v3774 = vld [vmem:[#allocation2 + $0xf8] sm:$0xff]
        %v3775 = vmax.f32 %v3743, 0.0
        %v3776 = vmax.f32 %v3744, 0.0
        %v3777 = vmax.f32 %v3745, 0.0
        %v3778 = vmax.f32 %v3746, 0.0
        %v3779 = vmax.f32 %v3747, 0.0
        %v3780 = vmax.f32 %v3748, 0.0
        %v3781 = vmax.f32 %v3749, 0.0
        %v3782 = vmax.f32 %v3750, 0.0
        %v3783 = vmax.f32 %v3751, 0.0
        %v3784 = vmax.f32 %v3752, 0.0
        %v3785 = vmax.f32 %v3753, 0.0
        %v3786 = vmax.f32 %v3754, 0.0
        %v3787 = vmax.f32 %v3755, 0.0
        %v3788 = vmax.f32 %v3756, 0.0
        %v3789 = vmax.f32 %v3757, 0.0
        %v3790 = vmax.f32 %v3758, 0.0
        %v3791 = vmax.f32 %v3759, 0.0
        %v3792 = vmax.f32 %v3760, 0.0
        %v3793 = vmax.f32 %v3761, 0.0
        %v3794 = vmax.f32 %v3762, 0.0
        %v3795 = vmax.f32 %v3763, 0.0
        %v3796 = vmax.f32 %v3764, 0.0
        %v3797 = vmax.f32 %v3765, 0.0
        %v3798 = vmax.f32 %v3766, 0.0
        %v3799 = vmax.f32 %v3767, 0.0
        %v3800 = vmax.f32 %v3768, 0.0
        %v3801 = vmax.f32 %v3769, 0.0
        %v3802 = vmax.f32 %v3770, 0.0
        %v3803 = vmax.f32 %v3771, 0.0
        %v3804 = vmax.f32 %v3772, 0.0
        %v3805 = vmax.f32 %v3773, 0.0
        %v3806 = vmax.f32 %v3774, 0.0
        %s3807 = scalar_lea.vmem [#allocation11], 384
        %v3808 = vld [vmem:[%s3807] sm:$0xf]
        %v3809 = vld [vmem:[%s3807 + $0x4] sm:$0xf]
        %v3810 = vld [vmem:[%s3807 + $0x8] sm:$0xf]
        %v3811 = vld [vmem:[%s3807 + $0xc] sm:$0xf]
        %v3812 = vld [vmem:[%s3807 + $0x10] sm:$0xf]
        %v3813 = vld [vmem:[%s3807 + $0x14] sm:$0xf]
        %v3814 = vld [vmem:[%s3807 + $0x18] sm:$0xf]
        %v3815 = vld [vmem:[%s3807 + $0x1c] sm:$0xf]
        %v3816 = vld [vmem:[%s3807 + $0x20] sm:$0xf]
        %v3817 = vld [vmem:[%s3807 + $0x24] sm:$0xf]
        %v3818 = vld [vmem:[%s3807 + $0x28] sm:$0xf]
        %v3819 = vld [vmem:[%s3807 + $0x2c] sm:$0xf]
        %v3820 = vld [vmem:[%s3807 + $0x30] sm:$0xf]
        %v3821 = vld [vmem:[%s3807 + $0x34] sm:$0xf]
        %v3822 = vld [vmem:[%s3807 + $0x38] sm:$0xf]
        %v3823 = vld [vmem:[%s3807 + $0x3c] sm:$0xf]
        %v3824 = vld [vmem:[%s3807 + $0x40] sm:$0xf]
        %v3825 = vld [vmem:[%s3807 + $0x44] sm:$0xf]
        %v3826 = vld [vmem:[%s3807 + $0x48] sm:$0xf]
        %v3827 = vld [vmem:[%s3807 + $0x4c] sm:$0xf]
        %v3828 = vld [vmem:[%s3807 + $0x50] sm:$0xf]
        %v3829 = vld [vmem:[%s3807 + $0x54] sm:$0xf]
        %v3830 = vld [vmem:[%s3807 + $0x58] sm:$0xf]
        %v3831 = vld [vmem:[%s3807 + $0x5c] sm:$0xf]
        %v3832 = vld [vmem:[%s3807 + $0x60] sm:$0xf]
        %v3833 = vld [vmem:[%s3807 + $0x64] sm:$0xf]
        %v3834 = vld [vmem:[%s3807 + $0x68] sm:$0xf]
        %v3835 = vld [vmem:[%s3807 + $0x6c] sm:$0xf]
        %v3836 = vld [vmem:[%s3807 + $0x70] sm:$0xf]
        %v3837 = vld [vmem:[%s3807 + $0x74] sm:$0xf]
        %v3838 = vld [vmem:[%s3807 + $0x78] sm:$0xf]
        %v3839 = vld [vmem:[%s3807 + $0x7c] sm:$0xf]
        %s3840 = scalar_lea.vmem %s4, 3
        %v3841 = vld [vmem:[%s3840] sm:$0x1]
        %v3842 = vpack.c.bf16 %v3777, %v3775
        %v3843 = vpack.c.bf16 %v3778, %v3776
        %v3844 = vpack.c.bf16 %v3781, %v3779
        %v3845 = vpack.c.bf16 %v3782, %v3780
        %v3846 = vpack.c.bf16 %v3785, %v3783
        %v3847 = vpack.c.bf16 %v3786, %v3784
        %v3848 = vpack.c.bf16 %v3789, %v3787
        %v3849 = vpack.c.bf16 %v3790, %v3788
        %v3850 = vpack.c.bf16 %v3793, %v3791
        %v3851 = vpack.c.bf16 %v3794, %v3792
        %v3852 = vpack.c.bf16 %v3797, %v3795
        %v3853 = vpack.c.bf16 %v3798, %v3796
        %v3854 = vpack.c.bf16 %v3801, %v3799
        %v3855 = vpack.c.bf16 %v3802, %v3800
        %v3856 = vpack.c.bf16 %v3805, %v3803
        %v3857 = vpack.c.bf16 %v3806, %v3804
        %v3859 = vperm.slane %v3841, 0
        %v3893 = vunpack.c.l.b16 %v3808
        %v3894 = vunpack.c.l.b16 %v3809
        %v3895 = vunpack.c.l.b16 %v3810
        %v3896 = vunpack.c.l.b16 %v3811
        %v3897 = vunpack.c.l.b16 %v3812
        %v3898 = vunpack.c.l.b16 %v3813
        %v3899 = vunpack.c.l.b16 %v3814
        %v3900 = vunpack.c.l.b16 %v3815
        %v3901 = vunpack.c.l.b16 %v3816
        %v3902 = vunpack.c.l.b16 %v3817
        %v3903 = vunpack.c.l.b16 %v3818
        %v3904 = vunpack.c.l.b16 %v3819
        %v3905 = vunpack.c.l.b16 %v3820
        %v3906 = vunpack.c.l.b16 %v3821
        %v3907 = vunpack.c.l.b16 %v3822
        %v3908 = vunpack.c.l.b16 %v3823
        %v3909 = vunpack.c.l.b16 %v3824
        %v3910 = vunpack.c.l.b16 %v3825
        %v3911 = vunpack.c.l.b16 %v3826
        %v3912 = vunpack.c.l.b16 %v3827
        %v3913 = vunpack.c.l.b16 %v3828
        %v3914 = vunpack.c.l.b16 %v3829
        %v3915 = vunpack.c.l.b16 %v3830
        %v3916 = vunpack.c.l.b16 %v3831
        %v3917 = vunpack.c.l.b16 %v3832
        %v3918 = vunpack.c.l.b16 %v3833
        %v3919 = vunpack.c.l.b16 %v3834
        %v3920 = vunpack.c.l.b16 %v3835
        %v3921 = vunpack.c.l.b16 %v3836
        %v3922 = vunpack.c.l.b16 %v3837
        %v3923 = vunpack.c.l.b16 %v3838
        %v3924 = vunpack.c.l.b16 %v3839
        %v3925 = vpack.c.b16 %v3894, %v3893
        %v3926 = vpack.c.b16 %v3896, %v3895
        %v3927 = vpack.c.b16 %v3898, %v3897
        %v3928 = vpack.c.b16 %v3900, %v3899
        %v3929 = vpack.c.b16 %v3902, %v3901
        %v3930 = vpack.c.b16 %v3904, %v3903
        %v3931 = vpack.c.b16 %v3906, %v3905
        %v3932 = vpack.c.b16 %v3908, %v3907
        %v3933 = vpack.c.b16 %v3910, %v3909
        %v3934 = vpack.c.b16 %v3912, %v3911
        %v3935 = vpack.c.b16 %v3914, %v3913
        %v3936 = vpack.c.b16 %v3916, %v3915
        %v3937 = vpack.c.b16 %v3918, %v3917
        %v3938 = vpack.c.b16 %v3920, %v3919
        %v3939 = vpack.c.b16 %v3922, %v3921
        %v3940 = vpack.c.b16 %v3924, %v3923
        %3957 = vmatpush.bf16.msra.mxu0 %v3932
        %3958 = vmatpush.bf16.msra.mxu0 %v3931
        %3959 = vmatpush.bf16.msra.mxu0 %v3930
        %3960 = vmatpush.bf16.msra.mxu0 %v3929
        %3961 = vmatpush.bf16.msra.mxu0 %v3928
        %3962 = vmatpush.bf16.msra.mxu0 %v3927
        %3963 = vmatpush.bf16.msra.mxu0 %v3926
        %3964 = vmatpush.bf16.msra.mxu0 %v3925
        %3965 = vmatmul.bf16.gmra.mxu0 %v3842
        %v3966 = vpop.f32.mrf.mxu0
        %v3967 = vadd.f32 %v3859, %v3966
        %v3968 = vpop.f32.mrf.mxu0
        %v3969 = vadd.f32 %v3859, %v3968
        %3970 = vmatmul.bf16.gmra.mxu0 %v3844
        %v3971 = vpop.f32.mrf.mxu0
        %v3972 = vadd.f32 %v3859, %v3971
        %v3973 = vpop.f32.mrf.mxu0
        %v3974 = vadd.f32 %v3859, %v3973
        %3975 = vmatmul.bf16.gmra.mxu0 %v3846
        %v3976 = vpop.f32.mrf.mxu0
        %v3977 = vadd.f32 %v3859, %v3976
        %v3978 = vpop.f32.mrf.mxu0
        %v3979 = vadd.f32 %v3859, %v3978
        %3980 = vmatmul.bf16.gmra.mxu0 %v3848
        %v3981 = vpop.f32.mrf.mxu0
        %v3982 = vadd.f32 %v3859, %v3981
        %v3983 = vpop.f32.mrf.mxu0
        %v3984 = vadd.f32 %v3859, %v3983
        %3985 = vmatmul.bf16.gmra.mxu0 %v3850
        %v3986 = vpop.f32.mrf.mxu0
        %v3987 = vadd.f32 %v3859, %v3986
        %v3988 = vpop.f32.mrf.mxu0
        %v3989 = vadd.f32 %v3859, %v3988
        %3990 = vmatmul.bf16.gmra.mxu0 %v3852
        %v3991 = vpop.f32.mrf.mxu0
        %v3992 = vadd.f32 %v3859, %v3991
        %v3993 = vpop.f32.mrf.mxu0
        %v3994 = vadd.f32 %v3859, %v3993
        %3995 = vmatmul.bf16.gmra.mxu0 %v3854
        %v3996 = vpop.f32.mrf.mxu0
        %v3997 = vadd.f32 %v3859, %v3996
        %v3998 = vpop.f32.mrf.mxu0
        %v3999 = vadd.f32 %v3859, %v3998
        %4000 = vmatmul.bf16.gmra.mxu0 %v3856
        %v4001 = vpop.f32.mrf.mxu0
        %v4002 = vadd.f32 %v3859, %v4001
        %v4003 = vpop.f32.mrf.mxu0
        %v4004 = vadd.f32 %v3859, %v4003
        %4005 = vdwg.mxu0
        %4006 = vmatpush.bf16.msra.mxu0 %v3940
        %4007 = vmatpush.bf16.msra.mxu0 %v3939
        %4008 = vmatpush.bf16.msra.mxu0 %v3938
        %4009 = vmatpush.bf16.msra.mxu0 %v3937
        %4010 = vmatpush.bf16.msra.mxu0 %v3936
        %4011 = vmatpush.bf16.msra.mxu0 %v3935
        %4012 = vmatpush.bf16.msra.mxu0 %v3934
        %4013 = vmatpush.bf16.msra.mxu0 %v3933
        %4014 = vmatmul.bf16.gmra.mxu0 %v3843
        %v4015 = vpop.f32.mrf.mxu0
        %v4016 = vadd.f32 %v3967, %v4015
        %v4017 = vpop.f32.mrf.mxu0
        %v4018 = vadd.f32 %v3969, %v4017
        %4019 = vmatmul.bf16.gmra.mxu0 %v3845
        %v4020 = vpop.f32.mrf.mxu0
        %v4021 = vadd.f32 %v3972, %v4020
        %v4022 = vpop.f32.mrf.mxu0
        %v4023 = vadd.f32 %v3974, %v4022
        %4024 = vmatmul.bf16.gmra.mxu0 %v3847
        %v4025 = vpop.f32.mrf.mxu0
        %v4026 = vadd.f32 %v3977, %v4025
        %v4027 = vpop.f32.mrf.mxu0
        %v4028 = vadd.f32 %v3979, %v4027
        %4029 = vmatmul.bf16.gmra.mxu0 %v3849
        %v4030 = vpop.f32.mrf.mxu0
        %v4031 = vadd.f32 %v3982, %v4030
        %v4032 = vpop.f32.mrf.mxu0
        %v4033 = vadd.f32 %v3984, %v4032
        %4034 = vmatmul.bf16.gmra.mxu0 %v3851
        %v4035 = vpop.f32.mrf.mxu0
        %v4036 = vadd.f32 %v3987, %v4035
        %v4037 = vpop.f32.mrf.mxu0
        %v4038 = vadd.f32 %v3989, %v4037
        %4039 = vmatmul.bf16.gmra.mxu0 %v3853
        %v4040 = vpop.f32.mrf.mxu0
        %v4041 = vadd.f32 %v3992, %v4040
        %v4042 = vpop.f32.mrf.mxu0
        %v4043 = vadd.f32 %v3994, %v4042
        %4044 = vmatmul.bf16.gmra.mxu0 %v3855
        %v4045 = vpop.f32.mrf.mxu0
        %v4046 = vadd.f32 %v3997, %v4045
        %v4047 = vpop.f32.mrf.mxu0
        %v4048 = vadd.f32 %v3999, %v4047
        %4049 = vmatmul.bf16.gmra.mxu0 %v3857
        %v4050 = vpop.f32.mrf.mxu0
        %v4051 = vadd.f32 %v4002, %v4050
        %v4052 = vpop.f32.mrf.mxu0
        %v4053 = vadd.f32 %v4004, %v4052
        %4054 = vdwg.mxu0
        %v4055 = vmax.f32 %v4016, 0.0
        %v4056 = vmax.f32 %v4018, 0.0
        %v4057 = vmax.f32 %v4021, 0.0
        %v4058 = vmax.f32 %v4023, 0.0
        %v4059 = vmax.f32 %v4026, 0.0
        %v4060 = vmax.f32 %v4028, 0.0
        %v4061 = vmax.f32 %v4031, 0.0
        %v4062 = vmax.f32 %v4033, 0.0
        %v4063 = vmax.f32 %v4036, 0.0
        %v4064 = vmax.f32 %v4038, 0.0
        %v4065 = vmax.f32 %v4041, 0.0
        %v4066 = vmax.f32 %v4043, 0.0
        %v4067 = vmax.f32 %v4046, 0.0
        %v4068 = vmax.f32 %v4048, 0.0
        %v4069 = vmax.f32 %v4051, 0.0
        %v4070 = vmax.f32 %v4053, 0.0
        %s4071 = scalar_lea.vmem [#allocation13], 192
        %v4072 = vld [vmem:[%s4071] sm:$0xf]
        %v4073 = vld [vmem:[%s4071 + $0x4] sm:$0xf]
        %v4074 = vld [vmem:[%s4071 + $0x8] sm:$0xf]
        %v4075 = vld [vmem:[%s4071 + $0xc] sm:$0xf]
        %v4076 = vld [vmem:[%s4071 + $0x10] sm:$0xf]
        %v4077 = vld [vmem:[%s4071 + $0x14] sm:$0xf]
        %v4078 = vld [vmem:[%s4071 + $0x18] sm:$0xf]
        %v4079 = vld [vmem:[%s4071 + $0x1c] sm:$0xf]
        %v4080 = vld [vmem:[%s4071 + $0x20] sm:$0xf]
        %v4081 = vld [vmem:[%s4071 + $0x24] sm:$0xf]
        %v4082 = vld [vmem:[%s4071 + $0x28] sm:$0xf]
        %v4083 = vld [vmem:[%s4071 + $0x2c] sm:$0xf]
        %v4084 = vld [vmem:[%s4071 + $0x30] sm:$0xf]
        %v4085 = vld [vmem:[%s4071 + $0x34] sm:$0xf]
        %v4086 = vld [vmem:[%s4071 + $0x38] sm:$0xf]
        %v4087 = vld [vmem:[%s4071 + $0x3c] sm:$0xf]
        %s4088 = scalar_lea.vmem %s6, 3
        %v4089 = vld [vmem:[%s4088] sm:$0x1]
        %v4090 = vpack.c.bf16 %v4056, %v4055
        %v4091 = vpack.c.bf16 %v4058, %v4057
        %v4092 = vpack.c.bf16 %v4060, %v4059
        %v4093 = vpack.c.bf16 %v4062, %v4061
        %v4094 = vpack.c.bf16 %v4064, %v4063
        %v4095 = vpack.c.bf16 %v4066, %v4065
        %v4096 = vpack.c.bf16 %v4068, %v4067
        %v4097 = vpack.c.bf16 %v4070, %v4069
        %v4099 = vperm.slane %v4089, 0
        %v4117 = vunpack.c.l.b16 %v4072
        %v4118 = vunpack.c.l.b16 %v4073
        %v4119 = vunpack.c.l.b16 %v4074
        %v4120 = vunpack.c.l.b16 %v4075
        %v4121 = vunpack.c.l.b16 %v4076
        %v4122 = vunpack.c.l.b16 %v4077
        %v4123 = vunpack.c.l.b16 %v4078
        %v4124 = vunpack.c.l.b16 %v4079
        %v4125 = vunpack.c.l.b16 %v4080
        %v4126 = vunpack.c.l.b16 %v4081
        %v4127 = vunpack.c.l.b16 %v4082
        %v4128 = vunpack.c.l.b16 %v4083
        %v4129 = vunpack.c.l.b16 %v4084
        %v4130 = vunpack.c.l.b16 %v4085
        %v4131 = vunpack.c.l.b16 %v4086
        %v4132 = vunpack.c.l.b16 %v4087
        %v4133 = vpack.c.b16 %v4118, %v4117
        %v4134 = vpack.c.b16 %v4120, %v4119
        %v4135 = vpack.c.b16 %v4122, %v4121
        %v4136 = vpack.c.b16 %v4124, %v4123
        %v4137 = vpack.c.b16 %v4126, %v4125
        %v4138 = vpack.c.b16 %v4128, %v4127
        %v4139 = vpack.c.b16 %v4130, %v4129
        %v4140 = vpack.c.b16 %v4132, %v4131
        %4149 = vmatpush.bf16.msra.mxu0 %v4140
        %4150 = vmatpush.bf16.msra.mxu0 %v4139
        %4151 = vmatpush.bf16.msra.mxu0 %v4138
        %4152 = vmatpush.bf16.msra.mxu0 %v4137
        %4153 = vmatpush.bf16.msra.mxu0 %v4136
        %4154 = vmatpush.bf16.msra.mxu0 %v4135
        %4155 = vmatpush.bf16.msra.mxu0 %v4134
        %4156 = vmatpush.bf16.msra.mxu0 %v4133
        %4157 = vmatmul.bf16.gmra.mxu0 %v4090
        %v4158 = vpop.f32.mrf.mxu0
        %v4159 = vadd.f32 %v4099, %v4158
        %v4160 = vpop.f32.mrf.mxu0
        %v4161 = vadd.f32 %v4099, %v4160
        %4162 = vmatmul.bf16.gmra.mxu0 %v4091
        %v4163 = vpop.f32.mrf.mxu0
        %v4164 = vadd.f32 %v4099, %v4163
        %v4165 = vpop.f32.mrf.mxu0
        %v4166 = vadd.f32 %v4099, %v4165
        %4167 = vmatmul.bf16.gmra.mxu0 %v4092
        %v4168 = vpop.f32.mrf.mxu0
        %v4169 = vadd.f32 %v4099, %v4168
        %v4170 = vpop.f32.mrf.mxu0
        %v4171 = vadd.f32 %v4099, %v4170
        %4172 = vmatmul.bf16.gmra.mxu0 %v4093
        %v4173 = vpop.f32.mrf.mxu0
        %v4174 = vadd.f32 %v4099, %v4173
        %v4175 = vpop.f32.mrf.mxu0
        %v4176 = vadd.f32 %v4099, %v4175
        %4177 = vmatmul.bf16.gmra.mxu0 %v4094
        %v4178 = vpop.f32.mrf.mxu0
        %v4179 = vadd.f32 %v4099, %v4178
        %v4180 = vpop.f32.mrf.mxu0
        %v4181 = vadd.f32 %v4099, %v4180
        %4182 = vmatmul.bf16.gmra.mxu0 %v4095
        %v4183 = vpop.f32.mrf.mxu0
        %v4184 = vadd.f32 %v4099, %v4183
        %v4185 = vpop.f32.mrf.mxu0
        %v4186 = vadd.f32 %v4099, %v4185
        %4187 = vmatmul.bf16.gmra.mxu0 %v4096
        %v4188 = vpop.f32.mrf.mxu0
        %v4189 = vadd.f32 %v4099, %v4188
        %v4190 = vpop.f32.mrf.mxu0
        %v4191 = vadd.f32 %v4099, %v4190
        %4192 = vmatmul.bf16.gmra.mxu0 %v4097
        %v4193 = vpop.f32.mrf.mxu0
        %v4194 = vadd.f32 %v4099, %v4193
        %v4195 = vpop.f32.mrf.mxu0
        %v4196 = vadd.f32 %v4099, %v4195
        %4197 = vdwg.mxu0
        %v4198 = vpack.c.bf16 %v3745, %v3743
        %v4199 = vpack.c.bf16 %v3746, %v3744
        %v4200 = vpack.c.bf16 %v3749, %v3747
        %v4201 = vpack.c.bf16 %v3750, %v3748
        %v4202 = vpack.c.bf16 %v3753, %v3751
        %v4203 = vpack.c.bf16 %v3754, %v3752
        %v4204 = vpack.c.bf16 %v3757, %v3755
        %v4205 = vpack.c.bf16 %v3758, %v3756
        %v4206 = vpack.c.bf16 %v3761, %v3759
        %v4207 = vpack.c.bf16 %v3762, %v3760
        %v4208 = vpack.c.bf16 %v3765, %v3763
        %v4209 = vpack.c.bf16 %v3766, %v3764
        %v4210 = vpack.c.bf16 %v3769, %v3767
        %v4211 = vpack.c.bf16 %v3770, %v3768
        %v4212 = vpack.c.bf16 %v3773, %v3771
        %v4213 = vpack.c.bf16 %v3774, %v3772
        %s4214 = scalar_lea.vmem [#allocation14], 384
        %v4215 = vld [vmem:[%s4214] sm:$0xf]
        %v4216 = vld [vmem:[%s4214 + $0x4] sm:$0xf]
        %v4217 = vld [vmem:[%s4214 + $0x8] sm:$0xf]
        %v4218 = vld [vmem:[%s4214 + $0xc] sm:$0xf]
        %v4219 = vld [vmem:[%s4214 + $0x10] sm:$0xf]
        %v4220 = vld [vmem:[%s4214 + $0x14] sm:$0xf]
        %v4221 = vld [vmem:[%s4214 + $0x18] sm:$0xf]
        %v4222 = vld [vmem:[%s4214 + $0x1c] sm:$0xf]
        %v4223 = vld [vmem:[%s4214 + $0x20] sm:$0xf]
        %v4224 = vld [vmem:[%s4214 + $0x24] sm:$0xf]
        %v4225 = vld [vmem:[%s4214 + $0x28] sm:$0xf]
        %v4226 = vld [vmem:[%s4214 + $0x2c] sm:$0xf]
        %v4227 = vld [vmem:[%s4214 + $0x30] sm:$0xf]
        %v4228 = vld [vmem:[%s4214 + $0x34] sm:$0xf]
        %v4229 = vld [vmem:[%s4214 + $0x38] sm:$0xf]
        %v4230 = vld [vmem:[%s4214 + $0x3c] sm:$0xf]
        %v4231 = vld [vmem:[%s4214 + $0x40] sm:$0xf]
        %v4232 = vld [vmem:[%s4214 + $0x44] sm:$0xf]
        %v4233 = vld [vmem:[%s4214 + $0x48] sm:$0xf]
        %v4234 = vld [vmem:[%s4214 + $0x4c] sm:$0xf]
        %v4235 = vld [vmem:[%s4214 + $0x50] sm:$0xf]
        %v4236 = vld [vmem:[%s4214 + $0x54] sm:$0xf]
        %v4237 = vld [vmem:[%s4214 + $0x58] sm:$0xf]
        %v4238 = vld [vmem:[%s4214 + $0x5c] sm:$0xf]
        %v4239 = vld [vmem:[%s4214 + $0x60] sm:$0xf]
        %v4240 = vld [vmem:[%s4214 + $0x64] sm:$0xf]
        %v4241 = vld [vmem:[%s4214 + $0x68] sm:$0xf]
        %v4242 = vld [vmem:[%s4214 + $0x6c] sm:$0xf]
        %v4243 = vld [vmem:[%s4214 + $0x70] sm:$0xf]
        %v4244 = vld [vmem:[%s4214 + $0x74] sm:$0xf]
        %v4245 = vld [vmem:[%s4214 + $0x78] sm:$0xf]
        %v4246 = vld [vmem:[%s4214 + $0x7c] sm:$0xf]
        %v4279 = vunpack.c.l.b16 %v4215
        %v4280 = vunpack.c.l.b16 %v4216
        %v4281 = vunpack.c.l.b16 %v4217
        %v4282 = vunpack.c.l.b16 %v4218
        %v4283 = vunpack.c.l.b16 %v4219
        %v4284 = vunpack.c.l.b16 %v4220
        %v4285 = vunpack.c.l.b16 %v4221
        %v4286 = vunpack.c.l.b16 %v4222
        %v4287 = vunpack.c.l.b16 %v4223
        %v4288 = vunpack.c.l.b16 %v4224
        %v4289 = vunpack.c.l.b16 %v4225
        %v4290 = vunpack.c.l.b16 %v4226
        %v4291 = vunpack.c.l.b16 %v4227
        %v4292 = vunpack.c.l.b16 %v4228
        %v4293 = vunpack.c.l.b16 %v4229
        %v4294 = vunpack.c.l.b16 %v4230
        %v4295 = vunpack.c.l.b16 %v4231
        %v4296 = vunpack.c.l.b16 %v4232
        %v4297 = vunpack.c.l.b16 %v4233
        %v4298 = vunpack.c.l.b16 %v4234
        %v4299 = vunpack.c.l.b16 %v4235
        %v4300 = vunpack.c.l.b16 %v4236
        %v4301 = vunpack.c.l.b16 %v4237
        %v4302 = vunpack.c.l.b16 %v4238
        %v4303 = vunpack.c.l.b16 %v4239
        %v4304 = vunpack.c.l.b16 %v4240
        %v4305 = vunpack.c.l.b16 %v4241
        %v4306 = vunpack.c.l.b16 %v4242
        %v4307 = vunpack.c.l.b16 %v4243
        %v4308 = vunpack.c.l.b16 %v4244
        %v4309 = vunpack.c.l.b16 %v4245
        %v4310 = vunpack.c.l.b16 %v4246
        %v4311 = vpack.c.b16 %v4280, %v4279
        %v4312 = vpack.c.b16 %v4282, %v4281
        %v4313 = vpack.c.b16 %v4284, %v4283
        %v4314 = vpack.c.b16 %v4286, %v4285
        %v4315 = vpack.c.b16 %v4288, %v4287
        %v4316 = vpack.c.b16 %v4290, %v4289
        %v4317 = vpack.c.b16 %v4292, %v4291
        %v4318 = vpack.c.b16 %v4294, %v4293
        %v4319 = vpack.c.b16 %v4296, %v4295
        %v4320 = vpack.c.b16 %v4298, %v4297
        %v4321 = vpack.c.b16 %v4300, %v4299
        %v4322 = vpack.c.b16 %v4302, %v4301
        %v4323 = vpack.c.b16 %v4304, %v4303
        %v4324 = vpack.c.b16 %v4306, %v4305
        %v4325 = vpack.c.b16 %v4308, %v4307
        %v4326 = vpack.c.b16 %v4310, %v4309
        %4343 = vmatpush.bf16.msra.mxu0 %v4318
        %4344 = vmatpush.bf16.msra.mxu0 %v4317
        %4345 = vmatpush.bf16.msra.mxu0 %v4316
        %4346 = vmatpush.bf16.msra.mxu0 %v4315
        %4347 = vmatpush.bf16.msra.mxu0 %v4314
        %4348 = vmatpush.bf16.msra.mxu0 %v4313
        %4349 = vmatpush.bf16.msra.mxu0 %v4312
        %4350 = vmatpush.bf16.msra.mxu0 %v4311
        %4351 = vmatmul.bf16.gmra.mxu0 %v4198
        %v4352 = vpop.f32.mrf.mxu0
        %v4353 = vadd.f32 %v4159, %v4352
        %v4354 = vpop.f32.mrf.mxu0
        %v4355 = vadd.f32 %v4161, %v4354
        %4356 = vmatmul.bf16.gmra.mxu0 %v4200
        %v4357 = vpop.f32.mrf.mxu0
        %v4358 = vadd.f32 %v4164, %v4357
        %v4359 = vpop.f32.mrf.mxu0
        %v4360 = vadd.f32 %v4166, %v4359
        %4361 = vmatmul.bf16.gmra.mxu0 %v4202
        %v4362 = vpop.f32.mrf.mxu0
        %v4363 = vadd.f32 %v4169, %v4362
        %v4364 = vpop.f32.mrf.mxu0
        %v4365 = vadd.f32 %v4171, %v4364
        %4366 = vmatmul.bf16.gmra.mxu0 %v4204
        %v4367 = vpop.f32.mrf.mxu0
        %v4368 = vadd.f32 %v4174, %v4367
        %v4369 = vpop.f32.mrf.mxu0
        %v4370 = vadd.f32 %v4176, %v4369
        %4371 = vmatmul.bf16.gmra.mxu0 %v4206
        %v4372 = vpop.f32.mrf.mxu0
        %v4373 = vadd.f32 %v4179, %v4372
        %v4374 = vpop.f32.mrf.mxu0
        %v4375 = vadd.f32 %v4181, %v4374
        %4376 = vmatmul.bf16.gmra.mxu0 %v4208
        %v4377 = vpop.f32.mrf.mxu0
        %v4378 = vadd.f32 %v4184, %v4377
        %v4379 = vpop.f32.mrf.mxu0
        %v4380 = vadd.f32 %v4186, %v4379
        %4381 = vmatmul.bf16.gmra.mxu0 %v4210
        %v4382 = vpop.f32.mrf.mxu0
        %v4383 = vadd.f32 %v4189, %v4382
        %v4384 = vpop.f32.mrf.mxu0
        %v4385 = vadd.f32 %v4191, %v4384
        %4386 = vmatmul.bf16.gmra.mxu0 %v4212
        %v4387 = vpop.f32.mrf.mxu0
        %v4388 = vadd.f32 %v4194, %v4387
        %v4389 = vpop.f32.mrf.mxu0
        %v4390 = vadd.f32 %v4196, %v4389
        %4391 = vdwg.mxu0
        %4392 = vmatpush.bf16.msra.mxu0 %v4326
        %4393 = vmatpush.bf16.msra.mxu0 %v4325
        %4394 = vmatpush.bf16.msra.mxu0 %v4324
        %4395 = vmatpush.bf16.msra.mxu0 %v4323
        %4396 = vmatpush.bf16.msra.mxu0 %v4322
        %4397 = vmatpush.bf16.msra.mxu0 %v4321
        %4398 = vmatpush.bf16.msra.mxu0 %v4320
        %4399 = vmatpush.bf16.msra.mxu0 %v4319
        %4400 = vmatmul.bf16.gmra.mxu0 %v4199
        %v4401 = vpop.f32.mrf.mxu0
        %v4402 = vadd.f32 %v4353, %v4401
        %v4403 = vpop.f32.mrf.mxu0
        %v4404 = vadd.f32 %v4355, %v4403
        %4405 = vmatmul.bf16.gmra.mxu0 %v4201
        %v4406 = vpop.f32.mrf.mxu0
        %v4407 = vadd.f32 %v4358, %v4406
        %v4408 = vpop.f32.mrf.mxu0
        %v4409 = vadd.f32 %v4360, %v4408
        %4410 = vmatmul.bf16.gmra.mxu0 %v4203
        %v4411 = vpop.f32.mrf.mxu0
        %v4412 = vadd.f32 %v4363, %v4411
        %v4413 = vpop.f32.mrf.mxu0
        %v4414 = vadd.f32 %v4365, %v4413
        %4415 = vmatmul.bf16.gmra.mxu0 %v4205
        %v4416 = vpop.f32.mrf.mxu0
        %v4417 = vadd.f32 %v4368, %v4416
        %v4418 = vpop.f32.mrf.mxu0
        %v4419 = vadd.f32 %v4370, %v4418
        %4420 = vmatmul.bf16.gmra.mxu0 %v4207
        %v4421 = vpop.f32.mrf.mxu0
        %v4422 = vadd.f32 %v4373, %v4421
        %v4423 = vpop.f32.mrf.mxu0
        %v4424 = vadd.f32 %v4375, %v4423
        %4425 = vmatmul.bf16.gmra.mxu0 %v4209
        %v4426 = vpop.f32.mrf.mxu0
        %v4427 = vadd.f32 %v4378, %v4426
        %v4428 = vpop.f32.mrf.mxu0
        %v4429 = vadd.f32 %v4380, %v4428
        %4430 = vmatmul.bf16.gmra.mxu0 %v4211
        %v4431 = vpop.f32.mrf.mxu0
        %v4432 = vadd.f32 %v4383, %v4431
        %v4433 = vpop.f32.mrf.mxu0
        %v4434 = vadd.f32 %v4385, %v4433
        %4435 = vmatmul.bf16.gmra.mxu0 %v4213
        %v4436 = vpop.f32.mrf.mxu0
        %v4437 = vadd.f32 %v4388, %v4436
        %v4438 = vpop.f32.mrf.mxu0
        %v4439 = vadd.f32 %v4390, %v4438
        %4440 = vdwg.mxu0
        %4441 = vst [vmem:[#allocation3] sm:$0xff] %v4402
        %4442 = vst [vmem:[#allocation3 + $0x8] sm:$0xff] %v4404
        %4443 = vst [vmem:[#allocation3 + $0x10] sm:$0xff] %v4407
        %4444 = vst [vmem:[#allocation3 + $0x18] sm:$0xff] %v4409
        %4445 = vst [vmem:[#allocation3 + $0x20] sm:$0xff] %v4412
        %4446 = vst [vmem:[#allocation3 + $0x28] sm:$0xff] %v4414
        %4447 = vst [vmem:[#allocation3 + $0x30] sm:$0xff] %v4417
        %4448 = vst [vmem:[#allocation3 + $0x38] sm:$0xff] %v4419
        %4449 = vst [vmem:[#allocation3 + $0x40] sm:$0xff] %v4422
        %4450 = vst [vmem:[#allocation3 + $0x48] sm:$0xff] %v4424
        %4451 = vst [vmem:[#allocation3 + $0x50] sm:$0xff] %v4427
        %4452 = vst [vmem:[#allocation3 + $0x58] sm:$0xff] %v4429
        %4453 = vst [vmem:[#allocation3 + $0x60] sm:$0xff] %v4432
        %4454 = vst [vmem:[#allocation3 + $0x68] sm:$0xff] %v4434
        %4455 = vst [vmem:[#allocation3 + $0x70] sm:$0xff] %v4437
        %4456 = vst [vmem:[#allocation3 + $0x78] sm:$0xff] %v4439
        %4457 = vst [vmem:[#allocation2] sm:$0xff] %v4402
        %4458 = vst [vmem:[#allocation2 + $0x10] sm:$0xff] %v4404
        %4459 = vst [vmem:[#allocation2 + $0x20] sm:$0xff] %v4407
        %4460 = vst [vmem:[#allocation2 + $0x30] sm:$0xff] %v4409
        %4461 = vst [vmem:[#allocation2 + $0x40] sm:$0xff] %v4412
        %4462 = vst [vmem:[#allocation2 + $0x50] sm:$0xff] %v4414
        %4463 = vst [vmem:[#allocation2 + $0x60] sm:$0xff] %v4417
        %4464 = vst [vmem:[#allocation2 + $0x70] sm:$0xff] %v4419
        %4465 = vst [vmem:[#allocation2 + $0x80] sm:$0xff] %v4422
        %4466 = vst [vmem:[#allocation2 + $0x90] sm:$0xff] %v4424
        %4467 = vst [vmem:[#allocation2 + $0xa0] sm:$0xff] %v4427
        %4468 = vst [vmem:[#allocation2 + $0xb0] sm:$0xff] %v4429
        %4469 = vst [vmem:[#allocation2 + $0xc0] sm:$0xff] %v4432
        %4470 = vst [vmem:[#allocation2 + $0xd0] sm:$0xff] %v4434
        %4471 = vst [vmem:[#allocation2 + $0xe0] sm:$0xff] %v4437
        %4472 = vst [vmem:[#allocation2 + $0xf0] sm:$0xff] %v4439
        %4473 = vst [vmem:[#allocation4] sm:$0xff] -1e+30
        %4474 = vst [vmem:[#allocation4 + $0x8] sm:$0xff] -1e+30
        %4475 = vst [vmem:[#allocation4 + $0x10] sm:$0xff] -1e+30
        %4476 = vst [vmem:[#allocation4 + $0x18] sm:$0xff] -1e+30
        %4477 = vst [vmem:[#allocation4 + $0x20] sm:$0xff] -1e+30
        %4478 = vst [vmem:[#allocation4 + $0x28] sm:$0xff] -1e+30
        %4479 = vst [vmem:[#allocation4 + $0x30] sm:$0xff] -1e+30
        %4480 = vst [vmem:[#allocation4 + $0x38] sm:$0xff] -1e+30
        %4481 = vst [vmem:[#allocation4 + $0x40] sm:$0xff] -1e+30
        %4482 = vst [vmem:[#allocation4 + $0x48] sm:$0xff] -1e+30
        %4483 = vst [vmem:[#allocation4 + $0x50] sm:$0xff] -1e+30
        %4484 = vst [vmem:[#allocation4 + $0x58] sm:$0xff] -1e+30
        %4485 = vst [vmem:[#allocation4 + $0x60] sm:$0xff] -1e+30
        %4486 = vst [vmem:[#allocation4 + $0x68] sm:$0xff] -1e+30
        %4487 = vst [vmem:[#allocation4 + $0x70] sm:$0xff] -1e+30
        %4488 = vst [vmem:[#allocation4 + $0x78] sm:$0xff] -1e+30
        %4489 = vst [vmem:[#allocation4 + $0x80] sm:$0xff] -1e+30
        %4490 = vst [vmem:[#allocation4 + $0x88] sm:$0xff] -1e+30
        %4491 = vst [vmem:[#allocation4 + $0x90] sm:$0xff] -1e+30
        %4492 = vst [vmem:[#allocation4 + $0x98] sm:$0xff] -1e+30
        %4493 = vst [vmem:[#allocation4 + $0xa0] sm:$0xff] -1e+30
        %4494 = vst [vmem:[#allocation4 + $0xa8] sm:$0xff] -1e+30
        %4495 = vst [vmem:[#allocation4 + $0xb0] sm:$0xff] -1e+30
        %4496 = vst [vmem:[#allocation4 + $0xb8] sm:$0xff] -1e+30
        %4497 = vst [vmem:[#allocation4 + $0xc0] sm:$0xff] -1e+30
        %4498 = vst [vmem:[#allocation4 + $0xc8] sm:$0xff] -1e+30
        %4499 = vst [vmem:[#allocation4 + $0xd0] sm:$0xff] -1e+30
        %4500 = vst [vmem:[#allocation4 + $0xd8] sm:$0xff] -1e+30
        %4501 = vst [vmem:[#allocation4 + $0xe0] sm:$0xff] -1e+30
        %4502 = vst [vmem:[#allocation4 + $0xe8] sm:$0xff] -1e+30
        %4503 = vst [vmem:[#allocation4 + $0xf0] sm:$0xff] -1e+30
        %4504 = vst [vmem:[#allocation4 + $0xf8] sm:$0xff] -1e+30
        loop: start=0, step=1, limit=128
        $region94: #{tpu_custom_call.1} parent=55 // loop_pre_header
          _
        $region95: #{tpu_custom_call.1} parent=55 // loop_header
          %s4506 = sphi 0, %s4510
          %p4507 = scmp.ge.s32.totalorder %s4506, 128
        $region96: #{tpu_custom_call.1} parent=55 // loop_header_branch
          %4509 = sbr.rel (%p4507) target = $region100
        $region97: #{tpu_custom_call.1} parent=55 // loop_body
          %s4511 = sshra.s32 %s4506, 7
          %s4512 = sand.u32 %s4506, 127
          %s4513 = sadd.s32 %s4511, %s37
          %s4514 = smul.u32 %s4513, 128
          %s4515 = sshra.s32 %s4506, 7
          %s4516 = sand.u32 %s4506, 127
          %s4517 = sadd.s32 %s4514, %s4516
          %s4518 = sld [smem:[#allocation7 + %s4517]]
          %s4519 = scalar_lea.vmem [#allocation4], %s4518
          %v4520 = vld [vmem:[%s4519] sm:$0x1]
          %s4521 = scalar_lea.vmem [#allocation3], %s4506
          %v4522 = vld [vmem:[%s4521] sm:$0x1]
          %v4523 = vmax.f32 %v4520, %v4522
          %4524 = vst [vmem:[%s4519] sm:$0x1] %v4523
        $region98: #{tpu_custom_call.1} parent=55 // loop_footer
          %s4510 = sadd.s32 1, %s4506
        $region99: #{tpu_custom_call.1} parent=55 // loop_footer_branch
          %4505 = sbr.rel target = $region95
        $region100: #{tpu_custom_call.1} parent=55 // loop_exit
          _
        %v4525 = vld [vmem:[#allocation5] sm:$0xff]
        %v4526 = vld [vmem:[#allocation5 + $0x8] sm:$0xff]
        %v4527 = vld [vmem:[#allocation5 + $0x10] sm:$0xff]
        %v4528 = vld [vmem:[#allocation5 + $0x18] sm:$0xff]
        %v4529 = vld [vmem:[#allocation5 + $0x20] sm:$0xff]
        %v4530 = vld [vmem:[#allocation5 + $0x28] sm:$0xff]
        %v4531 = vld [vmem:[#allocation5 + $0x30] sm:$0xff]
        %v4532 = vld [vmem:[#allocation5 + $0x38] sm:$0xff]
        %v4533 = vld [vmem:[#allocation5 + $0x40] sm:$0xff]
        %v4534 = vld [vmem:[#allocation5 + $0x48] sm:$0xff]
        %v4535 = vld [vmem:[#allocation5 + $0x50] sm:$0xff]
        %v4536 = vld [vmem:[#allocation5 + $0x58] sm:$0xff]
        %v4537 = vld [vmem:[#allocation5 + $0x60] sm:$0xff]
        %v4538 = vld [vmem:[#allocation5 + $0x68] sm:$0xff]
        %v4539 = vld [vmem:[#allocation5 + $0x70] sm:$0xff]
        %v4540 = vld [vmem:[#allocation5 + $0x78] sm:$0xff]
        %v4541 = vld [vmem:[#allocation4] sm:$0xff]
        %v4542 = vld [vmem:[#allocation4 + $0x8] sm:$0xff]
        %v4543 = vld [vmem:[#allocation4 + $0x10] sm:$0xff]
        %v4544 = vld [vmem:[#allocation4 + $0x18] sm:$0xff]
        %v4545 = vld [vmem:[#allocation4 + $0x20] sm:$0xff]
        %v4546 = vld [vmem:[#allocation4 + $0x28] sm:$0xff]
        %v4547 = vld [vmem:[#allocation4 + $0x30] sm:$0xff]
        %v4548 = vld [vmem:[#allocation4 + $0x38] sm:$0xff]
        %v4549 = vld [vmem:[#allocation4 + $0x40] sm:$0xff]
        %v4550 = vld [vmem:[#allocation4 + $0x48] sm:$0xff]
        %v4551 = vld [vmem:[#allocation4 + $0x50] sm:$0xff]
        %v4552 = vld [vmem:[#allocation4 + $0x58] sm:$0xff]
        %v4553 = vld [vmem:[#allocation4 + $0x60] sm:$0xff]
        %v4554 = vld [vmem:[#allocation4 + $0x68] sm:$0xff]
        %v4555 = vld [vmem:[#allocation4 + $0x70] sm:$0xff]
        %v4556 = vld [vmem:[#allocation4 + $0x78] sm:$0xff]
        %v4557 = vld [vmem:[#allocation4 + $0x80] sm:$0xff]
        %v4558 = vld [vmem:[#allocation4 + $0x88] sm:$0xff]
        %v4559 = vld [vmem:[#allocation4 + $0x90] sm:$0xff]
        %v4560 = vld [vmem:[#allocation4 + $0x98] sm:$0xff]
        %v4561 = vld [vmem:[#allocation4 + $0xa0] sm:$0xff]
        %v4562 = vld [vmem:[#allocation4 + $0xa8] sm:$0xff]
        %v4563 = vld [vmem:[#allocation4 + $0xb0] sm:$0xff]
        %v4564 = vld [vmem:[#allocation4 + $0xb8] sm:$0xff]
        %v4565 = vld [vmem:[#allocation4 + $0xc0] sm:$0xff]
        %v4566 = vld [vmem:[#allocation4 + $0xc8] sm:$0xff]
        %v4567 = vld [vmem:[#allocation4 + $0xd0] sm:$0xff]
        %v4568 = vld [vmem:[#allocation4 + $0xd8] sm:$0xff]
        %v4569 = vld [vmem:[#allocation4 + $0xe0] sm:$0xff]
        %v4570 = vld [vmem:[#allocation4 + $0xe8] sm:$0xff]
        %v4571 = vld [vmem:[#allocation4 + $0xf0] sm:$0xff]
        %v4572 = vld [vmem:[#allocation4 + $0xf8] sm:$0xff]
        %v4573 = vpack.c.bf16 %v4542, %v4541
        %v4574 = vpack.c.bf16 %v4544, %v4543
        %v4575 = vpack.c.bf16 %v4546, %v4545
        %v4576 = vpack.c.bf16 %v4548, %v4547
        %v4577 = vpack.c.bf16 %v4550, %v4549
        %v4578 = vpack.c.bf16 %v4552, %v4551
        %v4579 = vpack.c.bf16 %v4554, %v4553
        %v4580 = vpack.c.bf16 %v4556, %v4555
        %v4581 = vpack.c.bf16 %v4558, %v4557
        %v4582 = vpack.c.bf16 %v4560, %v4559
        %v4583 = vpack.c.bf16 %v4562, %v4561
        %v4584 = vpack.c.bf16 %v4564, %v4563
        %v4585 = vpack.c.bf16 %v4566, %v4565
        %v4586 = vpack.c.bf16 %v4568, %v4567
        %v4587 = vpack.c.bf16 %v4570, %v4569
        %v4588 = vpack.c.bf16 %v4572, %v4571
        %v4605 = vunpack.c.l.b16 %v4525
        %v4606 = vunpack.c.h.b16 %v4525
        %v4607 = vunpack.c.l.b16 %v4526
        %v4608 = vunpack.c.h.b16 %v4526
        %v4609 = vunpack.c.l.b16 %v4527
        %v4610 = vunpack.c.h.b16 %v4527
        %v4611 = vunpack.c.l.b16 %v4528
        %v4612 = vunpack.c.h.b16 %v4528
        %v4613 = vunpack.c.l.b16 %v4529
        %v4614 = vunpack.c.h.b16 %v4529
        %v4615 = vunpack.c.l.b16 %v4530
        %v4616 = vunpack.c.h.b16 %v4530
        %v4617 = vunpack.c.l.b16 %v4531
        %v4618 = vunpack.c.h.b16 %v4531
        %v4619 = vunpack.c.l.b16 %v4532
        %v4620 = vunpack.c.h.b16 %v4532
        %v4621 = vunpack.c.l.b16 %v4533
        %v4622 = vunpack.c.h.b16 %v4533
        %v4623 = vunpack.c.l.b16 %v4534
        %v4624 = vunpack.c.h.b16 %v4534
        %v4625 = vunpack.c.l.b16 %v4535
        %v4626 = vunpack.c.h.b16 %v4535
        %v4627 = vunpack.c.l.b16 %v4536
        %v4628 = vunpack.c.h.b16 %v4536
        %v4629 = vunpack.c.l.b16 %v4537
        %v4630 = vunpack.c.h.b16 %v4537
        %v4631 = vunpack.c.l.b16 %v4538
        %v4632 = vunpack.c.h.b16 %v4538
        %v4633 = vunpack.c.l.b16 %v4539
        %v4634 = vunpack.c.h.b16 %v4539
        %v4635 = vunpack.c.l.b16 %v4540
        %v4636 = vunpack.c.h.b16 %v4540
        %v4637 = vpack.c.b16 %v4607, %v4605
        %v4638 = vpack.c.b16 %v4608, %v4606
        %v4639 = vpack.c.b16 %v4611, %v4609
        %v4640 = vpack.c.b16 %v4612, %v4610
        %v4641 = vpack.c.b16 %v4615, %v4613
        %v4642 = vpack.c.b16 %v4616, %v4614
        %v4643 = vpack.c.b16 %v4619, %v4617
        %v4644 = vpack.c.b16 %v4620, %v4618
        %v4645 = vpack.c.b16 %v4623, %v4621
        %v4646 = vpack.c.b16 %v4624, %v4622
        %v4647 = vpack.c.b16 %v4627, %v4625
        %v4648 = vpack.c.b16 %v4628, %v4626
        %v4649 = vpack.c.b16 %v4631, %v4629
        %v4650 = vpack.c.b16 %v4632, %v4630
        %v4651 = vpack.c.b16 %v4635, %v4633
        %v4652 = vpack.c.b16 %v4636, %v4634
        %4669 = vmatpush.bf16.msra.mxu0 %v4580
        %4670 = vmatpush.bf16.msra.mxu0 %v4579
        %4671 = vmatpush.bf16.msra.mxu0 %v4578
        %4672 = vmatpush.bf16.msra.mxu0 %v4577
        %4673 = vmatpush.bf16.msra.mxu0 %v4576
        %4674 = vmatpush.bf16.msra.mxu0 %v4575
        %4675 = vmatpush.bf16.msra.mxu0 %v4574
        %4676 = vmatpush.bf16.msra.mxu0 %v4573
        %4677 = vmatmul.bf16.gmra.mxu0 %v4637
        %v4678 = vpop.f32.mrf.mxu0
        %v4679 = vadd.f32 0.0, %v4678
        %v4680 = vpop.f32.mrf.mxu0
        %v4681 = vadd.f32 0.0, %v4680
        %4682 = vmatmul.bf16.gmra.mxu0 %v4639
        %v4683 = vpop.f32.mrf.mxu0
        %v4684 = vadd.f32 0.0, %v4683
        %v4685 = vpop.f32.mrf.mxu0
        %v4686 = vadd.f32 0.0, %v4685
        %4687 = vmatmul.bf16.gmra.mxu0 %v4641
        %v4688 = vpop.f32.mrf.mxu0
        %v4689 = vadd.f32 0.0, %v4688
        %v4690 = vpop.f32.mrf.mxu0
        %v4691 = vadd.f32 0.0, %v4690
        %4692 = vmatmul.bf16.gmra.mxu0 %v4643
        %v4693 = vpop.f32.mrf.mxu0
        %v4694 = vadd.f32 0.0, %v4693
        %v4695 = vpop.f32.mrf.mxu0
        %v4696 = vadd.f32 0.0, %v4695
        %4697 = vmatmul.bf16.gmra.mxu0 %v4645
        %v4698 = vpop.f32.mrf.mxu0
        %v4699 = vadd.f32 0.0, %v4698
        %v4700 = vpop.f32.mrf.mxu0
        %v4701 = vadd.f32 0.0, %v4700
        %4702 = vmatmul.bf16.gmra.mxu0 %v4647
        %v4703 = vpop.f32.mrf.mxu0
        %v4704 = vadd.f32 0.0, %v4703
        %v4705 = vpop.f32.mrf.mxu0
        %v4706 = vadd.f32 0.0, %v4705
        %4707 = vmatmul.bf16.gmra.mxu0 %v4649
        %v4708 = vpop.f32.mrf.mxu0
        %v4709 = vadd.f32 0.0, %v4708
        %v4710 = vpop.f32.mrf.mxu0
        %v4711 = vadd.f32 0.0, %v4710
        %4712 = vmatmul.bf16.gmra.mxu0 %v4651
        %v4713 = vpop.f32.mrf.mxu0
        %v4714 = vadd.f32 0.0, %v4713
        %v4715 = vpop.f32.mrf.mxu0
        %v4716 = vadd.f32 0.0, %v4715
        %4717 = vdwg.mxu0
        %4718 = vmatpush.bf16.msra.mxu0 %v4588
        %4719 = vmatpush.bf16.msra.mxu0 %v4587
        %4720 = vmatpush.bf16.msra.mxu0 %v4586
        %4721 = vmatpush.bf16.msra.mxu0 %v4585
        %4722 = vmatpush.bf16.msra.mxu0 %v4584
        %4723 = vmatpush.bf16.msra.mxu0 %v4583
        %4724 = vmatpush.bf16.msra.mxu0 %v4582
        %4725 = vmatpush.bf16.msra.mxu0 %v4581
        %4726 = vmatmul.bf16.gmra.mxu0 %v4638
        %v4727 = vpop.f32.mrf.mxu0
        %v4728 = vadd.f32 %v4679, %v4727
        %v4729 = vpop.f32.mrf.mxu0
        %v4730 = vadd.f32 %v4681, %v4729
        %4731 = vmatmul.bf16.gmra.mxu0 %v4640
        %v4732 = vpop.f32.mrf.mxu0
        %v4733 = vadd.f32 %v4684, %v4732
        %v4734 = vpop.f32.mrf.mxu0
        %v4735 = vadd.f32 %v4686, %v4734
        %4736 = vmatmul.bf16.gmra.mxu0 %v4642
        %v4737 = vpop.f32.mrf.mxu0
        %v4738 = vadd.f32 %v4689, %v4737
        %v4739 = vpop.f32.mrf.mxu0
        %v4740 = vadd.f32 %v4691, %v4739
        %4741 = vmatmul.bf16.gmra.mxu0 %v4644
        %v4742 = vpop.f32.mrf.mxu0
        %v4743 = vadd.f32 %v4694, %v4742
        %v4744 = vpop.f32.mrf.mxu0
        %v4745 = vadd.f32 %v4696, %v4744
        %4746 = vmatmul.bf16.gmra.mxu0 %v4646
        %v4747 = vpop.f32.mrf.mxu0
        %v4748 = vadd.f32 %v4699, %v4747
        %v4749 = vpop.f32.mrf.mxu0
        %v4750 = vadd.f32 %v4701, %v4749
        %4751 = vmatmul.bf16.gmra.mxu0 %v4648
        %v4752 = vpop.f32.mrf.mxu0
        %v4753 = vadd.f32 %v4704, %v4752
        %v4754 = vpop.f32.mrf.mxu0
        %v4755 = vadd.f32 %v4706, %v4754
        %4756 = vmatmul.bf16.gmra.mxu0 %v4650
        %v4757 = vpop.f32.mrf.mxu0
        %v4758 = vadd.f32 %v4709, %v4757
        %v4759 = vpop.f32.mrf.mxu0
        %v4760 = vadd.f32 %v4711, %v4759
        %4761 = vmatmul.bf16.gmra.mxu0 %v4652
        %v4762 = vpop.f32.mrf.mxu0
        %v4763 = vadd.f32 %v4714, %v4762
        %v4764 = vpop.f32.mrf.mxu0
        %v4765 = vadd.f32 %v4716, %v4764
        %4766 = vdwg.mxu0
        %4767 = vst [vmem:[#allocation2 + $0x8] sm:$0xff] %v4728
        %4768 = vst [vmem:[#allocation2 + $0x18] sm:$0xff] %v4730
        %4769 = vst [vmem:[#allocation2 + $0x28] sm:$0xff] %v4733
        %4770 = vst [vmem:[#allocation2 + $0x38] sm:$0xff] %v4735
        %4771 = vst [vmem:[#allocation2 + $0x48] sm:$0xff] %v4738
        %4772 = vst [vmem:[#allocation2 + $0x58] sm:$0xff] %v4740
        %4773 = vst [vmem:[#allocation2 + $0x68] sm:$0xff] %v4743
        %4774 = vst [vmem:[#allocation2 + $0x78] sm:$0xff] %v4745
        %4775 = vst [vmem:[#allocation2 + $0x88] sm:$0xff] %v4748
        %4776 = vst [vmem:[#allocation2 + $0x98] sm:$0xff] %v4750
        %4777 = vst [vmem:[#allocation2 + $0xa8] sm:$0xff] %v4753
        %4778 = vst [vmem:[#allocation2 + $0xb8] sm:$0xff] %v4755
        %4779 = vst [vmem:[#allocation2 + $0xc8] sm:$0xff] %v4758
        %4780 = vst [vmem:[#allocation2 + $0xd8] sm:$0xff] %v4760
        %4781 = vst [vmem:[#allocation2 + $0xe8] sm:$0xff] %v4763
        %4782 = vst [vmem:[#allocation2 + $0xf8] sm:$0xff] %v4765
        %v4783 = vld [vmem:[#allocation2] sm:$0xff]
        %v4784 = vld [vmem:[#allocation2 + $0x8] sm:$0xff]
        %v4785 = vld [vmem:[#allocation2 + $0x10] sm:$0xff]
        %v4786 = vld [vmem:[#allocation2 + $0x18] sm:$0xff]
        %v4787 = vld [vmem:[#allocation2 + $0x20] sm:$0xff]
        %v4788 = vld [vmem:[#allocation2 + $0x28] sm:$0xff]
        %v4789 = vld [vmem:[#allocation2 + $0x30] sm:$0xff]
        %v4790 = vld [vmem:[#allocation2 + $0x38] sm:$0xff]
        %v4791 = vld [vmem:[#allocation2 + $0x40] sm:$0xff]
        %v4792 = vld [vmem:[#allocation2 + $0x48] sm:$0xff]
        %v4793 = vld [vmem:[#allocation2 + $0x50] sm:$0xff]
        %v4794 = vld [vmem:[#allocation2 + $0x58] sm:$0xff]
        %v4795 = vld [vmem:[#allocation2 + $0x60] sm:$0xff]
        %v4796 = vld [vmem:[#allocation2 + $0x68] sm:$0xff]
        %v4797 = vld [vmem:[#allocation2 + $0x70] sm:$0xff]
        %v4798 = vld [vmem:[#allocation2 + $0x78] sm:$0xff]
        %v4799 = vld [vmem:[#allocation2 + $0x80] sm:$0xff]
        %v4800 = vld [vmem:[#allocation2 + $0x88] sm:$0xff]
        %v4801 = vld [vmem:[#allocation2 + $0x90] sm:$0xff]
        %v4802 = vld [vmem:[#allocation2 + $0x98] sm:$0xff]
        %v4803 = vld [vmem:[#allocation2 + $0xa0] sm:$0xff]
        %v4804 = vld [vmem:[#allocation2 + $0xa8] sm:$0xff]
        %v4805 = vld [vmem:[#allocation2 + $0xb0] sm:$0xff]
        %v4806 = vld [vmem:[#allocation2 + $0xb8] sm:$0xff]
        %v4807 = vld [vmem:[#allocation2 + $0xc0] sm:$0xff]
        %v4808 = vld [vmem:[#allocation2 + $0xc8] sm:$0xff]
        %v4809 = vld [vmem:[#allocation2 + $0xd0] sm:$0xff]
        %v4810 = vld [vmem:[#allocation2 + $0xd8] sm:$0xff]
        %v4811 = vld [vmem:[#allocation2 + $0xe0] sm:$0xff]
        %v4812 = vld [vmem:[#allocation2 + $0xe8] sm:$0xff]
        %v4813 = vld [vmem:[#allocation2 + $0xf0] sm:$0xff]
        %v4814 = vld [vmem:[#allocation2 + $0xf8] sm:$0xff]
        %v4815 = vmax.f32 %v4783, 0.0
        %v4816 = vmax.f32 %v4784, 0.0
        %v4817 = vmax.f32 %v4785, 0.0
        %v4818 = vmax.f32 %v4786, 0.0
        %v4819 = vmax.f32 %v4787, 0.0
        %v4820 = vmax.f32 %v4788, 0.0
        %v4821 = vmax.f32 %v4789, 0.0
        %v4822 = vmax.f32 %v4790, 0.0
        %v4823 = vmax.f32 %v4791, 0.0
        %v4824 = vmax.f32 %v4792, 0.0
        %v4825 = vmax.f32 %v4793, 0.0
        %v4826 = vmax.f32 %v4794, 0.0
        %v4827 = vmax.f32 %v4795, 0.0
        %v4828 = vmax.f32 %v4796, 0.0
        %v4829 = vmax.f32 %v4797, 0.0
        %v4830 = vmax.f32 %v4798, 0.0
        %v4831 = vmax.f32 %v4799, 0.0
        %v4832 = vmax.f32 %v4800, 0.0
        %v4833 = vmax.f32 %v4801, 0.0
        %v4834 = vmax.f32 %v4802, 0.0
        %v4835 = vmax.f32 %v4803, 0.0
        %v4836 = vmax.f32 %v4804, 0.0
        %v4837 = vmax.f32 %v4805, 0.0
        %v4838 = vmax.f32 %v4806, 0.0
        %v4839 = vmax.f32 %v4807, 0.0
        %v4840 = vmax.f32 %v4808, 0.0
        %v4841 = vmax.f32 %v4809, 0.0
        %v4842 = vmax.f32 %v4810, 0.0
        %v4843 = vmax.f32 %v4811, 0.0
        %v4844 = vmax.f32 %v4812, 0.0
        %v4845 = vmax.f32 %v4813, 0.0
        %v4846 = vmax.f32 %v4814, 0.0
        %s4847 = scalar_lea.vmem [#allocation11], 512
        %v4848 = vld [vmem:[%s4847] sm:$0xf]
        %v4849 = vld [vmem:[%s4847 + $0x4] sm:$0xf]
        %v4850 = vld [vmem:[%s4847 + $0x8] sm:$0xf]
        %v4851 = vld [vmem:[%s4847 + $0xc] sm:$0xf]
        %v4852 = vld [vmem:[%s4847 + $0x10] sm:$0xf]
        %v4853 = vld [vmem:[%s4847 + $0x14] sm:$0xf]
        %v4854 = vld [vmem:[%s4847 + $0x18] sm:$0xf]
        %v4855 = vld [vmem:[%s4847 + $0x1c] sm:$0xf]
        %v4856 = vld [vmem:[%s4847 + $0x20] sm:$0xf]
        %v4857 = vld [vmem:[%s4847 + $0x24] sm:$0xf]
        %v4858 = vld [vmem:[%s4847 + $0x28] sm:$0xf]
        %v4859 = vld [vmem:[%s4847 + $0x2c] sm:$0xf]
        %v4860 = vld [vmem:[%s4847 + $0x30] sm:$0xf]
        %v4861 = vld [vmem:[%s4847 + $0x34] sm:$0xf]
        %v4862 = vld [vmem:[%s4847 + $0x38] sm:$0xf]
        %v4863 = vld [vmem:[%s4847 + $0x3c] sm:$0xf]
        %v4864 = vld [vmem:[%s4847 + $0x40] sm:$0xf]
        %v4865 = vld [vmem:[%s4847 + $0x44] sm:$0xf]
        %v4866 = vld [vmem:[%s4847 + $0x48] sm:$0xf]
        %v4867 = vld [vmem:[%s4847 + $0x4c] sm:$0xf]
        %v4868 = vld [vmem:[%s4847 + $0x50] sm:$0xf]
        %v4869 = vld [vmem:[%s4847 + $0x54] sm:$0xf]
        %v4870 = vld [vmem:[%s4847 + $0x58] sm:$0xf]
        %v4871 = vld [vmem:[%s4847 + $0x5c] sm:$0xf]
        %v4872 = vld [vmem:[%s4847 + $0x60] sm:$0xf]
        %v4873 = vld [vmem:[%s4847 + $0x64] sm:$0xf]
        %v4874 = vld [vmem:[%s4847 + $0x68] sm:$0xf]
        %v4875 = vld [vmem:[%s4847 + $0x6c] sm:$0xf]
        %v4876 = vld [vmem:[%s4847 + $0x70] sm:$0xf]
        %v4877 = vld [vmem:[%s4847 + $0x74] sm:$0xf]
        %v4878 = vld [vmem:[%s4847 + $0x78] sm:$0xf]
        %v4879 = vld [vmem:[%s4847 + $0x7c] sm:$0xf]
        %s4880 = scalar_lea.vmem %s4, 4
        %v4881 = vld [vmem:[%s4880] sm:$0x1]
        %v4882 = vpack.c.bf16 %v4817, %v4815
        %v4883 = vpack.c.bf16 %v4818, %v4816
        %v4884 = vpack.c.bf16 %v4821, %v4819
        %v4885 = vpack.c.bf16 %v4822, %v4820
        %v4886 = vpack.c.bf16 %v4825, %v4823
        %v4887 = vpack.c.bf16 %v4826, %v4824
        %v4888 = vpack.c.bf16 %v4829, %v4827
        %v4889 = vpack.c.bf16 %v4830, %v4828
        %v4890 = vpack.c.bf16 %v4833, %v4831
        %v4891 = vpack.c.bf16 %v4834, %v4832
        %v4892 = vpack.c.bf16 %v4837, %v4835
        %v4893 = vpack.c.bf16 %v4838, %v4836
        %v4894 = vpack.c.bf16 %v4841, %v4839
        %v4895 = vpack.c.bf16 %v4842, %v4840
        %v4896 = vpack.c.bf16 %v4845, %v4843
        %v4897 = vpack.c.bf16 %v4846, %v4844
        %v4899 = vperm.slane %v4881, 0
        %v4933 = vunpack.c.l.b16 %v4848
        %v4934 = vunpack.c.l.b16 %v4849
        %v4935 = vunpack.c.l.b16 %v4850
        %v4936 = vunpack.c.l.b16 %v4851
        %v4937 = vunpack.c.l.b16 %v4852
        %v4938 = vunpack.c.l.b16 %v4853
        %v4939 = vunpack.c.l.b16 %v4854
        %v4940 = vunpack.c.l.b16 %v4855
        %v4941 = vunpack.c.l.b16 %v4856
        %v4942 = vunpack.c.l.b16 %v4857
        %v4943 = vunpack.c.l.b16 %v4858
        %v4944 = vunpack.c.l.b16 %v4859
        %v4945 = vunpack.c.l.b16 %v4860
        %v4946 = vunpack.c.l.b16 %v4861
        %v4947 = vunpack.c.l.b16 %v4862
        %v4948 = vunpack.c.l.b16 %v4863
        %v4949 = vunpack.c.l.b16 %v4864
        %v4950 = vunpack.c.l.b16 %v4865
        %v4951 = vunpack.c.l.b16 %v4866
        %v4952 = vunpack.c.l.b16 %v4867
        %v4953 = vunpack.c.l.b16 %v4868
        %v4954 = vunpack.c.l.b16 %v4869
        %v4955 = vunpack.c.l.b16 %v4870
        %v4956 = vunpack.c.l.b16 %v4871
        %v4957 = vunpack.c.l.b16 %v4872
        %v4958 = vunpack.c.l.b16 %v4873
        %v4959 = vunpack.c.l.b16 %v4874
        %v4960 = vunpack.c.l.b16 %v4875
        %v4961 = vunpack.c.l.b16 %v4876
        %v4962 = vunpack.c.l.b16 %v4877
        %v4963 = vunpack.c.l.b16 %v4878
        %v4964 = vunpack.c.l.b16 %v4879
        %v4965 = vpack.c.b16 %v4934, %v4933
        %v4966 = vpack.c.b16 %v4936, %v4935
        %v4967 = vpack.c.b16 %v4938, %v4937
        %v4968 = vpack.c.b16 %v4940, %v4939
        %v4969 = vpack.c.b16 %v4942, %v4941
        %v4970 = vpack.c.b16 %v4944, %v4943
        %v4971 = vpack.c.b16 %v4946, %v4945
        %v4972 = vpack.c.b16 %v4948, %v4947
        %v4973 = vpack.c.b16 %v4950, %v4949
        %v4974 = vpack.c.b16 %v4952, %v4951
        %v4975 = vpack.c.b16 %v4954, %v4953
        %v4976 = vpack.c.b16 %v4956, %v4955
        %v4977 = vpack.c.b16 %v4958, %v4957
        %v4978 = vpack.c.b16 %v4960, %v4959
        %v4979 = vpack.c.b16 %v4962, %v4961
        %v4980 = vpack.c.b16 %v4964, %v4963
        %4997 = vmatpush.bf16.msra.mxu0 %v4972
        %4998 = vmatpush.bf16.msra.mxu0 %v4971
        %4999 = vmatpush.bf16.msra.mxu0 %v4970
        %5000 = vmatpush.bf16.msra.mxu0 %v4969
        %5001 = vmatpush.bf16.msra.mxu0 %v4968
        %5002 = vmatpush.bf16.msra.mxu0 %v4967
        %5003 = vmatpush.bf16.msra.mxu0 %v4966
        %5004 = vmatpush.bf16.msra.mxu0 %v4965
        %5005 = vmatmul.bf16.gmra.mxu0 %v4882
        %v5006 = vpop.f32.mrf.mxu0
        %v5007 = vadd.f32 %v4899, %v5006
        %v5008 = vpop.f32.mrf.mxu0
        %v5009 = vadd.f32 %v4899, %v5008
        %5010 = vmatmul.bf16.gmra.mxu0 %v4884
        %v5011 = vpop.f32.mrf.mxu0
        %v5012 = vadd.f32 %v4899, %v5011
        %v5013 = vpop.f32.mrf.mxu0
        %v5014 = vadd.f32 %v4899, %v5013
        %5015 = vmatmul.bf16.gmra.mxu0 %v4886
        %v5016 = vpop.f32.mrf.mxu0
        %v5017 = vadd.f32 %v4899, %v5016
        %v5018 = vpop.f32.mrf.mxu0
        %v5019 = vadd.f32 %v4899, %v5018
        %5020 = vmatmul.bf16.gmra.mxu0 %v4888
        %v5021 = vpop.f32.mrf.mxu0
        %v5022 = vadd.f32 %v4899, %v5021
        %v5023 = vpop.f32.mrf.mxu0
        %v5024 = vadd.f32 %v4899, %v5023
        %5025 = vmatmul.bf16.gmra.mxu0 %v4890
        %v5026 = vpop.f32.mrf.mxu0
        %v5027 = vadd.f32 %v4899, %v5026
        %v5028 = vpop.f32.mrf.mxu0
        %v5029 = vadd.f32 %v4899, %v5028
        %5030 = vmatmul.bf16.gmra.mxu0 %v4892
        %v5031 = vpop.f32.mrf.mxu0
        %v5032 = vadd.f32 %v4899, %v5031
        %v5033 = vpop.f32.mrf.mxu0
        %v5034 = vadd.f32 %v4899, %v5033
        %5035 = vmatmul.bf16.gmra.mxu0 %v4894
        %v5036 = vpop.f32.mrf.mxu0
        %v5037 = vadd.f32 %v4899, %v5036
        %v5038 = vpop.f32.mrf.mxu0
        %v5039 = vadd.f32 %v4899, %v5038
        %5040 = vmatmul.bf16.gmra.mxu0 %v4896
        %v5041 = vpop.f32.mrf.mxu0
        %v5042 = vadd.f32 %v4899, %v5041
        %v5043 = vpop.f32.mrf.mxu0
        %v5044 = vadd.f32 %v4899, %v5043
        %5045 = vdwg.mxu0
        %5046 = vmatpush.bf16.msra.mxu0 %v4980
        %5047 = vmatpush.bf16.msra.mxu0 %v4979
        %5048 = vmatpush.bf16.msra.mxu0 %v4978
        %5049 = vmatpush.bf16.msra.mxu0 %v4977
        %5050 = vmatpush.bf16.msra.mxu0 %v4976
        %5051 = vmatpush.bf16.msra.mxu0 %v4975
        %5052 = vmatpush.bf16.msra.mxu0 %v4974
        %5053 = vmatpush.bf16.msra.mxu0 %v4973
        %5054 = vmatmul.bf16.gmra.mxu0 %v4883
        %v5055 = vpop.f32.mrf.mxu0
        %v5056 = vadd.f32 %v5007, %v5055
        %v5057 = vpop.f32.mrf.mxu0
        %v5058 = vadd.f32 %v5009, %v5057
        %5059 = vmatmul.bf16.gmra.mxu0 %v4885
        %v5060 = vpop.f32.mrf.mxu0
        %v5061 = vadd.f32 %v5012, %v5060
        %v5062 = vpop.f32.mrf.mxu0
        %v5063 = vadd.f32 %v5014, %v5062
        %5064 = vmatmul.bf16.gmra.mxu0 %v4887
        %v5065 = vpop.f32.mrf.mxu0
        %v5066 = vadd.f32 %v5017, %v5065
        %v5067 = vpop.f32.mrf.mxu0
        %v5068 = vadd.f32 %v5019, %v5067
        %5069 = vmatmul.bf16.gmra.mxu0 %v4889
        %v5070 = vpop.f32.mrf.mxu0
        %v5071 = vadd.f32 %v5022, %v5070
        %v5072 = vpop.f32.mrf.mxu0
        %v5073 = vadd.f32 %v5024, %v5072
        %5074 = vmatmul.bf16.gmra.mxu0 %v4891
        %v5075 = vpop.f32.mrf.mxu0
        %v5076 = vadd.f32 %v5027, %v5075
        %v5077 = vpop.f32.mrf.mxu0
        %v5078 = vadd.f32 %v5029, %v5077
        %5079 = vmatmul.bf16.gmra.mxu0 %v4893
        %v5080 = vpop.f32.mrf.mxu0
        %v5081 = vadd.f32 %v5032, %v5080
        %v5082 = vpop.f32.mrf.mxu0
        %v5083 = vadd.f32 %v5034, %v5082
        %5084 = vmatmul.bf16.gmra.mxu0 %v4895
        %v5085 = vpop.f32.mrf.mxu0
        %v5086 = vadd.f32 %v5037, %v5085
        %v5087 = vpop.f32.mrf.mxu0
        %v5088 = vadd.f32 %v5039, %v5087
        %5089 = vmatmul.bf16.gmra.mxu0 %v4897
        %v5090 = vpop.f32.mrf.mxu0
        %v5091 = vadd.f32 %v5042, %v5090
        %v5092 = vpop.f32.mrf.mxu0
        %v5093 = vadd.f32 %v5044, %v5092
        %5094 = vdwg.mxu0
        %v5095 = vmax.f32 %v5056, 0.0
        %v5096 = vmax.f32 %v5058, 0.0
        %v5097 = vmax.f32 %v5061, 0.0
        %v5098 = vmax.f32 %v5063, 0.0
        %v5099 = vmax.f32 %v5066, 0.0
        %v5100 = vmax.f32 %v5068, 0.0
        %v5101 = vmax.f32 %v5071, 0.0
        %v5102 = vmax.f32 %v5073, 0.0
        %v5103 = vmax.f32 %v5076, 0.0
        %v5104 = vmax.f32 %v5078, 0.0
        %v5105 = vmax.f32 %v5081, 0.0
        %v5106 = vmax.f32 %v5083, 0.0
        %v5107 = vmax.f32 %v5086, 0.0
        %v5108 = vmax.f32 %v5088, 0.0
        %v5109 = vmax.f32 %v5091, 0.0
        %v5110 = vmax.f32 %v5093, 0.0
        %s5111 = scalar_lea.vmem [#allocation13], 256
        %v5112 = vld [vmem:[%s5111] sm:$0xf]
        %v5113 = vld [vmem:[%s5111 + $0x4] sm:$0xf]
        %v5114 = vld [vmem:[%s5111 + $0x8] sm:$0xf]
        %v5115 = vld [vmem:[%s5111 + $0xc] sm:$0xf]
        %v5116 = vld [vmem:[%s5111 + $0x10] sm:$0xf]
        %v5117 = vld [vmem:[%s5111 + $0x14] sm:$0xf]
        %v5118 = vld [vmem:[%s5111 + $0x18] sm:$0xf]
        %v5119 = vld [vmem:[%s5111 + $0x1c] sm:$0xf]
        %v5120 = vld [vmem:[%s5111 + $0x20] sm:$0xf]
        %v5121 = vld [vmem:[%s5111 + $0x24] sm:$0xf]
        %v5122 = vld [vmem:[%s5111 + $0x28] sm:$0xf]
        %v5123 = vld [vmem:[%s5111 + $0x2c] sm:$0xf]
        %v5124 = vld [vmem:[%s5111 + $0x30] sm:$0xf]
        %v5125 = vld [vmem:[%s5111 + $0x34] sm:$0xf]
        %v5126 = vld [vmem:[%s5111 + $0x38] sm:$0xf]
        %v5127 = vld [vmem:[%s5111 + $0x3c] sm:$0xf]
        %s5128 = scalar_lea.vmem %s6, 4
        %v5129 = vld [vmem:[%s5128] sm:$0x1]
        %v5130 = vpack.c.bf16 %v5096, %v5095
        %v5131 = vpack.c.bf16 %v5098, %v5097
        %v5132 = vpack.c.bf16 %v5100, %v5099
        %v5133 = vpack.c.bf16 %v5102, %v5101
        %v5134 = vpack.c.bf16 %v5104, %v5103
        %v5135 = vpack.c.bf16 %v5106, %v5105
        %v5136 = vpack.c.bf16 %v5108, %v5107
        %v5137 = vpack.c.bf16 %v5110, %v5109
        %v5139 = vperm.slane %v5129, 0
        %v5157 = vunpack.c.l.b16 %v5112
        %v5158 = vunpack.c.l.b16 %v5113
        %v5159 = vunpack.c.l.b16 %v5114
        %v5160 = vunpack.c.l.b16 %v5115
        %v5161 = vunpack.c.l.b16 %v5116
        %v5162 = vunpack.c.l.b16 %v5117
        %v5163 = vunpack.c.l.b16 %v5118
        %v5164 = vunpack.c.l.b16 %v5119
        %v5165 = vunpack.c.l.b16 %v5120
        %v5166 = vunpack.c.l.b16 %v5121
        %v5167 = vunpack.c.l.b16 %v5122
        %v5168 = vunpack.c.l.b16 %v5123
        %v5169 = vunpack.c.l.b16 %v5124
        %v5170 = vunpack.c.l.b16 %v5125
        %v5171 = vunpack.c.l.b16 %v5126
        %v5172 = vunpack.c.l.b16 %v5127
        %v5173 = vpack.c.b16 %v5158, %v5157
        %v5174 = vpack.c.b16 %v5160, %v5159
        %v5175 = vpack.c.b16 %v5162, %v5161
        %v5176 = vpack.c.b16 %v5164, %v5163
        %v5177 = vpack.c.b16 %v5166, %v5165
        %v5178 = vpack.c.b16 %v5168, %v5167
        %v5179 = vpack.c.b16 %v5170, %v5169
        %v5180 = vpack.c.b16 %v5172, %v5171
        %5189 = vmatpush.bf16.msra.mxu0 %v5180
        %5190 = vmatpush.bf16.msra.mxu0 %v5179
        %5191 = vmatpush.bf16.msra.mxu0 %v5178
        %5192 = vmatpush.bf16.msra.mxu0 %v5177
        %5193 = vmatpush.bf16.msra.mxu0 %v5176
        %5194 = vmatpush.bf16.msra.mxu0 %v5175
        %5195 = vmatpush.bf16.msra.mxu0 %v5174
        %5196 = vmatpush.bf16.msra.mxu0 %v5173
        %5197 = vmatmul.bf16.gmra.mxu0 %v5130
        %v5198 = vpop.f32.mrf.mxu0
        %v5199 = vadd.f32 %v5139, %v5198
        %v5200 = vpop.f32.mrf.mxu0
        %v5201 = vadd.f32 %v5139, %v5200
        %5202 = vmatmul.bf16.gmra.mxu0 %v5131
        %v5203 = vpop.f32.mrf.mxu0
        %v5204 = vadd.f32 %v5139, %v5203
        %v5205 = vpop.f32.mrf.mxu0
        %v5206 = vadd.f32 %v5139, %v5205
        %5207 = vmatmul.bf16.gmra.mxu0 %v5132
        %v5208 = vpop.f32.mrf.mxu0
        %v5209 = vadd.f32 %v5139, %v5208
        %v5210 = vpop.f32.mrf.mxu0
        %v5211 = vadd.f32 %v5139, %v5210
        %5212 = vmatmul.bf16.gmra.mxu0 %v5133
        %v5213 = vpop.f32.mrf.mxu0
        %v5214 = vadd.f32 %v5139, %v5213
        %v5215 = vpop.f32.mrf.mxu0
        %v5216 = vadd.f32 %v5139, %v5215
        %5217 = vmatmul.bf16.gmra.mxu0 %v5134
        %v5218 = vpop.f32.mrf.mxu0
        %v5219 = vadd.f32 %v5139, %v5218
        %v5220 = vpop.f32.mrf.mxu0
        %v5221 = vadd.f32 %v5139, %v5220
        %5222 = vmatmul.bf16.gmra.mxu0 %v5135
        %v5223 = vpop.f32.mrf.mxu0
        %v5224 = vadd.f32 %v5139, %v5223
        %v5225 = vpop.f32.mrf.mxu0
        %v5226 = vadd.f32 %v5139, %v5225
        %5227 = vmatmul.bf16.gmra.mxu0 %v5136
        %v5228 = vpop.f32.mrf.mxu0
        %v5229 = vadd.f32 %v5139, %v5228
        %v5230 = vpop.f32.mrf.mxu0
        %v5231 = vadd.f32 %v5139, %v5230
        %5232 = vmatmul.bf16.gmra.mxu0 %v5137
        %v5233 = vpop.f32.mrf.mxu0
        %v5234 = vadd.f32 %v5139, %v5233
        %v5235 = vpop.f32.mrf.mxu0
        %v5236 = vadd.f32 %v5139, %v5235
        %5237 = vdwg.mxu0
        %v5238 = vpack.c.bf16 %v4785, %v4783
        %v5239 = vpack.c.bf16 %v4786, %v4784
        %v5240 = vpack.c.bf16 %v4789, %v4787
        %v5241 = vpack.c.bf16 %v4790, %v4788
        %v5242 = vpack.c.bf16 %v4793, %v4791
        %v5243 = vpack.c.bf16 %v4794, %v4792
        %v5244 = vpack.c.bf16 %v4797, %v4795
        %v5245 = vpack.c.bf16 %v4798, %v4796
        %v5246 = vpack.c.bf16 %v4801, %v4799
        %v5247 = vpack.c.bf16 %v4802, %v4800
        %v5248 = vpack.c.bf16 %v4805, %v4803
        %v5249 = vpack.c.bf16 %v4806, %v4804
        %v5250 = vpack.c.bf16 %v4809, %v4807
        %v5251 = vpack.c.bf16 %v4810, %v4808
        %v5252 = vpack.c.bf16 %v4813, %v4811
        %v5253 = vpack.c.bf16 %v4814, %v4812
        %s5254 = scalar_lea.vmem [#allocation14], 512
        %v5255 = vld [vmem:[%s5254] sm:$0xf]
        %v5256 = vld [vmem:[%s5254 + $0x4] sm:$0xf]
        %v5257 = vld [vmem:[%s5254 + $0x8] sm:$0xf]
        %v5258 = vld [vmem:[%s5254 + $0xc] sm:$0xf]
        %v5259 = vld [vmem:[%s5254 + $0x10] sm:$0xf]
        %v5260 = vld [vmem:[%s5254 + $0x14] sm:$0xf]
        %v5261 = vld [vmem:[%s5254 + $0x18] sm:$0xf]
        %v5262 = vld [vmem:[%s5254 + $0x1c] sm:$0xf]
        %v5263 = vld [vmem:[%s5254 + $0x20] sm:$0xf]
        %v5264 = vld [vmem:[%s5254 + $0x24] sm:$0xf]
        %v5265 = vld [vmem:[%s5254 + $0x28] sm:$0xf]
        %v5266 = vld [vmem:[%s5254 + $0x2c] sm:$0xf]
        %v5267 = vld [vmem:[%s5254 + $0x30] sm:$0xf]
        %v5268 = vld [vmem:[%s5254 + $0x34] sm:$0xf]
        %v5269 = vld [vmem:[%s5254 + $0x38] sm:$0xf]
        %v5270 = vld [vmem:[%s5254 + $0x3c] sm:$0xf]
        %v5271 = vld [vmem:[%s5254 + $0x40] sm:$0xf]
        %v5272 = vld [vmem:[%s5254 + $0x44] sm:$0xf]
        %v5273 = vld [vmem:[%s5254 + $0x48] sm:$0xf]
        %v5274 = vld [vmem:[%s5254 + $0x4c] sm:$0xf]
        %v5275 = vld [vmem:[%s5254 + $0x50] sm:$0xf]
        %v5276 = vld [vmem:[%s5254 + $0x54] sm:$0xf]
        %v5277 = vld [vmem:[%s5254 + $0x58] sm:$0xf]
        %v5278 = vld [vmem:[%s5254 + $0x5c] sm:$0xf]
        %v5279 = vld [vmem:[%s5254 + $0x60] sm:$0xf]
        %v5280 = vld [vmem:[%s5254 + $0x64] sm:$0xf]
        %v5281 = vld [vmem:[%s5254 + $0x68] sm:$0xf]
        %v5282 = vld [vmem:[%s5254 + $0x6c] sm:$0xf]
        %v5283 = vld [vmem:[%s5254 + $0x70] sm:$0xf]
        %v5284 = vld [vmem:[%s5254 + $0x74] sm:$0xf]
        %v5285 = vld [vmem:[%s5254 + $0x78] sm:$0xf]
        %v5286 = vld [vmem:[%s5254 + $0x7c] sm:$0xf]
        %v5319 = vunpack.c.l.b16 %v5255
        %v5320 = vunpack.c.l.b16 %v5256
        %v5321 = vunpack.c.l.b16 %v5257
        %v5322 = vunpack.c.l.b16 %v5258
        %v5323 = vunpack.c.l.b16 %v5259
        %v5324 = vunpack.c.l.b16 %v5260
        %v5325 = vunpack.c.l.b16 %v5261
        %v5326 = vunpack.c.l.b16 %v5262
        %v5327 = vunpack.c.l.b16 %v5263
        %v5328 = vunpack.c.l.b16 %v5264
        %v5329 = vunpack.c.l.b16 %v5265
        %v5330 = vunpack.c.l.b16 %v5266
        %v5331 = vunpack.c.l.b16 %v5267
        %v5332 = vunpack.c.l.b16 %v5268
        %v5333 = vunpack.c.l.b16 %v5269
        %v5334 = vunpack.c.l.b16 %v5270
        %v5335 = vunpack.c.l.b16 %v5271
        %v5336 = vunpack.c.l.b16 %v5272
        %v5337 = vunpack.c.l.b16 %v5273
        %v5338 = vunpack.c.l.b16 %v5274
        %v5339 = vunpack.c.l.b16 %v5275
        %v5340 = vunpack.c.l.b16 %v5276
        %v5341 = vunpack.c.l.b16 %v5277
        %v5342 = vunpack.c.l.b16 %v5278
        %v5343 = vunpack.c.l.b16 %v5279
        %v5344 = vunpack.c.l.b16 %v5280
        %v5345 = vunpack.c.l.b16 %v5281
        %v5346 = vunpack.c.l.b16 %v5282
        %v5347 = vunpack.c.l.b16 %v5283
        %v5348 = vunpack.c.l.b16 %v5284
        %v5349 = vunpack.c.l.b16 %v5285
        %v5350 = vunpack.c.l.b16 %v5286
        %v5351 = vpack.c.b16 %v5320, %v5319
        %v5352 = vpack.c.b16 %v5322, %v5321
        %v5353 = vpack.c.b16 %v5324, %v5323
        %v5354 = vpack.c.b16 %v5326, %v5325
        %v5355 = vpack.c.b16 %v5328, %v5327
        %v5356 = vpack.c.b16 %v5330, %v5329
        %v5357 = vpack.c.b16 %v5332, %v5331
        %v5358 = vpack.c.b16 %v5334, %v5333
        %v5359 = vpack.c.b16 %v5336, %v5335
        %v5360 = vpack.c.b16 %v5338, %v5337
        %v5361 = vpack.c.b16 %v5340, %v5339
        %v5362 = vpack.c.b16 %v5342, %v5341
        %v5363 = vpack.c.b16 %v5344, %v5343
        %v5364 = vpack.c.b16 %v5346, %v5345
        %v5365 = vpack.c.b16 %v5348, %v5347
        %v5366 = vpack.c.b16 %v5350, %v5349
        %5383 = vmatpush.bf16.msra.mxu0 %v5358
        %5384 = vmatpush.bf16.msra.mxu0 %v5357
        %5385 = vmatpush.bf16.msra.mxu0 %v5356
        %5386 = vmatpush.bf16.msra.mxu0 %v5355
        %5387 = vmatpush.bf16.msra.mxu0 %v5354
        %5388 = vmatpush.bf16.msra.mxu0 %v5353
        %5389 = vmatpush.bf16.msra.mxu0 %v5352
        %5390 = vmatpush.bf16.msra.mxu0 %v5351
        %5391 = vmatmul.bf16.gmra.mxu0 %v5238
        %v5392 = vpop.f32.mrf.mxu0
        %v5393 = vadd.f32 %v5199, %v5392
        %v5394 = vpop.f32.mrf.mxu0
        %v5395 = vadd.f32 %v5201, %v5394
        %5396 = vmatmul.bf16.gmra.mxu0 %v5240
        %v5397 = vpop.f32.mrf.mxu0
        %v5398 = vadd.f32 %v5204, %v5397
        %v5399 = vpop.f32.mrf.mxu0
        %v5400 = vadd.f32 %v5206, %v5399
        %5401 = vmatmul.bf16.gmra.mxu0 %v5242
        %v5402 = vpop.f32.mrf.mxu0
        %v5403 = vadd.f32 %v5209, %v5402
        %v5404 = vpop.f32.mrf.mxu0
        %v5405 = vadd.f32 %v5211, %v5404
        %5406 = vmatmul.bf16.gmra.mxu0 %v5244
        %v5407 = vpop.f32.mrf.mxu0
        %v5408 = vadd.f32 %v5214, %v5407
        %v5409 = vpop.f32.mrf.mxu0
        %v5410 = vadd.f32 %v5216, %v5409
        %5411 = vmatmul.bf16.gmra.mxu0 %v5246
        %v5412 = vpop.f32.mrf.mxu0
        %v5413 = vadd.f32 %v5219, %v5412
        %v5414 = vpop.f32.mrf.mxu0
        %v5415 = vadd.f32 %v5221, %v5414
        %5416 = vmatmul.bf16.gmra.mxu0 %v5248
        %v5417 = vpop.f32.mrf.mxu0
        %v5418 = vadd.f32 %v5224, %v5417
        %v5419 = vpop.f32.mrf.mxu0
        %v5420 = vadd.f32 %v5226, %v5419
        %5421 = vmatmul.bf16.gmra.mxu0 %v5250
        %v5422 = vpop.f32.mrf.mxu0
        %v5423 = vadd.f32 %v5229, %v5422
        %v5424 = vpop.f32.mrf.mxu0
        %v5425 = vadd.f32 %v5231, %v5424
        %5426 = vmatmul.bf16.gmra.mxu0 %v5252
        %v5427 = vpop.f32.mrf.mxu0
        %v5428 = vadd.f32 %v5234, %v5427
        %v5429 = vpop.f32.mrf.mxu0
        %v5430 = vadd.f32 %v5236, %v5429
        %5431 = vdwg.mxu0
        %5432 = vmatpush.bf16.msra.mxu0 %v5366
        %5433 = vmatpush.bf16.msra.mxu0 %v5365
        %5434 = vmatpush.bf16.msra.mxu0 %v5364
        %5435 = vmatpush.bf16.msra.mxu0 %v5363
        %5436 = vmatpush.bf16.msra.mxu0 %v5362
        %5437 = vmatpush.bf16.msra.mxu0 %v5361
        %5438 = vmatpush.bf16.msra.mxu0 %v5360
        %5439 = vmatpush.bf16.msra.mxu0 %v5359
        %5440 = vmatmul.bf16.gmra.mxu0 %v5239
        %v5441 = vpop.f32.mrf.mxu0
        %v5442 = vadd.f32 %v5393, %v5441
        %v5443 = vpop.f32.mrf.mxu0
        %v5444 = vadd.f32 %v5395, %v5443
        %5445 = vmatmul.bf16.gmra.mxu0 %v5241
        %v5446 = vpop.f32.mrf.mxu0
        %v5447 = vadd.f32 %v5398, %v5446
        %v5448 = vpop.f32.mrf.mxu0
        %v5449 = vadd.f32 %v5400, %v5448
        %5450 = vmatmul.bf16.gmra.mxu0 %v5243
        %v5451 = vpop.f32.mrf.mxu0
        %v5452 = vadd.f32 %v5403, %v5451
        %v5453 = vpop.f32.mrf.mxu0
        %v5454 = vadd.f32 %v5405, %v5453
        %5455 = vmatmul.bf16.gmra.mxu0 %v5245
        %v5456 = vpop.f32.mrf.mxu0
        %v5457 = vadd.f32 %v5408, %v5456
        %v5458 = vpop.f32.mrf.mxu0
        %v5459 = vadd.f32 %v5410, %v5458
        %5460 = vmatmul.bf16.gmra.mxu0 %v5247
        %v5461 = vpop.f32.mrf.mxu0
        %v5462 = vadd.f32 %v5413, %v5461
        %v5463 = vpop.f32.mrf.mxu0
        %v5464 = vadd.f32 %v5415, %v5463
        %5465 = vmatmul.bf16.gmra.mxu0 %v5249
        %v5466 = vpop.f32.mrf.mxu0
        %v5467 = vadd.f32 %v5418, %v5466
        %v5468 = vpop.f32.mrf.mxu0
        %v5469 = vadd.f32 %v5420, %v5468
        %5470 = vmatmul.bf16.gmra.mxu0 %v5251
        %v5471 = vpop.f32.mrf.mxu0
        %v5472 = vadd.f32 %v5423, %v5471
        %v5473 = vpop.f32.mrf.mxu0
        %v5474 = vadd.f32 %v5425, %v5473
        %5475 = vmatmul.bf16.gmra.mxu0 %v5253
        %v5476 = vpop.f32.mrf.mxu0
        %v5477 = vadd.f32 %v5428, %v5476
        %v5478 = vpop.f32.mrf.mxu0
        %v5479 = vadd.f32 %v5430, %v5478
        %5480 = vdwg.mxu0
        %v5481 = vld [vmem:[%s8] sm:$0xf]
        %v5482 = vld [vmem:[%s8 + $0x4] sm:$0xf]
        %v5483 = vld [vmem:[%s8 + $0x8] sm:$0xf]
        %v5484 = vld [vmem:[%s8 + $0xc] sm:$0xf]
        %v5485 = vld [vmem:[%s8 + $0x10] sm:$0xf]
        %v5486 = vld [vmem:[%s8 + $0x14] sm:$0xf]
        %v5487 = vld [vmem:[%s8 + $0x18] sm:$0xf]
        %v5488 = vld [vmem:[%s8 + $0x1c] sm:$0xf]
        %v5489 = vld [vmem:[%s8 + $0x20] sm:$0xf]
        %v5490 = vld [vmem:[%s8 + $0x24] sm:$0xf]
        %v5491 = vld [vmem:[%s8 + $0x28] sm:$0xf]
        %v5492 = vld [vmem:[%s8 + $0x2c] sm:$0xf]
        %v5493 = vld [vmem:[%s8 + $0x30] sm:$0xf]
        %v5494 = vld [vmem:[%s8 + $0x34] sm:$0xf]
        %v5495 = vld [vmem:[%s8 + $0x38] sm:$0xf]
        %v5496 = vld [vmem:[%s8 + $0x3c] sm:$0xf]
        %v5497 = vld [vmem:[%s9] sm:$0x1]
        %v5498 = vpack.c.bf16 %v5444, %v5442
        %v5499 = vpack.c.bf16 %v5449, %v5447
        %v5500 = vpack.c.bf16 %v5454, %v5452
        %v5501 = vpack.c.bf16 %v5459, %v5457
        %v5502 = vpack.c.bf16 %v5464, %v5462
        %v5503 = vpack.c.bf16 %v5469, %v5467
        %v5504 = vpack.c.bf16 %v5474, %v5472
        %v5505 = vpack.c.bf16 %v5479, %v5477
        %v5507 = vperm.slane %v5497, 0
        %v5525 = vunpack.c.l.b16 %v5481
        %v5526 = vunpack.c.l.b16 %v5482
        %v5527 = vunpack.c.l.b16 %v5483
        %v5528 = vunpack.c.l.b16 %v5484
        %v5529 = vunpack.c.l.b16 %v5485
        %v5530 = vunpack.c.l.b16 %v5486
        %v5531 = vunpack.c.l.b16 %v5487
        %v5532 = vunpack.c.l.b16 %v5488
        %v5533 = vunpack.c.l.b16 %v5489
        %v5534 = vunpack.c.l.b16 %v5490
        %v5535 = vunpack.c.l.b16 %v5491
        %v5536 = vunpack.c.l.b16 %v5492
        %v5537 = vunpack.c.l.b16 %v5493
        %v5538 = vunpack.c.l.b16 %v5494
        %v5539 = vunpack.c.l.b16 %v5495
        %v5540 = vunpack.c.l.b16 %v5496
        %v5541 = vpack.c.b16 %v5526, %v5525
        %v5542 = vpack.c.b16 %v5528, %v5527
        %v5543 = vpack.c.b16 %v5530, %v5529
        %v5544 = vpack.c.b16 %v5532, %v5531
        %v5545 = vpack.c.b16 %v5534, %v5533
        %v5546 = vpack.c.b16 %v5536, %v5535
        %v5547 = vpack.c.b16 %v5538, %v5537
        %v5548 = vpack.c.b16 %v5540, %v5539
        %5557 = vmatpush.bf16.msra.mxu0 %v5548
        %5558 = vmatpush.bf16.msra.mxu0 %v5547
        %5559 = vmatpush.bf16.msra.mxu0 %v5546
        %5560 = vmatpush.bf16.msra.mxu0 %v5545
        %5561 = vmatpush.bf16.msra.mxu0 %v5544
        %5562 = vmatpush.bf16.msra.mxu0 %v5543
        %5563 = vmatpush.bf16.msra.mxu0 %v5542
        %5564 = vmatpush.bf16.msra.mxu0 %v5541
        %5565 = vmatmul.bf16.gmra.mxu0 %v5498
        %v5566 = vpop.f32.mrf.mxu0
        %v5567 = vadd.f32 %v5507, %v5566
        %v5568 = vpop.f32.mrf.mxu0
        %v5569 = vadd.f32 %v5507, %v5568
        %5570 = vmatmul.bf16.gmra.mxu0 %v5499
        %v5571 = vpop.f32.mrf.mxu0
        %v5572 = vadd.f32 %v5507, %v5571
        %v5573 = vpop.f32.mrf.mxu0
        %v5574 = vadd.f32 %v5507, %v5573
        %5575 = vmatmul.bf16.gmra.mxu0 %v5500
        %v5576 = vpop.f32.mrf.mxu0
        %v5577 = vadd.f32 %v5507, %v5576
        %v5578 = vpop.f32.mrf.mxu0
        %v5579 = vadd.f32 %v5507, %v5578
        %5580 = vmatmul.bf16.gmra.mxu0 %v5501
        %v5581 = vpop.f32.mrf.mxu0
        %v5582 = vadd.f32 %v5507, %v5581
        %v5583 = vpop.f32.mrf.mxu0
        %v5584 = vadd.f32 %v5507, %v5583
        %5585 = vmatmul.bf16.gmra.mxu0 %v5502
        %v5586 = vpop.f32.mrf.mxu0
        %v5587 = vadd.f32 %v5507, %v5586
        %v5588 = vpop.f32.mrf.mxu0
        %v5589 = vadd.f32 %v5507, %v5588
        %5590 = vmatmul.bf16.gmra.mxu0 %v5503
        %v5591 = vpop.f32.mrf.mxu0
        %v5592 = vadd.f32 %v5507, %v5591
        %v5593 = vpop.f32.mrf.mxu0
        %v5594 = vadd.f32 %v5507, %v5593
        %5595 = vmatmul.bf16.gmra.mxu0 %v5504
        %v5596 = vpop.f32.mrf.mxu0
        %v5597 = vadd.f32 %v5507, %v5596
        %v5598 = vpop.f32.mrf.mxu0
        %v5599 = vadd.f32 %v5507, %v5598
        %5600 = vmatmul.bf16.gmra.mxu0 %v5505
        %v5601 = vpop.f32.mrf.mxu0
        %v5602 = vadd.f32 %v5507, %v5601
        %v5603 = vpop.f32.mrf.mxu0
        %v5604 = vadd.f32 %v5507, %v5603
        %5605 = vdwg.mxu0
        %v5606 = vpack.c.bf16 %v5569, %v5567
        %v5607 = vpack.c.bf16 %v5574, %v5572
        %v5608 = vpack.c.bf16 %v5579, %v5577
        %v5609 = vpack.c.bf16 %v5584, %v5582
        %v5610 = vpack.c.bf16 %v5589, %v5587
        %v5611 = vpack.c.bf16 %v5594, %v5592
        %v5612 = vpack.c.bf16 %v5599, %v5597
        %v5613 = vpack.c.bf16 %v5604, %v5602
        %v5614 = vld [vmem:[#allocation5] sm:$0xff]
        %v5615 = vld [vmem:[#allocation5 + $0x8] sm:$0xff]
        %v5616 = vld [vmem:[#allocation5 + $0x10] sm:$0xff]
        %v5617 = vld [vmem:[#allocation5 + $0x18] sm:$0xff]
        %v5618 = vld [vmem:[#allocation5 + $0x20] sm:$0xff]
        %v5619 = vld [vmem:[#allocation5 + $0x28] sm:$0xff]
        %v5620 = vld [vmem:[#allocation5 + $0x30] sm:$0xff]
        %v5621 = vld [vmem:[#allocation5 + $0x38] sm:$0xff]
        %v5622 = vld [vmem:[#allocation5 + $0x40] sm:$0xff]
        %v5623 = vld [vmem:[#allocation5 + $0x48] sm:$0xff]
        %v5624 = vld [vmem:[#allocation5 + $0x50] sm:$0xff]
        %v5625 = vld [vmem:[#allocation5 + $0x58] sm:$0xff]
        %v5626 = vld [vmem:[#allocation5 + $0x60] sm:$0xff]
        %v5627 = vld [vmem:[#allocation5 + $0x68] sm:$0xff]
        %v5628 = vld [vmem:[#allocation5 + $0x70] sm:$0xff]
        %v5629 = vld [vmem:[#allocation5 + $0x78] sm:$0xff]
        %5630 = vxpose.xlu0.c.b16.start [1/8] %v5606, 128
        %5631 = vxpose.xlu0.c.b16.cont [2/8] %v5607, 128
        %5632 = vxpose.xlu0.c.b16.cont [3/8] %v5608, 128
        %5633 = vxpose.xlu0.c.b16.cont [4/8] %v5609, 128
        %5634 = vxpose.xlu0.c.b16.cont [5/8] %v5610, 128
        %5635 = vxpose.xlu0.c.b16.cont [6/8] %v5611, 128
        %5636 = vxpose.xlu0.c.b16.cont [7/8] %v5612, 128
        %5637 = vxpose.xlu0.c.b16.end [8/8] %v5613, 128
        %v5638 = vpop.trf.xlu0
        %v5639 = vpop.trf.xlu0
        %v5640 = vpop.trf.xlu0
        %v5641 = vpop.trf.xlu0
        %v5642 = vpop.trf.xlu0
        %v5643 = vpop.trf.xlu0
        %v5644 = vpop.trf.xlu0
        %v5645 = vpop.trf.xlu0
        %v5662 = vunpack.c.l.b16 %v5614
        %v5663 = vunpack.c.h.b16 %v5614
        %v5664 = vunpack.c.l.b16 %v5615
        %v5665 = vunpack.c.h.b16 %v5615
        %v5666 = vunpack.c.l.b16 %v5616
        %v5667 = vunpack.c.h.b16 %v5616
        %v5668 = vunpack.c.l.b16 %v5617
        %v5669 = vunpack.c.h.b16 %v5617
        %v5670 = vunpack.c.l.b16 %v5618
        %v5671 = vunpack.c.h.b16 %v5618
        %v5672 = vunpack.c.l.b16 %v5619
        %v5673 = vunpack.c.h.b16 %v5619
        %v5674 = vunpack.c.l.b16 %v5620
        %v5675 = vunpack.c.h.b16 %v5620
        %v5676 = vunpack.c.l.b16 %v5621
        %v5677 = vunpack.c.h.b16 %v5621
        %v5678 = vunpack.c.l.b16 %v5622
        %v5679 = vunpack.c.h.b16 %v5622
        %v5680 = vunpack.c.l.b16 %v5623
        %v5681 = vunpack.c.h.b16 %v5623
        %v5682 = vunpack.c.l.b16 %v5624
        %v5683 = vunpack.c.h.b16 %v5624
        %v5684 = vunpack.c.l.b16 %v5625
        %v5685 = vunpack.c.h.b16 %v5625
        %v5686 = vunpack.c.l.b16 %v5626
        %v5687 = vunpack.c.h.b16 %v5626
        %v5688 = vunpack.c.l.b16 %v5627
        %v5689 = vunpack.c.h.b16 %v5627
        %v5690 = vunpack.c.l.b16 %v5628
        %v5691 = vunpack.c.h.b16 %v5628
        %v5692 = vunpack.c.l.b16 %v5629
        %v5693 = vunpack.c.h.b16 %v5629
        %v5694 = vpack.c.b16 %v5664, %v5662
        %v5695 = vpack.c.b16 %v5665, %v5663
        %v5696 = vpack.c.b16 %v5668, %v5666
        %v5697 = vpack.c.b16 %v5669, %v5667
        %v5698 = vpack.c.b16 %v5672, %v5670
        %v5699 = vpack.c.b16 %v5673, %v5671
        %v5700 = vpack.c.b16 %v5676, %v5674
        %v5701 = vpack.c.b16 %v5677, %v5675
        %v5702 = vpack.c.b16 %v5680, %v5678
        %v5703 = vpack.c.b16 %v5681, %v5679
        %v5704 = vpack.c.b16 %v5684, %v5682
        %v5705 = vpack.c.b16 %v5685, %v5683
        %v5706 = vpack.c.b16 %v5688, %v5686
        %v5707 = vpack.c.b16 %v5689, %v5687
        %v5708 = vpack.c.b16 %v5692, %v5690
        %v5709 = vpack.c.b16 %v5693, %v5691
        %5726 = vmatpush.bf16.msra.mxu0 %v5708
        %5727 = vmatpush.bf16.msra.mxu0 %v5706
        %5728 = vmatpush.bf16.msra.mxu0 %v5704
        %5729 = vmatpush.bf16.msra.mxu0 %v5702
        %5730 = vmatpush.bf16.msra.mxu0 %v5700
        %5731 = vmatpush.bf16.msra.mxu0 %v5698
        %5732 = vmatpush.bf16.msra.mxu0 %v5696
        %5733 = vmatpush.bf16.msra.mxu0 %v5694
        %5734 = vmatmul.bf16.gmra.mxu0 %v5638
        %v5735 = vpop.f32.mrf.mxu0
        %v5736 = vadd.f32 0.0, %v5735
        %v5737 = vpop.f32.mrf.mxu0
        %v5738 = vadd.f32 0.0, %v5737
        %5739 = vmatmul.bf16.gmra.mxu0 %v5639
        %v5740 = vpop.f32.mrf.mxu0
        %v5741 = vadd.f32 0.0, %v5740
        %v5742 = vpop.f32.mrf.mxu0
        %v5743 = vadd.f32 0.0, %v5742
        %5744 = vmatmul.bf16.gmra.mxu0 %v5640
        %v5745 = vpop.f32.mrf.mxu0
        %v5746 = vadd.f32 0.0, %v5745
        %v5747 = vpop.f32.mrf.mxu0
        %v5748 = vadd.f32 0.0, %v5747
        %5749 = vmatmul.bf16.gmra.mxu0 %v5641
        %v5750 = vpop.f32.mrf.mxu0
        %v5751 = vadd.f32 0.0, %v5750
        %v5752 = vpop.f32.mrf.mxu0
        %v5753 = vadd.f32 0.0, %v5752
        %5754 = vmatmul.bf16.gmra.mxu0 %v5642
        %v5755 = vpop.f32.mrf.mxu0
        %v5756 = vadd.f32 0.0, %v5755
        %v5757 = vpop.f32.mrf.mxu0
        %v5758 = vadd.f32 0.0, %v5757
        %5759 = vmatmul.bf16.gmra.mxu0 %v5643
        %v5760 = vpop.f32.mrf.mxu0
        %v5761 = vadd.f32 0.0, %v5760
        %v5762 = vpop.f32.mrf.mxu0
        %v5763 = vadd.f32 0.0, %v5762
        %5764 = vmatmul.bf16.gmra.mxu0 %v5644
        %v5765 = vpop.f32.mrf.mxu0
        %v5766 = vadd.f32 0.0, %v5765
        %v5767 = vpop.f32.mrf.mxu0
        %v5768 = vadd.f32 0.0, %v5767
        %5769 = vmatmul.bf16.gmra.mxu0 %v5645
        %v5770 = vpop.f32.mrf.mxu0
        %v5771 = vadd.f32 0.0, %v5770
        %v5772 = vpop.f32.mrf.mxu0
        %v5773 = vadd.f32 0.0, %v5772
        %5774 = vdwg.mxu0
        %5775 = vmatpush.bf16.msra.mxu0 %v5709
        %5776 = vmatpush.bf16.msra.mxu0 %v5707
        %5777 = vmatpush.bf16.msra.mxu0 %v5705
        %5778 = vmatpush.bf16.msra.mxu0 %v5703
        %5779 = vmatpush.bf16.msra.mxu0 %v5701
        %5780 = vmatpush.bf16.msra.mxu0 %v5699
        %5781 = vmatpush.bf16.msra.mxu0 %v5697
        %5782 = vmatpush.bf16.msra.mxu0 %v5695
        %5783 = vmatmul.bf16.gmra.mxu0 %v5638
        %v5784 = vpop.f32.mrf.mxu0
        %v5785 = vadd.f32 0.0, %v5784
        %v5786 = vpop.f32.mrf.mxu0
        %v5787 = vadd.f32 0.0, %v5786
        %5788 = vmatmul.bf16.gmra.mxu0 %v5639
        %v5789 = vpop.f32.mrf.mxu0
        %v5790 = vadd.f32 0.0, %v5789
        %v5791 = vpop.f32.mrf.mxu0
        %v5792 = vadd.f32 0.0, %v5791
        %5793 = vmatmul.bf16.gmra.mxu0 %v5640
        %v5794 = vpop.f32.mrf.mxu0
        %v5795 = vadd.f32 0.0, %v5794
        %v5796 = vpop.f32.mrf.mxu0
        %v5797 = vadd.f32 0.0, %v5796
        %5798 = vmatmul.bf16.gmra.mxu0 %v5641
        %v5799 = vpop.f32.mrf.mxu0
        %v5800 = vadd.f32 0.0, %v5799
        %v5801 = vpop.f32.mrf.mxu0
        %v5802 = vadd.f32 0.0, %v5801
        %5803 = vmatmul.bf16.gmra.mxu0 %v5642
        %v5804 = vpop.f32.mrf.mxu0
        %v5805 = vadd.f32 0.0, %v5804
        %v5806 = vpop.f32.mrf.mxu0
        %v5807 = vadd.f32 0.0, %v5806
        %5808 = vmatmul.bf16.gmra.mxu0 %v5643
        %v5809 = vpop.f32.mrf.mxu0
        %v5810 = vadd.f32 0.0, %v5809
        %v5811 = vpop.f32.mrf.mxu0
        %v5812 = vadd.f32 0.0, %v5811
        %5813 = vmatmul.bf16.gmra.mxu0 %v5644
        %v5814 = vpop.f32.mrf.mxu0
        %v5815 = vadd.f32 0.0, %v5814
        %v5816 = vpop.f32.mrf.mxu0
        %v5817 = vadd.f32 0.0, %v5816
        %5818 = vmatmul.bf16.gmra.mxu0 %v5645
        %v5819 = vpop.f32.mrf.mxu0
        %v5820 = vadd.f32 0.0, %v5819
        %v5821 = vpop.f32.mrf.mxu0
        %v5822 = vadd.f32 0.0, %v5821
        %5823 = vdwg.mxu0
        %5824 = vmatpush.bf16.msra.mxu0 %v5708
        %5825 = vmatpush.bf16.msra.mxu0 %v5706
        %5826 = vmatpush.bf16.msra.mxu0 %v5704
        %5827 = vmatpush.bf16.msra.mxu0 %v5702
        %5828 = vmatpush.bf16.msra.mxu0 %v5700
        %5829 = vmatpush.bf16.msra.mxu0 %v5698
        %5830 = vmatpush.bf16.msra.mxu0 %v5696
        %5831 = vmatpush.bf16.msra.mxu0 %v5694
        %5832 = vmatmul.bf16.gmra.mxu0 1065369472
        %v5833 = vpop.f32.mrf.mxu0
        %v5834 = vadd.f32 0.0, %v5833
        %v5835 = vpop.f32.mrf.mxu0
        %5836 = vdwg.mxu0
        %5837 = vmatpush.bf16.msra.mxu0 %v5709
        %5838 = vmatpush.bf16.msra.mxu0 %v5707
        %5839 = vmatpush.bf16.msra.mxu0 %v5705
        %5840 = vmatpush.bf16.msra.mxu0 %v5703
        %5841 = vmatpush.bf16.msra.mxu0 %v5701
        %5842 = vmatpush.bf16.msra.mxu0 %v5699
        %5843 = vmatpush.bf16.msra.mxu0 %v5697
        %5844 = vmatpush.bf16.msra.mxu0 %v5695
        %5845 = vmatmul.bf16.gmra.mxu0 1065369472
        %v5846 = vpop.f32.mrf.mxu0
        %v5847 = vadd.f32 0.0, %v5846
        %v5848 = vpop.f32.mrf.mxu0
        %5849 = vdwg.mxu0
        %vm5850 = vcmp.gt.f32.partialorder %v5834, 0.0
        %vm5851 = vcmp.gt.f32.partialorder %v5847, 0.0
        %v5852 = vmax.f32 %v5834, 1.0
        %v5853 = vmax.f32 %v5847, 1.0
        %v5854 = vperm.slane %v5852, 0
        %v5855 = vperm.slane %v5853, 0
        %v5856 = vrcp.pop %v5854
        %v5857 = vmul.f32 %v5854, %v5856
        %v5858 = vsub.f32 1.0, %v5857
        %v5859 = vmul.f32 %v5856, %v5858
        %v5860 = vadd.f32 %v5856, %v5859
        %vm5861 = vweird.f32 %v5854
        %vm5862 = vweird.f32 %v5856
        %vm5863 = vmor %vm5861, %vm5862
        %v5864 = vsel %vm5863, %v5856, %v5860
        %v5865 = vand.u32 2147483647, %v5854
        %vm5866 = vcmp.eq.f32.partialorder %v5865, 8.507059e+37
        %v5867 = vand.u32 %v5854, 2147483648
        %v5868 = vor.u32 1.1754944e-38, %v5867
        %v5869 = vsel %vm5866, %v5868, %v5864
        %v5870 = vmul.f32 %v5736, %v5869
        %v5871 = vrcp.pop %v5855
        %v5872 = vmul.f32 %v5855, %v5871
        %v5873 = vsub.f32 1.0, %v5872
        %v5874 = vmul.f32 %v5871, %v5873
        %v5875 = vadd.f32 %v5871, %v5874
        %vm5876 = vweird.f32 %v5855
        %vm5877 = vweird.f32 %v5871
        %vm5878 = vmor %vm5876, %vm5877
        %v5879 = vsel %vm5878, %v5871, %v5875
        %v5880 = vand.u32 2147483647, %v5855
        %vm5881 = vcmp.eq.f32.partialorder %v5880, 8.507059e+37
        %v5882 = vand.u32 %v5855, 2147483648
        %v5883 = vor.u32 1.1754944e-38, %v5882
        %v5884 = vsel %vm5881, %v5883, %v5879
        %v5885 = vmul.f32 %v5785, %v5884
        %v5886 = vmul.f32 %v5738, %v5869
        %v5887 = vmul.f32 %v5787, %v5884
        %v5888 = vmul.f32 %v5741, %v5869
        %v5889 = vmul.f32 %v5790, %v5884
        %v5890 = vmul.f32 %v5743, %v5869
        %v5891 = vmul.f32 %v5792, %v5884
        %v5892 = vmul.f32 %v5746, %v5869
        %v5893 = vmul.f32 %v5795, %v5884
        %v5894 = vmul.f32 %v5748, %v5869
        %v5895 = vmul.f32 %v5797, %v5884
        %v5896 = vmul.f32 %v5751, %v5869
        %v5897 = vmul.f32 %v5800, %v5884
        %v5898 = vmul.f32 %v5753, %v5869
        %v5899 = vmul.f32 %v5802, %v5884
        %v5900 = vmul.f32 %v5756, %v5869
        %v5901 = vmul.f32 %v5805, %v5884
        %v5902 = vmul.f32 %v5758, %v5869
        %v5903 = vmul.f32 %v5807, %v5884
        %v5904 = vmul.f32 %v5761, %v5869
        %v5905 = vmul.f32 %v5810, %v5884
        %v5906 = vmul.f32 %v5763, %v5869
        %v5907 = vmul.f32 %v5812, %v5884
        %v5908 = vmul.f32 %v5766, %v5869
        %v5909 = vmul.f32 %v5815, %v5884
        %v5910 = vmul.f32 %v5768, %v5869
        %v5911 = vmul.f32 %v5817, %v5884
        %v5912 = vmul.f32 %v5771, %v5869
        %v5913 = vmul.f32 %v5820, %v5884
        %v5914 = vmul.f32 %v5773, %v5869
        %v5915 = vmul.f32 %v5822, %v5884
        %v5916 = vsel %vm5850, 1, 0
        %v5917 = vsel %vm5851, 1, 0
        %v5918 = vperm.slane %v5916, 0
        %v5919 = vperm.slane %v5917, 0
        %vm5920 = vcmp.eq.s32.totalorder %v5918, 1
        %vm5921 = vcmp.eq.s32.totalorder %v5919, 1
        %v5922 = vsel %vm5920, %v5870, 0.0
        %v5923 = vsel %vm5921, %v5885, 0.0
        %v5924 = vsel %vm5920, %v5886, 0.0
        %v5925 = vsel %vm5921, %v5887, 0.0
        %v5926 = vsel %vm5920, %v5888, 0.0
        %v5927 = vsel %vm5921, %v5889, 0.0
        %v5928 = vsel %vm5920, %v5890, 0.0
        %v5929 = vsel %vm5921, %v5891, 0.0
        %v5930 = vsel %vm5920, %v5892, 0.0
        %v5931 = vsel %vm5921, %v5893, 0.0
        %v5932 = vsel %vm5920, %v5894, 0.0
        %v5933 = vsel %vm5921, %v5895, 0.0
        %v5934 = vsel %vm5920, %v5896, 0.0
        %v5935 = vsel %vm5921, %v5897, 0.0
        %v5936 = vsel %vm5920, %v5898, 0.0
        %v5937 = vsel %vm5921, %v5899, 0.0
        %v5938 = vsel %vm5920, %v5900, 0.0
        %v5939 = vsel %vm5921, %v5901, 0.0
        %v5940 = vsel %vm5920, %v5902, 0.0
        %v5941 = vsel %vm5921, %v5903, 0.0
        %v5942 = vsel %vm5920, %v5904, 0.0
        %v5943 = vsel %vm5921, %v5905, 0.0
        %v5944 = vsel %vm5920, %v5906, 0.0
        %v5945 = vsel %vm5921, %v5907, 0.0
        %v5946 = vsel %vm5920, %v5908, 0.0
        %v5947 = vsel %vm5921, %v5909, 0.0
        %v5948 = vsel %vm5920, %v5910, 0.0
        %v5949 = vsel %vm5921, %v5911, 0.0
        %v5950 = vsel %vm5920, %v5912, 0.0
        %v5951 = vsel %vm5921, %v5913, 0.0
        %v5952 = vsel %vm5920, %v5914, 0.0
        %v5953 = vsel %vm5921, %v5915, 0.0
        %5954 = vst [vmem:[%s426] sm:$0xff] %v5922
        %5955 = vst [vmem:[%s426 + $0x8] sm:$0xff] %v5923
        %5956 = vst [vmem:[%s426 + $0x10] sm:$0xff] %v5924
        %5957 = vst [vmem:[%s426 + $0x18] sm:$0xff] %v5925
        %5958 = vst [vmem:[%s426 + $0x20] sm:$0xff] %v5926
        %5959 = vst [vmem:[%s426 + $0x28] sm:$0xff] %v5927
        %5960 = vst [vmem:[%s426 + $0x30] sm:$0xff] %v5928
        %5961 = vst [vmem:[%s426 + $0x38] sm:$0xff] %v5929
        %5962 = vst [vmem:[%s426 + $0x40] sm:$0xff] %v5930
        %5963 = vst [vmem:[%s426 + $0x48] sm:$0xff] %v5931
        %5964 = vst [vmem:[%s426 + $0x50] sm:$0xff] %v5932
        %5965 = vst [vmem:[%s426 + $0x58] sm:$0xff] %v5933
        %5966 = vst [vmem:[%s426 + $0x60] sm:$0xff] %v5934
        %5967 = vst [vmem:[%s426 + $0x68] sm:$0xff] %v5935
        %5968 = vst [vmem:[%s426 + $0x70] sm:$0xff] %v5936
        %5969 = vst [vmem:[%s426 + $0x78] sm:$0xff] %v5937
        %5970 = vst [vmem:[%s426 + $0x80] sm:$0xff] %v5938
        %5971 = vst [vmem:[%s426 + $0x88] sm:$0xff] %v5939
        %5972 = vst [vmem:[%s426 + $0x90] sm:$0xff] %v5940
        %5973 = vst [vmem:[%s426 + $0x98] sm:$0xff] %v5941
        %5974 = vst [vmem:[%s426 + $0xa0] sm:$0xff] %v5942
        %5975 = vst [vmem:[%s426 + $0xa8] sm:$0xff] %v5943
        %5976 = vst [vmem:[%s426 + $0xb0] sm:$0xff] %v5944
        %5977 = vst [vmem:[%s426 + $0xb8] sm:$0xff] %v5945
        %5978 = vst [vmem:[%s426 + $0xc0] sm:$0xff] %v5946
        %5979 = vst [vmem:[%s426 + $0xc8] sm:$0xff] %v5947
        %5980 = vst [vmem:[%s426 + $0xd0] sm:$0xff] %v5948
        %5981 = vst [vmem:[%s426 + $0xd8] sm:$0xff] %v5949
        %5982 = vst [vmem:[%s426 + $0xe0] sm:$0xff] %v5950
        %5983 = vst [vmem:[%s426 + $0xe8] sm:$0xff] %v5951
        %5984 = vst [vmem:[%s426 + $0xf0] sm:$0xff] %v5952
        %5985 = vst [vmem:[%s426 + $0xf8] sm:$0xff] %v5953
        %s5986 = sand.u32 %s244, 1
        %s5987 = scalar_lea.sflag [#allocation10], %s5986
        %s5988 = sand.u32 %s244, 1
        %s5989 = smul.addr %s5988, 256
        %s5990 = scalar_lea.vmem [#allocation16], %s5989
        // Predicated region
        $region101: #{tpu_custom_call.1} parent=55 // pred_check
          %p5991 = pneg %p254
        $region102: #{tpu_custom_call.1} parent=55 // pred_check_branch
          %5993 = sbr.rel (%p5991) target = $region104
        $region103: #{tpu_custom_call.1} parent=55 // pred_region
          %5995 = vsyncadd %s5987, 0
          %s5996 = smul.addr %s37, 32
          %s5997 = smul.addr %s5996, 8
          %s5998 = scalar_lea.hbm %s10, %s5997
          %s5999 = sshll.u32 %s5990, 4
          %s6000 = int_to_ptr.vmem [resolvable:$true] %s5999
          %s6001 = sshll.u32 %s5998, 4
          %s6002 = int_to_ptr.hbm [resolvable:$true] %s6001
          %6007 = dma.vmem_to_hbm [thread:$0]  %s6000, 4096, %s6002, %s5987, 256, 256, 16
        $region104: #{tpu_custom_call.1} parent=55 // pred_fallthru
          _
      $region56: #{tpu_custom_call.1} parent=5 // pred_fallthru
        _
      %p6008 = scmp.le.s32.totalorder 2, %s32
      // Predicated region
      $region105: #{tpu_custom_call.1} parent=5 // pred_check
        %p6009 = pneg %p6008
      $region106: #{tpu_custom_call.1} parent=5 // pred_check_branch
        %6011 = sbr.rel (%p6009) target = $region108
      $region107: #{tpu_custom_call.1} parent=5 // pred_region
        %s6012 = ssub.s32 %s32, 2
        // Predicated region
        $region109: #{tpu_custom_call.1} parent=107 // pred_check
          %p6013 = pneg %p260
        $region110: #{tpu_custom_call.1} parent=107 // pred_check_branch
          %6015 = sbr.rel (%p6013) target = $region112
        $region111: #{tpu_custom_call.1} parent=107 // pred_region
          %s6016 = sand.u32 %s245, 1
          %s6017 = scalar_lea.sflag [#allocation10], %s6016
          %s6018 = sand.u32 %s245, 1
          %s6019 = smul.addr %s6018, 256
          %s6020 = scalar_lea.vmem [#allocation16], %s6019
          %6022 = dma.done %s6017, 4096
        $region112: #{tpu_custom_call.1} parent=107 // pred_fallthru
          _
      $region108: #{tpu_custom_call.1} parent=5 // pred_fallthru
        _
    $region6: #{tpu_custom_call.1} parent=1 // loop_footer
      %s36 = sadd.s32 1, %s32
    $region7: #{tpu_custom_call.1} parent=1 // loop_footer_branch
      %31 = sbr.rel target = $region3
    $region8: #{tpu_custom_call.1} parent=1 // loop_exit
      _
    %6023 = vsyncpa [#allocation9], 1
    %s6024 = scalar_lea.sflag [#allocation9], 1
    %6025 = vsyncpa %s6024, 1
    %6026 = vsyncpa [#allocation12], 1
    %6027 = vsyncpa [#allocation15], 1
    %6028 = vsyncpa [#allocation10], 1
    %s6029 = scalar_lea.sflag [#allocation10], 1
    %6030 = vsyncpa %s6029, 1

</llo_original>
